<compile_context>
chip_gen: v6e
topology: v6e:2x2x1
jax: 0.10.0
libtpu: 0.0.40
codegen_flags: <defaults>
</compile_context>

<pallas_src>
import functools

import jax
import jax.numpy as jnp
from jax.experimental import pallas as pl
from jax.experimental.pallas import tpu as pltpu

N_QUERY = 192            # hard-coded in the PyTorch forward (repeat(1, 192, 1))
DIM = 64                 # hard-coded in the PyTorch forward (reshape(B, 64))
RESIZE_HW = (10, 25)     # FeatureResize default
N_KV = RESIZE_HW[0] * RESIZE_HW[1]   # 250


def _attention_kernel(roi_ref, fmap_ref, tq_ref, tkv_ref,
                      wq_ref, bq_ref, wkv_ref, kv_aff_ref,
                      ww_ref, bw_ref, out_ref, *, dim):
    bb = roi_ref.shape[0]
    roi = roi_ref[...]                                      # (Bb, Np, C)  f32
    fm = fmap_ref[...]                                      # (Bb, P, C)   f32

    # f_query: depthwise (groups=Np) Conv1d(k=1) == per-anchor scale/shift,
    # + ReLU, then the broadcast time-token query.  dim**-0.5 is folded into
    # the (Np, C) query instead of the (Np, P) similarity matrix.
    query = jnp.maximum(roi * wq_ref[...] + bq_ref[...], 0.0) + tq_ref[...]
    query = query * (dim ** -0.5)                           # (Bb, Np, C) f32

    # Fused f_key / f_value 1x1 convs: one lane-dense (C, 2C) bf16 matmul on
    # the MXU (f32 accumulation), then a single 128-wide affine carrying the
    # folded BN scale/shift (key half) and the f_value bias (value half).
    # ReLU applies to the key half only (static lane mask), then add the
    # packed [t_key | t_value] time tokens.
    wkv_b = jnp.broadcast_to(wkv_ref[...].astype(jnp.bfloat16),
                             (bb, dim, 2 * dim))
    kv = jnp.einsum('bpc,bcd->bpd', fm.astype(jnp.bfloat16), wkv_b,
                    preferred_element_type=jnp.float32)     # (Bb, P, 2C) f32
    kv = kv * kv_aff_ref[0:1, :] + kv_aff_ref[1:2, :]
    lane = jax.lax.broadcasted_iota(jnp.int32, kv.shape, 2)
    kv = jnp.where(lane < dim, jnp.maximum(kv, 0.0), kv)    # ReLU on key half
    kv = kv + tkv_ref[...]                                  # + [t_key|t_value]
    key = kv[:, :, :dim].astype(jnp.bfloat16)               # (Bb, P, C)
    value = kv[:, :, dim:].astype(jnp.bfloat16)             # (Bb, P, C)

    # attention: sim = (Q * dim^-0.5) K^T ; softmax over keys ; context = P V.
    sim = jnp.einsum('bqc,bkc->bqk', query.astype(jnp.bfloat16), key,
                     preferred_element_type=jnp.float32)    # (Bb, Np, P) f32
    sim = sim - jnp.max(sim, axis=-1, keepdims=True)
    p = jnp.exp(sim)
    inv = pl.reciprocal(jnp.sum(p, axis=-1, keepdims=True), approx=True)
    probs = (p * inv).astype(jnp.bfloat16)
    ctx = jnp.einsum('bqk,bkc->bqc', probs, value,
                     preferred_element_type=jnp.float32)    # (Bb, Np, C) f32

    # self.W: depthwise (groups=Np) Conv1d(k=1) == per-anchor scale/shift.
    out_ref[...] = ctx * ww_ref[...] + bw_ref[...]


def _pick_block_batch(B, target=8):
    """Largest divisor of B that is <= target while (for B >= 2) keeping the
    grid length >= 2 so the "parallel" batch axis can be sharded across v7x's
    two TensorCores (v5e/v6e have one TC and are indifferent)."""
    bb = max(1, min(target, B // 2 if B >= 2 else B))
    while B % bb:
        bb -= 1
    return bb


def anchor_vec_fmap_attention(roi, fmap, time_token, params, *, block_batch=None):
    """roi: (B, Np, C) f32, fmap: (B, C, H, W) f32 (NCHW), time_token: (B, C) f32."""
    B, Np, C = roi.shape
    H, W = fmap.shape[2], fmap.shape[3]
    assert Np == N_QUERY and C == DIM and fmap.shape[1] == C

    bb = _pick_block_batch(B) if block_batch is None else block_batch
    assert B % bb == 0

    # FeatureResize: F.interpolate(mode='nearest') to (10, 25), then flatten(2).
    # The 1x1 convs / BN / ReLU are pointwise in space, so resizing first is exact.
    h_idx = (jnp.arange(RESIZE_HW[0]) * H) // RESIZE_HW[0]
    w_idx = (jnp.arange(RESIZE_HW[1]) * W) // RESIZE_HW[1]
    fmap_rs = fmap[:, :, h_idx, :][:, :, :, w_idx].reshape(B, C, N_KV)
    fmap_rs = jnp.transpose(fmap_rs, (0, 2, 1))               # (B, P, C)

    # Tiny time-token projections (Conv1d(64,64,k=1) on a length-1 seq == matmul).
    t_query = jax.nn.relu(time_token @ params['w_tq'].T + params['b_tq'])
    t_key = jax.nn.relu(time_token @ params['w_tk'].T + params['b_tk'])
    t_value = jax.nn.relu(time_token @ params['w_tv'].T + params['b_tv'])
    t_query = t_query.reshape(B, 1, C)
    t_kv = jnp.concatenate([t_key, t_value], axis=-1).reshape(B, 1, 2 * C)

    # Fused key/value projection: kv = fm @ [wk^T | wv^T]; then one 128-wide
    # affine  kv * [bn_scale | 1] + [bn_shift | bv].
    wkv = jnp.concatenate([params['wk'].T, params['wv'].T], axis=1)      # (C, 2C)
    kv_affine = jnp.stack([
        jnp.concatenate([params['bn_scale'][0], jnp.ones((C,), jnp.float32)]),
        jnp.concatenate([params['bn_shift'][0], params['bv'][0]]),
    ])                                                                   # (2, 2C)

    # Pre-broadcast the depthwise (groups=Np) conv params to full lane width.
    wq = jnp.broadcast_to(params['wq'], (Np, C))
    bq = jnp.broadcast_to(params['bq'], (Np, C))
    ww = jnp.broadcast_to(params['ww'], (Np, C))
    bw = jnp.broadcast_to(params['bw'], (Np, C))

    kernel = functools.partial(_attention_kernel, dim=C)
    grid_spec = pltpu.PrefetchScalarGridSpec(
        num_scalar_prefetch=0,
        grid=(B // bb,),
        in_specs=[
            pl.BlockSpec((bb, Np, C), lambda b: (b, 0, 0)),      # roi
            pl.BlockSpec((bb, N_KV, C), lambda b: (b, 0, 0)),    # resized fmap
            pl.BlockSpec((bb, 1, C), lambda b: (b, 0, 0)),       # t_query
            pl.BlockSpec((bb, 1, 2 * C), lambda b: (b, 0, 0)),   # [t_key | t_value]
            pl.BlockSpec((Np, C), lambda b: (0, 0)),             # wq (depthwise, pre-broadcast)
            pl.BlockSpec((Np, C), lambda b: (0, 0)),             # bq
            pl.BlockSpec((C, 2 * C), lambda b: (0, 0)),          # wkv = [wk^T | wv^T]
            pl.BlockSpec((2, 2 * C), lambda b: (0, 0)),          # kv affine (scale, shift)
            pl.BlockSpec((Np, C), lambda b: (0, 0)),             # ww (self.W weight)
            pl.BlockSpec((Np, C), lambda b: (0, 0)),             # bw (self.W bias)
        ],
        out_specs=pl.BlockSpec((bb, Np, C), lambda b: (b, 0, 0)),
    )
    return pl.pallas_call(
        kernel,
        out_shape=jax.ShapeDtypeStruct((B, Np, C), jnp.float32),
        grid_spec=grid_spec,
        compiler_params=pltpu.CompilerParams(dimension_semantics=("parallel",)),
    )(roi, fmap_rs, t_query, t_kv, wq, bq, wkv, kv_affine, ww, bw)


def make_params(key):
    ks = jax.random.split(key, 18)
    s = 0.05
    p = {}
    # f_query: Conv1d(Np, Np, k=1, groups=Np) + ReLU  -> weight (Np,1,1), bias (Np,)
    p['wq'] = 1.0 + s * jax.random.normal(ks[0], (N_QUERY, 1), jnp.float32)
    p['bq'] = s * jax.random.normal(ks[1], (N_QUERY, 1), jnp.float32)
    # t_query / t_key / t_value: Conv1d(64, 64, k=1) + ReLU
    p['w_tq'] = s * jax.random.normal(ks[2], (DIM, DIM), jnp.float32)
    p['b_tq'] = s * jax.random.normal(ks[3], (DIM,), jnp.float32)
    p['w_tk'] = s * jax.random.normal(ks[4], (DIM, DIM), jnp.float32)
    p['b_tk'] = s * jax.random.normal(ks[5], (DIM,), jnp.float32)
    p['w_tv'] = s * jax.random.normal(ks[6], (DIM, DIM), jnp.float32)
    p['b_tv'] = s * jax.random.normal(ks[7], (DIM,), jnp.float32)
    # f_key: ConvModule(dim, dim, 1, norm=BN) == conv1x1(no bias) -> BN(eval) -> ReLU
    p['wk'] = s * jax.random.normal(ks[8], (DIM, DIM), jnp.float32)
    gamma = 1.0 + 0.1 * jax.random.normal(ks[9], (DIM,), jnp.float32)
    beta = 0.1 * jax.random.normal(ks[10], (DIM,), jnp.float32)
    run_mean = 0.1 * jax.random.normal(ks[11], (DIM,), jnp.float32)
    run_var = jax.random.uniform(ks[12], (DIM,), jnp.float32, 0.5, 1.5)
    bn_scale = gamma / jnp.sqrt(run_var + 1e-5)
    p['bn_scale'] = bn_scale.reshape(1, DIM)
    p['bn_shift'] = (beta - run_mean * bn_scale).reshape(1, DIM)
    # f_value: Conv2d(dim, dim, 1) with bias
    p['wv'] = s * jax.random.normal(ks[13], (DIM, DIM), jnp.float32)
    p['bv'] = s * jax.random.normal(ks[14], (1, DIM), jnp.float32)
    # self.W: Conv1d(Np, Np, k=1, groups=Np).
    # NOTE: the PyTorch module zero-inits W (output would be all zeros); use
    # small nonzero values so the numeric check below is meaningful.
    p['ww'] = s * jax.random.normal(ks[15], (N_QUERY, 1), jnp.float32)
    p['bw'] = s * jax.random.normal(ks[16], (N_QUERY, 1), jnp.float32)
    return p


def reference_forward(roi, fmap, time_token, p):
    """Plain-JAX f32 mirror of the PyTorch forward (conv first, resize after)."""
    B, Np, C = roi.shape
    H, W = fmap.shape[2], fmap.shape[3]
    h_idx = (jnp.arange(RESIZE_HW[0]) * H) // RESIZE_HW[0]
    w_idx = (jnp.arange(RESIZE_HW[1]) * W) // RESIZE_HW[1]

    query = jax.nn.relu(roi * p['wq'][None] + p['bq'][None])
    t_q = jax.nn.relu(time_token @ p['w_tq'].T + p['b_tq'])
    query = query + t_q[:, None, :]

    key = jnp.einsum('oi,bihw->bohw', p['wk'], fmap)
    key = jax.nn.relu(key * p['bn_scale'].reshape(1, C, 1, 1)
                      + p['bn_shift'].reshape(1, C, 1, 1))
    key = key[:, :, h_idx, :][:, :, :, w_idx].reshape(B, C, N_KV)
    t_k = jax.nn.relu(time_token @ p['w_tk'].T + p['b_tk'])
    key = key + t_k[:, :, None]

    value = jnp.einsum('oi,bihw->bohw', p['wv'], fmap) + p['bv'].reshape(1, C, 1, 1)
    value = value[:, :, h_idx, :][:, :, :, w_idx].reshape(B, C, N_KV)
    t_v = jax.nn.relu(time_token @ p['w_tv'].T + p['b_tv'])
    value = value + t_v[:, :, None]
    value = jnp.transpose(value, (0, 2, 1))

    sim = jnp.einsum('bqc,bck->bqk', query, key) * (C ** -0.5)
    sim = jax.nn.softmax(sim, axis=-1)
    ctx = jnp.einsum('bqk,bkc->bqc', sim, value)
    return ctx * p['ww'][None] + p['bw'][None]


if __name__ == "__main__":
    key = jax.random.PRNGKey(0)
    k_roi, k_fmap, k_tt, k_par = jax.random.split(key, 4)

    B, H, W = 8, 16, 20
    roi = jax.random.normal(k_roi, (B, N_QUERY, DIM), jnp.float32)
    fmap = jax.random.normal(k_fmap, (B, DIM, H, W), jnp.float32)
    time_token = jax.random.normal(k_tt, (B, DIM), jnp.float32)
    params = make_params(k_par)

    out = jax.block_until_ready(
        jax.jit(anchor_vec_fmap_attention)(roi, fmap, time_token, params))
    ref = jax.block_until_ready(reference_forward(roi, fmap, time_token, params))

    assert out.shape == (B, N_QUERY, DIM)
    # bf16 MXU operands + approx-reciprocal softmax => looser tolerance vs f32 ref.
    assert jnp.allclose(out, ref, atol=1e-2, rtol=1e-2), (
        float(jnp.max(jnp.abs(out - ref))))
    print("KERNEL_OK")
</pallas_src>

<mosaic_0001>
module attributes {stable_mosaic.version = 11 : i64} {
  func.func @_attention_kernel(%arg0: i32, %arg1: memref<4x192x64xf32, #tpu.memory_space<vmem>>, %arg2: memref<4x250x64xf32, #tpu.memory_space<vmem>>, %arg3: memref<4x1x64xf32, #tpu.memory_space<vmem>>, %arg4: memref<4x1x128xf32, #tpu.memory_space<vmem>>, %arg5: memref<192x64xf32, #tpu.memory_space<vmem>>, %arg6: memref<192x64xf32, #tpu.memory_space<vmem>>, %arg7: memref<64x128xf32, #tpu.memory_space<vmem>>, %arg8: memref<2x128xf32, #tpu.memory_space<vmem>>, %arg9: memref<192x64xf32, #tpu.memory_space<vmem>>, %arg10: memref<192x64xf32, #tpu.memory_space<vmem>>, %arg11: memref<4x192x64xf32, #tpu.memory_space<vmem>>) attributes {dimension_semantics = [#tpu.dimension_semantics<parallel>], iteration_bounds = array<i64: 2>, scalar_prefetch = 0 : i64, scratch_operands = 0 : i64, tpu.core_type = #tpu.core_type<tc>, window_params = [{transform_indices = @transform_0, window_bounds = array<i64: 4, 192, 64>}, {transform_indices = @transform_1, window_bounds = array<i64: 4, 250, 64>}, {transform_indices = @transform_2, window_bounds = array<i64: 4, 1, 64>}, {transform_indices = @transform_3, window_bounds = array<i64: 4, 1, 128>}, {pipeline_mode = #tpu.pipeline_mode<synchronous>, transform_indices = @transform_4, window_bounds = array<i64: 192, 64>}, {pipeline_mode = #tpu.pipeline_mode<synchronous>, transform_indices = @transform_5, window_bounds = array<i64: 192, 64>}, {pipeline_mode = #tpu.pipeline_mode<synchronous>, transform_indices = @transform_6, window_bounds = array<i64: 64, 128>}, {pipeline_mode = #tpu.pipeline_mode<synchronous>, transform_indices = @transform_7, window_bounds = array<i64: 2, 128>}, {pipeline_mode = #tpu.pipeline_mode<synchronous>, transform_indices = @transform_8, window_bounds = array<i64: 192, 64>}, {pipeline_mode = #tpu.pipeline_mode<synchronous>, transform_indices = @transform_9, window_bounds = array<i64: 192, 64>}, {transform_indices = @transform_10, window_bounds = array<i64: 4, 192, 64>}]} {
    %c0 = arith.constant 0 : index
    %c0_0 = arith.constant 0 : index
    %c0_1 = arith.constant 0 : index
    %0 = vector.load %arg1[%c0, %c0_0, %c0_1] : memref<4x192x64xf32, #tpu.memory_space<vmem>>, vector<4x192x64xf32>
    %c0_2 = arith.constant 0 : index
    %c0_3 = arith.constant 0 : index
    %c0_4 = arith.constant 0 : index
    %1 = vector.load %arg2[%c0_2, %c0_3, %c0_4] : memref<4x250x64xf32, #tpu.memory_space<vmem>>, vector<4x250x64xf32>
    %c0_5 = arith.constant 0 : index
    %c0_6 = arith.constant 0 : index
    %2 = vector.load %arg5[%c0_5, %c0_6] : memref<192x64xf32, #tpu.memory_space<vmem>>, vector<192x64xf32>
    %3 = vector.shape_cast %2 : vector<192x64xf32> to vector<1x192x64xf32>
    %4 = vector.broadcast %3 : vector<1x192x64xf32> to vector<4x192x64xf32>
    %5 = arith.mulf %0, %4 : vector<4x192x64xf32>
    %c0_7 = arith.constant 0 : index
    %c0_8 = arith.constant 0 : index
    %6 = vector.load %arg6[%c0_7, %c0_8] : memref<192x64xf32, #tpu.memory_space<vmem>>, vector<192x64xf32>
    %7 = vector.shape_cast %6 : vector<192x64xf32> to vector<1x192x64xf32>
    %8 = vector.broadcast %7 : vector<1x192x64xf32> to vector<4x192x64xf32>
    %9 = arith.addf %5, %8 : vector<4x192x64xf32>
    %cst = arith.constant 0.000000e+00 : f32
    %10 = vector.broadcast %cst : f32 to vector<4x192x64xf32>
    %11 = arith.maximumf %9, %10 : vector<4x192x64xf32>
    %c0_9 = arith.constant 0 : index
    %c0_10 = arith.constant 0 : index
    %c0_11 = arith.constant 0 : index
    %12 = vector.load %arg3[%c0_9, %c0_10, %c0_11] : memref<4x1x64xf32, #tpu.memory_space<vmem>>, vector<4x1x64xf32>
    %13 = vector.broadcast %12 : vector<4x1x64xf32> to vector<4x192x64xf32>
    %14 = arith.addf %11, %13 : vector<4x192x64xf32>
    %cst_12 = arith.constant 1.250000e-01 : f32
    %15 = vector.broadcast %cst_12 : f32 to vector<4x192x64xf32>
    %16 = arith.mulf %14, %15 : vector<4x192x64xf32>
    %c0_13 = arith.constant 0 : index
    %c0_14 = arith.constant 0 : index
    %17 = vector.load %arg7[%c0_13, %c0_14] : memref<64x128xf32, #tpu.memory_space<vmem>>, vector<64x128xf32>
    %18 = arith.truncf %17 : vector<64x128xf32> to vector<64x128xbf16>
    %19 = vector.shape_cast %18 : vector<64x128xbf16> to vector<1x64x128xbf16>
    %20 = vector.broadcast %19 : vector<1x64x128xbf16> to vector<4x64x128xbf16>
    %21 = arith.truncf %1 : vector<4x250x64xf32> to vector<4x250x64xbf16>
    "tpu.trace_start"() <{level = 10 : i32, message = "bpc,bcd->bpd"}> : () -> ()
    %cst_15 = arith.constant dense<0.000000e+00> : vector<4x250x128xf32>
    %22 = tpu.matmul %21, %20, %cst_15 {dimension_numbers = #tpu.dot_dimension_numbers<[2], [1], [1], [2], [0, 0, 0, 1, 1, 2], [0], [0]>} : vector<4x250x64xbf16>, vector<4x64x128xbf16>, vector<4x250x128xf32> -> vector<4x250x128xf32>
    "tpu.trace_stop"() : () -> ()
    %c0_16 = arith.constant 0 : index
    %c0_17 = arith.constant 0 : index
    %23 = vector.load %arg8[%c0_16, %c0_17] : memref<2x128xf32, #tpu.memory_space<vmem>>, vector<1x128xf32>
    %24 = vector.shape_cast %23 : vector<1x128xf32> to vector<1x1x128xf32>
    %25 = vector.broadcast %24 : vector<1x1x128xf32> to vector<4x250x128xf32>
    %26 = arith.mulf %22, %25 : vector<4x250x128xf32>
    %c1 = arith.constant 1 : index
    %c0_18 = arith.constant 0 : index
    %27 = vector.load %arg8[%c1, %c0_18] : memref<2x128xf32, #tpu.memory_space<vmem>>, vector<1x128xf32>
    %28 = vector.shape_cast %27 : vector<1x128xf32> to vector<1x1x128xf32>
    %29 = vector.broadcast %28 : vector<1x1x128xf32> to vector<4x250x128xf32>
    %30 = arith.addf %26, %29 : vector<4x250x128xf32>
    %31 = tpu.iota {dimensions = array<i32: 2>} : vector<4x250x128xi32>
    %c64_i32 = arith.constant 64 : i32
    %32 = vector.broadcast %c64_i32 : i32 to vector<4x250x128xi32>
    %33 = arith.cmpi slt, %31, %32 : vector<4x250x128xi32>
    %cst_19 = arith.constant 0.000000e+00 : f32
    %34 = vector.broadcast %cst_19 : f32 to vector<4x250x128xf32>
    %35 = arith.maximumf %30, %34 : vector<4x250x128xf32>
    %36 = arith.select %33, %35, %30 : vector<4x250x128xi1>, vector<4x250x128xf32>
    %c0_20 = arith.constant 0 : index
    %c0_21 = arith.constant 0 : index
    %c0_22 = arith.constant 0 : index
    %37 = vector.load %arg4[%c0_20, %c0_21, %c0_22] : memref<4x1x128xf32, #tpu.memory_space<vmem>>, vector<4x1x128xf32>
    %38 = vector.broadcast %37 : vector<4x1x128xf32> to vector<4x250x128xf32>
    %39 = arith.addf %36, %38 : vector<4x250x128xf32>
    %40 = vector.extract_strided_slice %39 {offsets = [0, 0, 0], sizes = [4, 250, 64], strides = [1, 1, 1]} : vector<4x250x128xf32> to vector<4x250x64xf32>
    %41 = arith.truncf %40 : vector<4x250x64xf32> to vector<4x250x64xbf16>
    %42 = vector.extract_strided_slice %39 {offsets = [0, 0, 64], sizes = [4, 250, 64], strides = [1, 1, 1]} : vector<4x250x128xf32> to vector<4x250x64xf32>
    %43 = arith.truncf %42 : vector<4x250x64xf32> to vector<4x250x64xbf16>
    %44 = arith.truncf %16 : vector<4x192x64xf32> to vector<4x192x64xbf16>
    "tpu.trace_start"() <{level = 10 : i32, message = "bqc,bkc->bqk"}> : () -> ()
    %cst_23 = arith.constant dense<0.000000e+00> : vector<4x192x250xf32>
    %45 = tpu.matmul %44, %41, %cst_23 {dimension_numbers = #tpu.dot_dimension_numbers<[2], [2], [1], [1], [0, 0, 0, 1, 1, 1], [0], [0]>} : vector<4x192x64xbf16>, vector<4x250x64xbf16>, vector<4x192x250xf32> -> vector<4x192x250xf32>
    "tpu.trace_stop"() : () -> ()
    %cst_24 = arith.constant dense<0xFF800000> : vector<4x192xf32>
    %46 = vector.multi_reduction <maximumf>, %45, %cst_24 [2] : vector<4x192x250xf32> to vector<4x192xf32>
    %47 = vector.shape_cast %46 : vector<4x192xf32> to vector<4x192x1xf32>
    %48 = vector.broadcast %47 : vector<4x192x1xf32> to vector<4x192x250xf32>
    %49 = arith.subf %45, %48 : vector<4x192x250xf32>
    %50 = math.exp %49 : vector<4x192x250xf32>
    %cst_25 = arith.constant dense<0.000000e+00> : vector<4x192xf32>
    %51 = vector.multi_reduction <add>, %50, %cst_25 [2] : vector<4x192x250xf32> to vector<4x192xf32>
    %52 = vector.shape_cast %51 : vector<4x192xf32> to vector<4x192x1xf32>
    %53 = tpu.reciprocal %52 {approx = true} : vector<4x192x1xf32> -> vector<4x192x1xf32>
    %54 = vector.broadcast %53 : vector<4x192x1xf32> to vector<4x192x250xf32>
    %55 = arith.mulf %50, %54 : vector<4x192x250xf32>
    %56 = arith.truncf %55 : vector<4x192x250xf32> to vector<4x192x250xbf16>
    "tpu.trace_start"() <{level = 10 : i32, message = "bqk,bkc->bqc"}> : () -> ()
    %cst_26 = arith.constant dense<0.000000e+00> : vector<4x192x64xf32>
    %57 = tpu.matmul %56, %43, %cst_26 {dimension_numbers = #tpu.dot_dimension_numbers<[2], [1], [1], [2], [0, 0, 0, 1, 1, 2], [0], [0]>} : vector<4x192x250xbf16>, vector<4x250x64xbf16>, vector<4x192x64xf32> -> vector<4x192x64xf32>
    "tpu.trace_stop"() : () -> ()
    %c0_27 = arith.constant 0 : index
    %c0_28 = arith.constant 0 : index
    %58 = vector.load %arg9[%c0_27, %c0_28] : memref<192x64xf32, #tpu.memory_space<vmem>>, vector<192x64xf32>
    %59 = vector.shape_cast %58 : vector<192x64xf32> to vector<1x192x64xf32>
    %60 = vector.broadcast %59 : vector<1x192x64xf32> to vector<4x192x64xf32>
    %61 = arith.mulf %57, %60 : vector<4x192x64xf32>
    %c0_29 = arith.constant 0 : index
    %c0_30 = arith.constant 0 : index
    %62 = vector.load %arg10[%c0_29, %c0_30] : memref<192x64xf32, #tpu.memory_space<vmem>>, vector<192x64xf32>
    %63 = vector.shape_cast %62 : vector<192x64xf32> to vector<1x192x64xf32>
    %64 = vector.broadcast %63 : vector<1x192x64xf32> to vector<4x192x64xf32>
    %65 = arith.addf %61, %64 : vector<4x192x64xf32>
    %c0_31 = arith.constant 0 : index
    %c0_32 = arith.constant 0 : index
    %c0_33 = arith.constant 0 : index
    %66 = vector.load %arg11[%c0_31, %c0_32, %c0_33] : memref<4x192x64xf32, #tpu.memory_space<vmem>>, vector<4x192x64xf32>
    tpu.vector_store %arg11[%c0_31, %c0_32, %c0_33], %65 {strides = array<i32>} : memref<4x192x64xf32, #tpu.memory_space<vmem>>, vector<4x192x64xf32>,
    return
  }
  func.func @transform_0(%arg0: i32) -> (i32, i32, i32) {
    %c0_i32 = arith.constant 0 : i32
    %c0_i32_0 = arith.constant 0 : i32
    %c0_i32_1 = arith.constant 0 : i32
    return %arg0, %c0_i32, %c0_i32_0 : i32, i32, i32
  }
  func.func @transform_1(%arg0: i32) -> (i32, i32, i32) {
    %c0_i32 = arith.constant 0 : i32
    %c0_i32_0 = arith.constant 0 : i32
    %c0_i32_1 = arith.constant 0 : i32
    return %arg0, %c0_i32, %c0_i32_0 : i32, i32, i32
  }
  func.func @transform_2(%arg0: i32) -> (i32, i32, i32) {
    %c0_i32 = arith.constant 0 : i32
    %c0_i32_0 = arith.constant 0 : i32
    %c0_i32_1 = arith.constant 0 : i32
    return %arg0, %c0_i32, %c0_i32_0 : i32, i32, i32
  }
  func.func @transform_3(%arg0: i32) -> (i32, i32, i32) {
    %c0_i32 = arith.constant 0 : i32
    %c0_i32_0 = arith.constant 0 : i32
    %c0_i32_1 = arith.constant 0 : i32
    return %arg0, %c0_i32, %c0_i32_0 : i32, i32, i32
  }
  func.func @transform_4(%arg0: i32) -> (i32, i32) {
    %c0_i32 = arith.constant 0 : i32
    %c0_i32_0 = arith.constant 0 : i32
    %c0_i32_1 = arith.constant 0 : i32
    return %c0_i32, %c0_i32_0 : i32, i32
  }
  func.func @transform_5(%arg0: i32) -> (i32, i32) {
    %c0_i32 = arith.constant 0 : i32
    %c0_i32_0 = arith.constant 0 : i32
    %c0_i32_1 = arith.constant 0 : i32
    return %c0_i32, %c0_i32_0 : i32, i32
  }
  func.func @transform_6(%arg0: i32) -> (i32, i32) {
    %c0_i32 = arith.constant 0 : i32
    %c0_i32_0 = arith.constant 0 : i32
    %c0_i32_1 = arith.constant 0 : i32
    return %c0_i32, %c0_i32_0 : i32, i32
  }
  func.func @transform_7(%arg0: i32) -> (i32, i32) {
    %c0_i32 = arith.constant 0 : i32
    %c0_i32_0 = arith.constant 0 : i32
    %c0_i32_1 = arith.constant 0 : i32
    return %c0_i32, %c0_i32_0 : i32, i32
  }
  func.func @transform_8(%arg0: i32) -> (i32, i32) {
    %c0_i32 = arith.constant 0 : i32
    %c0_i32_0 = arith.constant 0 : i32
    %c0_i32_1 = arith.constant 0 : i32
    return %c0_i32, %c0_i32_0 : i32, i32
  }
  func.func @transform_9(%arg0: i32) -> (i32, i32) {
    %c0_i32 = arith.constant 0 : i32
    %c0_i32_0 = arith.constant 0 : i32
    %c0_i32_1 = arith.constant 0 : i32
    return %c0_i32, %c0_i32_0 : i32, i32
  }
  func.func @transform_10(%arg0: i32) -> (i32, i32, i32) {
    %c0_i32 = arith.constant 0 : i32
    %c0_i32_0 = arith.constant 0 : i32
    %c0_i32_1 = arith.constant 0 : i32
    return %arg0, %c0_i32, %c0_i32_0 : i32, i32, i32
  }
}

</mosaic_0001>

<llo_original>
// kernel: anchor_vec_fmap_attention.1
$region0: #{anchor_vec_fmap_attention.1}
  #allocation0 [shape = 'u32[]', space=smem, size = 0x4, offset = 0x4, fixed_abs, tag = 'smem constant byte address 0x4 - core index']
  #allocation1 [shape = 'u32[144,128]{1,0:T(1,128)}', space=vmem, size = 0x12000, scoped, tag = 'internal scratch']
  %s0 = inlined_call_operand.vmem [shape: f32[8,192,64], index: 0, kind: input, shape index: {}]
  %s1 = inlined_call_operand.vmem [shape: f32[8,250,64], index: 1, kind: input, shape index: {}]
  %s2 = inlined_call_operand.vmem [shape: f32[8,1,64], index: 2, kind: input, shape index: {}]
  %s3 = inlined_call_operand.vmem [shape: f32[8,1,128], index: 3, kind: input, shape index: {}]
  %s4 = inlined_call_operand.vmem [shape: f32[192,64], index: 4, kind: input, shape index: {}]
  %s5 = inlined_call_operand.vmem [shape: f32[192,64], index: 5, kind: input, shape index: {}]
  %s6 = inlined_call_operand.vmem [shape: f32[64,128], index: 6, kind: input, shape index: {}]
  %s7 = inlined_call_operand.vmem [shape: f32[2,128], index: 7, kind: input, shape index: {}]
  %s8 = inlined_call_operand.vmem [shape: f32[192,64], index: 8, kind: input, shape index: {}]
  %s9 = inlined_call_operand.vmem [shape: f32[192,64], index: 9, kind: input, shape index: {}]
  %s10 = inlined_call_operand.vmem [shape: f32[8,192,64], index: 10, kind: output, shape index: {}]
  %s11 = sld [smem:[#allocation0]]
  $region73: #{anchor_vec_fmap_attention.1} parent=0
    _
  %s13 = ssub.s32 1, %s11
  %s14 = scalar_select 0, %s13, %s11
  loop: start=0, step=1, limit=4
  $region2: #{anchor_vec_fmap_attention.1} parent=0 // loop_pre_header
    _
  $region3: #{anchor_vec_fmap_attention.1} parent=0 // loop_header
    %s16 = sphi 0, %s20
    %p17 = scmp.ge.s32.totalorder %s16, 4
    %s26 = sphi 0, %s28
    %s29 = sphi 0, %s26
    %s30 = sphi 0, %s29
    %s46 = sphi 0, %s30
    %s52 = sphi 0, %s54
    %s55 = sphi 0, %s52
    %s56 = sphi 0, %s55
    %s72 = sphi 0, %s56
    %s78 = sphi 0, %s80
    %s81 = sphi 0, %s78
    %s82 = sphi 0, %s81
    %s98 = sphi 0, %s82
    %s104 = sphi 0, %s106
    %s107 = sphi 0, %s104
    %s108 = sphi 0, %s107
    %s124 = sphi 0, %s108
    %s128 = sphi 0, %s128
    %s130 = sphi 0, %s128
    %s131 = sphi 0, %s130
    %s145 = sphi 0, %s131
    %s149 = sphi 0, %s149
    %s151 = sphi 0, %s149
    %s152 = sphi 0, %s151
    %s166 = sphi 0, %s152
    %s170 = sphi 0, %s170
    %s172 = sphi 0, %s170
    %s173 = sphi 0, %s172
    %s187 = sphi 0, %s173
    %s191 = sphi 0, %s191
    %s193 = sphi 0, %s191
    %s194 = sphi 0, %s193
    %s208 = sphi 0, %s194
    %s212 = sphi 0, %s212
    %s214 = sphi 0, %s212
    %s215 = sphi 0, %s214
    %s229 = sphi 0, %s215
    %s233 = sphi 0, %s233
    %s235 = sphi 0, %s233
    %s236 = sphi 0, %s235
    %s250 = sphi 0, %s236
    %s256 = sphi 0, %s258
    %s259 = sphi 0, %s256
    %s260 = sphi 0, %s259
    %s276 = sphi 0, %s260
  $region4: #{anchor_vec_fmap_attention.1} parent=0 // loop_header_branch
    %19 = sbr.rel (%p17) target = $region8
  $region5: #{anchor_vec_fmap_attention.1} parent=0 // loop_body
    %s21 = ssub.s32 %s16, 1
    %s22 = ssub.s32 %s16, 2
    %s23 = sadd.s32 %s16, 1
    %s24 = ssub.s32 %s16, %s23
    %p25 = scmp.eq.s32.totalorder %s24, 0
    %s27 = sadd.s32 %s26, 1
    %s28 = scalar_select %p25, %s26, %s27
    %p31 = pneg %p25
    %p32 = scmp.eq.s32.totalorder %s16, 1
    %p33 = por %p31, %p32
    %p34 = scmp.ne.s32.totalorder %s26, %s29
    %p35 = scmp.eq.s32.totalorder %s16, 0
    %p36 = por %p34, %p35
    %p37 = scmp.ne.s32.totalorder %s26, %s29
    %p38 = scmp.eq.s32.totalorder %s21, 1
    %p39 = por %p37, %p38
    %p40 = scmp.ne.s32.totalorder %s29, %s30
    %p41 = scmp.eq.s32.totalorder %s21, 0
    %p42 = por %p40, %p41
    %p43 = scmp.ne.s32.totalorder %s29, %s30
    %p44 = scmp.eq.s32.totalorder %s22, 1
    %p45 = por %p43, %p44
    %p47 = scmp.ne.s32.totalorder %s30, %s46
    %p48 = scmp.eq.s32.totalorder %s22, 0
    %p49 = por %p47, %p48
    %s50 = ssub.s32 %s16, %s23
    %p51 = scmp.eq.s32.totalorder %s50, 0
    %s53 = sadd.s32 %s52, 1
    %s54 = scalar_select %p51, %s52, %s53
    %p57 = pneg %p51
    %p58 = scmp.eq.s32.totalorder %s16, 1
    %p59 = por %p57, %p58
    %p60 = scmp.ne.s32.totalorder %s52, %s55
    %p61 = scmp.eq.s32.totalorder %s16, 0
    %p62 = por %p60, %p61
    %p63 = scmp.ne.s32.totalorder %s52, %s55
    %p64 = scmp.eq.s32.totalorder %s21, 1
    %p65 = por %p63, %p64
    %p66 = scmp.ne.s32.totalorder %s55, %s56
    %p67 = scmp.eq.s32.totalorder %s21, 0
    %p68 = por %p66, %p67
    %p69 = scmp.ne.s32.totalorder %s55, %s56
    %p70 = scmp.eq.s32.totalorder %s22, 1
    %p71 = por %p69, %p70
    %p73 = scmp.ne.s32.totalorder %s56, %s72
    %p74 = scmp.eq.s32.totalorder %s22, 0
    %p75 = por %p73, %p74
    %s76 = ssub.s32 %s16, %s23
    %p77 = scmp.eq.s32.totalorder %s76, 0
    %s79 = sadd.s32 %s78, 1
    %s80 = scalar_select %p77, %s78, %s79
    %p83 = pneg %p77
    %p84 = scmp.eq.s32.totalorder %s16, 1
    %p85 = por %p83, %p84
    %p86 = scmp.ne.s32.totalorder %s78, %s81
    %p87 = scmp.eq.s32.totalorder %s16, 0
    %p88 = por %p86, %p87
    %p89 = scmp.ne.s32.totalorder %s78, %s81
    %p90 = scmp.eq.s32.totalorder %s21, 1
    %p91 = por %p89, %p90
    %p92 = scmp.ne.s32.totalorder %s81, %s82
    %p93 = scmp.eq.s32.totalorder %s21, 0
    %p94 = por %p92, %p93
    %p95 = scmp.ne.s32.totalorder %s81, %s82
    %p96 = scmp.eq.s32.totalorder %s22, 1
    %p97 = por %p95, %p96
    %p99 = scmp.ne.s32.totalorder %s82, %s98
    %p100 = scmp.eq.s32.totalorder %s22, 0
    %p101 = por %p99, %p100
    %s102 = ssub.s32 %s16, %s23
    %p103 = scmp.eq.s32.totalorder %s102, 0
    %s105 = sadd.s32 %s104, 1
    %s106 = scalar_select %p103, %s104, %s105
    %p109 = pneg %p103
    %p110 = scmp.eq.s32.totalorder %s16, 1
    %p111 = por %p109, %p110
    %p112 = scmp.ne.s32.totalorder %s104, %s107
    %p113 = scmp.eq.s32.totalorder %s16, 0
    %p114 = por %p112, %p113
    %p115 = scmp.ne.s32.totalorder %s104, %s107
    %p116 = scmp.eq.s32.totalorder %s21, 1
    %p117 = por %p115, %p116
    %p118 = scmp.ne.s32.totalorder %s107, %s108
    %p119 = scmp.eq.s32.totalorder %s21, 0
    %p120 = por %p118, %p119
    %p121 = scmp.ne.s32.totalorder %s107, %s108
    %p122 = scmp.eq.s32.totalorder %s22, 1
    %p123 = por %p121, %p122
    %p125 = scmp.ne.s32.totalorder %s108, %s124
    %p126 = scmp.eq.s32.totalorder %s22, 0
    %p127 = por %p125, %p126
    %s129 = sadd.s32 %s128, 1
    %p132 = scmp.eq.s32.totalorder %s16, 1
    %p133 = scmp.ne.s32.totalorder %s128, %s130
    %p134 = scmp.eq.s32.totalorder %s16, 0
    %p135 = por %p133, %p134
    %p136 = scmp.ne.s32.totalorder %s128, %s130
    %p137 = scmp.eq.s32.totalorder %s21, 1
    %p138 = por %p136, %p137
    %p139 = scmp.ne.s32.totalorder %s130, %s131
    %p140 = scmp.eq.s32.totalorder %s21, 0
    %p141 = por %p139, %p140
    %p142 = scmp.ne.s32.totalorder %s130, %s131
    %p143 = scmp.eq.s32.totalorder %s22, 1
    %p144 = por %p142, %p143
    %p146 = scmp.ne.s32.totalorder %s131, %s145
    %p147 = scmp.eq.s32.totalorder %s22, 0
    %p148 = por %p146, %p147
    %s150 = sadd.s32 %s149, 1
    %p153 = scmp.eq.s32.totalorder %s16, 1
    %p154 = scmp.ne.s32.totalorder %s149, %s151
    %p155 = scmp.eq.s32.totalorder %s16, 0
    %p156 = por %p154, %p155
    %p157 = scmp.ne.s32.totalorder %s149, %s151
    %p158 = scmp.eq.s32.totalorder %s21, 1
    %p159 = por %p157, %p158
    %p160 = scmp.ne.s32.totalorder %s151, %s152
    %p161 = scmp.eq.s32.totalorder %s21, 0
    %p162 = por %p160, %p161
    %p163 = scmp.ne.s32.totalorder %s151, %s152
    %p164 = scmp.eq.s32.totalorder %s22, 1
    %p165 = por %p163, %p164
    %p167 = scmp.ne.s32.totalorder %s152, %s166
    %p168 = scmp.eq.s32.totalorder %s22, 0
    %p169 = por %p167, %p168
    %s171 = sadd.s32 %s170, 1
    %p174 = scmp.eq.s32.totalorder %s16, 1
    %p175 = scmp.ne.s32.totalorder %s170, %s172
    %p176 = scmp.eq.s32.totalorder %s16, 0
    %p177 = por %p175, %p176
    %p178 = scmp.ne.s32.totalorder %s170, %s172
    %p179 = scmp.eq.s32.totalorder %s21, 1
    %p180 = por %p178, %p179
    %p181 = scmp.ne.s32.totalorder %s172, %s173
    %p182 = scmp.eq.s32.totalorder %s21, 0
    %p183 = por %p181, %p182
    %p184 = scmp.ne.s32.totalorder %s172, %s173
    %p185 = scmp.eq.s32.totalorder %s22, 1
    %p186 = por %p184, %p185
    %p188 = scmp.ne.s32.totalorder %s173, %s187
    %p189 = scmp.eq.s32.totalorder %s22, 0
    %p190 = por %p188, %p189
    %s192 = sadd.s32 %s191, 1
    %p195 = scmp.eq.s32.totalorder %s16, 1
    %p196 = scmp.ne.s32.totalorder %s191, %s193
    %p197 = scmp.eq.s32.totalorder %s16, 0
    %p198 = por %p196, %p197
    %p199 = scmp.ne.s32.totalorder %s191, %s193
    %p200 = scmp.eq.s32.totalorder %s21, 1
    %p201 = por %p199, %p200
    %p202 = scmp.ne.s32.totalorder %s193, %s194
    %p203 = scmp.eq.s32.totalorder %s21, 0
    %p204 = por %p202, %p203
    %p205 = scmp.ne.s32.totalorder %s193, %s194
    %p206 = scmp.eq.s32.totalorder %s22, 1
    %p207 = por %p205, %p206
    %p209 = scmp.ne.s32.totalorder %s194, %s208
    %p210 = scmp.eq.s32.totalorder %s22, 0
    %p211 = por %p209, %p210
    %s213 = sadd.s32 %s212, 1
    %p216 = scmp.eq.s32.totalorder %s16, 1
    %p217 = scmp.ne.s32.totalorder %s212, %s214
    %p218 = scmp.eq.s32.totalorder %s16, 0
    %p219 = por %p217, %p218
    %p220 = scmp.ne.s32.totalorder %s212, %s214
    %p221 = scmp.eq.s32.totalorder %s21, 1
    %p222 = por %p220, %p221
    %p223 = scmp.ne.s32.totalorder %s214, %s215
    %p224 = scmp.eq.s32.totalorder %s21, 0
    %p225 = por %p223, %p224
    %p226 = scmp.ne.s32.totalorder %s214, %s215
    %p227 = scmp.eq.s32.totalorder %s22, 1
    %p228 = por %p226, %p227
    %p230 = scmp.ne.s32.totalorder %s215, %s229
    %p231 = scmp.eq.s32.totalorder %s22, 0
    %p232 = por %p230, %p231
    %s234 = sadd.s32 %s233, 1
    %p237 = scmp.eq.s32.totalorder %s16, 1
    %p238 = scmp.ne.s32.totalorder %s233, %s235
    %p239 = scmp.eq.s32.totalorder %s16, 0
    %p240 = por %p238, %p239
    %p241 = scmp.ne.s32.totalorder %s233, %s235
    %p242 = scmp.eq.s32.totalorder %s21, 1
    %p243 = por %p241, %p242
    %p244 = scmp.ne.s32.totalorder %s235, %s236
    %p245 = scmp.eq.s32.totalorder %s21, 0
    %p246 = por %p244, %p245
    %p247 = scmp.ne.s32.totalorder %s235, %s236
    %p248 = scmp.eq.s32.totalorder %s22, 1
    %p249 = por %p247, %p248
    %p251 = scmp.ne.s32.totalorder %s236, %s250
    %p252 = scmp.eq.s32.totalorder %s22, 0
    %p253 = por %p251, %p252
    %s254 = ssub.s32 %s16, %s23
    %p255 = scmp.eq.s32.totalorder %s254, 0
    %s257 = sadd.s32 %s256, 1
    %s258 = scalar_select %p255, %s256, %s257
    %p261 = pneg %p255
    %p262 = scmp.eq.s32.totalorder %s16, 1
    %p263 = por %p261, %p262
    %p264 = scmp.ne.s32.totalorder %s256, %s259
    %p265 = scmp.eq.s32.totalorder %s16, 0
    %p266 = por %p264, %p265
    %p267 = scmp.ne.s32.totalorder %s256, %s259
    %p268 = scmp.eq.s32.totalorder %s21, 1
    %p269 = por %p267, %p268
    %p270 = scmp.ne.s32.totalorder %s259, %s260
    %p271 = scmp.eq.s32.totalorder %s21, 0
    %p272 = por %p270, %p271
    %p273 = scmp.ne.s32.totalorder %s259, %s260
    %p274 = scmp.eq.s32.totalorder %s22, 1
    %p275 = por %p273, %p274
    %p277 = scmp.ne.s32.totalorder %s260, %s276
    %p278 = scmp.eq.s32.totalorder %s22, 0
    %p279 = por %p277, %p278
    %p280 = scmp.le.s32.totalorder 1, %s16
    %p281 = scmp.lt.s32.totalorder %s16, 3
    %p282 = pnand %p280, %p281
    %p283 = pneg %p282
    // Predicated region
    $region9: #{anchor_vec_fmap_attention.1} parent=5 // pred_check
      _
    $region10: #{anchor_vec_fmap_attention.1} parent=5 // pred_check_branch
      %285 = sbr.rel (%p282) target = $region12
    $region11: #{anchor_vec_fmap_attention.1} parent=5 // pred_region
      %s286 = ssub.s32 %s16, 1
      // Predicated region
      $region13: #{anchor_vec_fmap_attention.1} parent=11 // pred_check
        %p287 = pneg %p141
      $region14: #{anchor_vec_fmap_attention.1} parent=11 // pred_check_branch
        %289 = sbr.rel (%p287) target = $region16
      $region15: #{anchor_vec_fmap_attention.1} parent=11 // pred_region
        _
      $region16: #{anchor_vec_fmap_attention.1} parent=11 // pred_fallthru
        _
      // Predicated region
      $region17: #{anchor_vec_fmap_attention.1} parent=11 // pred_check
        %p290 = pneg %p162
      $region18: #{anchor_vec_fmap_attention.1} parent=11 // pred_check_branch
        %292 = sbr.rel (%p290) target = $region20
      $region19: #{anchor_vec_fmap_attention.1} parent=11 // pred_region
        _
      $region20: #{anchor_vec_fmap_attention.1} parent=11 // pred_fallthru
        _
      // Predicated region
      $region21: #{anchor_vec_fmap_attention.1} parent=11 // pred_check
        %p293 = pneg %p183
      $region22: #{anchor_vec_fmap_attention.1} parent=11 // pred_check_branch
        %295 = sbr.rel (%p293) target = $region24
      $region23: #{anchor_vec_fmap_attention.1} parent=11 // pred_region
        _
      $region24: #{anchor_vec_fmap_attention.1} parent=11 // pred_fallthru
        _
      // Predicated region
      $region25: #{anchor_vec_fmap_attention.1} parent=11 // pred_check
        %p296 = pneg %p204
      $region26: #{anchor_vec_fmap_attention.1} parent=11 // pred_check_branch
        %298 = sbr.rel (%p296) target = $region28
      $region27: #{anchor_vec_fmap_attention.1} parent=11 // pred_region
        _
      $region28: #{anchor_vec_fmap_attention.1} parent=11 // pred_fallthru
        _
      // Predicated region
      $region29: #{anchor_vec_fmap_attention.1} parent=11 // pred_check
        %p299 = pneg %p225
      $region30: #{anchor_vec_fmap_attention.1} parent=11 // pred_check_branch
        %301 = sbr.rel (%p299) target = $region32
      $region31: #{anchor_vec_fmap_attention.1} parent=11 // pred_region
        _
      $region32: #{anchor_vec_fmap_attention.1} parent=11 // pred_fallthru
        _
      // Predicated region
      $region33: #{anchor_vec_fmap_attention.1} parent=11 // pred_check
        %p302 = pneg %p246
      $region34: #{anchor_vec_fmap_attention.1} parent=11 // pred_check_branch
        %304 = sbr.rel (%p302) target = $region36
      $region35: #{anchor_vec_fmap_attention.1} parent=11 // pred_region
        _
      $region36: #{anchor_vec_fmap_attention.1} parent=11 // pred_fallthru
        _
    $region12: #{anchor_vec_fmap_attention.1} parent=5 // pred_fallthru
      _
    %p305 = scmp.lt.s32.totalorder %s16, 2
    // Predicated region
    $region37: #{anchor_vec_fmap_attention.1} parent=5 // pred_check
      %p306 = pneg %p305
    $region38: #{anchor_vec_fmap_attention.1} parent=5 // pred_check_branch
      %308 = sbr.rel (%p306) target = $region40
    $region39: #{anchor_vec_fmap_attention.1} parent=5 // pred_region
      // Predicated region
      $region41: #{anchor_vec_fmap_attention.1} parent=39 // pred_check
        %p309 = pneg %p36
      $region42: #{anchor_vec_fmap_attention.1} parent=39 // pred_check_branch
        %311 = sbr.rel (%p309) target = $region44
      $region43: #{anchor_vec_fmap_attention.1} parent=39 // pred_region
        %s312 = smul.u32 4, %s16
        %p313 = scmp.lt.s32.totalorder %s312, 7
        %s314 = scalar_select %p313, %s312, 7
        %s315 = smul.addr %s314, 24
        %s316 = smul.addr %s315, 8
        %s317 = scalar_lea.vmem %s0, %s316
        %s318 = smul.u32 4, %s16
      $region44: #{anchor_vec_fmap_attention.1} parent=39 // pred_fallthru
        _
      // Predicated region
      $region45: #{anchor_vec_fmap_attention.1} parent=39 // pred_check
        %p319 = pneg %p62
      $region46: #{anchor_vec_fmap_attention.1} parent=39 // pred_check_branch
        %321 = sbr.rel (%p319) target = $region48
      $region47: #{anchor_vec_fmap_attention.1} parent=39 // pred_region
        %s322 = smul.u32 4, %s16
        %p323 = scmp.lt.s32.totalorder %s322, 7
        %s324 = scalar_select %p323, %s322, 7
        %s325 = smul.addr %s324, 32
        %s326 = smul.addr %s325, 8
        %s327 = scalar_lea.vmem %s1, %s326
        %s328 = smul.u32 4, %s16
      $region48: #{anchor_vec_fmap_attention.1} parent=39 // pred_fallthru
        _
      // Predicated region
      $region49: #{anchor_vec_fmap_attention.1} parent=39 // pred_check
        %p329 = pneg %p88
      $region50: #{anchor_vec_fmap_attention.1} parent=39 // pred_check_branch
        %331 = sbr.rel (%p329) target = $region52
      $region51: #{anchor_vec_fmap_attention.1} parent=39 // pred_region
        %s332 = smul.u32 4, %s16
        %p333 = scmp.lt.s32.totalorder %s332, 7
        %s334 = scalar_select %p333, %s332, 7
        %s335 = scalar_lea.vmem %s2, %s334
        %s336 = smul.u32 4, %s16
      $region52: #{anchor_vec_fmap_attention.1} parent=39 // pred_fallthru
        _
      // Predicated region
      $region53: #{anchor_vec_fmap_attention.1} parent=39 // pred_check
        %p337 = pneg %p114
      $region54: #{anchor_vec_fmap_attention.1} parent=39 // pred_check_branch
        %339 = sbr.rel (%p337) target = $region56
      $region55: #{anchor_vec_fmap_attention.1} parent=39 // pred_region
        %s340 = smul.u32 4, %s16
        %p341 = scmp.lt.s32.totalorder %s340, 7
        %s342 = scalar_select %p341, %s340, 7
        %s343 = scalar_lea.vmem %s3, %s342
        %s344 = smul.u32 4, %s16
      $region56: #{anchor_vec_fmap_attention.1} parent=39 // pred_fallthru
        _
    $region40: #{anchor_vec_fmap_attention.1} parent=5 // pred_fallthru
      _
    %p345 = scmp.le.s32.totalorder 1, %s16
    %p346 = scmp.lt.s32.totalorder %s16, 3
    %p347 = pnand %p345, %p346
    %p348 = pneg %p347
    // Predicated region
    $region57: #{anchor_vec_fmap_attention.1} parent=5 // pred_check
      _
    $region58: #{anchor_vec_fmap_attention.1} parent=5 // pred_check_branch
      %350 = sbr.rel (%p347) target = $region60
    $region59: #{anchor_vec_fmap_attention.1} parent=5 // pred_region
      %s351 = ssub.s32 %s16, 1
      %s352 = smul.u32 4, %s21
      %p353 = scmp.lt.s32.totalorder %s352, 7
      %s354 = scalar_select %p353, %s352, 7
      %s355 = smul.addr %s354, 24
      %s356 = smul.addr %s355, 8
      %s357 = scalar_lea.vmem %s0, %s356
      %p358 = pneg %p42
      %p359 = pneg %p39
      %s360 = smul.u32 4, %s21
      %p361 = scmp.lt.s32.totalorder %s360, 7
      %s362 = scalar_select %p361, %s360, 7
      %s363 = smul.addr %s362, 32
      %s364 = smul.addr %s363, 8
      %s365 = scalar_lea.vmem %s1, %s364
      %p366 = pneg %p68
      %p367 = pneg %p65
      %s368 = smul.u32 4, %s21
      %p369 = scmp.lt.s32.totalorder %s368, 7
      %s370 = scalar_select %p369, %s368, 7
      %s371 = scalar_lea.vmem %s2, %s370
      %p372 = pneg %p94
      %p373 = pneg %p91
      %s374 = smul.u32 4, %s21
      %p375 = scmp.lt.s32.totalorder %s374, 7
      %s376 = scalar_select %p375, %s374, 7
      %s377 = scalar_lea.vmem %s3, %s376
      %p378 = pneg %p120
      %p379 = pneg %p117
      %p380 = pneg %p141
      %p381 = pneg %p138
      %p382 = pneg %p162
      %p383 = pneg %p159
      %p384 = pneg %p183
      %p385 = pneg %p180
      %p386 = pneg %p204
      %p387 = pneg %p201
      %p388 = pneg %p225
      %p389 = pneg %p222
      %p390 = pneg %p246
      %p391 = pneg %p243
      %p392 = pneg %p272
      %p393 = pneg %p269
      %s394 = smul.u32 4, %s21
      %p395 = scmp.lt.s32.totalorder %s394, 7
      %s396 = scalar_select %p395, %s394, 7
      %s397 = smul.addr %s396, 24
      %s398 = smul.addr %s397, 8
      %s399 = scalar_lea.vmem %s10, %s398
      %s400 = smul.u32 4, %s21
      %p401 = scmp.lt.s32.totalorder %s400, 7
      %s402 = scalar_select %p401, %s400, 7
      %s403 = smul.addr %s402, 24
      %s404 = smul.addr %s403, 8
      %s405 = scalar_lea.vmem %s0, %s404
      %s406 = smul.u32 4, %s21
      %s407 = smul.u32 4, %s21
      %p408 = scmp.lt.s32.totalorder %s407, 7
      %s409 = scalar_select %p408, %s407, 7
      %s410 = smul.addr %s409, 32
      %s411 = smul.addr %s410, 8
      %s412 = scalar_lea.vmem %s1, %s411
      %s413 = smul.u32 4, %s21
      %s414 = smul.u32 4, %s21
      %p415 = scmp.lt.s32.totalorder %s414, 7
      %s416 = scalar_select %p415, %s414, 7
      %s417 = scalar_lea.vmem %s2, %s416
      %s418 = smul.u32 4, %s21
      %s419 = smul.u32 4, %s21
      %p420 = scmp.lt.s32.totalorder %s419, 7
      %s421 = scalar_select %p420, %s419, 7
      %s422 = scalar_lea.vmem %s3, %s421
      %s423 = smul.u32 4, %s21
      %s424 = smul.u32 4, %s21
      %p425 = scmp.lt.s32.totalorder %s424, 7
      %s426 = scalar_select %p425, %s424, 7
      %s427 = smul.addr %s426, 24
      %s428 = smul.addr %s427, 8
      %s429 = scalar_lea.vmem %s10, %s428
      %s430 = smul.u32 4, %s21
      %v432 = vld [vmem:[%s405] sm:$0xff]
      %v433 = vld [vmem:[%s405 + $0x8] sm:$0xff]
      %v434 = vld [vmem:[%s405 + $0x10] sm:$0xff]
      %v435 = vld [vmem:[%s405 + $0x18] sm:$0xff]
      %v436 = vld [vmem:[%s405 + $0x20] sm:$0xff]
      %v437 = vld [vmem:[%s405 + $0x28] sm:$0xff]
      %v438 = vld [vmem:[%s405 + $0x30] sm:$0xff]
      %v439 = vld [vmem:[%s405 + $0x38] sm:$0xff]
      %v440 = vld [vmem:[%s405 + $0x40] sm:$0xff]
      %v441 = vld [vmem:[%s405 + $0x48] sm:$0xff]
      %v442 = vld [vmem:[%s405 + $0x50] sm:$0xff]
      %v443 = vld [vmem:[%s405 + $0x58] sm:$0xff]
      %v444 = vld [vmem:[%s405 + $0x60] sm:$0xff]
      %v445 = vld [vmem:[%s405 + $0x68] sm:$0xff]
      %v446 = vld [vmem:[%s405 + $0x70] sm:$0xff]
      %v447 = vld [vmem:[%s405 + $0x78] sm:$0xff]
      %v448 = vld [vmem:[%s405 + $0x80] sm:$0xff]
      %v449 = vld [vmem:[%s405 + $0x88] sm:$0xff]
      %v450 = vld [vmem:[%s405 + $0x90] sm:$0xff]
      %v451 = vld [vmem:[%s405 + $0x98] sm:$0xff]
      %v452 = vld [vmem:[%s405 + $0xa0] sm:$0xff]
      %v453 = vld [vmem:[%s405 + $0xa8] sm:$0xff]
      %v454 = vld [vmem:[%s405 + $0xb0] sm:$0xff]
      %v455 = vld [vmem:[%s405 + $0xb8] sm:$0xff]
      %v456 = vld [vmem:[%s405 + $0xc0] sm:$0xff]
      %v457 = vld [vmem:[%s405 + $0xc8] sm:$0xff]
      %v458 = vld [vmem:[%s405 + $0xd0] sm:$0xff]
      %v459 = vld [vmem:[%s405 + $0xd8] sm:$0xff]
      %v460 = vld [vmem:[%s405 + $0xe0] sm:$0xff]
      %v461 = vld [vmem:[%s405 + $0xe8] sm:$0xff]
      %v462 = vld [vmem:[%s405 + $0xf0] sm:$0xff]
      %v463 = vld [vmem:[%s405 + $0xf8] sm:$0xff]
      %v464 = vld [vmem:[%s405 + $0x100] sm:$0xff]
      %v465 = vld [vmem:[%s405 + $0x108] sm:$0xff]
      %v466 = vld [vmem:[%s405 + $0x110] sm:$0xff]
      %v467 = vld [vmem:[%s405 + $0x118] sm:$0xff]
      %v468 = vld [vmem:[%s405 + $0x120] sm:$0xff]
      %v469 = vld [vmem:[%s405 + $0x128] sm:$0xff]
      %v470 = vld [vmem:[%s405 + $0x130] sm:$0xff]
      %v471 = vld [vmem:[%s405 + $0x138] sm:$0xff]
      %v472 = vld [vmem:[%s405 + $0x140] sm:$0xff]
      %v473 = vld [vmem:[%s405 + $0x148] sm:$0xff]
      %v474 = vld [vmem:[%s405 + $0x150] sm:$0xff]
      %v475 = vld [vmem:[%s405 + $0x158] sm:$0xff]
      %v476 = vld [vmem:[%s405 + $0x160] sm:$0xff]
      %v477 = vld [vmem:[%s405 + $0x168] sm:$0xff]
      %v478 = vld [vmem:[%s405 + $0x170] sm:$0xff]
      %v479 = vld [vmem:[%s405 + $0x178] sm:$0xff]
      %v480 = vld [vmem:[%s405 + $0x180] sm:$0xff]
      %v481 = vld [vmem:[%s405 + $0x188] sm:$0xff]
      %v482 = vld [vmem:[%s405 + $0x190] sm:$0xff]
      %v483 = vld [vmem:[%s405 + $0x198] sm:$0xff]
      %v484 = vld [vmem:[%s405 + $0x1a0] sm:$0xff]
      %v485 = vld [vmem:[%s405 + $0x1a8] sm:$0xff]
      %v486 = vld [vmem:[%s405 + $0x1b0] sm:$0xff]
      %v487 = vld [vmem:[%s405 + $0x1b8] sm:$0xff]
      %v488 = vld [vmem:[%s405 + $0x1c0] sm:$0xff]
      %v489 = vld [vmem:[%s405 + $0x1c8] sm:$0xff]
      %v490 = vld [vmem:[%s405 + $0x1d0] sm:$0xff]
      %v491 = vld [vmem:[%s405 + $0x1d8] sm:$0xff]
      %v492 = vld [vmem:[%s405 + $0x1e0] sm:$0xff]
      %v493 = vld [vmem:[%s405 + $0x1e8] sm:$0xff]
      %v494 = vld [vmem:[%s405 + $0x1f0] sm:$0xff]
      %v495 = vld [vmem:[%s405 + $0x1f8] sm:$0xff]
      %v496 = vld [vmem:[%s405 + $0x200] sm:$0xff]
      %v497 = vld [vmem:[%s405 + $0x208] sm:$0xff]
      %v498 = vld [vmem:[%s405 + $0x210] sm:$0xff]
      %v499 = vld [vmem:[%s405 + $0x218] sm:$0xff]
      %v500 = vld [vmem:[%s405 + $0x220] sm:$0xff]
      %v501 = vld [vmem:[%s405 + $0x228] sm:$0xff]
      %v502 = vld [vmem:[%s405 + $0x230] sm:$0xff]
      %v503 = vld [vmem:[%s405 + $0x238] sm:$0xff]
      %v504 = vld [vmem:[%s405 + $0x240] sm:$0xff]
      %v505 = vld [vmem:[%s405 + $0x248] sm:$0xff]
      %v506 = vld [vmem:[%s405 + $0x250] sm:$0xff]
      %v507 = vld [vmem:[%s405 + $0x258] sm:$0xff]
      %v508 = vld [vmem:[%s405 + $0x260] sm:$0xff]
      %v509 = vld [vmem:[%s405 + $0x268] sm:$0xff]
      %v510 = vld [vmem:[%s405 + $0x270] sm:$0xff]
      %v511 = vld [vmem:[%s405 + $0x278] sm:$0xff]
      %v512 = vld [vmem:[%s405 + $0x280] sm:$0xff]
      %v513 = vld [vmem:[%s405 + $0x288] sm:$0xff]
      %v514 = vld [vmem:[%s405 + $0x290] sm:$0xff]
      %v515 = vld [vmem:[%s405 + $0x298] sm:$0xff]
      %v516 = vld [vmem:[%s405 + $0x2a0] sm:$0xff]
      %v517 = vld [vmem:[%s405 + $0x2a8] sm:$0xff]
      %v518 = vld [vmem:[%s405 + $0x2b0] sm:$0xff]
      %v519 = vld [vmem:[%s405 + $0x2b8] sm:$0xff]
      %v520 = vld [vmem:[%s405 + $0x2c0] sm:$0xff]
      %v521 = vld [vmem:[%s405 + $0x2c8] sm:$0xff]
      %v522 = vld [vmem:[%s405 + $0x2d0] sm:$0xff]
      %v523 = vld [vmem:[%s405 + $0x2d8] sm:$0xff]
      %v524 = vld [vmem:[%s405 + $0x2e0] sm:$0xff]
      %v525 = vld [vmem:[%s405 + $0x2e8] sm:$0xff]
      %v526 = vld [vmem:[%s405 + $0x2f0] sm:$0xff]
      %v527 = vld [vmem:[%s405 + $0x2f8] sm:$0xff]
      %v528 = vld [vmem:[%s412] sm:$0xff]
      %v529 = vld [vmem:[%s412 + $0x8] sm:$0xff]
      %v530 = vld [vmem:[%s412 + $0x10] sm:$0xff]
      %v531 = vld [vmem:[%s412 + $0x18] sm:$0xff]
      %v532 = vld [vmem:[%s412 + $0x20] sm:$0xff]
      %v533 = vld [vmem:[%s412 + $0x28] sm:$0xff]
      %v534 = vld [vmem:[%s412 + $0x30] sm:$0xff]
      %v535 = vld [vmem:[%s412 + $0x38] sm:$0xff]
      %v536 = vld [vmem:[%s412 + $0x40] sm:$0xff]
      %v537 = vld [vmem:[%s412 + $0x48] sm:$0xff]
      %v538 = vld [vmem:[%s412 + $0x50] sm:$0xff]
      %v539 = vld [vmem:[%s412 + $0x58] sm:$0xff]
      %v540 = vld [vmem:[%s412 + $0x60] sm:$0xff]
      %v541 = vld [vmem:[%s412 + $0x68] sm:$0xff]
      %v542 = vld [vmem:[%s412 + $0x70] sm:$0xff]
      %v543 = vld [vmem:[%s412 + $0x78] sm:$0xff]
      %v544 = vld [vmem:[%s412 + $0x80] sm:$0xff]
      %v545 = vld [vmem:[%s412 + $0x88] sm:$0xff]
      %v546 = vld [vmem:[%s412 + $0x90] sm:$0xff]
      %v547 = vld [vmem:[%s412 + $0x98] sm:$0xff]
      %v548 = vld [vmem:[%s412 + $0xa0] sm:$0xff]
      %v549 = vld [vmem:[%s412 + $0xa8] sm:$0xff]
      %v550 = vld [vmem:[%s412 + $0xb0] sm:$0xff]
      %v551 = vld [vmem:[%s412 + $0xb8] sm:$0xff]
      %v552 = vld [vmem:[%s412 + $0xc0] sm:$0xff]
      %v553 = vld [vmem:[%s412 + $0xc8] sm:$0xff]
      %v554 = vld [vmem:[%s412 + $0xd0] sm:$0xff]
      %v555 = vld [vmem:[%s412 + $0xd8] sm:$0xff]
      %v556 = vld [vmem:[%s412 + $0xe0] sm:$0xff]
      %v557 = vld [vmem:[%s412 + $0xe8] sm:$0xff]
      %v558 = vld [vmem:[%s412 + $0xf0] sm:$0xff]
      %v559 = vld [vmem:[%s412 + $0xf8] sm:$0x3]
      %v560 = vld [vmem:[%s412 + $0x100] sm:$0xff]
      %v561 = vld [vmem:[%s412 + $0x108] sm:$0xff]
      %v562 = vld [vmem:[%s412 + $0x110] sm:$0xff]
      %v563 = vld [vmem:[%s412 + $0x118] sm:$0xff]
      %v564 = vld [vmem:[%s412 + $0x120] sm:$0xff]
      %v565 = vld [vmem:[%s412 + $0x128] sm:$0xff]
      %v566 = vld [vmem:[%s412 + $0x130] sm:$0xff]
      %v567 = vld [vmem:[%s412 + $0x138] sm:$0xff]
      %v568 = vld [vmem:[%s412 + $0x140] sm:$0xff]
      %v569 = vld [vmem:[%s412 + $0x148] sm:$0xff]
      %v570 = vld [vmem:[%s412 + $0x150] sm:$0xff]
      %v571 = vld [vmem:[%s412 + $0x158] sm:$0xff]
      %v572 = vld [vmem:[%s412 + $0x160] sm:$0xff]
      %v573 = vld [vmem:[%s412 + $0x168] sm:$0xff]
      %v574 = vld [vmem:[%s412 + $0x170] sm:$0xff]
      %v575 = vld [vmem:[%s412 + $0x178] sm:$0xff]
      %v576 = vld [vmem:[%s412 + $0x180] sm:$0xff]
      %v577 = vld [vmem:[%s412 + $0x188] sm:$0xff]
      %v578 = vld [vmem:[%s412 + $0x190] sm:$0xff]
      %v579 = vld [vmem:[%s412 + $0x198] sm:$0xff]
      %v580 = vld [vmem:[%s412 + $0x1a0] sm:$0xff]
      %v581 = vld [vmem:[%s412 + $0x1a8] sm:$0xff]
      %v582 = vld [vmem:[%s412 + $0x1b0] sm:$0xff]
      %v583 = vld [vmem:[%s412 + $0x1b8] sm:$0xff]
      %v584 = vld [vmem:[%s412 + $0x1c0] sm:$0xff]
      %v585 = vld [vmem:[%s412 + $0x1c8] sm:$0xff]
      %v586 = vld [vmem:[%s412 + $0x1d0] sm:$0xff]
      %v587 = vld [vmem:[%s412 + $0x1d8] sm:$0xff]
      %v588 = vld [vmem:[%s412 + $0x1e0] sm:$0xff]
      %v589 = vld [vmem:[%s412 + $0x1e8] sm:$0xff]
      %v590 = vld [vmem:[%s412 + $0x1f0] sm:$0xff]
      %v591 = vld [vmem:[%s412 + $0x1f8] sm:$0x3]
      %v592 = vld [vmem:[%s412 + $0x200] sm:$0xff]
      %v593 = vld [vmem:[%s412 + $0x208] sm:$0xff]
      %v594 = vld [vmem:[%s412 + $0x210] sm:$0xff]
      %v595 = vld [vmem:[%s412 + $0x218] sm:$0xff]
      %v596 = vld [vmem:[%s412 + $0x220] sm:$0xff]
      %v597 = vld [vmem:[%s412 + $0x228] sm:$0xff]
      %v598 = vld [vmem:[%s412 + $0x230] sm:$0xff]
      %v599 = vld [vmem:[%s412 + $0x238] sm:$0xff]
      %v600 = vld [vmem:[%s412 + $0x240] sm:$0xff]
      %v601 = vld [vmem:[%s412 + $0x248] sm:$0xff]
      %v602 = vld [vmem:[%s412 + $0x250] sm:$0xff]
      %v603 = vld [vmem:[%s412 + $0x258] sm:$0xff]
      %v604 = vld [vmem:[%s412 + $0x260] sm:$0xff]
      %v605 = vld [vmem:[%s412 + $0x268] sm:$0xff]
      %v606 = vld [vmem:[%s412 + $0x270] sm:$0xff]
      %v607 = vld [vmem:[%s412 + $0x278] sm:$0xff]
      %v608 = vld [vmem:[%s412 + $0x280] sm:$0xff]
      %v609 = vld [vmem:[%s412 + $0x288] sm:$0xff]
      %v610 = vld [vmem:[%s412 + $0x290] sm:$0xff]
      %v611 = vld [vmem:[%s412 + $0x298] sm:$0xff]
      %v612 = vld [vmem:[%s412 + $0x2a0] sm:$0xff]
      %v613 = vld [vmem:[%s412 + $0x2a8] sm:$0xff]
      %v614 = vld [vmem:[%s412 + $0x2b0] sm:$0xff]
      %v615 = vld [vmem:[%s412 + $0x2b8] sm:$0xff]
      %v616 = vld [vmem:[%s412 + $0x2c0] sm:$0xff]
      %v617 = vld [vmem:[%s412 + $0x2c8] sm:$0xff]
      %v618 = vld [vmem:[%s412 + $0x2d0] sm:$0xff]
      %v619 = vld [vmem:[%s412 + $0x2d8] sm:$0xff]
      %v620 = vld [vmem:[%s412 + $0x2e0] sm:$0xff]
      %v621 = vld [vmem:[%s412 + $0x2e8] sm:$0xff]
      %v622 = vld [vmem:[%s412 + $0x2f0] sm:$0xff]
      %v623 = vld [vmem:[%s412 + $0x2f8] sm:$0x3]
      %v624 = vld [vmem:[%s412 + $0x300] sm:$0xff]
      %v625 = vld [vmem:[%s412 + $0x308] sm:$0xff]
      %v626 = vld [vmem:[%s412 + $0x310] sm:$0xff]
      %v627 = vld [vmem:[%s412 + $0x318] sm:$0xff]
      %v628 = vld [vmem:[%s412 + $0x320] sm:$0xff]
      %v629 = vld [vmem:[%s412 + $0x328] sm:$0xff]
      %v630 = vld [vmem:[%s412 + $0x330] sm:$0xff]
      %v631 = vld [vmem:[%s412 + $0x338] sm:$0xff]
      %v632 = vld [vmem:[%s412 + $0x340] sm:$0xff]
      %v633 = vld [vmem:[%s412 + $0x348] sm:$0xff]
      %v634 = vld [vmem:[%s412 + $0x350] sm:$0xff]
      %v635 = vld [vmem:[%s412 + $0x358] sm:$0xff]
      %v636 = vld [vmem:[%s412 + $0x360] sm:$0xff]
      %v637 = vld [vmem:[%s412 + $0x368] sm:$0xff]
      %v638 = vld [vmem:[%s412 + $0x370] sm:$0xff]
      %v639 = vld [vmem:[%s412 + $0x378] sm:$0xff]
      %v640 = vld [vmem:[%s412 + $0x380] sm:$0xff]
      %v641 = vld [vmem:[%s412 + $0x388] sm:$0xff]
      %v642 = vld [vmem:[%s412 + $0x390] sm:$0xff]
      %v643 = vld [vmem:[%s412 + $0x398] sm:$0xff]
      %v644 = vld [vmem:[%s412 + $0x3a0] sm:$0xff]
      %v645 = vld [vmem:[%s412 + $0x3a8] sm:$0xff]
      %v646 = vld [vmem:[%s412 + $0x3b0] sm:$0xff]
      %v647 = vld [vmem:[%s412 + $0x3b8] sm:$0xff]
      %v648 = vld [vmem:[%s412 + $0x3c0] sm:$0xff]
      %v649 = vld [vmem:[%s412 + $0x3c8] sm:$0xff]
      %v650 = vld [vmem:[%s412 + $0x3d0] sm:$0xff]
      %v651 = vld [vmem:[%s412 + $0x3d8] sm:$0xff]
      %v652 = vld [vmem:[%s412 + $0x3e0] sm:$0xff]
      %v653 = vld [vmem:[%s412 + $0x3e8] sm:$0xff]
      %v654 = vld [vmem:[%s412 + $0x3f0] sm:$0xff]
      %v655 = vld [vmem:[%s412 + $0x3f8] sm:$0x3]
      %v656 = vld [vmem:[%s4] sm:$0xff]
      %v657 = vld [vmem:[%s4 + $0x8] sm:$0xff]
      %v658 = vld [vmem:[%s4 + $0x10] sm:$0xff]
      %v659 = vld [vmem:[%s4 + $0x18] sm:$0xff]
      %v660 = vld [vmem:[%s4 + $0x20] sm:$0xff]
      %v661 = vld [vmem:[%s4 + $0x28] sm:$0xff]
      %v662 = vld [vmem:[%s4 + $0x30] sm:$0xff]
      %v663 = vld [vmem:[%s4 + $0x38] sm:$0xff]
      %v664 = vld [vmem:[%s4 + $0x40] sm:$0xff]
      %v665 = vld [vmem:[%s4 + $0x48] sm:$0xff]
      %v666 = vld [vmem:[%s4 + $0x50] sm:$0xff]
      %v667 = vld [vmem:[%s4 + $0x58] sm:$0xff]
      %v668 = vld [vmem:[%s4 + $0x60] sm:$0xff]
      %v669 = vld [vmem:[%s4 + $0x68] sm:$0xff]
      %v670 = vld [vmem:[%s4 + $0x70] sm:$0xff]
      %v671 = vld [vmem:[%s4 + $0x78] sm:$0xff]
      %v672 = vld [vmem:[%s4 + $0x80] sm:$0xff]
      %v673 = vld [vmem:[%s4 + $0x88] sm:$0xff]
      %v674 = vld [vmem:[%s4 + $0x90] sm:$0xff]
      %v675 = vld [vmem:[%s4 + $0x98] sm:$0xff]
      %v676 = vld [vmem:[%s4 + $0xa0] sm:$0xff]
      %v677 = vld [vmem:[%s4 + $0xa8] sm:$0xff]
      %v678 = vld [vmem:[%s4 + $0xb0] sm:$0xff]
      %v679 = vld [vmem:[%s4 + $0xb8] sm:$0xff]
      %v680 = vmul.f32 %v432, %v656
      %v681 = vmul.f32 %v433, %v657
      %v682 = vmul.f32 %v434, %v658
      %v683 = vmul.f32 %v435, %v659
      %v684 = vmul.f32 %v436, %v660
      %v685 = vmul.f32 %v437, %v661
      %v686 = vmul.f32 %v438, %v662
      %v687 = vmul.f32 %v439, %v663
      %v688 = vmul.f32 %v440, %v664
      %v689 = vmul.f32 %v441, %v665
      %v690 = vmul.f32 %v442, %v666
      %v691 = vmul.f32 %v443, %v667
      %v692 = vmul.f32 %v444, %v668
      %v693 = vmul.f32 %v445, %v669
      %v694 = vmul.f32 %v446, %v670
      %v695 = vmul.f32 %v447, %v671
      %v696 = vmul.f32 %v448, %v672
      %v697 = vmul.f32 %v449, %v673
      %v698 = vmul.f32 %v450, %v674
      %v699 = vmul.f32 %v451, %v675
      %v700 = vmul.f32 %v452, %v676
      %v701 = vmul.f32 %v453, %v677
      %v702 = vmul.f32 %v454, %v678
      %v703 = vmul.f32 %v455, %v679
      %v704 = vmul.f32 %v456, %v656
      %v705 = vmul.f32 %v457, %v657
      %v706 = vmul.f32 %v458, %v658
      %v707 = vmul.f32 %v459, %v659
      %v708 = vmul.f32 %v460, %v660
      %v709 = vmul.f32 %v461, %v661
      %v710 = vmul.f32 %v462, %v662
      %v711 = vmul.f32 %v463, %v663
      %v712 = vmul.f32 %v464, %v664
      %v713 = vmul.f32 %v465, %v665
      %v714 = vmul.f32 %v466, %v666
      %v715 = vmul.f32 %v467, %v667
      %v716 = vmul.f32 %v468, %v668
      %v717 = vmul.f32 %v469, %v669
      %v718 = vmul.f32 %v470, %v670
      %v719 = vmul.f32 %v471, %v671
      %v720 = vmul.f32 %v472, %v672
      %v721 = vmul.f32 %v473, %v673
      %v722 = vmul.f32 %v474, %v674
      %v723 = vmul.f32 %v475, %v675
      %v724 = vmul.f32 %v476, %v676
      %v725 = vmul.f32 %v477, %v677
      %v726 = vmul.f32 %v478, %v678
      %v727 = vmul.f32 %v479, %v679
      %v728 = vmul.f32 %v480, %v656
      %v729 = vmul.f32 %v481, %v657
      %v730 = vmul.f32 %v482, %v658
      %v731 = vmul.f32 %v483, %v659
      %v732 = vmul.f32 %v484, %v660
      %v733 = vmul.f32 %v485, %v661
      %v734 = vmul.f32 %v486, %v662
      %v735 = vmul.f32 %v487, %v663
      %v736 = vmul.f32 %v488, %v664
      %v737 = vmul.f32 %v489, %v665
      %v738 = vmul.f32 %v490, %v666
      %v739 = vmul.f32 %v491, %v667
      %v740 = vmul.f32 %v492, %v668
      %v741 = vmul.f32 %v493, %v669
      %v742 = vmul.f32 %v494, %v670
      %v743 = vmul.f32 %v495, %v671
      %v744 = vmul.f32 %v496, %v672
      %v745 = vmul.f32 %v497, %v673
      %v746 = vmul.f32 %v498, %v674
      %v747 = vmul.f32 %v499, %v675
      %v748 = vmul.f32 %v500, %v676
      %v749 = vmul.f32 %v501, %v677
      %v750 = vmul.f32 %v502, %v678
      %v751 = vmul.f32 %v503, %v679
      %v752 = vmul.f32 %v504, %v656
      %v753 = vmul.f32 %v505, %v657
      %v754 = vmul.f32 %v506, %v658
      %v755 = vmul.f32 %v507, %v659
      %v756 = vmul.f32 %v508, %v660
      %v757 = vmul.f32 %v509, %v661
      %v758 = vmul.f32 %v510, %v662
      %v759 = vmul.f32 %v511, %v663
      %v760 = vmul.f32 %v512, %v664
      %v761 = vmul.f32 %v513, %v665
      %v762 = vmul.f32 %v514, %v666
      %v763 = vmul.f32 %v515, %v667
      %v764 = vmul.f32 %v516, %v668
      %v765 = vmul.f32 %v517, %v669
      %v766 = vmul.f32 %v518, %v670
      %v767 = vmul.f32 %v519, %v671
      %v768 = vmul.f32 %v520, %v672
      %v769 = vmul.f32 %v521, %v673
      %v770 = vmul.f32 %v522, %v674
      %v771 = vmul.f32 %v523, %v675
      %v772 = vmul.f32 %v524, %v676
      %v773 = vmul.f32 %v525, %v677
      %v774 = vmul.f32 %v526, %v678
      %v775 = vmul.f32 %v527, %v679
      %v776 = vld [vmem:[%s5] sm:$0xff]
      %v777 = vld [vmem:[%s5 + $0x8] sm:$0xff]
      %v778 = vld [vmem:[%s5 + $0x10] sm:$0xff]
      %v779 = vld [vmem:[%s5 + $0x18] sm:$0xff]
      %v780 = vld [vmem:[%s5 + $0x20] sm:$0xff]
      %v781 = vld [vmem:[%s5 + $0x28] sm:$0xff]
      %v782 = vld [vmem:[%s5 + $0x30] sm:$0xff]
      %v783 = vld [vmem:[%s5 + $0x38] sm:$0xff]
      %v784 = vld [vmem:[%s5 + $0x40] sm:$0xff]
      %v785 = vld [vmem:[%s5 + $0x48] sm:$0xff]
      %v786 = vld [vmem:[%s5 + $0x50] sm:$0xff]
      %v787 = vld [vmem:[%s5 + $0x58] sm:$0xff]
      %v788 = vld [vmem:[%s5 + $0x60] sm:$0xff]
      %v789 = vld [vmem:[%s5 + $0x68] sm:$0xff]
      %v790 = vld [vmem:[%s5 + $0x70] sm:$0xff]
      %v791 = vld [vmem:[%s5 + $0x78] sm:$0xff]
      %v792 = vld [vmem:[%s5 + $0x80] sm:$0xff]
      %v793 = vld [vmem:[%s5 + $0x88] sm:$0xff]
      %v794 = vld [vmem:[%s5 + $0x90] sm:$0xff]
      %v795 = vld [vmem:[%s5 + $0x98] sm:$0xff]
      %v796 = vld [vmem:[%s5 + $0xa0] sm:$0xff]
      %v797 = vld [vmem:[%s5 + $0xa8] sm:$0xff]
      %v798 = vld [vmem:[%s5 + $0xb0] sm:$0xff]
      %v799 = vld [vmem:[%s5 + $0xb8] sm:$0xff]
      %v800 = vadd.f32 %v680, %v776
      %v801 = vadd.f32 %v681, %v777
      %v802 = vadd.f32 %v682, %v778
      %v803 = vadd.f32 %v683, %v779
      %v804 = vadd.f32 %v684, %v780
      %v805 = vadd.f32 %v685, %v781
      %v806 = vadd.f32 %v686, %v782
      %v807 = vadd.f32 %v687, %v783
      %v808 = vadd.f32 %v688, %v784
      %v809 = vadd.f32 %v689, %v785
      %v810 = vadd.f32 %v690, %v786
      %v811 = vadd.f32 %v691, %v787
      %v812 = vadd.f32 %v692, %v788
      %v813 = vadd.f32 %v693, %v789
      %v814 = vadd.f32 %v694, %v790
      %v815 = vadd.f32 %v695, %v791
      %v816 = vadd.f32 %v696, %v792
      %v817 = vadd.f32 %v697, %v793
      %v818 = vadd.f32 %v698, %v794
      %v819 = vadd.f32 %v699, %v795
      %v820 = vadd.f32 %v700, %v796
      %v821 = vadd.f32 %v701, %v797
      %v822 = vadd.f32 %v702, %v798
      %v823 = vadd.f32 %v703, %v799
      %v824 = vadd.f32 %v704, %v776
      %v825 = vadd.f32 %v705, %v777
      %v826 = vadd.f32 %v706, %v778
      %v827 = vadd.f32 %v707, %v779
      %v828 = vadd.f32 %v708, %v780
      %v829 = vadd.f32 %v709, %v781
      %v830 = vadd.f32 %v710, %v782
      %v831 = vadd.f32 %v711, %v783
      %v832 = vadd.f32 %v712, %v784
      %v833 = vadd.f32 %v713, %v785
      %v834 = vadd.f32 %v714, %v786
      %v835 = vadd.f32 %v715, %v787
      %v836 = vadd.f32 %v716, %v788
      %v837 = vadd.f32 %v717, %v789
      %v838 = vadd.f32 %v718, %v790
      %v839 = vadd.f32 %v719, %v791
      %v840 = vadd.f32 %v720, %v792
      %v841 = vadd.f32 %v721, %v793
      %v842 = vadd.f32 %v722, %v794
      %v843 = vadd.f32 %v723, %v795
      %v844 = vadd.f32 %v724, %v796
      %v845 = vadd.f32 %v725, %v797
      %v846 = vadd.f32 %v726, %v798
      %v847 = vadd.f32 %v727, %v799
      %v848 = vadd.f32 %v728, %v776
      %v849 = vadd.f32 %v729, %v777
      %v850 = vadd.f32 %v730, %v778
      %v851 = vadd.f32 %v731, %v779
      %v852 = vadd.f32 %v732, %v780
      %v853 = vadd.f32 %v733, %v781
      %v854 = vadd.f32 %v734, %v782
      %v855 = vadd.f32 %v735, %v783
      %v856 = vadd.f32 %v736, %v784
      %v857 = vadd.f32 %v737, %v785
      %v858 = vadd.f32 %v738, %v786
      %v859 = vadd.f32 %v739, %v787
      %v860 = vadd.f32 %v740, %v788
      %v861 = vadd.f32 %v741, %v789
      %v862 = vadd.f32 %v742, %v790
      %v863 = vadd.f32 %v743, %v791
      %v864 = vadd.f32 %v744, %v792
      %v865 = vadd.f32 %v745, %v793
      %v866 = vadd.f32 %v746, %v794
      %v867 = vadd.f32 %v747, %v795
      %v868 = vadd.f32 %v748, %v796
      %v869 = vadd.f32 %v749, %v797
      %v870 = vadd.f32 %v750, %v798
      %v871 = vadd.f32 %v751, %v799
      %v872 = vadd.f32 %v752, %v776
      %v873 = vadd.f32 %v753, %v777
      %v874 = vadd.f32 %v754, %v778
      %v875 = vadd.f32 %v755, %v779
      %v876 = vadd.f32 %v756, %v780
      %v877 = vadd.f32 %v757, %v781
      %v878 = vadd.f32 %v758, %v782
      %v879 = vadd.f32 %v759, %v783
      %v880 = vadd.f32 %v760, %v784
      %v881 = vadd.f32 %v761, %v785
      %v882 = vadd.f32 %v762, %v786
      %v883 = vadd.f32 %v763, %v787
      %v884 = vadd.f32 %v764, %v788
      %v885 = vadd.f32 %v765, %v789
      %v886 = vadd.f32 %v766, %v790
      %v887 = vadd.f32 %v767, %v791
      %v888 = vadd.f32 %v768, %v792
      %v889 = vadd.f32 %v769, %v793
      %v890 = vadd.f32 %v770, %v794
      %v891 = vadd.f32 %v771, %v795
      %v892 = vadd.f32 %v772, %v796
      %v893 = vadd.f32 %v773, %v797
      %v894 = vadd.f32 %v774, %v798
      %v895 = vadd.f32 %v775, %v799
      %v896 = vmax.f32 %v800, 0.0
      %v897 = vmax.f32 %v801, 0.0
      %v898 = vmax.f32 %v802, 0.0
      %v899 = vmax.f32 %v803, 0.0
      %v900 = vmax.f32 %v804, 0.0
      %v901 = vmax.f32 %v805, 0.0
      %v902 = vmax.f32 %v806, 0.0
      %v903 = vmax.f32 %v807, 0.0
      %v904 = vmax.f32 %v808, 0.0
      %v905 = vmax.f32 %v809, 0.0
      %v906 = vmax.f32 %v810, 0.0
      %v907 = vmax.f32 %v811, 0.0
      %v908 = vmax.f32 %v812, 0.0
      %v909 = vmax.f32 %v813, 0.0
      %v910 = vmax.f32 %v814, 0.0
      %v911 = vmax.f32 %v815, 0.0
      %v912 = vmax.f32 %v816, 0.0
      %v913 = vmax.f32 %v817, 0.0
      %v914 = vmax.f32 %v818, 0.0
      %v915 = vmax.f32 %v819, 0.0
      %v916 = vmax.f32 %v820, 0.0
      %v917 = vmax.f32 %v821, 0.0
      %v918 = vmax.f32 %v822, 0.0
      %v919 = vmax.f32 %v823, 0.0
      %v920 = vmax.f32 %v824, 0.0
      %v921 = vmax.f32 %v825, 0.0
      %v922 = vmax.f32 %v826, 0.0
      %v923 = vmax.f32 %v827, 0.0
      %v924 = vmax.f32 %v828, 0.0
      %v925 = vmax.f32 %v829, 0.0
      %v926 = vmax.f32 %v830, 0.0
      %v927 = vmax.f32 %v831, 0.0
      %v928 = vmax.f32 %v832, 0.0
      %v929 = vmax.f32 %v833, 0.0
      %v930 = vmax.f32 %v834, 0.0
      %v931 = vmax.f32 %v835, 0.0
      %v932 = vmax.f32 %v836, 0.0
      %v933 = vmax.f32 %v837, 0.0
      %v934 = vmax.f32 %v838, 0.0
      %v935 = vmax.f32 %v839, 0.0
      %v936 = vmax.f32 %v840, 0.0
      %v937 = vmax.f32 %v841, 0.0
      %v938 = vmax.f32 %v842, 0.0
      %v939 = vmax.f32 %v843, 0.0
      %v940 = vmax.f32 %v844, 0.0
      %v941 = vmax.f32 %v845, 0.0
      %v942 = vmax.f32 %v846, 0.0
      %v943 = vmax.f32 %v847, 0.0
      %v944 = vmax.f32 %v848, 0.0
      %v945 = vmax.f32 %v849, 0.0
      %v946 = vmax.f32 %v850, 0.0
      %v947 = vmax.f32 %v851, 0.0
      %v948 = vmax.f32 %v852, 0.0
      %v949 = vmax.f32 %v853, 0.0
      %v950 = vmax.f32 %v854, 0.0
      %v951 = vmax.f32 %v855, 0.0
      %v952 = vmax.f32 %v856, 0.0
      %v953 = vmax.f32 %v857, 0.0
      %v954 = vmax.f32 %v858, 0.0
      %v955 = vmax.f32 %v859, 0.0
      %v956 = vmax.f32 %v860, 0.0
      %v957 = vmax.f32 %v861, 0.0
      %v958 = vmax.f32 %v862, 0.0
      %v959 = vmax.f32 %v863, 0.0
      %v960 = vmax.f32 %v864, 0.0
      %v961 = vmax.f32 %v865, 0.0
      %v962 = vmax.f32 %v866, 0.0
      %v963 = vmax.f32 %v867, 0.0
      %v964 = vmax.f32 %v868, 0.0
      %v965 = vmax.f32 %v869, 0.0
      %v966 = vmax.f32 %v870, 0.0
      %v967 = vmax.f32 %v871, 0.0
      %v968 = vmax.f32 %v872, 0.0
      %v969 = vmax.f32 %v873, 0.0
      %v970 = vmax.f32 %v874, 0.0
      %v971 = vmax.f32 %v875, 0.0
      %v972 = vmax.f32 %v876, 0.0
      %v973 = vmax.f32 %v877, 0.0
      %v974 = vmax.f32 %v878, 0.0
      %v975 = vmax.f32 %v879, 0.0
      %v976 = vmax.f32 %v880, 0.0
      %v977 = vmax.f32 %v881, 0.0
      %v978 = vmax.f32 %v882, 0.0
      %v979 = vmax.f32 %v883, 0.0
      %v980 = vmax.f32 %v884, 0.0
      %v981 = vmax.f32 %v885, 0.0
      %v982 = vmax.f32 %v886, 0.0
      %v983 = vmax.f32 %v887, 0.0
      %v984 = vmax.f32 %v888, 0.0
      %v985 = vmax.f32 %v889, 0.0
      %v986 = vmax.f32 %v890, 0.0
      %v987 = vmax.f32 %v891, 0.0
      %v988 = vmax.f32 %v892, 0.0
      %v989 = vmax.f32 %v893, 0.0
      %v990 = vmax.f32 %v894, 0.0
      %v991 = vmax.f32 %v895, 0.0
      %v992 = vld [vmem:[%s417] sm:$0x1]
      %v993 = vld [vmem:[%s417 + $0x1] sm:$0x1]
      %v994 = vld [vmem:[%s417 + $0x2] sm:$0x1]
      %v995 = vld [vmem:[%s417 + $0x3] sm:$0x1]
      %v1000 = vlaneseq
      %v1001 = vshrl.u32 %v1000, 7
      %v1002 = vsub.s32 0, %v1001
      %v1003 = vrot.slane %v992, %v1002
      %v1004 = vlaneseq
      %v1005 = vshrl.u32 %v1004, 7
      %v1006 = vsub.s32 0, %v1005
      %v1007 = vrot.slane %v993, %v1006
      %v1008 = vlaneseq
      %v1009 = vshrl.u32 %v1008, 7
      %v1010 = vsub.s32 0, %v1009
      %v1011 = vrot.slane %v994, %v1010
      %v1012 = vlaneseq
      %v1013 = vshrl.u32 %v1012, 7
      %v1014 = vsub.s32 0, %v1013
      %v1015 = vrot.slane %v995, %v1014
      %v1020 = vadd.f32 %v896, %v1003
      %v1021 = vadd.f32 %v897, %v1003
      %v1022 = vadd.f32 %v898, %v1003
      %v1023 = vadd.f32 %v899, %v1003
      %v1024 = vadd.f32 %v900, %v1003
      %v1025 = vadd.f32 %v901, %v1003
      %v1026 = vadd.f32 %v902, %v1003
      %v1027 = vadd.f32 %v903, %v1003
      %v1028 = vadd.f32 %v904, %v1003
      %v1029 = vadd.f32 %v905, %v1003
      %v1030 = vadd.f32 %v906, %v1003
      %v1031 = vadd.f32 %v907, %v1003
      %v1032 = vadd.f32 %v908, %v1003
      %v1033 = vadd.f32 %v909, %v1003
      %v1034 = vadd.f32 %v910, %v1003
      %v1035 = vadd.f32 %v911, %v1003
      %v1036 = vadd.f32 %v912, %v1003
      %v1037 = vadd.f32 %v913, %v1003
      %v1038 = vadd.f32 %v914, %v1003
      %v1039 = vadd.f32 %v915, %v1003
      %v1040 = vadd.f32 %v916, %v1003
      %v1041 = vadd.f32 %v917, %v1003
      %v1042 = vadd.f32 %v918, %v1003
      %v1043 = vadd.f32 %v919, %v1003
      %v1044 = vadd.f32 %v920, %v1007
      %v1045 = vadd.f32 %v921, %v1007
      %v1046 = vadd.f32 %v922, %v1007
      %v1047 = vadd.f32 %v923, %v1007
      %v1048 = vadd.f32 %v924, %v1007
      %v1049 = vadd.f32 %v925, %v1007
      %v1050 = vadd.f32 %v926, %v1007
      %v1051 = vadd.f32 %v927, %v1007
      %v1052 = vadd.f32 %v928, %v1007
      %v1053 = vadd.f32 %v929, %v1007
      %v1054 = vadd.f32 %v930, %v1007
      %v1055 = vadd.f32 %v931, %v1007
      %v1056 = vadd.f32 %v932, %v1007
      %v1057 = vadd.f32 %v933, %v1007
      %v1058 = vadd.f32 %v934, %v1007
      %v1059 = vadd.f32 %v935, %v1007
      %v1060 = vadd.f32 %v936, %v1007
      %v1061 = vadd.f32 %v937, %v1007
      %v1062 = vadd.f32 %v938, %v1007
      %v1063 = vadd.f32 %v939, %v1007
      %v1064 = vadd.f32 %v940, %v1007
      %v1065 = vadd.f32 %v941, %v1007
      %v1066 = vadd.f32 %v942, %v1007
      %v1067 = vadd.f32 %v943, %v1007
      %v1068 = vadd.f32 %v944, %v1011
      %v1069 = vadd.f32 %v945, %v1011
      %v1070 = vadd.f32 %v946, %v1011
      %v1071 = vadd.f32 %v947, %v1011
      %v1072 = vadd.f32 %v948, %v1011
      %v1073 = vadd.f32 %v949, %v1011
      %v1074 = vadd.f32 %v950, %v1011
      %v1075 = vadd.f32 %v951, %v1011
      %v1076 = vadd.f32 %v952, %v1011
      %v1077 = vadd.f32 %v953, %v1011
      %v1078 = vadd.f32 %v954, %v1011
      %v1079 = vadd.f32 %v955, %v1011
      %v1080 = vadd.f32 %v956, %v1011
      %v1081 = vadd.f32 %v957, %v1011
      %v1082 = vadd.f32 %v958, %v1011
      %v1083 = vadd.f32 %v959, %v1011
      %v1084 = vadd.f32 %v960, %v1011
      %v1085 = vadd.f32 %v961, %v1011
      %v1086 = vadd.f32 %v962, %v1011
      %v1087 = vadd.f32 %v963, %v1011
      %v1088 = vadd.f32 %v964, %v1011
      %v1089 = vadd.f32 %v965, %v1011
      %v1090 = vadd.f32 %v966, %v1011
      %v1091 = vadd.f32 %v967, %v1011
      %v1092 = vadd.f32 %v968, %v1015
      %v1093 = vadd.f32 %v969, %v1015
      %v1094 = vadd.f32 %v970, %v1015
      %v1095 = vadd.f32 %v971, %v1015
      %v1096 = vadd.f32 %v972, %v1015
      %v1097 = vadd.f32 %v973, %v1015
      %v1098 = vadd.f32 %v974, %v1015
      %v1099 = vadd.f32 %v975, %v1015
      %v1100 = vadd.f32 %v976, %v1015
      %v1101 = vadd.f32 %v977, %v1015
      %v1102 = vadd.f32 %v978, %v1015
      %v1103 = vadd.f32 %v979, %v1015
      %v1104 = vadd.f32 %v980, %v1015
      %v1105 = vadd.f32 %v981, %v1015
      %v1106 = vadd.f32 %v982, %v1015
      %v1107 = vadd.f32 %v983, %v1015
      %v1108 = vadd.f32 %v984, %v1015
      %v1109 = vadd.f32 %v985, %v1015
      %v1110 = vadd.f32 %v986, %v1015
      %v1111 = vadd.f32 %v987, %v1015
      %v1112 = vadd.f32 %v988, %v1015
      %v1113 = vadd.f32 %v989, %v1015
      %v1114 = vadd.f32 %v990, %v1015
      %v1115 = vadd.f32 %v991, %v1015
      %v1116 = vmul.f32 %v1020, 0.125
      %v1117 = vmul.f32 %v1021, 0.125
      %v1118 = vmul.f32 %v1022, 0.125
      %v1119 = vmul.f32 %v1023, 0.125
      %v1120 = vmul.f32 %v1024, 0.125
      %v1121 = vmul.f32 %v1025, 0.125
      %v1122 = vmul.f32 %v1026, 0.125
      %v1123 = vmul.f32 %v1027, 0.125
      %v1124 = vmul.f32 %v1028, 0.125
      %v1125 = vmul.f32 %v1029, 0.125
      %v1126 = vmul.f32 %v1030, 0.125
      %v1127 = vmul.f32 %v1031, 0.125
      %v1128 = vmul.f32 %v1032, 0.125
      %v1129 = vmul.f32 %v1033, 0.125
      %v1130 = vmul.f32 %v1034, 0.125
      %v1131 = vmul.f32 %v1035, 0.125
      %v1132 = vmul.f32 %v1036, 0.125
      %v1133 = vmul.f32 %v1037, 0.125
      %v1134 = vmul.f32 %v1038, 0.125
      %v1135 = vmul.f32 %v1039, 0.125
      %v1136 = vmul.f32 %v1040, 0.125
      %v1137 = vmul.f32 %v1041, 0.125
      %v1138 = vmul.f32 %v1042, 0.125
      %v1139 = vmul.f32 %v1043, 0.125
      %v1140 = vmul.f32 %v1044, 0.125
      %v1141 = vmul.f32 %v1045, 0.125
      %v1142 = vmul.f32 %v1046, 0.125
      %v1143 = vmul.f32 %v1047, 0.125
      %v1144 = vmul.f32 %v1048, 0.125
      %v1145 = vmul.f32 %v1049, 0.125
      %v1146 = vmul.f32 %v1050, 0.125
      %v1147 = vmul.f32 %v1051, 0.125
      %v1148 = vmul.f32 %v1052, 0.125
      %v1149 = vmul.f32 %v1053, 0.125
      %v1150 = vmul.f32 %v1054, 0.125
      %v1151 = vmul.f32 %v1055, 0.125
      %v1152 = vmul.f32 %v1056, 0.125
      %v1153 = vmul.f32 %v1057, 0.125
      %v1154 = vmul.f32 %v1058, 0.125
      %v1155 = vmul.f32 %v1059, 0.125
      %v1156 = vmul.f32 %v1060, 0.125
      %v1157 = vmul.f32 %v1061, 0.125
      %v1158 = vmul.f32 %v1062, 0.125
      %v1159 = vmul.f32 %v1063, 0.125
      %v1160 = vmul.f32 %v1064, 0.125
      %v1161 = vmul.f32 %v1065, 0.125
      %v1162 = vmul.f32 %v1066, 0.125
      %v1163 = vmul.f32 %v1067, 0.125
      %v1164 = vmul.f32 %v1068, 0.125
      %v1165 = vmul.f32 %v1069, 0.125
      %v1166 = vmul.f32 %v1070, 0.125
      %v1167 = vmul.f32 %v1071, 0.125
      %v1168 = vmul.f32 %v1072, 0.125
      %v1169 = vmul.f32 %v1073, 0.125
      %v1170 = vmul.f32 %v1074, 0.125
      %v1171 = vmul.f32 %v1075, 0.125
      %v1172 = vmul.f32 %v1076, 0.125
      %v1173 = vmul.f32 %v1077, 0.125
      %v1174 = vmul.f32 %v1078, 0.125
      %v1175 = vmul.f32 %v1079, 0.125
      %v1176 = vmul.f32 %v1080, 0.125
      %v1177 = vmul.f32 %v1081, 0.125
      %v1178 = vmul.f32 %v1082, 0.125
      %v1179 = vmul.f32 %v1083, 0.125
      %v1180 = vmul.f32 %v1084, 0.125
      %v1181 = vmul.f32 %v1085, 0.125
      %v1182 = vmul.f32 %v1086, 0.125
      %v1183 = vmul.f32 %v1087, 0.125
      %v1184 = vmul.f32 %v1088, 0.125
      %v1185 = vmul.f32 %v1089, 0.125
      %v1186 = vmul.f32 %v1090, 0.125
      %v1187 = vmul.f32 %v1091, 0.125
      %v1188 = vmul.f32 %v1092, 0.125
      %v1189 = vmul.f32 %v1093, 0.125
      %v1190 = vmul.f32 %v1094, 0.125
      %v1191 = vmul.f32 %v1095, 0.125
      %v1192 = vmul.f32 %v1096, 0.125
      %v1193 = vmul.f32 %v1097, 0.125
      %v1194 = vmul.f32 %v1098, 0.125
      %v1195 = vmul.f32 %v1099, 0.125
      %v1196 = vmul.f32 %v1100, 0.125
      %v1197 = vmul.f32 %v1101, 0.125
      %v1198 = vmul.f32 %v1102, 0.125
      %v1199 = vmul.f32 %v1103, 0.125
      %v1200 = vmul.f32 %v1104, 0.125
      %v1201 = vmul.f32 %v1105, 0.125
      %v1202 = vmul.f32 %v1106, 0.125
      %v1203 = vmul.f32 %v1107, 0.125
      %v1204 = vmul.f32 %v1108, 0.125
      %v1205 = vmul.f32 %v1109, 0.125
      %v1206 = vmul.f32 %v1110, 0.125
      %v1207 = vmul.f32 %v1111, 0.125
      %v1208 = vmul.f32 %v1112, 0.125
      %v1209 = vmul.f32 %v1113, 0.125
      %v1210 = vmul.f32 %v1114, 0.125
      %v1211 = vmul.f32 %v1115, 0.125
      %v1212 = vld [vmem:[%s6] sm:$0xff]
      %v1213 = vld [vmem:[%s6 + $0x8] sm:$0xff]
      %v1214 = vld [vmem:[%s6 + $0x10] sm:$0xff]
      %v1215 = vld [vmem:[%s6 + $0x18] sm:$0xff]
      %v1216 = vld [vmem:[%s6 + $0x20] sm:$0xff]
      %v1217 = vld [vmem:[%s6 + $0x28] sm:$0xff]
      %v1218 = vld [vmem:[%s6 + $0x30] sm:$0xff]
      %v1219 = vld [vmem:[%s6 + $0x38] sm:$0xff]
      %v1220 = vpack.c.bf16 %v1213, %v1212
      %v1221 = vpack.c.bf16 %v1215, %v1214
      %v1222 = vpack.c.bf16 %v1217, %v1216
      %v1223 = vpack.c.bf16 %v1219, %v1218
      %v1224 = vpack.c.bf16 %v529, %v528
      %v1225 = vpack.c.bf16 %v531, %v530
      %v1226 = vpack.c.bf16 %v533, %v532
      %v1227 = vpack.c.bf16 %v535, %v534
      %v1228 = vpack.c.bf16 %v537, %v536
      %v1229 = vpack.c.bf16 %v539, %v538
      %v1230 = vpack.c.bf16 %v541, %v540
      %v1231 = vpack.c.bf16 %v543, %v542
      %v1232 = vpack.c.bf16 %v545, %v544
      %v1233 = vpack.c.bf16 %v547, %v546
      %v1234 = vpack.c.bf16 %v549, %v548
      %v1235 = vpack.c.bf16 %v551, %v550
      %v1236 = vpack.c.bf16 %v553, %v552
      %v1237 = vpack.c.bf16 %v555, %v554
      %v1238 = vpack.c.bf16 %v557, %v556
      %v1239 = vpack.c.bf16 %v559, %v558
      %v1240 = vpack.c.bf16 %v561, %v560
      %v1241 = vpack.c.bf16 %v563, %v562
      %v1242 = vpack.c.bf16 %v565, %v564
      %v1243 = vpack.c.bf16 %v567, %v566
      %v1244 = vpack.c.bf16 %v569, %v568
      %v1245 = vpack.c.bf16 %v571, %v570
      %v1246 = vpack.c.bf16 %v573, %v572
      %v1247 = vpack.c.bf16 %v575, %v574
      %v1248 = vpack.c.bf16 %v577, %v576
      %v1249 = vpack.c.bf16 %v579, %v578
      %v1250 = vpack.c.bf16 %v581, %v580
      %v1251 = vpack.c.bf16 %v583, %v582
      %v1252 = vpack.c.bf16 %v585, %v584
      %v1253 = vpack.c.bf16 %v587, %v586
      %v1254 = vpack.c.bf16 %v589, %v588
      %v1255 = vpack.c.bf16 %v591, %v590
      %v1256 = vpack.c.bf16 %v593, %v592
      %v1257 = vpack.c.bf16 %v595, %v594
      %v1258 = vpack.c.bf16 %v597, %v596
      %v1259 = vpack.c.bf16 %v599, %v598
      %v1260 = vpack.c.bf16 %v601, %v600
      %v1261 = vpack.c.bf16 %v603, %v602
      %v1262 = vpack.c.bf16 %v605, %v604
      %v1263 = vpack.c.bf16 %v607, %v606
      %v1264 = vpack.c.bf16 %v609, %v608
      %v1265 = vpack.c.bf16 %v611, %v610
      %v1266 = vpack.c.bf16 %v613, %v612
      %v1267 = vpack.c.bf16 %v615, %v614
      %v1268 = vpack.c.bf16 %v617, %v616
      %v1269 = vpack.c.bf16 %v619, %v618
      %v1270 = vpack.c.bf16 %v621, %v620
      %v1271 = vpack.c.bf16 %v623, %v622
      %v1272 = vpack.c.bf16 %v625, %v624
      %v1273 = vpack.c.bf16 %v627, %v626
      %v1274 = vpack.c.bf16 %v629, %v628
      %v1275 = vpack.c.bf16 %v631, %v630
      %v1276 = vpack.c.bf16 %v633, %v632
      %v1277 = vpack.c.bf16 %v635, %v634
      %v1278 = vpack.c.bf16 %v637, %v636
      %v1279 = vpack.c.bf16 %v639, %v638
      %v1280 = vpack.c.bf16 %v641, %v640
      %v1281 = vpack.c.bf16 %v643, %v642
      %v1282 = vpack.c.bf16 %v645, %v644
      %v1283 = vpack.c.bf16 %v647, %v646
      %v1284 = vpack.c.bf16 %v649, %v648
      %v1285 = vpack.c.bf16 %v651, %v650
      %v1286 = vpack.c.bf16 %v653, %v652
      %v1287 = vpack.c.bf16 %v655, %v654
      %vm1288 = vcmask 523264
      %v1290 = vsel %vm1288, %v1224, 0
      %v1293 = vsel %vm1288, %v1225, 0
      %v1296 = vsel %vm1288, %v1226, 0
      %v1299 = vsel %vm1288, %v1227, 0
      %v1302 = vsel %vm1288, %v1228, 0
      %v1305 = vsel %vm1288, %v1229, 0
      %v1308 = vsel %vm1288, %v1230, 0
      %v1311 = vsel %vm1288, %v1231, 0
      %v1314 = vsel %vm1288, %v1232, 0
      %v1317 = vsel %vm1288, %v1233, 0
      %v1320 = vsel %vm1288, %v1234, 0
      %v1323 = vsel %vm1288, %v1235, 0
      %v1326 = vsel %vm1288, %v1236, 0
      %v1329 = vsel %vm1288, %v1237, 0
      %v1332 = vsel %vm1288, %v1238, 0
      %v1335 = vsel %vm1288, %v1239, 0
      %1337 = vmatprep.subr.bf16.mxu0 0
      %1338 = vmatpush1.bf16.msra.mxu0 0
      %1339 = vmatprep.subr.bf16.mxu0 0
      %1340 = vmatpush1.bf16.msra.mxu0 0
      %1341 = vmatprep.subr.bf16.mxu0 0
      %1342 = vmatpush1.bf16.msra.mxu0 0
      %1343 = vmatprep.subr.bf16.mxu0 0
      %1344 = vmatpush1.bf16.msra.mxu0 0
      %1345 = vmatprep.subr.bf16.mxu0 0
      %1346 = vmatpush1.bf16.msra.mxu0 %v1223
      %1347 = vmatprep.subr.bf16.mxu0 0
      %1348 = vmatpush1.bf16.msra.mxu0 %v1222
      %1349 = vmatprep.subr.bf16.mxu0 0
      %1350 = vmatpush1.bf16.msra.mxu0 %v1221
      %1351 = vmatprep.subr.bf16.mxu0 0
      %1352 = vmatpush1.bf16.msra.mxu0 %v1220
      %1353 = vmatprep.subr.bf16.mxu0 0
      %1354 = vmatpush2.bf16.msra.mxu0 0
      %1355 = vmatprep.subr.bf16.mxu0 0
      %1356 = vmatpush2.bf16.msra.mxu0 0
      %1357 = vmatprep.subr.bf16.mxu0 0
      %1358 = vmatpush2.bf16.msra.mxu0 0
      %1359 = vmatprep.subr.bf16.mxu0 0
      %1360 = vmatpush2.bf16.msra.mxu0 0
      %1361 = vmatprep.subr.bf16.mxu0 0
      %1362 = vmatpush2.bf16.msra.mxu0 0
      %1363 = vmatprep.subr.bf16.mxu0 0
      %1364 = vmatpush2.bf16.msra.mxu0 0
      %1365 = vmatprep.subr.bf16.mxu0 0
      %1366 = vmatpush2.bf16.msra.mxu0 0
      %1367 = vmatprep.subr.bf16.mxu0 0
      %1368 = vmatpush2.bf16.msra.mxu0 0
      %1369 = vmatprep.mubr.bf16.mxu0 0
      %1370 = vmatmul.mubr.bf16.gmra.mxu0 %v1290
      %v1371 = vpop.f32.mrf.mxu0
      %v1372 = vadd.f32 0.0, %v1371
      %v1373 = vpop.f32.mrf.mxu0
      %v1374 = vpop.f32.mrf.mxu0
      %v1375 = vadd.f32 0.0, %v1374
      %v1376 = vpop.f32.mrf.mxu0
      %1377 = vmatprep.mubr.bf16.mxu0 0
      %1378 = vmatmul.mubr.bf16.gmra.mxu0 %v1293
      %v1379 = vpop.f32.mrf.mxu0
      %v1380 = vadd.f32 0.0, %v1379
      %v1381 = vpop.f32.mrf.mxu0
      %v1382 = vpop.f32.mrf.mxu0
      %v1383 = vadd.f32 0.0, %v1382
      %v1384 = vpop.f32.mrf.mxu0
      %1385 = vmatprep.mubr.bf16.mxu0 0
      %1386 = vmatmul.mubr.bf16.gmra.mxu0 %v1296
      %v1387 = vpop.f32.mrf.mxu0
      %v1388 = vadd.f32 0.0, %v1387
      %v1389 = vpop.f32.mrf.mxu0
      %v1390 = vpop.f32.mrf.mxu0
      %v1391 = vadd.f32 0.0, %v1390
      %v1392 = vpop.f32.mrf.mxu0
      %1393 = vmatprep.mubr.bf16.mxu0 0
      %1394 = vmatmul.mubr.bf16.gmra.mxu0 %v1299
      %v1395 = vpop.f32.mrf.mxu0
      %v1396 = vadd.f32 0.0, %v1395
      %v1397 = vpop.f32.mrf.mxu0
      %v1398 = vpop.f32.mrf.mxu0
      %v1399 = vadd.f32 0.0, %v1398
      %v1400 = vpop.f32.mrf.mxu0
      %1401 = vmatprep.mubr.bf16.mxu0 0
      %1402 = vmatmul.mubr.bf16.gmra.mxu0 %v1302
      %v1403 = vpop.f32.mrf.mxu0
      %v1404 = vadd.f32 0.0, %v1403
      %v1405 = vpop.f32.mrf.mxu0
      %v1406 = vpop.f32.mrf.mxu0
      %v1407 = vadd.f32 0.0, %v1406
      %v1408 = vpop.f32.mrf.mxu0
      %1409 = vmatprep.mubr.bf16.mxu0 0
      %1410 = vmatmul.mubr.bf16.gmra.mxu0 %v1305
      %v1411 = vpop.f32.mrf.mxu0
      %v1412 = vadd.f32 0.0, %v1411
      %v1413 = vpop.f32.mrf.mxu0
      %v1414 = vpop.f32.mrf.mxu0
      %v1415 = vadd.f32 0.0, %v1414
      %v1416 = vpop.f32.mrf.mxu0
      %1417 = vmatprep.mubr.bf16.mxu0 0
      %1418 = vmatmul.mubr.bf16.gmra.mxu0 %v1308
      %v1419 = vpop.f32.mrf.mxu0
      %v1420 = vadd.f32 0.0, %v1419
      %v1421 = vpop.f32.mrf.mxu0
      %v1422 = vpop.f32.mrf.mxu0
      %v1423 = vadd.f32 0.0, %v1422
      %v1424 = vpop.f32.mrf.mxu0
      %1425 = vmatprep.mubr.bf16.mxu0 0
      %1426 = vmatmul.mubr.bf16.gmra.mxu0 %v1311
      %v1427 = vpop.f32.mrf.mxu0
      %v1428 = vadd.f32 0.0, %v1427
      %v1429 = vpop.f32.mrf.mxu0
      %v1430 = vpop.f32.mrf.mxu0
      %v1431 = vadd.f32 0.0, %v1430
      %v1432 = vpop.f32.mrf.mxu0
      %1433 = vmatprep.mubr.bf16.mxu0 0
      %1434 = vmatmul.mubr.bf16.gmra.mxu0 %v1314
      %v1435 = vpop.f32.mrf.mxu0
      %v1436 = vadd.f32 0.0, %v1435
      %v1437 = vpop.f32.mrf.mxu0
      %v1438 = vpop.f32.mrf.mxu0
      %v1439 = vadd.f32 0.0, %v1438
      %v1440 = vpop.f32.mrf.mxu0
      %1441 = vmatprep.mubr.bf16.mxu0 0
      %1442 = vmatmul.mubr.bf16.gmra.mxu0 %v1317
      %v1443 = vpop.f32.mrf.mxu0
      %v1444 = vadd.f32 0.0, %v1443
      %v1445 = vpop.f32.mrf.mxu0
      %v1446 = vpop.f32.mrf.mxu0
      %v1447 = vadd.f32 0.0, %v1446
      %v1448 = vpop.f32.mrf.mxu0
      %1449 = vmatprep.mubr.bf16.mxu0 0
      %1450 = vmatmul.mubr.bf16.gmra.mxu0 %v1320
      %v1451 = vpop.f32.mrf.mxu0
      %v1452 = vadd.f32 0.0, %v1451
      %v1453 = vpop.f32.mrf.mxu0
      %v1454 = vpop.f32.mrf.mxu0
      %v1455 = vadd.f32 0.0, %v1454
      %v1456 = vpop.f32.mrf.mxu0
      %1457 = vmatprep.mubr.bf16.mxu0 0
      %1458 = vmatmul.mubr.bf16.gmra.mxu0 %v1323
      %v1459 = vpop.f32.mrf.mxu0
      %v1460 = vadd.f32 0.0, %v1459
      %v1461 = vpop.f32.mrf.mxu0
      %v1462 = vpop.f32.mrf.mxu0
      %v1463 = vadd.f32 0.0, %v1462
      %v1464 = vpop.f32.mrf.mxu0
      %1465 = vmatprep.mubr.bf16.mxu0 0
      %1466 = vmatmul.mubr.bf16.gmra.mxu0 %v1326
      %v1467 = vpop.f32.mrf.mxu0
      %v1468 = vadd.f32 0.0, %v1467
      %v1469 = vpop.f32.mrf.mxu0
      %v1470 = vpop.f32.mrf.mxu0
      %v1471 = vadd.f32 0.0, %v1470
      %v1472 = vpop.f32.mrf.mxu0
      %1473 = vmatprep.mubr.bf16.mxu0 0
      %1474 = vmatmul.mubr.bf16.gmra.mxu0 %v1329
      %v1475 = vpop.f32.mrf.mxu0
      %v1476 = vadd.f32 0.0, %v1475
      %v1477 = vpop.f32.mrf.mxu0
      %v1478 = vpop.f32.mrf.mxu0
      %v1479 = vadd.f32 0.0, %v1478
      %v1480 = vpop.f32.mrf.mxu0
      %1481 = vmatprep.mubr.bf16.mxu0 0
      %1482 = vmatmul.mubr.bf16.gmra.mxu0 %v1332
      %v1483 = vpop.f32.mrf.mxu0
      %v1484 = vadd.f32 0.0, %v1483
      %v1485 = vpop.f32.mrf.mxu0
      %v1486 = vpop.f32.mrf.mxu0
      %v1487 = vadd.f32 0.0, %v1486
      %v1488 = vpop.f32.mrf.mxu0
      %1489 = vmatprep.mubr.bf16.mxu0 0
      %1490 = vmatmul.mubr.bf16.gmra.mxu0 %v1335
      %v1491 = vpop.f32.mrf.mxu0
      %v1492 = vadd.f32 0.0, %v1491
      %v1493 = vpop.f32.mrf.mxu0
      %v1494 = vpop.f32.mrf.mxu0
      %v1495 = vadd.f32 0.0, %v1494
      %v1496 = vpop.f32.mrf.mxu0
      %1497 = vdwg.mxu0
      %v1499 = vsel %vm1288, %v1240, 0
      %v1502 = vsel %vm1288, %v1241, 0
      %v1505 = vsel %vm1288, %v1242, 0
      %v1508 = vsel %vm1288, %v1243, 0
      %v1511 = vsel %vm1288, %v1244, 0
      %v1514 = vsel %vm1288, %v1245, 0
      %v1517 = vsel %vm1288, %v1246, 0
      %v1520 = vsel %vm1288, %v1247, 0
      %v1523 = vsel %vm1288, %v1248, 0
      %v1526 = vsel %vm1288, %v1249, 0
      %v1529 = vsel %vm1288, %v1250, 0
      %v1532 = vsel %vm1288, %v1251, 0
      %v1535 = vsel %vm1288, %v1252, 0
      %v1538 = vsel %vm1288, %v1253, 0
      %v1541 = vsel %vm1288, %v1254, 0
      %v1544 = vsel %vm1288, %v1255, 0
      %1546 = vmatprep.subr.bf16.mxu0 0
      %1547 = vmatpush1.bf16.msra.mxu0 0
      %1548 = vmatprep.subr.bf16.mxu0 0
      %1549 = vmatpush1.bf16.msra.mxu0 0
      %1550 = vmatprep.subr.bf16.mxu0 0
      %1551 = vmatpush1.bf16.msra.mxu0 0
      %1552 = vmatprep.subr.bf16.mxu0 0
      %1553 = vmatpush1.bf16.msra.mxu0 0
      %1554 = vmatprep.subr.bf16.mxu0 0
      %1555 = vmatpush1.bf16.msra.mxu0 %v1223
      %1556 = vmatprep.subr.bf16.mxu0 0
      %1557 = vmatpush1.bf16.msra.mxu0 %v1222
      %1558 = vmatprep.subr.bf16.mxu0 0
      %1559 = vmatpush1.bf16.msra.mxu0 %v1221
      %1560 = vmatprep.subr.bf16.mxu0 0
      %1561 = vmatpush1.bf16.msra.mxu0 %v1220
      %1562 = vmatprep.subr.bf16.mxu0 0
      %1563 = vmatpush2.bf16.msra.mxu0 0
      %1564 = vmatprep.subr.bf16.mxu0 0
      %1565 = vmatpush2.bf16.msra.mxu0 0
      %1566 = vmatprep.subr.bf16.mxu0 0
      %1567 = vmatpush2.bf16.msra.mxu0 0
      %1568 = vmatprep.subr.bf16.mxu0 0
      %1569 = vmatpush2.bf16.msra.mxu0 0
      %1570 = vmatprep.subr.bf16.mxu0 0
      %1571 = vmatpush2.bf16.msra.mxu0 0
      %1572 = vmatprep.subr.bf16.mxu0 0
      %1573 = vmatpush2.bf16.msra.mxu0 0
      %1574 = vmatprep.subr.bf16.mxu0 0
      %1575 = vmatpush2.bf16.msra.mxu0 0
      %1576 = vmatprep.subr.bf16.mxu0 0
      %1577 = vmatpush2.bf16.msra.mxu0 0
      %1578 = vmatprep.mubr.bf16.mxu0 0
      %1579 = vmatmul.mubr.bf16.gmra.mxu0 %v1499
      %v1580 = vpop.f32.mrf.mxu0
      %v1581 = vadd.f32 0.0, %v1580
      %v1582 = vpop.f32.mrf.mxu0
      %v1583 = vpop.f32.mrf.mxu0
      %v1584 = vadd.f32 0.0, %v1583
      %v1585 = vpop.f32.mrf.mxu0
      %1586 = vmatprep.mubr.bf16.mxu0 0
      %1587 = vmatmul.mubr.bf16.gmra.mxu0 %v1502
      %v1588 = vpop.f32.mrf.mxu0
      %v1589 = vadd.f32 0.0, %v1588
      %v1590 = vpop.f32.mrf.mxu0
      %v1591 = vpop.f32.mrf.mxu0
      %v1592 = vadd.f32 0.0, %v1591
      %v1593 = vpop.f32.mrf.mxu0
      %1594 = vmatprep.mubr.bf16.mxu0 0
      %1595 = vmatmul.mubr.bf16.gmra.mxu0 %v1505
      %v1596 = vpop.f32.mrf.mxu0
      %v1597 = vadd.f32 0.0, %v1596
      %v1598 = vpop.f32.mrf.mxu0
      %v1599 = vpop.f32.mrf.mxu0
      %v1600 = vadd.f32 0.0, %v1599
      %v1601 = vpop.f32.mrf.mxu0
      %1602 = vmatprep.mubr.bf16.mxu0 0
      %1603 = vmatmul.mubr.bf16.gmra.mxu0 %v1508
      %v1604 = vpop.f32.mrf.mxu0
      %v1605 = vadd.f32 0.0, %v1604
      %v1606 = vpop.f32.mrf.mxu0
      %v1607 = vpop.f32.mrf.mxu0
      %v1608 = vadd.f32 0.0, %v1607
      %v1609 = vpop.f32.mrf.mxu0
      %1610 = vmatprep.mubr.bf16.mxu0 0
      %1611 = vmatmul.mubr.bf16.gmra.mxu0 %v1511
      %v1612 = vpop.f32.mrf.mxu0
      %v1613 = vadd.f32 0.0, %v1612
      %v1614 = vpop.f32.mrf.mxu0
      %v1615 = vpop.f32.mrf.mxu0
      %v1616 = vadd.f32 0.0, %v1615
      %v1617 = vpop.f32.mrf.mxu0
      %1618 = vmatprep.mubr.bf16.mxu0 0
      %1619 = vmatmul.mubr.bf16.gmra.mxu0 %v1514
      %v1620 = vpop.f32.mrf.mxu0
      %v1621 = vadd.f32 0.0, %v1620
      %v1622 = vpop.f32.mrf.mxu0
      %v1623 = vpop.f32.mrf.mxu0
      %v1624 = vadd.f32 0.0, %v1623
      %v1625 = vpop.f32.mrf.mxu0
      %1626 = vmatprep.mubr.bf16.mxu0 0
      %1627 = vmatmul.mubr.bf16.gmra.mxu0 %v1517
      %v1628 = vpop.f32.mrf.mxu0
      %v1629 = vadd.f32 0.0, %v1628
      %v1630 = vpop.f32.mrf.mxu0
      %v1631 = vpop.f32.mrf.mxu0
      %v1632 = vadd.f32 0.0, %v1631
      %v1633 = vpop.f32.mrf.mxu0
      %1634 = vmatprep.mubr.bf16.mxu0 0
      %1635 = vmatmul.mubr.bf16.gmra.mxu0 %v1520
      %v1636 = vpop.f32.mrf.mxu0
      %v1637 = vadd.f32 0.0, %v1636
      %v1638 = vpop.f32.mrf.mxu0
      %v1639 = vpop.f32.mrf.mxu0
      %v1640 = vadd.f32 0.0, %v1639
      %v1641 = vpop.f32.mrf.mxu0
      %1642 = vmatprep.mubr.bf16.mxu0 0
      %1643 = vmatmul.mubr.bf16.gmra.mxu0 %v1523
      %v1644 = vpop.f32.mrf.mxu0
      %v1645 = vadd.f32 0.0, %v1644
      %v1646 = vpop.f32.mrf.mxu0
      %v1647 = vpop.f32.mrf.mxu0
      %v1648 = vadd.f32 0.0, %v1647
      %v1649 = vpop.f32.mrf.mxu0
      %1650 = vmatprep.mubr.bf16.mxu0 0
      %1651 = vmatmul.mubr.bf16.gmra.mxu0 %v1526
      %v1652 = vpop.f32.mrf.mxu0
      %v1653 = vadd.f32 0.0, %v1652
      %v1654 = vpop.f32.mrf.mxu0
      %v1655 = vpop.f32.mrf.mxu0
      %v1656 = vadd.f32 0.0, %v1655
      %v1657 = vpop.f32.mrf.mxu0
      %1658 = vmatprep.mubr.bf16.mxu0 0
      %1659 = vmatmul.mubr.bf16.gmra.mxu0 %v1529
      %v1660 = vpop.f32.mrf.mxu0
      %v1661 = vadd.f32 0.0, %v1660
      %v1662 = vpop.f32.mrf.mxu0
      %v1663 = vpop.f32.mrf.mxu0
      %v1664 = vadd.f32 0.0, %v1663
      %v1665 = vpop.f32.mrf.mxu0
      %1666 = vmatprep.mubr.bf16.mxu0 0
      %1667 = vmatmul.mubr.bf16.gmra.mxu0 %v1532
      %v1668 = vpop.f32.mrf.mxu0
      %v1669 = vadd.f32 0.0, %v1668
      %v1670 = vpop.f32.mrf.mxu0
      %v1671 = vpop.f32.mrf.mxu0
      %v1672 = vadd.f32 0.0, %v1671
      %v1673 = vpop.f32.mrf.mxu0
      %1674 = vmatprep.mubr.bf16.mxu0 0
      %1675 = vmatmul.mubr.bf16.gmra.mxu0 %v1535
      %v1676 = vpop.f32.mrf.mxu0
      %v1677 = vadd.f32 0.0, %v1676
      %v1678 = vpop.f32.mrf.mxu0
      %v1679 = vpop.f32.mrf.mxu0
      %v1680 = vadd.f32 0.0, %v1679
      %v1681 = vpop.f32.mrf.mxu0
      %1682 = vmatprep.mubr.bf16.mxu0 0
      %1683 = vmatmul.mubr.bf16.gmra.mxu0 %v1538
      %v1684 = vpop.f32.mrf.mxu0
      %v1685 = vadd.f32 0.0, %v1684
      %v1686 = vpop.f32.mrf.mxu0
      %v1687 = vpop.f32.mrf.mxu0
      %v1688 = vadd.f32 0.0, %v1687
      %v1689 = vpop.f32.mrf.mxu0
      %1690 = vmatprep.mubr.bf16.mxu0 0
      %1691 = vmatmul.mubr.bf16.gmra.mxu0 %v1541
      %v1692 = vpop.f32.mrf.mxu0
      %v1693 = vadd.f32 0.0, %v1692
      %v1694 = vpop.f32.mrf.mxu0
      %v1695 = vpop.f32.mrf.mxu0
      %v1696 = vadd.f32 0.0, %v1695
      %v1697 = vpop.f32.mrf.mxu0
      %1698 = vmatprep.mubr.bf16.mxu0 0
      %1699 = vmatmul.mubr.bf16.gmra.mxu0 %v1544
      %v1700 = vpop.f32.mrf.mxu0
      %v1701 = vadd.f32 0.0, %v1700
      %v1702 = vpop.f32.mrf.mxu0
      %v1703 = vpop.f32.mrf.mxu0
      %v1704 = vadd.f32 0.0, %v1703
      %v1705 = vpop.f32.mrf.mxu0
      %1706 = vdwg.mxu0
      %v1708 = vsel %vm1288, %v1256, 0
      %v1711 = vsel %vm1288, %v1257, 0
      %v1714 = vsel %vm1288, %v1258, 0
      %v1717 = vsel %vm1288, %v1259, 0
      %v1720 = vsel %vm1288, %v1260, 0
      %v1723 = vsel %vm1288, %v1261, 0
      %v1726 = vsel %vm1288, %v1262, 0
      %v1729 = vsel %vm1288, %v1263, 0
      %v1732 = vsel %vm1288, %v1264, 0
      %v1735 = vsel %vm1288, %v1265, 0
      %v1738 = vsel %vm1288, %v1266, 0
      %v1741 = vsel %vm1288, %v1267, 0
      %v1744 = vsel %vm1288, %v1268, 0
      %v1747 = vsel %vm1288, %v1269, 0
      %v1750 = vsel %vm1288, %v1270, 0
      %v1753 = vsel %vm1288, %v1271, 0
      %1755 = vmatprep.subr.bf16.mxu0 0
      %1756 = vmatpush1.bf16.msra.mxu0 0
      %1757 = vmatprep.subr.bf16.mxu0 0
      %1758 = vmatpush1.bf16.msra.mxu0 0
      %1759 = vmatprep.subr.bf16.mxu0 0
      %1760 = vmatpush1.bf16.msra.mxu0 0
      %1761 = vmatprep.subr.bf16.mxu0 0
      %1762 = vmatpush1.bf16.msra.mxu0 0
      %1763 = vmatprep.subr.bf16.mxu0 0
      %1764 = vmatpush1.bf16.msra.mxu0 %v1223
      %1765 = vmatprep.subr.bf16.mxu0 0
      %1766 = vmatpush1.bf16.msra.mxu0 %v1222
      %1767 = vmatprep.subr.bf16.mxu0 0
      %1768 = vmatpush1.bf16.msra.mxu0 %v1221
      %1769 = vmatprep.subr.bf16.mxu0 0
      %1770 = vmatpush1.bf16.msra.mxu0 %v1220
      %1771 = vmatprep.subr.bf16.mxu0 0
      %1772 = vmatpush2.bf16.msra.mxu0 0
      %1773 = vmatprep.subr.bf16.mxu0 0
      %1774 = vmatpush2.bf16.msra.mxu0 0
      %1775 = vmatprep.subr.bf16.mxu0 0
      %1776 = vmatpush2.bf16.msra.mxu0 0
      %1777 = vmatprep.subr.bf16.mxu0 0
      %1778 = vmatpush2.bf16.msra.mxu0 0
      %1779 = vmatprep.subr.bf16.mxu0 0
      %1780 = vmatpush2.bf16.msra.mxu0 0
      %1781 = vmatprep.subr.bf16.mxu0 0
      %1782 = vmatpush2.bf16.msra.mxu0 0
      %1783 = vmatprep.subr.bf16.mxu0 0
      %1784 = vmatpush2.bf16.msra.mxu0 0
      %1785 = vmatprep.subr.bf16.mxu0 0
      %1786 = vmatpush2.bf16.msra.mxu0 0
      %1787 = vmatprep.mubr.bf16.mxu0 0
      %1788 = vmatmul.mubr.bf16.gmra.mxu0 %v1708
      %v1789 = vpop.f32.mrf.mxu0
      %v1790 = vadd.f32 0.0, %v1789
      %v1791 = vpop.f32.mrf.mxu0
      %v1792 = vpop.f32.mrf.mxu0
      %v1793 = vadd.f32 0.0, %v1792
      %v1794 = vpop.f32.mrf.mxu0
      %1795 = vmatprep.mubr.bf16.mxu0 0
      %1796 = vmatmul.mubr.bf16.gmra.mxu0 %v1711
      %v1797 = vpop.f32.mrf.mxu0
      %v1798 = vadd.f32 0.0, %v1797
      %v1799 = vpop.f32.mrf.mxu0
      %v1800 = vpop.f32.mrf.mxu0
      %v1801 = vadd.f32 0.0, %v1800
      %v1802 = vpop.f32.mrf.mxu0
      %1803 = vmatprep.mubr.bf16.mxu0 0
      %1804 = vmatmul.mubr.bf16.gmra.mxu0 %v1714
      %v1805 = vpop.f32.mrf.mxu0
      %v1806 = vadd.f32 0.0, %v1805
      %v1807 = vpop.f32.mrf.mxu0
      %v1808 = vpop.f32.mrf.mxu0
      %v1809 = vadd.f32 0.0, %v1808
      %v1810 = vpop.f32.mrf.mxu0
      %1811 = vmatprep.mubr.bf16.mxu0 0
      %1812 = vmatmul.mubr.bf16.gmra.mxu0 %v1717
      %v1813 = vpop.f32.mrf.mxu0
      %v1814 = vadd.f32 0.0, %v1813
      %v1815 = vpop.f32.mrf.mxu0
      %v1816 = vpop.f32.mrf.mxu0
      %v1817 = vadd.f32 0.0, %v1816
      %v1818 = vpop.f32.mrf.mxu0
      %1819 = vmatprep.mubr.bf16.mxu0 0
      %1820 = vmatmul.mubr.bf16.gmra.mxu0 %v1720
      %v1821 = vpop.f32.mrf.mxu0
      %v1822 = vadd.f32 0.0, %v1821
      %v1823 = vpop.f32.mrf.mxu0
      %v1824 = vpop.f32.mrf.mxu0
      %v1825 = vadd.f32 0.0, %v1824
      %v1826 = vpop.f32.mrf.mxu0
      %1827 = vmatprep.mubr.bf16.mxu0 0
      %1828 = vmatmul.mubr.bf16.gmra.mxu0 %v1723
      %v1829 = vpop.f32.mrf.mxu0
      %v1830 = vadd.f32 0.0, %v1829
      %v1831 = vpop.f32.mrf.mxu0
      %v1832 = vpop.f32.mrf.mxu0
      %v1833 = vadd.f32 0.0, %v1832
      %v1834 = vpop.f32.mrf.mxu0
      %1835 = vmatprep.mubr.bf16.mxu0 0
      %1836 = vmatmul.mubr.bf16.gmra.mxu0 %v1726
      %v1837 = vpop.f32.mrf.mxu0
      %v1838 = vadd.f32 0.0, %v1837
      %v1839 = vpop.f32.mrf.mxu0
      %v1840 = vpop.f32.mrf.mxu0
      %v1841 = vadd.f32 0.0, %v1840
      %v1842 = vpop.f32.mrf.mxu0
      %1843 = vmatprep.mubr.bf16.mxu0 0
      %1844 = vmatmul.mubr.bf16.gmra.mxu0 %v1729
      %v1845 = vpop.f32.mrf.mxu0
      %v1846 = vadd.f32 0.0, %v1845
      %v1847 = vpop.f32.mrf.mxu0
      %v1848 = vpop.f32.mrf.mxu0
      %v1849 = vadd.f32 0.0, %v1848
      %v1850 = vpop.f32.mrf.mxu0
      %1851 = vmatprep.mubr.bf16.mxu0 0
      %1852 = vmatmul.mubr.bf16.gmra.mxu0 %v1732
      %v1853 = vpop.f32.mrf.mxu0
      %v1854 = vadd.f32 0.0, %v1853
      %v1855 = vpop.f32.mrf.mxu0
      %v1856 = vpop.f32.mrf.mxu0
      %v1857 = vadd.f32 0.0, %v1856
      %v1858 = vpop.f32.mrf.mxu0
      %1859 = vmatprep.mubr.bf16.mxu0 0
      %1860 = vmatmul.mubr.bf16.gmra.mxu0 %v1735
      %v1861 = vpop.f32.mrf.mxu0
      %v1862 = vadd.f32 0.0, %v1861
      %v1863 = vpop.f32.mrf.mxu0
      %v1864 = vpop.f32.mrf.mxu0
      %v1865 = vadd.f32 0.0, %v1864
      %v1866 = vpop.f32.mrf.mxu0
      %1867 = vmatprep.mubr.bf16.mxu0 0
      %1868 = vmatmul.mubr.bf16.gmra.mxu0 %v1738
      %v1869 = vpop.f32.mrf.mxu0
      %v1870 = vadd.f32 0.0, %v1869
      %v1871 = vpop.f32.mrf.mxu0
      %v1872 = vpop.f32.mrf.mxu0
      %v1873 = vadd.f32 0.0, %v1872
      %v1874 = vpop.f32.mrf.mxu0
      %1875 = vmatprep.mubr.bf16.mxu0 0
      %1876 = vmatmul.mubr.bf16.gmra.mxu0 %v1741
      %v1877 = vpop.f32.mrf.mxu0
      %v1878 = vadd.f32 0.0, %v1877
      %v1879 = vpop.f32.mrf.mxu0
      %v1880 = vpop.f32.mrf.mxu0
      %v1881 = vadd.f32 0.0, %v1880
      %v1882 = vpop.f32.mrf.mxu0
      %1883 = vmatprep.mubr.bf16.mxu0 0
      %1884 = vmatmul.mubr.bf16.gmra.mxu0 %v1744
      %v1885 = vpop.f32.mrf.mxu0
      %v1886 = vadd.f32 0.0, %v1885
      %v1887 = vpop.f32.mrf.mxu0
      %v1888 = vpop.f32.mrf.mxu0
      %v1889 = vadd.f32 0.0, %v1888
      %v1890 = vpop.f32.mrf.mxu0
      %1891 = vmatprep.mubr.bf16.mxu0 0
      %1892 = vmatmul.mubr.bf16.gmra.mxu0 %v1747
      %v1893 = vpop.f32.mrf.mxu0
      %v1894 = vadd.f32 0.0, %v1893
      %v1895 = vpop.f32.mrf.mxu0
      %v1896 = vpop.f32.mrf.mxu0
      %v1897 = vadd.f32 0.0, %v1896
      %v1898 = vpop.f32.mrf.mxu0
      %1899 = vmatprep.mubr.bf16.mxu0 0
      %1900 = vmatmul.mubr.bf16.gmra.mxu0 %v1750
      %v1901 = vpop.f32.mrf.mxu0
      %v1902 = vadd.f32 0.0, %v1901
      %v1903 = vpop.f32.mrf.mxu0
      %v1904 = vpop.f32.mrf.mxu0
      %v1905 = vadd.f32 0.0, %v1904
      %v1906 = vpop.f32.mrf.mxu0
      %1907 = vmatprep.mubr.bf16.mxu0 0
      %1908 = vmatmul.mubr.bf16.gmra.mxu0 %v1753
      %v1909 = vpop.f32.mrf.mxu0
      %v1910 = vadd.f32 0.0, %v1909
      %v1911 = vpop.f32.mrf.mxu0
      %v1912 = vpop.f32.mrf.mxu0
      %v1913 = vadd.f32 0.0, %v1912
      %v1914 = vpop.f32.mrf.mxu0
      %1915 = vdwg.mxu0
      %v1917 = vsel %vm1288, %v1272, 0
      %v1920 = vsel %vm1288, %v1273, 0
      %v1923 = vsel %vm1288, %v1274, 0
      %v1926 = vsel %vm1288, %v1275, 0
      %v1929 = vsel %vm1288, %v1276, 0
      %v1932 = vsel %vm1288, %v1277, 0
      %v1935 = vsel %vm1288, %v1278, 0
      %v1938 = vsel %vm1288, %v1279, 0
      %v1941 = vsel %vm1288, %v1280, 0
      %v1944 = vsel %vm1288, %v1281, 0
      %v1947 = vsel %vm1288, %v1282, 0
      %v1950 = vsel %vm1288, %v1283, 0
      %v1953 = vsel %vm1288, %v1284, 0
      %v1956 = vsel %vm1288, %v1285, 0
      %v1959 = vsel %vm1288, %v1286, 0
      %v1962 = vsel %vm1288, %v1287, 0
      %1964 = vmatprep.subr.bf16.mxu0 0
      %1965 = vmatpush1.bf16.msra.mxu0 0
      %1966 = vmatprep.subr.bf16.mxu0 0
      %1967 = vmatpush1.bf16.msra.mxu0 0
      %1968 = vmatprep.subr.bf16.mxu0 0
      %1969 = vmatpush1.bf16.msra.mxu0 0
      %1970 = vmatprep.subr.bf16.mxu0 0
      %1971 = vmatpush1.bf16.msra.mxu0 0
      %1972 = vmatprep.subr.bf16.mxu0 0
      %1973 = vmatpush1.bf16.msra.mxu0 %v1223
      %1974 = vmatprep.subr.bf16.mxu0 0
      %1975 = vmatpush1.bf16.msra.mxu0 %v1222
      %1976 = vmatprep.subr.bf16.mxu0 0
      %1977 = vmatpush1.bf16.msra.mxu0 %v1221
      %1978 = vmatprep.subr.bf16.mxu0 0
      %1979 = vmatpush1.bf16.msra.mxu0 %v1220
      %1980 = vmatprep.subr.bf16.mxu0 0
      %1981 = vmatpush2.bf16.msra.mxu0 0
      %1982 = vmatprep.subr.bf16.mxu0 0
      %1983 = vmatpush2.bf16.msra.mxu0 0
      %1984 = vmatprep.subr.bf16.mxu0 0
      %1985 = vmatpush2.bf16.msra.mxu0 0
      %1986 = vmatprep.subr.bf16.mxu0 0
      %1987 = vmatpush2.bf16.msra.mxu0 0
      %1988 = vmatprep.subr.bf16.mxu0 0
      %1989 = vmatpush2.bf16.msra.mxu0 0
      %1990 = vmatprep.subr.bf16.mxu0 0
      %1991 = vmatpush2.bf16.msra.mxu0 0
      %1992 = vmatprep.subr.bf16.mxu0 0
      %1993 = vmatpush2.bf16.msra.mxu0 0
      %1994 = vmatprep.subr.bf16.mxu0 0
      %1995 = vmatpush2.bf16.msra.mxu0 0
      %1996 = vmatprep.mubr.bf16.mxu0 0
      %1997 = vmatmul.mubr.bf16.gmra.mxu0 %v1917
      %v1998 = vpop.f32.mrf.mxu0
      %v1999 = vadd.f32 0.0, %v1998
      %v2000 = vpop.f32.mrf.mxu0
      %v2001 = vpop.f32.mrf.mxu0
      %v2002 = vadd.f32 0.0, %v2001
      %v2003 = vpop.f32.mrf.mxu0
      %2004 = vmatprep.mubr.bf16.mxu0 0
      %2005 = vmatmul.mubr.bf16.gmra.mxu0 %v1920
      %v2006 = vpop.f32.mrf.mxu0
      %v2007 = vadd.f32 0.0, %v2006
      %v2008 = vpop.f32.mrf.mxu0
      %v2009 = vpop.f32.mrf.mxu0
      %v2010 = vadd.f32 0.0, %v2009
      %v2011 = vpop.f32.mrf.mxu0
      %2012 = vmatprep.mubr.bf16.mxu0 0
      %2013 = vmatmul.mubr.bf16.gmra.mxu0 %v1923
      %v2014 = vpop.f32.mrf.mxu0
      %v2015 = vadd.f32 0.0, %v2014
      %v2016 = vpop.f32.mrf.mxu0
      %v2017 = vpop.f32.mrf.mxu0
      %v2018 = vadd.f32 0.0, %v2017
      %v2019 = vpop.f32.mrf.mxu0
      %2020 = vmatprep.mubr.bf16.mxu0 0
      %2021 = vmatmul.mubr.bf16.gmra.mxu0 %v1926
      %v2022 = vpop.f32.mrf.mxu0
      %v2023 = vadd.f32 0.0, %v2022
      %v2024 = vpop.f32.mrf.mxu0
      %v2025 = vpop.f32.mrf.mxu0
      %v2026 = vadd.f32 0.0, %v2025
      %v2027 = vpop.f32.mrf.mxu0
      %2028 = vmatprep.mubr.bf16.mxu0 0
      %2029 = vmatmul.mubr.bf16.gmra.mxu0 %v1929
      %v2030 = vpop.f32.mrf.mxu0
      %v2031 = vadd.f32 0.0, %v2030
      %v2032 = vpop.f32.mrf.mxu0
      %v2033 = vpop.f32.mrf.mxu0
      %v2034 = vadd.f32 0.0, %v2033
      %v2035 = vpop.f32.mrf.mxu0
      %2036 = vmatprep.mubr.bf16.mxu0 0
      %2037 = vmatmul.mubr.bf16.gmra.mxu0 %v1932
      %v2038 = vpop.f32.mrf.mxu0
      %v2039 = vadd.f32 0.0, %v2038
      %v2040 = vpop.f32.mrf.mxu0
      %v2041 = vpop.f32.mrf.mxu0
      %v2042 = vadd.f32 0.0, %v2041
      %v2043 = vpop.f32.mrf.mxu0
      %2044 = vmatprep.mubr.bf16.mxu0 0
      %2045 = vmatmul.mubr.bf16.gmra.mxu0 %v1935
      %v2046 = vpop.f32.mrf.mxu0
      %v2047 = vadd.f32 0.0, %v2046
      %v2048 = vpop.f32.mrf.mxu0
      %v2049 = vpop.f32.mrf.mxu0
      %v2050 = vadd.f32 0.0, %v2049
      %v2051 = vpop.f32.mrf.mxu0
      %2052 = vmatprep.mubr.bf16.mxu0 0
      %2053 = vmatmul.mubr.bf16.gmra.mxu0 %v1938
      %v2054 = vpop.f32.mrf.mxu0
      %v2055 = vadd.f32 0.0, %v2054
      %v2056 = vpop.f32.mrf.mxu0
      %v2057 = vpop.f32.mrf.mxu0
      %v2058 = vadd.f32 0.0, %v2057
      %v2059 = vpop.f32.mrf.mxu0
      %2060 = vmatprep.mubr.bf16.mxu0 0
      %2061 = vmatmul.mubr.bf16.gmra.mxu0 %v1941
      %v2062 = vpop.f32.mrf.mxu0
      %v2063 = vadd.f32 0.0, %v2062
      %v2064 = vpop.f32.mrf.mxu0
      %v2065 = vpop.f32.mrf.mxu0
      %v2066 = vadd.f32 0.0, %v2065
      %v2067 = vpop.f32.mrf.mxu0
      %2068 = vmatprep.mubr.bf16.mxu0 0
      %2069 = vmatmul.mubr.bf16.gmra.mxu0 %v1944
      %v2070 = vpop.f32.mrf.mxu0
      %v2071 = vadd.f32 0.0, %v2070
      %v2072 = vpop.f32.mrf.mxu0
      %v2073 = vpop.f32.mrf.mxu0
      %v2074 = vadd.f32 0.0, %v2073
      %v2075 = vpop.f32.mrf.mxu0
      %2076 = vmatprep.mubr.bf16.mxu0 0
      %2077 = vmatmul.mubr.bf16.gmra.mxu0 %v1947
      %v2078 = vpop.f32.mrf.mxu0
      %v2079 = vadd.f32 0.0, %v2078
      %v2080 = vpop.f32.mrf.mxu0
      %v2081 = vpop.f32.mrf.mxu0
      %v2082 = vadd.f32 0.0, %v2081
      %v2083 = vpop.f32.mrf.mxu0
      %2084 = vmatprep.mubr.bf16.mxu0 0
      %2085 = vmatmul.mubr.bf16.gmra.mxu0 %v1950
      %v2086 = vpop.f32.mrf.mxu0
      %v2087 = vadd.f32 0.0, %v2086
      %v2088 = vpop.f32.mrf.mxu0
      %v2089 = vpop.f32.mrf.mxu0
      %v2090 = vadd.f32 0.0, %v2089
      %v2091 = vpop.f32.mrf.mxu0
      %2092 = vmatprep.mubr.bf16.mxu0 0
      %2093 = vmatmul.mubr.bf16.gmra.mxu0 %v1953
      %v2094 = vpop.f32.mrf.mxu0
      %v2095 = vadd.f32 0.0, %v2094
      %v2096 = vpop.f32.mrf.mxu0
      %v2097 = vpop.f32.mrf.mxu0
      %v2098 = vadd.f32 0.0, %v2097
      %v2099 = vpop.f32.mrf.mxu0
      %2100 = vmatprep.mubr.bf16.mxu0 0
      %2101 = vmatmul.mubr.bf16.gmra.mxu0 %v1956
      %v2102 = vpop.f32.mrf.mxu0
      %v2103 = vadd.f32 0.0, %v2102
      %v2104 = vpop.f32.mrf.mxu0
      %v2105 = vpop.f32.mrf.mxu0
      %v2106 = vadd.f32 0.0, %v2105
      %v2107 = vpop.f32.mrf.mxu0
      %2108 = vmatprep.mubr.bf16.mxu0 0
      %2109 = vmatmul.mubr.bf16.gmra.mxu0 %v1959
      %v2110 = vpop.f32.mrf.mxu0
      %v2111 = vadd.f32 0.0, %v2110
      %v2112 = vpop.f32.mrf.mxu0
      %v2113 = vpop.f32.mrf.mxu0
      %v2114 = vadd.f32 0.0, %v2113
      %v2115 = vpop.f32.mrf.mxu0
      %2116 = vmatprep.mubr.bf16.mxu0 0
      %2117 = vmatmul.mubr.bf16.gmra.mxu0 %v1962
      %v2118 = vpop.f32.mrf.mxu0
      %v2119 = vadd.f32 0.0, %v2118
      %v2120 = vpop.f32.mrf.mxu0
      %v2121 = vpop.f32.mrf.mxu0
      %v2122 = vadd.f32 0.0, %v2121
      %v2123 = vpop.f32.mrf.mxu0
      %2124 = vdwg.mxu0
      %v2125 = vld [vmem:[%s7] sm:$0x1]
      %v2126 = vlaneseq
      %v2127 = vshrl.u32 %v2126, 7
      %v2128 = vsub.s32 0, %v2127
      %v2129 = vrot.slane %v2125, %v2128
      %v2130 = vmul.f32 %v1372, %v2129
      %v2131 = vmul.f32 %v1375, %v2129
      %v2132 = vmul.f32 %v1380, %v2129
      %v2133 = vmul.f32 %v1383, %v2129
      %v2134 = vmul.f32 %v1388, %v2129
      %v2135 = vmul.f32 %v1391, %v2129
      %v2136 = vmul.f32 %v1396, %v2129
      %v2137 = vmul.f32 %v1399, %v2129
      %v2138 = vmul.f32 %v1404, %v2129
      %v2139 = vmul.f32 %v1407, %v2129
      %v2140 = vmul.f32 %v1412, %v2129
      %v2141 = vmul.f32 %v1415, %v2129
      %v2142 = vmul.f32 %v1420, %v2129
      %v2143 = vmul.f32 %v1423, %v2129
      %v2144 = vmul.f32 %v1428, %v2129
      %v2145 = vmul.f32 %v1431, %v2129
      %v2146 = vmul.f32 %v1436, %v2129
      %v2147 = vmul.f32 %v1439, %v2129
      %v2148 = vmul.f32 %v1444, %v2129
      %v2149 = vmul.f32 %v1447, %v2129
      %v2150 = vmul.f32 %v1452, %v2129
      %v2151 = vmul.f32 %v1455, %v2129
      %v2152 = vmul.f32 %v1460, %v2129
      %v2153 = vmul.f32 %v1463, %v2129
      %v2154 = vmul.f32 %v1468, %v2129
      %v2155 = vmul.f32 %v1471, %v2129
      %v2156 = vmul.f32 %v1476, %v2129
      %v2157 = vmul.f32 %v1479, %v2129
      %v2158 = vmul.f32 %v1484, %v2129
      %v2159 = vmul.f32 %v1487, %v2129
      %v2160 = vmul.f32 %v1492, %v2129
      %v2161 = vmul.f32 %v1495, %v2129
      %v2162 = vmul.f32 %v1581, %v2129
      %v2163 = vmul.f32 %v1584, %v2129
      %v2164 = vmul.f32 %v1589, %v2129
      %v2165 = vmul.f32 %v1592, %v2129
      %v2166 = vmul.f32 %v1597, %v2129
      %v2167 = vmul.f32 %v1600, %v2129
      %v2168 = vmul.f32 %v1605, %v2129
      %v2169 = vmul.f32 %v1608, %v2129
      %v2170 = vmul.f32 %v1613, %v2129
      %v2171 = vmul.f32 %v1616, %v2129
      %v2172 = vmul.f32 %v1621, %v2129
      %v2173 = vmul.f32 %v1624, %v2129
      %v2174 = vmul.f32 %v1629, %v2129
      %v2175 = vmul.f32 %v1632, %v2129
      %v2176 = vmul.f32 %v1637, %v2129
      %v2177 = vmul.f32 %v1640, %v2129
      %v2178 = vmul.f32 %v1645, %v2129
      %v2179 = vmul.f32 %v1648, %v2129
      %v2180 = vmul.f32 %v1653, %v2129
      %v2181 = vmul.f32 %v1656, %v2129
      %v2182 = vmul.f32 %v1661, %v2129
      %v2183 = vmul.f32 %v1664, %v2129
      %v2184 = vmul.f32 %v1669, %v2129
      %v2185 = vmul.f32 %v1672, %v2129
      %v2186 = vmul.f32 %v1677, %v2129
      %v2187 = vmul.f32 %v1680, %v2129
      %v2188 = vmul.f32 %v1685, %v2129
      %v2189 = vmul.f32 %v1688, %v2129
      %v2190 = vmul.f32 %v1693, %v2129
      %v2191 = vmul.f32 %v1696, %v2129
      %v2192 = vmul.f32 %v1701, %v2129
      %v2193 = vmul.f32 %v1704, %v2129
      %v2194 = vmul.f32 %v1790, %v2129
      %v2195 = vmul.f32 %v1793, %v2129
      %v2196 = vmul.f32 %v1798, %v2129
      %v2197 = vmul.f32 %v1801, %v2129
      %v2198 = vmul.f32 %v1806, %v2129
      %v2199 = vmul.f32 %v1809, %v2129
      %v2200 = vmul.f32 %v1814, %v2129
      %v2201 = vmul.f32 %v1817, %v2129
      %v2202 = vmul.f32 %v1822, %v2129
      %v2203 = vmul.f32 %v1825, %v2129
      %v2204 = vmul.f32 %v1830, %v2129
      %v2205 = vmul.f32 %v1833, %v2129
      %v2206 = vmul.f32 %v1838, %v2129
      %v2207 = vmul.f32 %v1841, %v2129
      %v2208 = vmul.f32 %v1846, %v2129
      %v2209 = vmul.f32 %v1849, %v2129
      %v2210 = vmul.f32 %v1854, %v2129
      %v2211 = vmul.f32 %v1857, %v2129
      %v2212 = vmul.f32 %v1862, %v2129
      %v2213 = vmul.f32 %v1865, %v2129
      %v2214 = vmul.f32 %v1870, %v2129
      %v2215 = vmul.f32 %v1873, %v2129
      %v2216 = vmul.f32 %v1878, %v2129
      %v2217 = vmul.f32 %v1881, %v2129
      %v2218 = vmul.f32 %v1886, %v2129
      %v2219 = vmul.f32 %v1889, %v2129
      %v2220 = vmul.f32 %v1894, %v2129
      %v2221 = vmul.f32 %v1897, %v2129
      %v2222 = vmul.f32 %v1902, %v2129
      %v2223 = vmul.f32 %v1905, %v2129
      %v2224 = vmul.f32 %v1910, %v2129
      %v2225 = vmul.f32 %v1913, %v2129
      %v2226 = vmul.f32 %v1999, %v2129
      %v2227 = vmul.f32 %v2002, %v2129
      %v2228 = vmul.f32 %v2007, %v2129
      %v2229 = vmul.f32 %v2010, %v2129
      %v2230 = vmul.f32 %v2015, %v2129
      %v2231 = vmul.f32 %v2018, %v2129
      %v2232 = vmul.f32 %v2023, %v2129
      %v2233 = vmul.f32 %v2026, %v2129
      %v2234 = vmul.f32 %v2031, %v2129
      %v2235 = vmul.f32 %v2034, %v2129
      %v2236 = vmul.f32 %v2039, %v2129
      %v2237 = vmul.f32 %v2042, %v2129
      %v2238 = vmul.f32 %v2047, %v2129
      %v2239 = vmul.f32 %v2050, %v2129
      %v2240 = vmul.f32 %v2055, %v2129
      %v2241 = vmul.f32 %v2058, %v2129
      %v2242 = vmul.f32 %v2063, %v2129
      %v2243 = vmul.f32 %v2066, %v2129
      %v2244 = vmul.f32 %v2071, %v2129
      %v2245 = vmul.f32 %v2074, %v2129
      %v2246 = vmul.f32 %v2079, %v2129
      %v2247 = vmul.f32 %v2082, %v2129
      %v2248 = vmul.f32 %v2087, %v2129
      %v2249 = vmul.f32 %v2090, %v2129
      %v2250 = vmul.f32 %v2095, %v2129
      %v2251 = vmul.f32 %v2098, %v2129
      %v2252 = vmul.f32 %v2103, %v2129
      %v2253 = vmul.f32 %v2106, %v2129
      %v2254 = vmul.f32 %v2111, %v2129
      %v2255 = vmul.f32 %v2114, %v2129
      %v2256 = vmul.f32 %v2119, %v2129
      %v2257 = vmul.f32 %v2122, %v2129
      %v2258 = vld [vmem:[%s7 + $0x1] sm:$0x1]
      %v2259 = vlaneseq
      %v2260 = vshrl.u32 %v2259, 7
      %v2261 = vsub.s32 0, %v2260
      %v2262 = vrot.slane %v2258, %v2261
      %v2263 = vadd.f32 %v2130, %v2262
      %v2264 = vadd.f32 %v2131, %v2262
      %v2265 = vadd.f32 %v2132, %v2262
      %v2266 = vadd.f32 %v2133, %v2262
      %v2267 = vadd.f32 %v2134, %v2262
      %v2268 = vadd.f32 %v2135, %v2262
      %v2269 = vadd.f32 %v2136, %v2262
      %v2270 = vadd.f32 %v2137, %v2262
      %v2271 = vadd.f32 %v2138, %v2262
      %v2272 = vadd.f32 %v2139, %v2262
      %v2273 = vadd.f32 %v2140, %v2262
      %v2274 = vadd.f32 %v2141, %v2262
      %v2275 = vadd.f32 %v2142, %v2262
      %v2276 = vadd.f32 %v2143, %v2262
      %v2277 = vadd.f32 %v2144, %v2262
      %v2278 = vadd.f32 %v2145, %v2262
      %v2279 = vadd.f32 %v2146, %v2262
      %v2280 = vadd.f32 %v2147, %v2262
      %v2281 = vadd.f32 %v2148, %v2262
      %v2282 = vadd.f32 %v2149, %v2262
      %v2283 = vadd.f32 %v2150, %v2262
      %v2284 = vadd.f32 %v2151, %v2262
      %v2285 = vadd.f32 %v2152, %v2262
      %v2286 = vadd.f32 %v2153, %v2262
      %v2287 = vadd.f32 %v2154, %v2262
      %v2288 = vadd.f32 %v2155, %v2262
      %v2289 = vadd.f32 %v2156, %v2262
      %v2290 = vadd.f32 %v2157, %v2262
      %v2291 = vadd.f32 %v2158, %v2262
      %v2292 = vadd.f32 %v2159, %v2262
      %v2293 = vadd.f32 %v2160, %v2262
      %v2294 = vadd.f32 %v2161, %v2262
      %v2295 = vadd.f32 %v2162, %v2262
      %v2296 = vadd.f32 %v2163, %v2262
      %v2297 = vadd.f32 %v2164, %v2262
      %v2298 = vadd.f32 %v2165, %v2262
      %v2299 = vadd.f32 %v2166, %v2262
      %v2300 = vadd.f32 %v2167, %v2262
      %v2301 = vadd.f32 %v2168, %v2262
      %v2302 = vadd.f32 %v2169, %v2262
      %v2303 = vadd.f32 %v2170, %v2262
      %v2304 = vadd.f32 %v2171, %v2262
      %v2305 = vadd.f32 %v2172, %v2262
      %v2306 = vadd.f32 %v2173, %v2262
      %v2307 = vadd.f32 %v2174, %v2262
      %v2308 = vadd.f32 %v2175, %v2262
      %v2309 = vadd.f32 %v2176, %v2262
      %v2310 = vadd.f32 %v2177, %v2262
      %v2311 = vadd.f32 %v2178, %v2262
      %v2312 = vadd.f32 %v2179, %v2262
      %v2313 = vadd.f32 %v2180, %v2262
      %v2314 = vadd.f32 %v2181, %v2262
      %v2315 = vadd.f32 %v2182, %v2262
      %v2316 = vadd.f32 %v2183, %v2262
      %v2317 = vadd.f32 %v2184, %v2262
      %v2318 = vadd.f32 %v2185, %v2262
      %v2319 = vadd.f32 %v2186, %v2262
      %v2320 = vadd.f32 %v2187, %v2262
      %v2321 = vadd.f32 %v2188, %v2262
      %v2322 = vadd.f32 %v2189, %v2262
      %v2323 = vadd.f32 %v2190, %v2262
      %v2324 = vadd.f32 %v2191, %v2262
      %v2325 = vadd.f32 %v2192, %v2262
      %v2326 = vadd.f32 %v2193, %v2262
      %v2327 = vadd.f32 %v2194, %v2262
      %v2328 = vadd.f32 %v2195, %v2262
      %v2329 = vadd.f32 %v2196, %v2262
      %v2330 = vadd.f32 %v2197, %v2262
      %v2331 = vadd.f32 %v2198, %v2262
      %v2332 = vadd.f32 %v2199, %v2262
      %v2333 = vadd.f32 %v2200, %v2262
      %v2334 = vadd.f32 %v2201, %v2262
      %v2335 = vadd.f32 %v2202, %v2262
      %v2336 = vadd.f32 %v2203, %v2262
      %v2337 = vadd.f32 %v2204, %v2262
      %v2338 = vadd.f32 %v2205, %v2262
      %v2339 = vadd.f32 %v2206, %v2262
      %v2340 = vadd.f32 %v2207, %v2262
      %v2341 = vadd.f32 %v2208, %v2262
      %v2342 = vadd.f32 %v2209, %v2262
      %v2343 = vadd.f32 %v2210, %v2262
      %v2344 = vadd.f32 %v2211, %v2262
      %v2345 = vadd.f32 %v2212, %v2262
      %v2346 = vadd.f32 %v2213, %v2262
      %v2347 = vadd.f32 %v2214, %v2262
      %v2348 = vadd.f32 %v2215, %v2262
      %v2349 = vadd.f32 %v2216, %v2262
      %v2350 = vadd.f32 %v2217, %v2262
      %v2351 = vadd.f32 %v2218, %v2262
      %v2352 = vadd.f32 %v2219, %v2262
      %v2353 = vadd.f32 %v2220, %v2262
      %v2354 = vadd.f32 %v2221, %v2262
      %v2355 = vadd.f32 %v2222, %v2262
      %v2356 = vadd.f32 %v2223, %v2262
      %v2357 = vadd.f32 %v2224, %v2262
      %v2358 = vadd.f32 %v2225, %v2262
      %v2359 = vadd.f32 %v2226, %v2262
      %v2360 = vadd.f32 %v2227, %v2262
      %v2361 = vadd.f32 %v2228, %v2262
      %v2362 = vadd.f32 %v2229, %v2262
      %v2363 = vadd.f32 %v2230, %v2262
      %v2364 = vadd.f32 %v2231, %v2262
      %v2365 = vadd.f32 %v2232, %v2262
      %v2366 = vadd.f32 %v2233, %v2262
      %v2367 = vadd.f32 %v2234, %v2262
      %v2368 = vadd.f32 %v2235, %v2262
      %v2369 = vadd.f32 %v2236, %v2262
      %v2370 = vadd.f32 %v2237, %v2262
      %v2371 = vadd.f32 %v2238, %v2262
      %v2372 = vadd.f32 %v2239, %v2262
      %v2373 = vadd.f32 %v2240, %v2262
      %v2374 = vadd.f32 %v2241, %v2262
      %v2375 = vadd.f32 %v2242, %v2262
      %v2376 = vadd.f32 %v2243, %v2262
      %v2377 = vadd.f32 %v2244, %v2262
      %v2378 = vadd.f32 %v2245, %v2262
      %v2379 = vadd.f32 %v2246, %v2262
      %v2380 = vadd.f32 %v2247, %v2262
      %v2381 = vadd.f32 %v2248, %v2262
      %v2382 = vadd.f32 %v2249, %v2262
      %v2383 = vadd.f32 %v2250, %v2262
      %v2384 = vadd.f32 %v2251, %v2262
      %v2385 = vadd.f32 %v2252, %v2262
      %v2386 = vadd.f32 %v2253, %v2262
      %v2387 = vadd.f32 %v2254, %v2262
      %v2388 = vadd.f32 %v2255, %v2262
      %v2389 = vadd.f32 %v2256, %v2262
      %v2390 = vadd.f32 %v2257, %v2262
      %v2391 = vlaneseq
      %v2392 = vand.u32 %v2391, 127
      %vm2393 = vcmp.lt.s32.totalorder %v2392, 64
      %v2394 = vmax.f32 %v2263, 0.0
      %v2395 = vmax.f32 %v2264, 0.0
      %v2396 = vmax.f32 %v2265, 0.0
      %v2397 = vmax.f32 %v2266, 0.0
      %v2398 = vmax.f32 %v2267, 0.0
      %v2399 = vmax.f32 %v2268, 0.0
      %v2400 = vmax.f32 %v2269, 0.0
      %v2401 = vmax.f32 %v2270, 0.0
      %v2402 = vmax.f32 %v2271, 0.0
      %v2403 = vmax.f32 %v2272, 0.0
      %v2404 = vmax.f32 %v2273, 0.0
      %v2405 = vmax.f32 %v2274, 0.0
      %v2406 = vmax.f32 %v2275, 0.0
      %v2407 = vmax.f32 %v2276, 0.0
      %v2408 = vmax.f32 %v2277, 0.0
      %v2409 = vmax.f32 %v2278, 0.0
      %v2410 = vmax.f32 %v2279, 0.0
      %v2411 = vmax.f32 %v2280, 0.0
      %v2412 = vmax.f32 %v2281, 0.0
      %v2413 = vmax.f32 %v2282, 0.0
      %v2414 = vmax.f32 %v2283, 0.0
      %v2415 = vmax.f32 %v2284, 0.0
      %v2416 = vmax.f32 %v2285, 0.0
      %v2417 = vmax.f32 %v2286, 0.0
      %v2418 = vmax.f32 %v2287, 0.0
      %v2419 = vmax.f32 %v2288, 0.0
      %v2420 = vmax.f32 %v2289, 0.0
      %v2421 = vmax.f32 %v2290, 0.0
      %v2422 = vmax.f32 %v2291, 0.0
      %v2423 = vmax.f32 %v2292, 0.0
      %v2424 = vmax.f32 %v2293, 0.0
      %v2425 = vmax.f32 %v2294, 0.0
      %v2426 = vmax.f32 %v2295, 0.0
      %v2427 = vmax.f32 %v2296, 0.0
      %v2428 = vmax.f32 %v2297, 0.0
      %v2429 = vmax.f32 %v2298, 0.0
      %v2430 = vmax.f32 %v2299, 0.0
      %v2431 = vmax.f32 %v2300, 0.0
      %v2432 = vmax.f32 %v2301, 0.0
      %v2433 = vmax.f32 %v2302, 0.0
      %v2434 = vmax.f32 %v2303, 0.0
      %v2435 = vmax.f32 %v2304, 0.0
      %v2436 = vmax.f32 %v2305, 0.0
      %v2437 = vmax.f32 %v2306, 0.0
      %v2438 = vmax.f32 %v2307, 0.0
      %v2439 = vmax.f32 %v2308, 0.0
      %v2440 = vmax.f32 %v2309, 0.0
      %v2441 = vmax.f32 %v2310, 0.0
      %v2442 = vmax.f32 %v2311, 0.0
      %v2443 = vmax.f32 %v2312, 0.0
      %v2444 = vmax.f32 %v2313, 0.0
      %v2445 = vmax.f32 %v2314, 0.0
      %v2446 = vmax.f32 %v2315, 0.0
      %v2447 = vmax.f32 %v2316, 0.0
      %v2448 = vmax.f32 %v2317, 0.0
      %v2449 = vmax.f32 %v2318, 0.0
      %v2450 = vmax.f32 %v2319, 0.0
      %v2451 = vmax.f32 %v2320, 0.0
      %v2452 = vmax.f32 %v2321, 0.0
      %v2453 = vmax.f32 %v2322, 0.0
      %v2454 = vmax.f32 %v2323, 0.0
      %v2455 = vmax.f32 %v2324, 0.0
      %v2456 = vmax.f32 %v2325, 0.0
      %v2457 = vmax.f32 %v2326, 0.0
      %v2458 = vmax.f32 %v2327, 0.0
      %v2459 = vmax.f32 %v2328, 0.0
      %v2460 = vmax.f32 %v2329, 0.0
      %v2461 = vmax.f32 %v2330, 0.0
      %v2462 = vmax.f32 %v2331, 0.0
      %v2463 = vmax.f32 %v2332, 0.0
      %v2464 = vmax.f32 %v2333, 0.0
      %v2465 = vmax.f32 %v2334, 0.0
      %v2466 = vmax.f32 %v2335, 0.0
      %v2467 = vmax.f32 %v2336, 0.0
      %v2468 = vmax.f32 %v2337, 0.0
      %v2469 = vmax.f32 %v2338, 0.0
      %v2470 = vmax.f32 %v2339, 0.0
      %v2471 = vmax.f32 %v2340, 0.0
      %v2472 = vmax.f32 %v2341, 0.0
      %v2473 = vmax.f32 %v2342, 0.0
      %v2474 = vmax.f32 %v2343, 0.0
      %v2475 = vmax.f32 %v2344, 0.0
      %v2476 = vmax.f32 %v2345, 0.0
      %v2477 = vmax.f32 %v2346, 0.0
      %v2478 = vmax.f32 %v2347, 0.0
      %v2479 = vmax.f32 %v2348, 0.0
      %v2480 = vmax.f32 %v2349, 0.0
      %v2481 = vmax.f32 %v2350, 0.0
      %v2482 = vmax.f32 %v2351, 0.0
      %v2483 = vmax.f32 %v2352, 0.0
      %v2484 = vmax.f32 %v2353, 0.0
      %v2485 = vmax.f32 %v2354, 0.0
      %v2486 = vmax.f32 %v2355, 0.0
      %v2487 = vmax.f32 %v2356, 0.0
      %v2488 = vmax.f32 %v2357, 0.0
      %v2489 = vmax.f32 %v2358, 0.0
      %v2490 = vmax.f32 %v2359, 0.0
      %v2491 = vmax.f32 %v2360, 0.0
      %v2492 = vmax.f32 %v2361, 0.0
      %v2493 = vmax.f32 %v2362, 0.0
      %v2494 = vmax.f32 %v2363, 0.0
      %v2495 = vmax.f32 %v2364, 0.0
      %v2496 = vmax.f32 %v2365, 0.0
      %v2497 = vmax.f32 %v2366, 0.0
      %v2498 = vmax.f32 %v2367, 0.0
      %v2499 = vmax.f32 %v2368, 0.0
      %v2500 = vmax.f32 %v2369, 0.0
      %v2501 = vmax.f32 %v2370, 0.0
      %v2502 = vmax.f32 %v2371, 0.0
      %v2503 = vmax.f32 %v2372, 0.0
      %v2504 = vmax.f32 %v2373, 0.0
      %v2505 = vmax.f32 %v2374, 0.0
      %v2506 = vmax.f32 %v2375, 0.0
      %v2507 = vmax.f32 %v2376, 0.0
      %v2508 = vmax.f32 %v2377, 0.0
      %v2509 = vmax.f32 %v2378, 0.0
      %v2510 = vmax.f32 %v2379, 0.0
      %v2511 = vmax.f32 %v2380, 0.0
      %v2512 = vmax.f32 %v2381, 0.0
      %v2513 = vmax.f32 %v2382, 0.0
      %v2514 = vmax.f32 %v2383, 0.0
      %v2515 = vmax.f32 %v2384, 0.0
      %v2516 = vmax.f32 %v2385, 0.0
      %v2517 = vmax.f32 %v2386, 0.0
      %v2518 = vmax.f32 %v2387, 0.0
      %v2519 = vmax.f32 %v2388, 0.0
      %v2520 = vmax.f32 %v2389, 0.0
      %v2521 = vmax.f32 %v2390, 0.0
      %v2522 = vsel %vm2393, %v2394, %v2263
      %v2523 = vsel %vm2393, %v2395, %v2264
      %v2524 = vsel %vm2393, %v2396, %v2265
      %v2525 = vsel %vm2393, %v2397, %v2266
      %v2526 = vsel %vm2393, %v2398, %v2267
      %v2527 = vsel %vm2393, %v2399, %v2268
      %v2528 = vsel %vm2393, %v2400, %v2269
      %v2529 = vsel %vm2393, %v2401, %v2270
      %v2530 = vsel %vm2393, %v2402, %v2271
      %v2531 = vsel %vm2393, %v2403, %v2272
      %v2532 = vsel %vm2393, %v2404, %v2273
      %v2533 = vsel %vm2393, %v2405, %v2274
      %v2534 = vsel %vm2393, %v2406, %v2275
      %v2535 = vsel %vm2393, %v2407, %v2276
      %v2536 = vsel %vm2393, %v2408, %v2277
      %v2537 = vsel %vm2393, %v2409, %v2278
      %v2538 = vsel %vm2393, %v2410, %v2279
      %v2539 = vsel %vm2393, %v2411, %v2280
      %v2540 = vsel %vm2393, %v2412, %v2281
      %v2541 = vsel %vm2393, %v2413, %v2282
      %v2542 = vsel %vm2393, %v2414, %v2283
      %v2543 = vsel %vm2393, %v2415, %v2284
      %v2544 = vsel %vm2393, %v2416, %v2285
      %v2545 = vsel %vm2393, %v2417, %v2286
      %v2546 = vsel %vm2393, %v2418, %v2287
      %v2547 = vsel %vm2393, %v2419, %v2288
      %v2548 = vsel %vm2393, %v2420, %v2289
      %v2549 = vsel %vm2393, %v2421, %v2290
      %v2550 = vsel %vm2393, %v2422, %v2291
      %v2551 = vsel %vm2393, %v2423, %v2292
      %v2552 = vsel %vm2393, %v2424, %v2293
      %v2553 = vsel %vm2393, %v2425, %v2294
      %v2554 = vsel %vm2393, %v2426, %v2295
      %v2555 = vsel %vm2393, %v2427, %v2296
      %v2556 = vsel %vm2393, %v2428, %v2297
      %v2557 = vsel %vm2393, %v2429, %v2298
      %v2558 = vsel %vm2393, %v2430, %v2299
      %v2559 = vsel %vm2393, %v2431, %v2300
      %v2560 = vsel %vm2393, %v2432, %v2301
      %v2561 = vsel %vm2393, %v2433, %v2302
      %v2562 = vsel %vm2393, %v2434, %v2303
      %v2563 = vsel %vm2393, %v2435, %v2304
      %v2564 = vsel %vm2393, %v2436, %v2305
      %v2565 = vsel %vm2393, %v2437, %v2306
      %v2566 = vsel %vm2393, %v2438, %v2307
      %v2567 = vsel %vm2393, %v2439, %v2308
      %v2568 = vsel %vm2393, %v2440, %v2309
      %v2569 = vsel %vm2393, %v2441, %v2310
      %v2570 = vsel %vm2393, %v2442, %v2311
      %v2571 = vsel %vm2393, %v2443, %v2312
      %v2572 = vsel %vm2393, %v2444, %v2313
      %v2573 = vsel %vm2393, %v2445, %v2314
      %v2574 = vsel %vm2393, %v2446, %v2315
      %v2575 = vsel %vm2393, %v2447, %v2316
      %v2576 = vsel %vm2393, %v2448, %v2317
      %v2577 = vsel %vm2393, %v2449, %v2318
      %v2578 = vsel %vm2393, %v2450, %v2319
      %v2579 = vsel %vm2393, %v2451, %v2320
      %v2580 = vsel %vm2393, %v2452, %v2321
      %v2581 = vsel %vm2393, %v2453, %v2322
      %v2582 = vsel %vm2393, %v2454, %v2323
      %v2583 = vsel %vm2393, %v2455, %v2324
      %v2584 = vsel %vm2393, %v2456, %v2325
      %v2585 = vsel %vm2393, %v2457, %v2326
      %v2586 = vsel %vm2393, %v2458, %v2327
      %v2587 = vsel %vm2393, %v2459, %v2328
      %v2588 = vsel %vm2393, %v2460, %v2329
      %v2589 = vsel %vm2393, %v2461, %v2330
      %v2590 = vsel %vm2393, %v2462, %v2331
      %v2591 = vsel %vm2393, %v2463, %v2332
      %v2592 = vsel %vm2393, %v2464, %v2333
      %v2593 = vsel %vm2393, %v2465, %v2334
      %v2594 = vsel %vm2393, %v2466, %v2335
      %v2595 = vsel %vm2393, %v2467, %v2336
      %v2596 = vsel %vm2393, %v2468, %v2337
      %v2597 = vsel %vm2393, %v2469, %v2338
      %v2598 = vsel %vm2393, %v2470, %v2339
      %v2599 = vsel %vm2393, %v2471, %v2340
      %v2600 = vsel %vm2393, %v2472, %v2341
      %v2601 = vsel %vm2393, %v2473, %v2342
      %v2602 = vsel %vm2393, %v2474, %v2343
      %v2603 = vsel %vm2393, %v2475, %v2344
      %v2604 = vsel %vm2393, %v2476, %v2345
      %v2605 = vsel %vm2393, %v2477, %v2346
      %v2606 = vsel %vm2393, %v2478, %v2347
      %v2607 = vsel %vm2393, %v2479, %v2348
      %v2608 = vsel %vm2393, %v2480, %v2349
      %v2609 = vsel %vm2393, %v2481, %v2350
      %v2610 = vsel %vm2393, %v2482, %v2351
      %v2611 = vsel %vm2393, %v2483, %v2352
      %v2612 = vsel %vm2393, %v2484, %v2353
      %v2613 = vsel %vm2393, %v2485, %v2354
      %v2614 = vsel %vm2393, %v2486, %v2355
      %v2615 = vsel %vm2393, %v2487, %v2356
      %v2616 = vsel %vm2393, %v2488, %v2357
      %v2617 = vsel %vm2393, %v2489, %v2358
      %v2618 = vsel %vm2393, %v2490, %v2359
      %v2619 = vsel %vm2393, %v2491, %v2360
      %v2620 = vsel %vm2393, %v2492, %v2361
      %v2621 = vsel %vm2393, %v2493, %v2362
      %v2622 = vsel %vm2393, %v2494, %v2363
      %v2623 = vsel %vm2393, %v2495, %v2364
      %v2624 = vsel %vm2393, %v2496, %v2365
      %v2625 = vsel %vm2393, %v2497, %v2366
      %v2626 = vsel %vm2393, %v2498, %v2367
      %v2627 = vsel %vm2393, %v2499, %v2368
      %v2628 = vsel %vm2393, %v2500, %v2369
      %v2629 = vsel %vm2393, %v2501, %v2370
      %v2630 = vsel %vm2393, %v2502, %v2371
      %v2631 = vsel %vm2393, %v2503, %v2372
      %v2632 = vsel %vm2393, %v2504, %v2373
      %v2633 = vsel %vm2393, %v2505, %v2374
      %v2634 = vsel %vm2393, %v2506, %v2375
      %v2635 = vsel %vm2393, %v2507, %v2376
      %v2636 = vsel %vm2393, %v2508, %v2377
      %v2637 = vsel %vm2393, %v2509, %v2378
      %v2638 = vsel %vm2393, %v2510, %v2379
      %v2639 = vsel %vm2393, %v2511, %v2380
      %v2640 = vsel %vm2393, %v2512, %v2381
      %v2641 = vsel %vm2393, %v2513, %v2382
      %v2642 = vsel %vm2393, %v2514, %v2383
      %v2643 = vsel %vm2393, %v2515, %v2384
      %v2644 = vsel %vm2393, %v2516, %v2385
      %v2645 = vsel %vm2393, %v2517, %v2386
      %v2646 = vsel %vm2393, %v2518, %v2387
      %v2647 = vsel %vm2393, %v2519, %v2388
      %v2648 = vsel %vm2393, %v2520, %v2389
      %v2649 = vsel %vm2393, %v2521, %v2390
      %v2650 = vld [vmem:[%s422] sm:$0x1]
      %v2651 = vld [vmem:[%s422 + $0x1] sm:$0x1]
      %v2652 = vld [vmem:[%s422 + $0x2] sm:$0x1]
      %v2653 = vld [vmem:[%s422 + $0x3] sm:$0x1]
      %v2658 = vlaneseq
      %v2659 = vshrl.u32 %v2658, 7
      %v2660 = vsub.s32 0, %v2659
      %v2661 = vrot.slane %v2650, %v2660
      %v2662 = vlaneseq
      %v2663 = vshrl.u32 %v2662, 7
      %v2664 = vsub.s32 0, %v2663
      %v2665 = vrot.slane %v2651, %v2664
      %v2666 = vlaneseq
      %v2667 = vshrl.u32 %v2666, 7
      %v2668 = vsub.s32 0, %v2667
      %v2669 = vrot.slane %v2652, %v2668
      %v2670 = vlaneseq
      %v2671 = vshrl.u32 %v2670, 7
      %v2672 = vsub.s32 0, %v2671
      %v2673 = vrot.slane %v2653, %v2672
      %v2678 = vadd.f32 %v2522, %v2661
      %v2679 = vadd.f32 %v2523, %v2661
      %v2680 = vadd.f32 %v2524, %v2661
      %v2681 = vadd.f32 %v2525, %v2661
      %v2682 = vadd.f32 %v2526, %v2661
      %v2683 = vadd.f32 %v2527, %v2661
      %v2684 = vadd.f32 %v2528, %v2661
      %v2685 = vadd.f32 %v2529, %v2661
      %v2686 = vadd.f32 %v2530, %v2661
      %v2687 = vadd.f32 %v2531, %v2661
      %v2688 = vadd.f32 %v2532, %v2661
      %v2689 = vadd.f32 %v2533, %v2661
      %v2690 = vadd.f32 %v2534, %v2661
      %v2691 = vadd.f32 %v2535, %v2661
      %v2692 = vadd.f32 %v2536, %v2661
      %v2693 = vadd.f32 %v2537, %v2661
      %v2694 = vadd.f32 %v2538, %v2661
      %v2695 = vadd.f32 %v2539, %v2661
      %v2696 = vadd.f32 %v2540, %v2661
      %v2697 = vadd.f32 %v2541, %v2661
      %v2698 = vadd.f32 %v2542, %v2661
      %v2699 = vadd.f32 %v2543, %v2661
      %v2700 = vadd.f32 %v2544, %v2661
      %v2701 = vadd.f32 %v2545, %v2661
      %v2702 = vadd.f32 %v2546, %v2661
      %v2703 = vadd.f32 %v2547, %v2661
      %v2704 = vadd.f32 %v2548, %v2661
      %v2705 = vadd.f32 %v2549, %v2661
      %v2706 = vadd.f32 %v2550, %v2661
      %v2707 = vadd.f32 %v2551, %v2661
      %v2708 = vadd.f32 %v2552, %v2661
      %v2709 = vadd.f32 %v2553, %v2661
      %v2710 = vadd.f32 %v2554, %v2665
      %v2711 = vadd.f32 %v2555, %v2665
      %v2712 = vadd.f32 %v2556, %v2665
      %v2713 = vadd.f32 %v2557, %v2665
      %v2714 = vadd.f32 %v2558, %v2665
      %v2715 = vadd.f32 %v2559, %v2665
      %v2716 = vadd.f32 %v2560, %v2665
      %v2717 = vadd.f32 %v2561, %v2665
      %v2718 = vadd.f32 %v2562, %v2665
      %v2719 = vadd.f32 %v2563, %v2665
      %v2720 = vadd.f32 %v2564, %v2665
      %v2721 = vadd.f32 %v2565, %v2665
      %v2722 = vadd.f32 %v2566, %v2665
      %v2723 = vadd.f32 %v2567, %v2665
      %v2724 = vadd.f32 %v2568, %v2665
      %v2725 = vadd.f32 %v2569, %v2665
      %v2726 = vadd.f32 %v2570, %v2665
      %v2727 = vadd.f32 %v2571, %v2665
      %v2728 = vadd.f32 %v2572, %v2665
      %v2729 = vadd.f32 %v2573, %v2665
      %v2730 = vadd.f32 %v2574, %v2665
      %v2731 = vadd.f32 %v2575, %v2665
      %v2732 = vadd.f32 %v2576, %v2665
      %v2733 = vadd.f32 %v2577, %v2665
      %v2734 = vadd.f32 %v2578, %v2665
      %v2735 = vadd.f32 %v2579, %v2665
      %v2736 = vadd.f32 %v2580, %v2665
      %v2737 = vadd.f32 %v2581, %v2665
      %v2738 = vadd.f32 %v2582, %v2665
      %v2739 = vadd.f32 %v2583, %v2665
      %v2740 = vadd.f32 %v2584, %v2665
      %v2741 = vadd.f32 %v2585, %v2665
      %v2742 = vadd.f32 %v2586, %v2669
      %v2743 = vadd.f32 %v2587, %v2669
      %v2744 = vadd.f32 %v2588, %v2669
      %v2745 = vadd.f32 %v2589, %v2669
      %v2746 = vadd.f32 %v2590, %v2669
      %v2747 = vadd.f32 %v2591, %v2669
      %v2748 = vadd.f32 %v2592, %v2669
      %v2749 = vadd.f32 %v2593, %v2669
      %v2750 = vadd.f32 %v2594, %v2669
      %v2751 = vadd.f32 %v2595, %v2669
      %v2752 = vadd.f32 %v2596, %v2669
      %v2753 = vadd.f32 %v2597, %v2669
      %v2754 = vadd.f32 %v2598, %v2669
      %v2755 = vadd.f32 %v2599, %v2669
      %v2756 = vadd.f32 %v2600, %v2669
      %v2757 = vadd.f32 %v2601, %v2669
      %v2758 = vadd.f32 %v2602, %v2669
      %v2759 = vadd.f32 %v2603, %v2669
      %v2760 = vadd.f32 %v2604, %v2669
      %v2761 = vadd.f32 %v2605, %v2669
      %v2762 = vadd.f32 %v2606, %v2669
      %v2763 = vadd.f32 %v2607, %v2669
      %v2764 = vadd.f32 %v2608, %v2669
      %v2765 = vadd.f32 %v2609, %v2669
      %v2766 = vadd.f32 %v2610, %v2669
      %v2767 = vadd.f32 %v2611, %v2669
      %v2768 = vadd.f32 %v2612, %v2669
      %v2769 = vadd.f32 %v2613, %v2669
      %v2770 = vadd.f32 %v2614, %v2669
      %v2771 = vadd.f32 %v2615, %v2669
      %v2772 = vadd.f32 %v2616, %v2669
      %v2773 = vadd.f32 %v2617, %v2669
      %v2774 = vadd.f32 %v2618, %v2673
      %v2775 = vadd.f32 %v2619, %v2673
      %v2776 = vadd.f32 %v2620, %v2673
      %v2777 = vadd.f32 %v2621, %v2673
      %v2778 = vadd.f32 %v2622, %v2673
      %v2779 = vadd.f32 %v2623, %v2673
      %v2780 = vadd.f32 %v2624, %v2673
      %v2781 = vadd.f32 %v2625, %v2673
      %v2782 = vadd.f32 %v2626, %v2673
      %v2783 = vadd.f32 %v2627, %v2673
      %v2784 = vadd.f32 %v2628, %v2673
      %v2785 = vadd.f32 %v2629, %v2673
      %v2786 = vadd.f32 %v2630, %v2673
      %v2787 = vadd.f32 %v2631, %v2673
      %v2788 = vadd.f32 %v2632, %v2673
      %v2789 = vadd.f32 %v2633, %v2673
      %v2790 = vadd.f32 %v2634, %v2673
      %v2791 = vadd.f32 %v2635, %v2673
      %v2792 = vadd.f32 %v2636, %v2673
      %v2793 = vadd.f32 %v2637, %v2673
      %v2794 = vadd.f32 %v2638, %v2673
      %v2795 = vadd.f32 %v2639, %v2673
      %v2796 = vadd.f32 %v2640, %v2673
      %v2797 = vadd.f32 %v2641, %v2673
      %v2798 = vadd.f32 %v2642, %v2673
      %v2799 = vadd.f32 %v2643, %v2673
      %v2800 = vadd.f32 %v2644, %v2673
      %v2801 = vadd.f32 %v2645, %v2673
      %v2802 = vadd.f32 %v2646, %v2673
      %v2803 = vadd.f32 %v2647, %v2673
      %v2804 = vadd.f32 %v2648, %v2673
      %v2805 = vadd.f32 %v2649, %v2673
      %v2806 = vpack.c.bf16 %v2679, %v2678
      %v2807 = vpack.c.bf16 %v2681, %v2680
      %v2808 = vpack.c.bf16 %v2683, %v2682
      %v2809 = vpack.c.bf16 %v2685, %v2684
      %v2810 = vpack.c.bf16 %v2687, %v2686
      %v2811 = vpack.c.bf16 %v2689, %v2688
      %v2812 = vpack.c.bf16 %v2691, %v2690
      %v2813 = vpack.c.bf16 %v2693, %v2692
      %v2814 = vpack.c.bf16 %v2695, %v2694
      %v2815 = vpack.c.bf16 %v2697, %v2696
      %v2816 = vpack.c.bf16 %v2699, %v2698
      %v2817 = vpack.c.bf16 %v2701, %v2700
      %v2818 = vpack.c.bf16 %v2703, %v2702
      %v2819 = vpack.c.bf16 %v2705, %v2704
      %v2820 = vpack.c.bf16 %v2707, %v2706
      %v2821 = vpack.c.bf16 %v2709, %v2708
      %v2822 = vpack.c.bf16 %v2711, %v2710
      %v2823 = vpack.c.bf16 %v2713, %v2712
      %v2824 = vpack.c.bf16 %v2715, %v2714
      %v2825 = vpack.c.bf16 %v2717, %v2716
      %v2826 = vpack.c.bf16 %v2719, %v2718
      %v2827 = vpack.c.bf16 %v2721, %v2720
      %v2828 = vpack.c.bf16 %v2723, %v2722
      %v2829 = vpack.c.bf16 %v2725, %v2724
      %v2830 = vpack.c.bf16 %v2727, %v2726
      %v2831 = vpack.c.bf16 %v2729, %v2728
      %v2832 = vpack.c.bf16 %v2731, %v2730
      %v2833 = vpack.c.bf16 %v2733, %v2732
      %v2834 = vpack.c.bf16 %v2735, %v2734
      %v2835 = vpack.c.bf16 %v2737, %v2736
      %v2836 = vpack.c.bf16 %v2739, %v2738
      %v2837 = vpack.c.bf16 %v2741, %v2740
      %v2838 = vpack.c.bf16 %v2743, %v2742
      %v2839 = vpack.c.bf16 %v2745, %v2744
      %v2840 = vpack.c.bf16 %v2747, %v2746
      %v2841 = vpack.c.bf16 %v2749, %v2748
      %v2842 = vpack.c.bf16 %v2751, %v2750
      %v2843 = vpack.c.bf16 %v2753, %v2752
      %v2844 = vpack.c.bf16 %v2755, %v2754
      %v2845 = vpack.c.bf16 %v2757, %v2756
      %v2846 = vpack.c.bf16 %v2759, %v2758
      %v2847 = vpack.c.bf16 %v2761, %v2760
      %v2848 = vpack.c.bf16 %v2763, %v2762
      %v2849 = vpack.c.bf16 %v2765, %v2764
      %v2850 = vpack.c.bf16 %v2767, %v2766
      %v2851 = vpack.c.bf16 %v2769, %v2768
      %v2852 = vpack.c.bf16 %v2771, %v2770
      %v2853 = vpack.c.bf16 %v2773, %v2772
      %v2854 = vpack.c.bf16 %v2775, %v2774
      %v2855 = vpack.c.bf16 %v2777, %v2776
      %v2856 = vpack.c.bf16 %v2779, %v2778
      %v2857 = vpack.c.bf16 %v2781, %v2780
      %v2858 = vpack.c.bf16 %v2783, %v2782
      %v2859 = vpack.c.bf16 %v2785, %v2784
      %v2860 = vpack.c.bf16 %v2787, %v2786
      %v2861 = vpack.c.bf16 %v2789, %v2788
      %v2862 = vpack.c.bf16 %v2791, %v2790
      %v2863 = vpack.c.bf16 %v2793, %v2792
      %v2864 = vpack.c.bf16 %v2795, %v2794
      %v2865 = vpack.c.bf16 %v2797, %v2796
      %v2866 = vpack.c.bf16 %v2799, %v2798
      %v2867 = vpack.c.bf16 %v2801, %v2800
      %v2868 = vpack.c.bf16 %v2803, %v2802
      %v2869 = vpack.c.bf16 %v2805, %v2804
      %v2870 = vpack.c.bf16 %v1117, %v1116
      %v2871 = vpack.c.bf16 %v1119, %v1118
      %v2872 = vpack.c.bf16 %v1121, %v1120
      %v2873 = vpack.c.bf16 %v1123, %v1122
      %v2874 = vpack.c.bf16 %v1125, %v1124
      %v2875 = vpack.c.bf16 %v1127, %v1126
      %v2876 = vpack.c.bf16 %v1129, %v1128
      %v2877 = vpack.c.bf16 %v1131, %v1130
      %v2878 = vpack.c.bf16 %v1133, %v1132
      %v2879 = vpack.c.bf16 %v1135, %v1134
      %v2880 = vpack.c.bf16 %v1137, %v1136
      %v2881 = vpack.c.bf16 %v1139, %v1138
      %v2882 = vpack.c.bf16 %v1141, %v1140
      %v2883 = vpack.c.bf16 %v1143, %v1142
      %v2884 = vpack.c.bf16 %v1145, %v1144
      %v2885 = vpack.c.bf16 %v1147, %v1146
      %v2886 = vpack.c.bf16 %v1149, %v1148
      %v2887 = vpack.c.bf16 %v1151, %v1150
      %v2888 = vpack.c.bf16 %v1153, %v1152
      %v2889 = vpack.c.bf16 %v1155, %v1154
      %v2890 = vpack.c.bf16 %v1157, %v1156
      %v2891 = vpack.c.bf16 %v1159, %v1158
      %v2892 = vpack.c.bf16 %v1161, %v1160
      %v2893 = vpack.c.bf16 %v1163, %v1162
      %v2894 = vpack.c.bf16 %v1165, %v1164
      %v2895 = vpack.c.bf16 %v1167, %v1166
      %v2896 = vpack.c.bf16 %v1169, %v1168
      %v2897 = vpack.c.bf16 %v1171, %v1170
      %v2898 = vpack.c.bf16 %v1173, %v1172
      %v2899 = vpack.c.bf16 %v1175, %v1174
      %v2900 = vpack.c.bf16 %v1177, %v1176
      %v2901 = vpack.c.bf16 %v1179, %v1178
      %v2902 = vpack.c.bf16 %v1181, %v1180
      %v2903 = vpack.c.bf16 %v1183, %v1182
      %v2904 = vpack.c.bf16 %v1185, %v1184
      %v2905 = vpack.c.bf16 %v1187, %v1186
      %v2906 = vpack.c.bf16 %v1189, %v1188
      %v2907 = vpack.c.bf16 %v1191, %v1190
      %v2908 = vpack.c.bf16 %v1193, %v1192
      %v2909 = vpack.c.bf16 %v1195, %v1194
      %v2910 = vpack.c.bf16 %v1197, %v1196
      %v2911 = vpack.c.bf16 %v1199, %v1198
      %v2912 = vpack.c.bf16 %v1201, %v1200
      %v2913 = vpack.c.bf16 %v1203, %v1202
      %v2914 = vpack.c.bf16 %v1205, %v1204
      %v2915 = vpack.c.bf16 %v1207, %v1206
      %v2916 = vpack.c.bf16 %v1209, %v1208
      %v2917 = vpack.c.bf16 %v1211, %v1210
      %v2919 = vsel %vm1288, %v2870, 0
      %v2922 = vsel %vm1288, %v2871, 0
      %v2925 = vsel %vm1288, %v2872, 0
      %v2928 = vsel %vm1288, %v2873, 0
      %v2931 = vsel %vm1288, %v2874, 0
      %v2934 = vsel %vm1288, %v2875, 0
      %v2937 = vsel %vm1288, %v2876, 0
      %v2940 = vsel %vm1288, %v2877, 0
      %v2943 = vsel %vm1288, %v2878, 0
      %v2946 = vsel %vm1288, %v2879, 0
      %v2949 = vsel %vm1288, %v2880, 0
      %v2952 = vsel %vm1288, %v2881, 0
      %v2955 = vsel %vm1288, %v2806, 0
      %v2958 = vsel %vm1288, %v2807, 0
      %v2961 = vsel %vm1288, %v2808, 0
      %v2964 = vsel %vm1288, %v2809, 0
      %v2967 = vsel %vm1288, %v2810, 0
      %v2970 = vsel %vm1288, %v2811, 0
      %v2973 = vsel %vm1288, %v2812, 0
      %v2976 = vsel %vm1288, %v2813, 0
      %v2979 = vsel %vm1288, %v2814, 0
      %v2982 = vsel %vm1288, %v2815, 0
      %v2985 = vsel %vm1288, %v2816, 0
      %v2988 = vsel %vm1288, %v2817, 0
      %v2991 = vsel %vm1288, %v2818, 0
      %v2994 = vsel %vm1288, %v2819, 0
      %v2997 = vsel %vm1288, %v2820, 0
      %v3000 = vsel %vm1288, %v2821, 0
      %3002 = vmatprep.subr.bf16.mxu0 0
      %3003 = vmatpush1.bf16.xpose.msra.mxu0 %v2976
      %3004 = vmatprep.subr.bf16.mxu0 0
      %3005 = vmatpush1.bf16.xpose.msra.mxu0 %v2973
      %3006 = vmatprep.subr.bf16.mxu0 0
      %3007 = vmatpush1.bf16.xpose.msra.mxu0 %v2970
      %3008 = vmatprep.subr.bf16.mxu0 0
      %3009 = vmatpush1.bf16.xpose.msra.mxu0 %v2967
      %3010 = vmatprep.subr.bf16.mxu0 0
      %3011 = vmatpush1.bf16.xpose.msra.mxu0 %v2964
      %3012 = vmatprep.subr.bf16.mxu0 0
      %3013 = vmatpush1.bf16.xpose.msra.mxu0 %v2961
      %3014 = vmatprep.subr.bf16.mxu0 0
      %3015 = vmatpush1.bf16.xpose.msra.mxu0 %v2958
      %3016 = vmatprep.subr.bf16.mxu0 0
      %3017 = vmatpush1.bf16.xpose.msra.mxu0 %v2955
      %3018 = vmatprep.subr.bf16.mxu0 0
      %3019 = vmatpush2.bf16.xpose.msra.mxu0 %v3000
      %3020 = vmatprep.subr.bf16.mxu0 0
      %3021 = vmatpush2.bf16.xpose.msra.mxu0 %v2997
      %3022 = vmatprep.subr.bf16.mxu0 0
      %3023 = vmatpush2.bf16.xpose.msra.mxu0 %v2994
      %3024 = vmatprep.subr.bf16.mxu0 0
      %3025 = vmatpush2.bf16.xpose.msra.mxu0 %v2991
      %3026 = vmatprep.subr.bf16.mxu0 0
      %3027 = vmatpush2.bf16.xpose.msra.mxu0 %v2988
      %3028 = vmatprep.subr.bf16.mxu0 0
      %3029 = vmatpush2.bf16.xpose.msra.mxu0 %v2985
      %3030 = vmatprep.subr.bf16.mxu0 0
      %3031 = vmatpush2.bf16.xpose.msra.mxu0 %v2982
      %3032 = vmatprep.subr.bf16.mxu0 0
      %3033 = vmatpush2.bf16.xpose.msra.mxu0 %v2979
      %3034 = vmatprep.mubr.bf16.mxu0 0
      %3035 = vmatmul.mubr.bf16.gmra.mxu0 %v2919
      %v3036 = vpop.f32.mrf.mxu0
      %v3037 = vadd.f32 0.0, %v3036
      %v3038 = vpop.f32.mrf.mxu0
      %v3039 = vadd.f32 0.0, %v3038
      %v3040 = vpop.f32.mrf.mxu0
      %v3041 = vadd.f32 0.0, %v3040
      %v3042 = vpop.f32.mrf.mxu0
      %v3043 = vadd.f32 0.0, %v3042
      %3044 = vmatprep.mubr.bf16.mxu0 0
      %3045 = vmatmul.mubr.bf16.gmra.mxu0 %v2922
      %v3046 = vpop.f32.mrf.mxu0
      %v3047 = vadd.f32 0.0, %v3046
      %v3048 = vpop.f32.mrf.mxu0
      %v3049 = vadd.f32 0.0, %v3048
      %v3050 = vpop.f32.mrf.mxu0
      %v3051 = vadd.f32 0.0, %v3050
      %v3052 = vpop.f32.mrf.mxu0
      %v3053 = vadd.f32 0.0, %v3052
      %3054 = vmatprep.mubr.bf16.mxu0 0
      %3055 = vmatmul.mubr.bf16.gmra.mxu0 %v2925
      %v3056 = vpop.f32.mrf.mxu0
      %v3057 = vadd.f32 0.0, %v3056
      %v3058 = vpop.f32.mrf.mxu0
      %v3059 = vadd.f32 0.0, %v3058
      %v3060 = vpop.f32.mrf.mxu0
      %v3061 = vadd.f32 0.0, %v3060
      %v3062 = vpop.f32.mrf.mxu0
      %v3063 = vadd.f32 0.0, %v3062
      %3064 = vmatprep.mubr.bf16.mxu0 0
      %3065 = vmatmul.mubr.bf16.gmra.mxu0 %v2928
      %v3066 = vpop.f32.mrf.mxu0
      %v3067 = vadd.f32 0.0, %v3066
      %v3068 = vpop.f32.mrf.mxu0
      %v3069 = vadd.f32 0.0, %v3068
      %v3070 = vpop.f32.mrf.mxu0
      %v3071 = vadd.f32 0.0, %v3070
      %v3072 = vpop.f32.mrf.mxu0
      %v3073 = vadd.f32 0.0, %v3072
      %3074 = vmatprep.mubr.bf16.mxu0 0
      %3075 = vmatmul.mubr.bf16.gmra.mxu0 %v2931
      %v3076 = vpop.f32.mrf.mxu0
      %v3077 = vadd.f32 0.0, %v3076
      %v3078 = vpop.f32.mrf.mxu0
      %v3079 = vadd.f32 0.0, %v3078
      %v3080 = vpop.f32.mrf.mxu0
      %v3081 = vadd.f32 0.0, %v3080
      %v3082 = vpop.f32.mrf.mxu0
      %v3083 = vadd.f32 0.0, %v3082
      %3084 = vmatprep.mubr.bf16.mxu0 0
      %3085 = vmatmul.mubr.bf16.gmra.mxu0 %v2934
      %v3086 = vpop.f32.mrf.mxu0
      %v3087 = vadd.f32 0.0, %v3086
      %v3088 = vpop.f32.mrf.mxu0
      %v3089 = vadd.f32 0.0, %v3088
      %v3090 = vpop.f32.mrf.mxu0
      %v3091 = vadd.f32 0.0, %v3090
      %v3092 = vpop.f32.mrf.mxu0
      %v3093 = vadd.f32 0.0, %v3092
      %3094 = vmatprep.mubr.bf16.mxu0 0
      %3095 = vmatmul.mubr.bf16.gmra.mxu0 %v2937
      %v3096 = vpop.f32.mrf.mxu0
      %v3097 = vadd.f32 0.0, %v3096
      %v3098 = vpop.f32.mrf.mxu0
      %v3099 = vadd.f32 0.0, %v3098
      %v3100 = vpop.f32.mrf.mxu0
      %v3101 = vadd.f32 0.0, %v3100
      %v3102 = vpop.f32.mrf.mxu0
      %v3103 = vadd.f32 0.0, %v3102
      %3104 = vmatprep.mubr.bf16.mxu0 0
      %3105 = vmatmul.mubr.bf16.gmra.mxu0 %v2940
      %v3106 = vpop.f32.mrf.mxu0
      %v3107 = vadd.f32 0.0, %v3106
      %v3108 = vpop.f32.mrf.mxu0
      %v3109 = vadd.f32 0.0, %v3108
      %v3110 = vpop.f32.mrf.mxu0
      %v3111 = vadd.f32 0.0, %v3110
      %v3112 = vpop.f32.mrf.mxu0
      %v3113 = vadd.f32 0.0, %v3112
      %3114 = vmatprep.mubr.bf16.mxu0 0
      %3115 = vmatmul.mubr.bf16.gmra.mxu0 %v2943
      %v3116 = vpop.f32.mrf.mxu0
      %v3117 = vadd.f32 0.0, %v3116
      %v3118 = vpop.f32.mrf.mxu0
      %v3119 = vadd.f32 0.0, %v3118
      %v3120 = vpop.f32.mrf.mxu0
      %v3121 = vadd.f32 0.0, %v3120
      %v3122 = vpop.f32.mrf.mxu0
      %v3123 = vadd.f32 0.0, %v3122
      %3124 = vmatprep.mubr.bf16.mxu0 0
      %3125 = vmatmul.mubr.bf16.gmra.mxu0 %v2946
      %v3126 = vpop.f32.mrf.mxu0
      %v3127 = vadd.f32 0.0, %v3126
      %v3128 = vpop.f32.mrf.mxu0
      %v3129 = vadd.f32 0.0, %v3128
      %v3130 = vpop.f32.mrf.mxu0
      %v3131 = vadd.f32 0.0, %v3130
      %v3132 = vpop.f32.mrf.mxu0
      %v3133 = vadd.f32 0.0, %v3132
      %3134 = vmatprep.mubr.bf16.mxu0 0
      %3135 = vmatmul.mubr.bf16.gmra.mxu0 %v2949
      %v3136 = vpop.f32.mrf.mxu0
      %v3137 = vadd.f32 0.0, %v3136
      %v3138 = vpop.f32.mrf.mxu0
      %v3139 = vadd.f32 0.0, %v3138
      %v3140 = vpop.f32.mrf.mxu0
      %v3141 = vadd.f32 0.0, %v3140
      %v3142 = vpop.f32.mrf.mxu0
      %v3143 = vadd.f32 0.0, %v3142
      %3144 = vmatprep.mubr.bf16.mxu0 0
      %3145 = vmatmul.mubr.bf16.gmra.mxu0 %v2952
      %v3146 = vpop.f32.mrf.mxu0
      %v3147 = vadd.f32 0.0, %v3146
      %v3148 = vpop.f32.mrf.mxu0
      %v3149 = vadd.f32 0.0, %v3148
      %v3150 = vpop.f32.mrf.mxu0
      %v3151 = vadd.f32 0.0, %v3150
      %v3152 = vpop.f32.mrf.mxu0
      %v3153 = vadd.f32 0.0, %v3152
      %3154 = vdwg.mxu0
      %v3156 = vsel %vm1288, %v2882, 0
      %v3159 = vsel %vm1288, %v2883, 0
      %v3162 = vsel %vm1288, %v2884, 0
      %v3165 = vsel %vm1288, %v2885, 0
      %v3168 = vsel %vm1288, %v2886, 0
      %v3171 = vsel %vm1288, %v2887, 0
      %v3174 = vsel %vm1288, %v2888, 0
      %v3177 = vsel %vm1288, %v2889, 0
      %v3180 = vsel %vm1288, %v2890, 0
      %v3183 = vsel %vm1288, %v2891, 0
      %v3186 = vsel %vm1288, %v2892, 0
      %v3189 = vsel %vm1288, %v2893, 0
      %v3192 = vsel %vm1288, %v2822, 0
      %v3195 = vsel %vm1288, %v2823, 0
      %v3198 = vsel %vm1288, %v2824, 0
      %v3201 = vsel %vm1288, %v2825, 0
      %v3204 = vsel %vm1288, %v2826, 0
      %v3207 = vsel %vm1288, %v2827, 0
      %v3210 = vsel %vm1288, %v2828, 0
      %v3213 = vsel %vm1288, %v2829, 0
      %v3216 = vsel %vm1288, %v2830, 0
      %v3219 = vsel %vm1288, %v2831, 0
      %v3222 = vsel %vm1288, %v2832, 0
      %v3225 = vsel %vm1288, %v2833, 0
      %v3228 = vsel %vm1288, %v2834, 0
      %v3231 = vsel %vm1288, %v2835, 0
      %v3234 = vsel %vm1288, %v2836, 0
      %v3237 = vsel %vm1288, %v2837, 0
      %3239 = vmatprep.subr.bf16.mxu0 0
      %3240 = vmatpush1.bf16.xpose.msra.mxu0 %v3213
      %3241 = vmatprep.subr.bf16.mxu0 0
      %3242 = vmatpush1.bf16.xpose.msra.mxu0 %v3210
      %3243 = vmatprep.subr.bf16.mxu0 0
      %3244 = vmatpush1.bf16.xpose.msra.mxu0 %v3207
      %3245 = vmatprep.subr.bf16.mxu0 0
      %3246 = vmatpush1.bf16.xpose.msra.mxu0 %v3204
      %3247 = vmatprep.subr.bf16.mxu0 0
      %3248 = vmatpush1.bf16.xpose.msra.mxu0 %v3201
      %3249 = vmatprep.subr.bf16.mxu0 0
      %3250 = vmatpush1.bf16.xpose.msra.mxu0 %v3198
      %3251 = vmatprep.subr.bf16.mxu0 0
      %3252 = vmatpush1.bf16.xpose.msra.mxu0 %v3195
      %3253 = vmatprep.subr.bf16.mxu0 0
      %3254 = vmatpush1.bf16.xpose.msra.mxu0 %v3192
      %3255 = vmatprep.subr.bf16.mxu0 0
      %3256 = vmatpush2.bf16.xpose.msra.mxu0 %v3237
      %3257 = vmatprep.subr.bf16.mxu0 0
      %3258 = vmatpush2.bf16.xpose.msra.mxu0 %v3234
      %3259 = vmatprep.subr.bf16.mxu0 0
      %3260 = vmatpush2.bf16.xpose.msra.mxu0 %v3231
      %3261 = vmatprep.subr.bf16.mxu0 0
      %3262 = vmatpush2.bf16.xpose.msra.mxu0 %v3228
      %3263 = vmatprep.subr.bf16.mxu0 0
      %3264 = vmatpush2.bf16.xpose.msra.mxu0 %v3225
      %3265 = vmatprep.subr.bf16.mxu0 0
      %3266 = vmatpush2.bf16.xpose.msra.mxu0 %v3222
      %3267 = vmatprep.subr.bf16.mxu0 0
      %3268 = vmatpush2.bf16.xpose.msra.mxu0 %v3219
      %3269 = vmatprep.subr.bf16.mxu0 0
      %3270 = vmatpush2.bf16.xpose.msra.mxu0 %v3216
      %3271 = vmatprep.mubr.bf16.mxu0 0
      %3272 = vmatmul.mubr.bf16.gmra.mxu0 %v3156
      %v3273 = vpop.f32.mrf.mxu0
      %v3274 = vadd.f32 0.0, %v3273
      %v3275 = vpop.f32.mrf.mxu0
      %v3276 = vadd.f32 0.0, %v3275
      %v3277 = vpop.f32.mrf.mxu0
      %v3278 = vadd.f32 0.0, %v3277
      %v3279 = vpop.f32.mrf.mxu0
      %v3280 = vadd.f32 0.0, %v3279
      %3281 = vmatprep.mubr.bf16.mxu0 0
      %3282 = vmatmul.mubr.bf16.gmra.mxu0 %v3159
      %v3283 = vpop.f32.mrf.mxu0
      %v3284 = vadd.f32 0.0, %v3283
      %v3285 = vpop.f32.mrf.mxu0
      %v3286 = vadd.f32 0.0, %v3285
      %v3287 = vpop.f32.mrf.mxu0
      %v3288 = vadd.f32 0.0, %v3287
      %v3289 = vpop.f32.mrf.mxu0
      %v3290 = vadd.f32 0.0, %v3289
      %3291 = vmatprep.mubr.bf16.mxu0 0
      %3292 = vmatmul.mubr.bf16.gmra.mxu0 %v3162
      %v3293 = vpop.f32.mrf.mxu0
      %v3294 = vadd.f32 0.0, %v3293
      %v3295 = vpop.f32.mrf.mxu0
      %v3296 = vadd.f32 0.0, %v3295
      %v3297 = vpop.f32.mrf.mxu0
      %v3298 = vadd.f32 0.0, %v3297
      %v3299 = vpop.f32.mrf.mxu0
      %v3300 = vadd.f32 0.0, %v3299
      %3301 = vmatprep.mubr.bf16.mxu0 0
      %3302 = vmatmul.mubr.bf16.gmra.mxu0 %v3165
      %v3303 = vpop.f32.mrf.mxu0
      %v3304 = vadd.f32 0.0, %v3303
      %v3305 = vpop.f32.mrf.mxu0
      %v3306 = vadd.f32 0.0, %v3305
      %v3307 = vpop.f32.mrf.mxu0
      %v3308 = vadd.f32 0.0, %v3307
      %v3309 = vpop.f32.mrf.mxu0
      %v3310 = vadd.f32 0.0, %v3309
      %3311 = vmatprep.mubr.bf16.mxu0 0
      %3312 = vmatmul.mubr.bf16.gmra.mxu0 %v3168
      %v3313 = vpop.f32.mrf.mxu0
      %v3314 = vadd.f32 0.0, %v3313
      %v3315 = vpop.f32.mrf.mxu0
      %v3316 = vadd.f32 0.0, %v3315
      %v3317 = vpop.f32.mrf.mxu0
      %v3318 = vadd.f32 0.0, %v3317
      %v3319 = vpop.f32.mrf.mxu0
      %v3320 = vadd.f32 0.0, %v3319
      %3321 = vmatprep.mubr.bf16.mxu0 0
      %3322 = vmatmul.mubr.bf16.gmra.mxu0 %v3171
      %v3323 = vpop.f32.mrf.mxu0
      %v3324 = vadd.f32 0.0, %v3323
      %v3325 = vpop.f32.mrf.mxu0
      %v3326 = vadd.f32 0.0, %v3325
      %v3327 = vpop.f32.mrf.mxu0
      %v3328 = vadd.f32 0.0, %v3327
      %v3329 = vpop.f32.mrf.mxu0
      %v3330 = vadd.f32 0.0, %v3329
      %3331 = vmatprep.mubr.bf16.mxu0 0
      %3332 = vmatmul.mubr.bf16.gmra.mxu0 %v3174
      %v3333 = vpop.f32.mrf.mxu0
      %v3334 = vadd.f32 0.0, %v3333
      %v3335 = vpop.f32.mrf.mxu0
      %v3336 = vadd.f32 0.0, %v3335
      %v3337 = vpop.f32.mrf.mxu0
      %v3338 = vadd.f32 0.0, %v3337
      %v3339 = vpop.f32.mrf.mxu0
      %v3340 = vadd.f32 0.0, %v3339
      %3341 = vmatprep.mubr.bf16.mxu0 0
      %3342 = vmatmul.mubr.bf16.gmra.mxu0 %v3177
      %v3343 = vpop.f32.mrf.mxu0
      %v3344 = vadd.f32 0.0, %v3343
      %v3345 = vpop.f32.mrf.mxu0
      %v3346 = vadd.f32 0.0, %v3345
      %v3347 = vpop.f32.mrf.mxu0
      %v3348 = vadd.f32 0.0, %v3347
      %v3349 = vpop.f32.mrf.mxu0
      %v3350 = vadd.f32 0.0, %v3349
      %3351 = vmatprep.mubr.bf16.mxu0 0
      %3352 = vmatmul.mubr.bf16.gmra.mxu0 %v3180
      %v3353 = vpop.f32.mrf.mxu0
      %v3354 = vadd.f32 0.0, %v3353
      %v3355 = vpop.f32.mrf.mxu0
      %v3356 = vadd.f32 0.0, %v3355
      %v3357 = vpop.f32.mrf.mxu0
      %v3358 = vadd.f32 0.0, %v3357
      %v3359 = vpop.f32.mrf.mxu0
      %v3360 = vadd.f32 0.0, %v3359
      %3361 = vmatprep.mubr.bf16.mxu0 0
      %3362 = vmatmul.mubr.bf16.gmra.mxu0 %v3183
      %v3363 = vpop.f32.mrf.mxu0
      %v3364 = vadd.f32 0.0, %v3363
      %v3365 = vpop.f32.mrf.mxu0
      %v3366 = vadd.f32 0.0, %v3365
      %v3367 = vpop.f32.mrf.mxu0
      %v3368 = vadd.f32 0.0, %v3367
      %v3369 = vpop.f32.mrf.mxu0
      %v3370 = vadd.f32 0.0, %v3369
      %3371 = vmatprep.mubr.bf16.mxu0 0
      %3372 = vmatmul.mubr.bf16.gmra.mxu0 %v3186
      %v3373 = vpop.f32.mrf.mxu0
      %v3374 = vadd.f32 0.0, %v3373
      %v3375 = vpop.f32.mrf.mxu0
      %v3376 = vadd.f32 0.0, %v3375
      %v3377 = vpop.f32.mrf.mxu0
      %v3378 = vadd.f32 0.0, %v3377
      %v3379 = vpop.f32.mrf.mxu0
      %v3380 = vadd.f32 0.0, %v3379
      %3381 = vmatprep.mubr.bf16.mxu0 0
      %3382 = vmatmul.mubr.bf16.gmra.mxu0 %v3189
      %v3383 = vpop.f32.mrf.mxu0
      %v3384 = vadd.f32 0.0, %v3383
      %v3385 = vpop.f32.mrf.mxu0
      %v3386 = vadd.f32 0.0, %v3385
      %v3387 = vpop.f32.mrf.mxu0
      %v3388 = vadd.f32 0.0, %v3387
      %v3389 = vpop.f32.mrf.mxu0
      %v3390 = vadd.f32 0.0, %v3389
      %3391 = vdwg.mxu0
      %v3393 = vsel %vm1288, %v2894, 0
      %v3396 = vsel %vm1288, %v2895, 0
      %v3399 = vsel %vm1288, %v2896, 0
      %v3402 = vsel %vm1288, %v2897, 0
      %v3405 = vsel %vm1288, %v2898, 0
      %v3408 = vsel %vm1288, %v2899, 0
      %v3411 = vsel %vm1288, %v2900, 0
      %v3414 = vsel %vm1288, %v2901, 0
      %v3417 = vsel %vm1288, %v2902, 0
      %v3420 = vsel %vm1288, %v2903, 0
      %v3423 = vsel %vm1288, %v2904, 0
      %v3426 = vsel %vm1288, %v2905, 0
      %v3429 = vsel %vm1288, %v2838, 0
      %v3432 = vsel %vm1288, %v2839, 0
      %v3435 = vsel %vm1288, %v2840, 0
      %v3438 = vsel %vm1288, %v2841, 0
      %v3441 = vsel %vm1288, %v2842, 0
      %v3444 = vsel %vm1288, %v2843, 0
      %v3447 = vsel %vm1288, %v2844, 0
      %v3450 = vsel %vm1288, %v2845, 0
      %v3453 = vsel %vm1288, %v2846, 0
      %v3456 = vsel %vm1288, %v2847, 0
      %v3459 = vsel %vm1288, %v2848, 0
      %v3462 = vsel %vm1288, %v2849, 0
      %v3465 = vsel %vm1288, %v2850, 0
      %v3468 = vsel %vm1288, %v2851, 0
      %v3471 = vsel %vm1288, %v2852, 0
      %v3474 = vsel %vm1288, %v2853, 0
      %3476 = vmatprep.subr.bf16.mxu0 0
      %3477 = vmatpush1.bf16.xpose.msra.mxu0 %v3450
      %3478 = vmatprep.subr.bf16.mxu0 0
      %3479 = vmatpush1.bf16.xpose.msra.mxu0 %v3447
      %3480 = vmatprep.subr.bf16.mxu0 0
      %3481 = vmatpush1.bf16.xpose.msra.mxu0 %v3444
      %3482 = vmatprep.subr.bf16.mxu0 0
      %3483 = vmatpush1.bf16.xpose.msra.mxu0 %v3441
      %3484 = vmatprep.subr.bf16.mxu0 0
      %3485 = vmatpush1.bf16.xpose.msra.mxu0 %v3438
      %3486 = vmatprep.subr.bf16.mxu0 0
      %3487 = vmatpush1.bf16.xpose.msra.mxu0 %v3435
      %3488 = vmatprep.subr.bf16.mxu0 0
      %3489 = vmatpush1.bf16.xpose.msra.mxu0 %v3432
      %3490 = vmatprep.subr.bf16.mxu0 0
      %3491 = vmatpush1.bf16.xpose.msra.mxu0 %v3429
      %3492 = vmatprep.subr.bf16.mxu0 0
      %3493 = vmatpush2.bf16.xpose.msra.mxu0 %v3474
      %3494 = vmatprep.subr.bf16.mxu0 0
      %3495 = vmatpush2.bf16.xpose.msra.mxu0 %v3471
      %3496 = vmatprep.subr.bf16.mxu0 0
      %3497 = vmatpush2.bf16.xpose.msra.mxu0 %v3468
      %3498 = vmatprep.subr.bf16.mxu0 0
      %3499 = vmatpush2.bf16.xpose.msra.mxu0 %v3465
      %3500 = vmatprep.subr.bf16.mxu0 0
      %3501 = vmatpush2.bf16.xpose.msra.mxu0 %v3462
      %3502 = vmatprep.subr.bf16.mxu0 0
      %3503 = vmatpush2.bf16.xpose.msra.mxu0 %v3459
      %3504 = vmatprep.subr.bf16.mxu0 0
      %3505 = vmatpush2.bf16.xpose.msra.mxu0 %v3456
      %3506 = vmatprep.subr.bf16.mxu0 0
      %3507 = vmatpush2.bf16.xpose.msra.mxu0 %v3453
      %3508 = vmatprep.mubr.bf16.mxu0 0
      %3509 = vmatmul.mubr.bf16.gmra.mxu0 %v3393
      %v3510 = vpop.f32.mrf.mxu0
      %v3511 = vadd.f32 0.0, %v3510
      %v3512 = vpop.f32.mrf.mxu0
      %v3513 = vadd.f32 0.0, %v3512
      %v3514 = vpop.f32.mrf.mxu0
      %v3515 = vadd.f32 0.0, %v3514
      %v3516 = vpop.f32.mrf.mxu0
      %v3517 = vadd.f32 0.0, %v3516
      %3518 = vmatprep.mubr.bf16.mxu0 0
      %3519 = vmatmul.mubr.bf16.gmra.mxu0 %v3396
      %v3520 = vpop.f32.mrf.mxu0
      %v3521 = vadd.f32 0.0, %v3520
      %v3522 = vpop.f32.mrf.mxu0
      %v3523 = vadd.f32 0.0, %v3522
      %v3524 = vpop.f32.mrf.mxu0
      %v3525 = vadd.f32 0.0, %v3524
      %v3526 = vpop.f32.mrf.mxu0
      %v3527 = vadd.f32 0.0, %v3526
      %3528 = vmatprep.mubr.bf16.mxu0 0
      %3529 = vmatmul.mubr.bf16.gmra.mxu0 %v3399
      %v3530 = vpop.f32.mrf.mxu0
      %v3531 = vadd.f32 0.0, %v3530
      %v3532 = vpop.f32.mrf.mxu0
      %v3533 = vadd.f32 0.0, %v3532
      %v3534 = vpop.f32.mrf.mxu0
      %v3535 = vadd.f32 0.0, %v3534
      %v3536 = vpop.f32.mrf.mxu0
      %v3537 = vadd.f32 0.0, %v3536
      %3538 = vmatprep.mubr.bf16.mxu0 0
      %3539 = vmatmul.mubr.bf16.gmra.mxu0 %v3402
      %v3540 = vpop.f32.mrf.mxu0
      %v3541 = vadd.f32 0.0, %v3540
      %v3542 = vpop.f32.mrf.mxu0
      %v3543 = vadd.f32 0.0, %v3542
      %v3544 = vpop.f32.mrf.mxu0
      %v3545 = vadd.f32 0.0, %v3544
      %v3546 = vpop.f32.mrf.mxu0
      %v3547 = vadd.f32 0.0, %v3546
      %3548 = vmatprep.mubr.bf16.mxu0 0
      %3549 = vmatmul.mubr.bf16.gmra.mxu0 %v3405
      %v3550 = vpop.f32.mrf.mxu0
      %v3551 = vadd.f32 0.0, %v3550
      %v3552 = vpop.f32.mrf.mxu0
      %v3553 = vadd.f32 0.0, %v3552
      %v3554 = vpop.f32.mrf.mxu0
      %v3555 = vadd.f32 0.0, %v3554
      %v3556 = vpop.f32.mrf.mxu0
      %v3557 = vadd.f32 0.0, %v3556
      %3558 = vmatprep.mubr.bf16.mxu0 0
      %3559 = vmatmul.mubr.bf16.gmra.mxu0 %v3408
      %v3560 = vpop.f32.mrf.mxu0
      %v3561 = vadd.f32 0.0, %v3560
      %v3562 = vpop.f32.mrf.mxu0
      %v3563 = vadd.f32 0.0, %v3562
      %v3564 = vpop.f32.mrf.mxu0
      %v3565 = vadd.f32 0.0, %v3564
      %v3566 = vpop.f32.mrf.mxu0
      %v3567 = vadd.f32 0.0, %v3566
      %3568 = vmatprep.mubr.bf16.mxu0 0
      %3569 = vmatmul.mubr.bf16.gmra.mxu0 %v3411
      %v3570 = vpop.f32.mrf.mxu0
      %v3571 = vadd.f32 0.0, %v3570
      %v3572 = vpop.f32.mrf.mxu0
      %v3573 = vadd.f32 0.0, %v3572
      %v3574 = vpop.f32.mrf.mxu0
      %v3575 = vadd.f32 0.0, %v3574
      %v3576 = vpop.f32.mrf.mxu0
      %v3577 = vadd.f32 0.0, %v3576
      %3578 = vmatprep.mubr.bf16.mxu0 0
      %3579 = vmatmul.mubr.bf16.gmra.mxu0 %v3414
      %v3580 = vpop.f32.mrf.mxu0
      %v3581 = vadd.f32 0.0, %v3580
      %v3582 = vpop.f32.mrf.mxu0
      %v3583 = vadd.f32 0.0, %v3582
      %v3584 = vpop.f32.mrf.mxu0
      %v3585 = vadd.f32 0.0, %v3584
      %v3586 = vpop.f32.mrf.mxu0
      %v3587 = vadd.f32 0.0, %v3586
      %3588 = vmatprep.mubr.bf16.mxu0 0
      %3589 = vmatmul.mubr.bf16.gmra.mxu0 %v3417
      %v3590 = vpop.f32.mrf.mxu0
      %v3591 = vadd.f32 0.0, %v3590
      %v3592 = vpop.f32.mrf.mxu0
      %v3593 = vadd.f32 0.0, %v3592
      %v3594 = vpop.f32.mrf.mxu0
      %v3595 = vadd.f32 0.0, %v3594
      %v3596 = vpop.f32.mrf.mxu0
      %v3597 = vadd.f32 0.0, %v3596
      %3598 = vmatprep.mubr.bf16.mxu0 0
      %3599 = vmatmul.mubr.bf16.gmra.mxu0 %v3420
      %v3600 = vpop.f32.mrf.mxu0
      %v3601 = vadd.f32 0.0, %v3600
      %v3602 = vpop.f32.mrf.mxu0
      %v3603 = vadd.f32 0.0, %v3602
      %v3604 = vpop.f32.mrf.mxu0
      %v3605 = vadd.f32 0.0, %v3604
      %v3606 = vpop.f32.mrf.mxu0
      %v3607 = vadd.f32 0.0, %v3606
      %3608 = vmatprep.mubr.bf16.mxu0 0
      %3609 = vmatmul.mubr.bf16.gmra.mxu0 %v3423
      %v3610 = vpop.f32.mrf.mxu0
      %v3611 = vadd.f32 0.0, %v3610
      %v3612 = vpop.f32.mrf.mxu0
      %v3613 = vadd.f32 0.0, %v3612
      %v3614 = vpop.f32.mrf.mxu0
      %v3615 = vadd.f32 0.0, %v3614
      %v3616 = vpop.f32.mrf.mxu0
      %v3617 = vadd.f32 0.0, %v3616
      %3618 = vmatprep.mubr.bf16.mxu0 0
      %3619 = vmatmul.mubr.bf16.gmra.mxu0 %v3426
      %v3620 = vpop.f32.mrf.mxu0
      %v3621 = vadd.f32 0.0, %v3620
      %v3622 = vpop.f32.mrf.mxu0
      %v3623 = vadd.f32 0.0, %v3622
      %v3624 = vpop.f32.mrf.mxu0
      %v3625 = vadd.f32 0.0, %v3624
      %v3626 = vpop.f32.mrf.mxu0
      %v3627 = vadd.f32 0.0, %v3626
      %3628 = vdwg.mxu0
      %v3630 = vsel %vm1288, %v2906, 0
      %v3633 = vsel %vm1288, %v2907, 0
      %v3636 = vsel %vm1288, %v2908, 0
      %v3639 = vsel %vm1288, %v2909, 0
      %v3642 = vsel %vm1288, %v2910, 0
      %v3645 = vsel %vm1288, %v2911, 0
      %v3648 = vsel %vm1288, %v2912, 0
      %v3651 = vsel %vm1288, %v2913, 0
      %v3654 = vsel %vm1288, %v2914, 0
      %v3657 = vsel %vm1288, %v2915, 0
      %v3660 = vsel %vm1288, %v2916, 0
      %v3663 = vsel %vm1288, %v2917, 0
      %v3666 = vsel %vm1288, %v2854, 0
      %v3669 = vsel %vm1288, %v2855, 0
      %v3672 = vsel %vm1288, %v2856, 0
      %v3675 = vsel %vm1288, %v2857, 0
      %v3678 = vsel %vm1288, %v2858, 0
      %v3681 = vsel %vm1288, %v2859, 0
      %v3684 = vsel %vm1288, %v2860, 0
      %v3687 = vsel %vm1288, %v2861, 0
      %v3690 = vsel %vm1288, %v2862, 0
      %v3693 = vsel %vm1288, %v2863, 0
      %v3696 = vsel %vm1288, %v2864, 0
      %v3699 = vsel %vm1288, %v2865, 0
      %v3702 = vsel %vm1288, %v2866, 0
      %v3705 = vsel %vm1288, %v2867, 0
      %v3708 = vsel %vm1288, %v2868, 0
      %v3711 = vsel %vm1288, %v2869, 0
      %3713 = vmatprep.subr.bf16.mxu0 0
      %3714 = vmatpush1.bf16.xpose.msra.mxu0 %v3687
      %3715 = vmatprep.subr.bf16.mxu0 0
      %3716 = vmatpush1.bf16.xpose.msra.mxu0 %v3684
      %3717 = vmatprep.subr.bf16.mxu0 0
      %3718 = vmatpush1.bf16.xpose.msra.mxu0 %v3681
      %3719 = vmatprep.subr.bf16.mxu0 0
      %3720 = vmatpush1.bf16.xpose.msra.mxu0 %v3678
      %3721 = vmatprep.subr.bf16.mxu0 0
      %3722 = vmatpush1.bf16.xpose.msra.mxu0 %v3675
      %3723 = vmatprep.subr.bf16.mxu0 0
      %3724 = vmatpush1.bf16.xpose.msra.mxu0 %v3672
      %3725 = vmatprep.subr.bf16.mxu0 0
      %3726 = vmatpush1.bf16.xpose.msra.mxu0 %v3669
      %3727 = vmatprep.subr.bf16.mxu0 0
      %3728 = vmatpush1.bf16.xpose.msra.mxu0 %v3666
      %3729 = vmatprep.subr.bf16.mxu0 0
      %3730 = vmatpush2.bf16.xpose.msra.mxu0 %v3711
      %3731 = vmatprep.subr.bf16.mxu0 0
      %3732 = vmatpush2.bf16.xpose.msra.mxu0 %v3708
      %3733 = vmatprep.subr.bf16.mxu0 0
      %3734 = vmatpush2.bf16.xpose.msra.mxu0 %v3705
      %3735 = vmatprep.subr.bf16.mxu0 0
      %3736 = vmatpush2.bf16.xpose.msra.mxu0 %v3702
      %3737 = vmatprep.subr.bf16.mxu0 0
      %3738 = vmatpush2.bf16.xpose.msra.mxu0 %v3699
      %3739 = vmatprep.subr.bf16.mxu0 0
      %3740 = vmatpush2.bf16.xpose.msra.mxu0 %v3696
      %3741 = vmatprep.subr.bf16.mxu0 0
      %3742 = vmatpush2.bf16.xpose.msra.mxu0 %v3693
      %3743 = vmatprep.subr.bf16.mxu0 0
      %3744 = vmatpush2.bf16.xpose.msra.mxu0 %v3690
      %3745 = vmatprep.mubr.bf16.mxu0 0
      %3746 = vmatmul.mubr.bf16.gmra.mxu0 %v3630
      %v3747 = vpop.f32.mrf.mxu0
      %v3748 = vadd.f32 0.0, %v3747
      %v3749 = vpop.f32.mrf.mxu0
      %v3750 = vadd.f32 0.0, %v3749
      %v3751 = vpop.f32.mrf.mxu0
      %v3752 = vadd.f32 0.0, %v3751
      %v3753 = vpop.f32.mrf.mxu0
      %v3754 = vadd.f32 0.0, %v3753
      %3755 = vmatprep.mubr.bf16.mxu0 0
      %3756 = vmatmul.mubr.bf16.gmra.mxu0 %v3633
      %v3757 = vpop.f32.mrf.mxu0
      %v3758 = vadd.f32 0.0, %v3757
      %v3759 = vpop.f32.mrf.mxu0
      %v3760 = vadd.f32 0.0, %v3759
      %v3761 = vpop.f32.mrf.mxu0
      %v3762 = vadd.f32 0.0, %v3761
      %v3763 = vpop.f32.mrf.mxu0
      %v3764 = vadd.f32 0.0, %v3763
      %3765 = vmatprep.mubr.bf16.mxu0 0
      %3766 = vmatmul.mubr.bf16.gmra.mxu0 %v3636
      %v3767 = vpop.f32.mrf.mxu0
      %v3768 = vadd.f32 0.0, %v3767
      %v3769 = vpop.f32.mrf.mxu0
      %v3770 = vadd.f32 0.0, %v3769
      %v3771 = vpop.f32.mrf.mxu0
      %v3772 = vadd.f32 0.0, %v3771
      %v3773 = vpop.f32.mrf.mxu0
      %v3774 = vadd.f32 0.0, %v3773
      %3775 = vmatprep.mubr.bf16.mxu0 0
      %3776 = vmatmul.mubr.bf16.gmra.mxu0 %v3639
      %v3777 = vpop.f32.mrf.mxu0
      %v3778 = vadd.f32 0.0, %v3777
      %v3779 = vpop.f32.mrf.mxu0
      %v3780 = vadd.f32 0.0, %v3779
      %v3781 = vpop.f32.mrf.mxu0
      %v3782 = vadd.f32 0.0, %v3781
      %v3783 = vpop.f32.mrf.mxu0
      %v3784 = vadd.f32 0.0, %v3783
      %3785 = vmatprep.mubr.bf16.mxu0 0
      %3786 = vmatmul.mubr.bf16.gmra.mxu0 %v3642
      %v3787 = vpop.f32.mrf.mxu0
      %v3788 = vadd.f32 0.0, %v3787
      %v3789 = vpop.f32.mrf.mxu0
      %v3790 = vadd.f32 0.0, %v3789
      %v3791 = vpop.f32.mrf.mxu0
      %v3792 = vadd.f32 0.0, %v3791
      %v3793 = vpop.f32.mrf.mxu0
      %v3794 = vadd.f32 0.0, %v3793
      %3795 = vmatprep.mubr.bf16.mxu0 0
      %3796 = vmatmul.mubr.bf16.gmra.mxu0 %v3645
      %v3797 = vpop.f32.mrf.mxu0
      %v3798 = vadd.f32 0.0, %v3797
      %v3799 = vpop.f32.mrf.mxu0
      %v3800 = vadd.f32 0.0, %v3799
      %v3801 = vpop.f32.mrf.mxu0
      %v3802 = vadd.f32 0.0, %v3801
      %v3803 = vpop.f32.mrf.mxu0
      %v3804 = vadd.f32 0.0, %v3803
      %3805 = vmatprep.mubr.bf16.mxu0 0
      %3806 = vmatmul.mubr.bf16.gmra.mxu0 %v3648
      %v3807 = vpop.f32.mrf.mxu0
      %v3808 = vadd.f32 0.0, %v3807
      %v3809 = vpop.f32.mrf.mxu0
      %v3810 = vadd.f32 0.0, %v3809
      %v3811 = vpop.f32.mrf.mxu0
      %v3812 = vadd.f32 0.0, %v3811
      %v3813 = vpop.f32.mrf.mxu0
      %v3814 = vadd.f32 0.0, %v3813
      %3815 = vmatprep.mubr.bf16.mxu0 0
      %3816 = vmatmul.mubr.bf16.gmra.mxu0 %v3651
      %v3817 = vpop.f32.mrf.mxu0
      %v3818 = vadd.f32 0.0, %v3817
      %v3819 = vpop.f32.mrf.mxu0
      %v3820 = vadd.f32 0.0, %v3819
      %v3821 = vpop.f32.mrf.mxu0
      %v3822 = vadd.f32 0.0, %v3821
      %v3823 = vpop.f32.mrf.mxu0
      %v3824 = vadd.f32 0.0, %v3823
      %3825 = vmatprep.mubr.bf16.mxu0 0
      %3826 = vmatmul.mubr.bf16.gmra.mxu0 %v3654
      %v3827 = vpop.f32.mrf.mxu0
      %v3828 = vadd.f32 0.0, %v3827
      %v3829 = vpop.f32.mrf.mxu0
      %v3830 = vadd.f32 0.0, %v3829
      %v3831 = vpop.f32.mrf.mxu0
      %v3832 = vadd.f32 0.0, %v3831
      %v3833 = vpop.f32.mrf.mxu0
      %v3834 = vadd.f32 0.0, %v3833
      %3835 = vmatprep.mubr.bf16.mxu0 0
      %3836 = vmatmul.mubr.bf16.gmra.mxu0 %v3657
      %v3837 = vpop.f32.mrf.mxu0
      %v3838 = vadd.f32 0.0, %v3837
      %v3839 = vpop.f32.mrf.mxu0
      %v3840 = vadd.f32 0.0, %v3839
      %v3841 = vpop.f32.mrf.mxu0
      %v3842 = vadd.f32 0.0, %v3841
      %v3843 = vpop.f32.mrf.mxu0
      %v3844 = vadd.f32 0.0, %v3843
      %3845 = vmatprep.mubr.bf16.mxu0 0
      %3846 = vmatmul.mubr.bf16.gmra.mxu0 %v3660
      %v3847 = vpop.f32.mrf.mxu0
      %v3848 = vadd.f32 0.0, %v3847
      %v3849 = vpop.f32.mrf.mxu0
      %v3850 = vadd.f32 0.0, %v3849
      %v3851 = vpop.f32.mrf.mxu0
      %v3852 = vadd.f32 0.0, %v3851
      %v3853 = vpop.f32.mrf.mxu0
      %v3854 = vadd.f32 0.0, %v3853
      %3855 = vmatprep.mubr.bf16.mxu0 0
      %3856 = vmatmul.mubr.bf16.gmra.mxu0 %v3663
      %v3857 = vpop.f32.mrf.mxu0
      %v3858 = vadd.f32 0.0, %v3857
      %v3859 = vpop.f32.mrf.mxu0
      %v3860 = vadd.f32 0.0, %v3859
      %v3861 = vpop.f32.mrf.mxu0
      %v3862 = vadd.f32 0.0, %v3861
      %v3863 = vpop.f32.mrf.mxu0
      %v3864 = vadd.f32 0.0, %v3863
      %3865 = vdwg.mxu0
      %vm3866 = vcmask 998400
      %v3867 = vsel %vm3866, %v3039, -inf
      %v3868 = vmax.f32 %v3037, %v3867
      %3869 = vmax.xlane.f32.xlu0 %v3868
      %v3870 = vpop.xlane.xlu0 %3869
      %v3871 = vsel %vm3866, %v3043, -inf
      %v3872 = vmax.f32 %v3041, %v3871
      %3873 = vmax.xlane.f32.xlu0 %v3872
      %v3874 = vpop.xlane.xlu0 %3873
      %v3875 = vsel %vm3866, %v3049, -inf
      %v3876 = vmax.f32 %v3047, %v3875
      %3877 = vmax.xlane.f32.xlu0 %v3876
      %v3878 = vpop.xlane.xlu0 %3877
      %v3879 = vsel %vm3866, %v3053, -inf
      %v3880 = vmax.f32 %v3051, %v3879
      %3881 = vmax.xlane.f32.xlu0 %v3880
      %v3882 = vpop.xlane.xlu0 %3881
      %v3883 = vsel %vm3866, %v3059, -inf
      %v3884 = vmax.f32 %v3057, %v3883
      %3885 = vmax.xlane.f32.xlu0 %v3884
      %v3886 = vpop.xlane.xlu0 %3885
      %v3887 = vsel %vm3866, %v3063, -inf
      %v3888 = vmax.f32 %v3061, %v3887
      %3889 = vmax.xlane.f32.xlu0 %v3888
      %v3890 = vpop.xlane.xlu0 %3889
      %v3891 = vsel %vm3866, %v3069, -inf
      %v3892 = vmax.f32 %v3067, %v3891
      %3893 = vmax.xlane.f32.xlu0 %v3892
      %v3894 = vpop.xlane.xlu0 %3893
      %v3895 = vsel %vm3866, %v3073, -inf
      %v3896 = vmax.f32 %v3071, %v3895
      %3897 = vmax.xlane.f32.xlu0 %v3896
      %v3898 = vpop.xlane.xlu0 %3897
      %v3899 = vsel %vm3866, %v3079, -inf
      %v3900 = vmax.f32 %v3077, %v3899
      %3901 = vmax.xlane.f32.xlu0 %v3900
      %v3902 = vpop.xlane.xlu0 %3901
      %v3903 = vsel %vm3866, %v3083, -inf
      %v3904 = vmax.f32 %v3081, %v3903
      %3905 = vmax.xlane.f32.xlu0 %v3904
      %v3906 = vpop.xlane.xlu0 %3905
      %v3907 = vsel %vm3866, %v3089, -inf
      %v3908 = vmax.f32 %v3087, %v3907
      %3909 = vmax.xlane.f32.xlu0 %v3908
      %v3910 = vpop.xlane.xlu0 %3909
      %v3911 = vsel %vm3866, %v3093, -inf
      %v3912 = vmax.f32 %v3091, %v3911
      %3913 = vmax.xlane.f32.xlu0 %v3912
      %v3914 = vpop.xlane.xlu0 %3913
      %v3915 = vsel %vm3866, %v3099, -inf
      %v3916 = vmax.f32 %v3097, %v3915
      %3917 = vmax.xlane.f32.xlu0 %v3916
      %v3918 = vpop.xlane.xlu0 %3917
      %v3919 = vsel %vm3866, %v3103, -inf
      %v3920 = vmax.f32 %v3101, %v3919
      %3921 = vmax.xlane.f32.xlu0 %v3920
      %v3922 = vpop.xlane.xlu0 %3921
      %v3923 = vsel %vm3866, %v3109, -inf
      %v3924 = vmax.f32 %v3107, %v3923
      %3925 = vmax.xlane.f32.xlu0 %v3924
      %v3926 = vpop.xlane.xlu0 %3925
      %v3927 = vsel %vm3866, %v3113, -inf
      %v3928 = vmax.f32 %v3111, %v3927
      %3929 = vmax.xlane.f32.xlu0 %v3928
      %v3930 = vpop.xlane.xlu0 %3929
      %v3931 = vsel %vm3866, %v3119, -inf
      %v3932 = vmax.f32 %v3117, %v3931
      %3933 = vmax.xlane.f32.xlu0 %v3932
      %v3934 = vpop.xlane.xlu0 %3933
      %v3935 = vsel %vm3866, %v3123, -inf
      %v3936 = vmax.f32 %v3121, %v3935
      %3937 = vmax.xlane.f32.xlu0 %v3936
      %v3938 = vpop.xlane.xlu0 %3937
      %v3939 = vsel %vm3866, %v3129, -inf
      %v3940 = vmax.f32 %v3127, %v3939
      %3941 = vmax.xlane.f32.xlu0 %v3940
      %v3942 = vpop.xlane.xlu0 %3941
      %v3943 = vsel %vm3866, %v3133, -inf
      %v3944 = vmax.f32 %v3131, %v3943
      %3945 = vmax.xlane.f32.xlu0 %v3944
      %v3946 = vpop.xlane.xlu0 %3945
      %v3947 = vsel %vm3866, %v3139, -inf
      %v3948 = vmax.f32 %v3137, %v3947
      %3949 = vmax.xlane.f32.xlu0 %v3948
      %v3950 = vpop.xlane.xlu0 %3949
      %v3951 = vsel %vm3866, %v3143, -inf
      %v3952 = vmax.f32 %v3141, %v3951
      %3953 = vmax.xlane.f32.xlu0 %v3952
      %v3954 = vpop.xlane.xlu0 %3953
      %v3955 = vsel %vm3866, %v3149, -inf
      %v3956 = vmax.f32 %v3147, %v3955
      %3957 = vmax.xlane.f32.xlu0 %v3956
      %v3958 = vpop.xlane.xlu0 %3957
      %v3959 = vsel %vm3866, %v3153, -inf
      %v3960 = vmax.f32 %v3151, %v3959
      %3961 = vmax.xlane.f32.xlu0 %v3960
      %v3962 = vpop.xlane.xlu0 %3961
      %v3963 = vsel %vm3866, %v3276, -inf
      %v3964 = vmax.f32 %v3274, %v3963
      %3965 = vmax.xlane.f32.xlu0 %v3964
      %v3966 = vpop.xlane.xlu0 %3965
      %v3967 = vsel %vm3866, %v3280, -inf
      %v3968 = vmax.f32 %v3278, %v3967
      %3969 = vmax.xlane.f32.xlu0 %v3968
      %v3970 = vpop.xlane.xlu0 %3969
      %v3971 = vsel %vm3866, %v3286, -inf
      %v3972 = vmax.f32 %v3284, %v3971
      %3973 = vmax.xlane.f32.xlu0 %v3972
      %v3974 = vpop.xlane.xlu0 %3973
      %v3975 = vsel %vm3866, %v3290, -inf
      %v3976 = vmax.f32 %v3288, %v3975
      %3977 = vmax.xlane.f32.xlu0 %v3976
      %v3978 = vpop.xlane.xlu0 %3977
      %v3979 = vsel %vm3866, %v3296, -inf
      %v3980 = vmax.f32 %v3294, %v3979
      %3981 = vmax.xlane.f32.xlu0 %v3980
      %v3982 = vpop.xlane.xlu0 %3981
      %v3983 = vsel %vm3866, %v3300, -inf
      %v3984 = vmax.f32 %v3298, %v3983
      %3985 = vmax.xlane.f32.xlu0 %v3984
      %v3986 = vpop.xlane.xlu0 %3985
      %v3987 = vsel %vm3866, %v3306, -inf
      %v3988 = vmax.f32 %v3304, %v3987
      %3989 = vmax.xlane.f32.xlu0 %v3988
      %v3990 = vpop.xlane.xlu0 %3989
      %v3991 = vsel %vm3866, %v3310, -inf
      %v3992 = vmax.f32 %v3308, %v3991
      %3993 = vmax.xlane.f32.xlu0 %v3992
      %v3994 = vpop.xlane.xlu0 %3993
      %v3995 = vsel %vm3866, %v3316, -inf
      %v3996 = vmax.f32 %v3314, %v3995
      %3997 = vmax.xlane.f32.xlu0 %v3996
      %v3998 = vpop.xlane.xlu0 %3997
      %v3999 = vsel %vm3866, %v3320, -inf
      %v4000 = vmax.f32 %v3318, %v3999
      %4001 = vmax.xlane.f32.xlu0 %v4000
      %v4002 = vpop.xlane.xlu0 %4001
      %v4003 = vsel %vm3866, %v3326, -inf
      %v4004 = vmax.f32 %v3324, %v4003
      %4005 = vmax.xlane.f32.xlu0 %v4004
      %v4006 = vpop.xlane.xlu0 %4005
      %v4007 = vsel %vm3866, %v3330, -inf
      %v4008 = vmax.f32 %v3328, %v4007
      %4009 = vmax.xlane.f32.xlu0 %v4008
      %v4010 = vpop.xlane.xlu0 %4009
      %v4011 = vsel %vm3866, %v3336, -inf
      %v4012 = vmax.f32 %v3334, %v4011
      %4013 = vmax.xlane.f32.xlu0 %v4012
      %v4014 = vpop.xlane.xlu0 %4013
      %v4015 = vsel %vm3866, %v3340, -inf
      %v4016 = vmax.f32 %v3338, %v4015
      %4017 = vmax.xlane.f32.xlu0 %v4016
      %v4018 = vpop.xlane.xlu0 %4017
      %v4019 = vsel %vm3866, %v3346, -inf
      %v4020 = vmax.f32 %v3344, %v4019
      %4021 = vmax.xlane.f32.xlu0 %v4020
      %v4022 = vpop.xlane.xlu0 %4021
      %v4023 = vsel %vm3866, %v3350, -inf
      %v4024 = vmax.f32 %v3348, %v4023
      %4025 = vmax.xlane.f32.xlu0 %v4024
      %v4026 = vpop.xlane.xlu0 %4025
      %v4027 = vsel %vm3866, %v3356, -inf
      %v4028 = vmax.f32 %v3354, %v4027
      %4029 = vmax.xlane.f32.xlu0 %v4028
      %v4030 = vpop.xlane.xlu0 %4029
      %v4031 = vsel %vm3866, %v3360, -inf
      %v4032 = vmax.f32 %v3358, %v4031
      %4033 = vmax.xlane.f32.xlu0 %v4032
      %v4034 = vpop.xlane.xlu0 %4033
      %v4035 = vsel %vm3866, %v3366, -inf
      %v4036 = vmax.f32 %v3364, %v4035
      %4037 = vmax.xlane.f32.xlu0 %v4036
      %v4038 = vpop.xlane.xlu0 %4037
      %v4039 = vsel %vm3866, %v3370, -inf
      %v4040 = vmax.f32 %v3368, %v4039
      %4041 = vmax.xlane.f32.xlu0 %v4040
      %v4042 = vpop.xlane.xlu0 %4041
      %v4043 = vsel %vm3866, %v3376, -inf
      %v4044 = vmax.f32 %v3374, %v4043
      %4045 = vmax.xlane.f32.xlu0 %v4044
      %v4046 = vpop.xlane.xlu0 %4045
      %v4047 = vsel %vm3866, %v3380, -inf
      %v4048 = vmax.f32 %v3378, %v4047
      %4049 = vmax.xlane.f32.xlu0 %v4048
      %v4050 = vpop.xlane.xlu0 %4049
      %v4051 = vsel %vm3866, %v3386, -inf
      %v4052 = vmax.f32 %v3384, %v4051
      %4053 = vmax.xlane.f32.xlu0 %v4052
      %v4054 = vpop.xlane.xlu0 %4053
      %v4055 = vsel %vm3866, %v3390, -inf
      %v4056 = vmax.f32 %v3388, %v4055
      %4057 = vmax.xlane.f32.xlu0 %v4056
      %v4058 = vpop.xlane.xlu0 %4057
      %v4059 = vsel %vm3866, %v3513, -inf
      %v4060 = vmax.f32 %v3511, %v4059
      %4061 = vmax.xlane.f32.xlu0 %v4060
      %v4062 = vpop.xlane.xlu0 %4061
      %v4063 = vsel %vm3866, %v3517, -inf
      %v4064 = vmax.f32 %v3515, %v4063
      %4065 = vmax.xlane.f32.xlu0 %v4064
      %v4066 = vpop.xlane.xlu0 %4065
      %v4067 = vsel %vm3866, %v3523, -inf
      %v4068 = vmax.f32 %v3521, %v4067
      %4069 = vmax.xlane.f32.xlu0 %v4068
      %v4070 = vpop.xlane.xlu0 %4069
      %v4071 = vsel %vm3866, %v3527, -inf
      %v4072 = vmax.f32 %v3525, %v4071
      %4073 = vmax.xlane.f32.xlu0 %v4072
      %v4074 = vpop.xlane.xlu0 %4073
      %v4075 = vsel %vm3866, %v3533, -inf
      %v4076 = vmax.f32 %v3531, %v4075
      %4077 = vmax.xlane.f32.xlu0 %v4076
      %v4078 = vpop.xlane.xlu0 %4077
      %v4079 = vsel %vm3866, %v3537, -inf
      %v4080 = vmax.f32 %v3535, %v4079
      %4081 = vmax.xlane.f32.xlu0 %v4080
      %v4082 = vpop.xlane.xlu0 %4081
      %v4083 = vsel %vm3866, %v3543, -inf
      %v4084 = vmax.f32 %v3541, %v4083
      %4085 = vmax.xlane.f32.xlu0 %v4084
      %v4086 = vpop.xlane.xlu0 %4085
      %v4087 = vsel %vm3866, %v3547, -inf
      %v4088 = vmax.f32 %v3545, %v4087
      %4089 = vmax.xlane.f32.xlu0 %v4088
      %v4090 = vpop.xlane.xlu0 %4089
      %v4091 = vsel %vm3866, %v3553, -inf
      %v4092 = vmax.f32 %v3551, %v4091
      %4093 = vmax.xlane.f32.xlu0 %v4092
      %v4094 = vpop.xlane.xlu0 %4093
      %v4095 = vsel %vm3866, %v3557, -inf
      %v4096 = vmax.f32 %v3555, %v4095
      %4097 = vmax.xlane.f32.xlu0 %v4096
      %v4098 = vpop.xlane.xlu0 %4097
      %v4099 = vsel %vm3866, %v3563, -inf
      %v4100 = vmax.f32 %v3561, %v4099
      %4101 = vmax.xlane.f32.xlu0 %v4100
      %v4102 = vpop.xlane.xlu0 %4101
      %v4103 = vsel %vm3866, %v3567, -inf
      %v4104 = vmax.f32 %v3565, %v4103
      %4105 = vmax.xlane.f32.xlu0 %v4104
      %v4106 = vpop.xlane.xlu0 %4105
      %v4107 = vsel %vm3866, %v3573, -inf
      %v4108 = vmax.f32 %v3571, %v4107
      %4109 = vmax.xlane.f32.xlu0 %v4108
      %v4110 = vpop.xlane.xlu0 %4109
      %v4111 = vsel %vm3866, %v3577, -inf
      %v4112 = vmax.f32 %v3575, %v4111
      %4113 = vmax.xlane.f32.xlu0 %v4112
      %v4114 = vpop.xlane.xlu0 %4113
      %v4115 = vsel %vm3866, %v3583, -inf
      %v4116 = vmax.f32 %v3581, %v4115
      %4117 = vmax.xlane.f32.xlu0 %v4116
      %v4118 = vpop.xlane.xlu0 %4117
      %v4119 = vsel %vm3866, %v3587, -inf
      %v4120 = vmax.f32 %v3585, %v4119
      %4121 = vmax.xlane.f32.xlu0 %v4120
      %v4122 = vpop.xlane.xlu0 %4121
      %v4123 = vsel %vm3866, %v3593, -inf
      %v4124 = vmax.f32 %v3591, %v4123
      %4125 = vmax.xlane.f32.xlu0 %v4124
      %v4126 = vpop.xlane.xlu0 %4125
      %v4127 = vsel %vm3866, %v3597, -inf
      %v4128 = vmax.f32 %v3595, %v4127
      %4129 = vmax.xlane.f32.xlu0 %v4128
      %v4130 = vpop.xlane.xlu0 %4129
      %v4131 = vsel %vm3866, %v3603, -inf
      %v4132 = vmax.f32 %v3601, %v4131
      %4133 = vmax.xlane.f32.xlu0 %v4132
      %v4134 = vpop.xlane.xlu0 %4133
      %v4135 = vsel %vm3866, %v3607, -inf
      %v4136 = vmax.f32 %v3605, %v4135
      %4137 = vmax.xlane.f32.xlu0 %v4136
      %v4138 = vpop.xlane.xlu0 %4137
      %v4139 = vsel %vm3866, %v3613, -inf
      %v4140 = vmax.f32 %v3611, %v4139
      %4141 = vmax.xlane.f32.xlu0 %v4140
      %v4142 = vpop.xlane.xlu0 %4141
      %v4143 = vsel %vm3866, %v3617, -inf
      %v4144 = vmax.f32 %v3615, %v4143
      %4145 = vmax.xlane.f32.xlu0 %v4144
      %v4146 = vpop.xlane.xlu0 %4145
      %v4147 = vsel %vm3866, %v3623, -inf
      %v4148 = vmax.f32 %v3621, %v4147
      %4149 = vmax.xlane.f32.xlu0 %v4148
      %v4150 = vpop.xlane.xlu0 %4149
      %v4151 = vsel %vm3866, %v3627, -inf
      %v4152 = vmax.f32 %v3625, %v4151
      %4153 = vmax.xlane.f32.xlu0 %v4152
      %v4154 = vpop.xlane.xlu0 %4153
      %v4155 = vsel %vm3866, %v3750, -inf
      %v4156 = vmax.f32 %v3748, %v4155
      %4157 = vmax.xlane.f32.xlu0 %v4156
      %v4158 = vpop.xlane.xlu0 %4157
      %v4159 = vsel %vm3866, %v3754, -inf
      %v4160 = vmax.f32 %v3752, %v4159
      %4161 = vmax.xlane.f32.xlu0 %v4160
      %v4162 = vpop.xlane.xlu0 %4161
      %v4163 = vsel %vm3866, %v3760, -inf
      %v4164 = vmax.f32 %v3758, %v4163
      %4165 = vmax.xlane.f32.xlu0 %v4164
      %v4166 = vpop.xlane.xlu0 %4165
      %v4167 = vsel %vm3866, %v3764, -inf
      %v4168 = vmax.f32 %v3762, %v4167
      %4169 = vmax.xlane.f32.xlu0 %v4168
      %v4170 = vpop.xlane.xlu0 %4169
      %v4171 = vsel %vm3866, %v3770, -inf
      %v4172 = vmax.f32 %v3768, %v4171
      %4173 = vmax.xlane.f32.xlu0 %v4172
      %v4174 = vpop.xlane.xlu0 %4173
      %v4175 = vsel %vm3866, %v3774, -inf
      %v4176 = vmax.f32 %v3772, %v4175
      %4177 = vmax.xlane.f32.xlu0 %v4176
      %v4178 = vpop.xlane.xlu0 %4177
      %v4179 = vsel %vm3866, %v3780, -inf
      %v4180 = vmax.f32 %v3778, %v4179
      %4181 = vmax.xlane.f32.xlu0 %v4180
      %v4182 = vpop.xlane.xlu0 %4181
      %v4183 = vsel %vm3866, %v3784, -inf
      %v4184 = vmax.f32 %v3782, %v4183
      %4185 = vmax.xlane.f32.xlu0 %v4184
      %v4186 = vpop.xlane.xlu0 %4185
      %v4187 = vsel %vm3866, %v3790, -inf
      %v4188 = vmax.f32 %v3788, %v4187
      %4189 = vmax.xlane.f32.xlu0 %v4188
      %v4190 = vpop.xlane.xlu0 %4189
      %v4191 = vsel %vm3866, %v3794, -inf
      %v4192 = vmax.f32 %v3792, %v4191
      %4193 = vmax.xlane.f32.xlu0 %v4192
      %v4194 = vpop.xlane.xlu0 %4193
      %v4195 = vsel %vm3866, %v3800, -inf
      %v4196 = vmax.f32 %v3798, %v4195
      %4197 = vmax.xlane.f32.xlu0 %v4196
      %v4198 = vpop.xlane.xlu0 %4197
      %v4199 = vsel %vm3866, %v3804, -inf
      %v4200 = vmax.f32 %v3802, %v4199
      %4201 = vmax.xlane.f32.xlu0 %v4200
      %v4202 = vpop.xlane.xlu0 %4201
      %v4203 = vsel %vm3866, %v3810, -inf
      %v4204 = vmax.f32 %v3808, %v4203
      %4205 = vmax.xlane.f32.xlu0 %v4204
      %v4206 = vpop.xlane.xlu0 %4205
      %v4207 = vsel %vm3866, %v3814, -inf
      %v4208 = vmax.f32 %v3812, %v4207
      %4209 = vmax.xlane.f32.xlu0 %v4208
      %v4210 = vpop.xlane.xlu0 %4209
      %v4211 = vsel %vm3866, %v3820, -inf
      %v4212 = vmax.f32 %v3818, %v4211
      %4213 = vmax.xlane.f32.xlu0 %v4212
      %v4214 = vpop.xlane.xlu0 %4213
      %v4215 = vsel %vm3866, %v3824, -inf
      %v4216 = vmax.f32 %v3822, %v4215
      %4217 = vmax.xlane.f32.xlu0 %v4216
      %v4218 = vpop.xlane.xlu0 %4217
      %v4219 = vsel %vm3866, %v3830, -inf
      %v4220 = vmax.f32 %v3828, %v4219
      %4221 = vmax.xlane.f32.xlu0 %v4220
      %v4222 = vpop.xlane.xlu0 %4221
      %v4223 = vsel %vm3866, %v3834, -inf
      %v4224 = vmax.f32 %v3832, %v4223
      %4225 = vmax.xlane.f32.xlu0 %v4224
      %v4226 = vpop.xlane.xlu0 %4225
      %v4227 = vsel %vm3866, %v3840, -inf
      %v4228 = vmax.f32 %v3838, %v4227
      %4229 = vmax.xlane.f32.xlu0 %v4228
      %v4230 = vpop.xlane.xlu0 %4229
      %v4231 = vsel %vm3866, %v3844, -inf
      %v4232 = vmax.f32 %v3842, %v4231
      %4233 = vmax.xlane.f32.xlu0 %v4232
      %v4234 = vpop.xlane.xlu0 %4233
      %v4235 = vsel %vm3866, %v3850, -inf
      %v4236 = vmax.f32 %v3848, %v4235
      %4237 = vmax.xlane.f32.xlu0 %v4236
      %v4238 = vpop.xlane.xlu0 %4237
      %v4239 = vsel %vm3866, %v3854, -inf
      %v4240 = vmax.f32 %v3852, %v4239
      %4241 = vmax.xlane.f32.xlu0 %v4240
      %v4242 = vpop.xlane.xlu0 %4241
      %v4243 = vsel %vm3866, %v3860, -inf
      %v4244 = vmax.f32 %v3858, %v4243
      %4245 = vmax.xlane.f32.xlu0 %v4244
      %v4246 = vpop.xlane.xlu0 %4245
      %v4247 = vsel %vm3866, %v3864, -inf
      %v4248 = vmax.f32 %v3862, %v4247
      %4249 = vmax.xlane.f32.xlu0 %v4248
      %v4250 = vpop.xlane.xlu0 %4249
      %v4251 = vsub.f32 %v3037, %v3870
      %v4252 = vsub.f32 %v3039, %v3870
      %v4253 = vsub.f32 %v3041, %v3874
      %v4254 = vsub.f32 %v3043, %v3874
      %v4255 = vsub.f32 %v3047, %v3878
      %v4256 = vsub.f32 %v3049, %v3878
      %v4257 = vsub.f32 %v3051, %v3882
      %v4258 = vsub.f32 %v3053, %v3882
      %v4259 = vsub.f32 %v3057, %v3886
      %v4260 = vsub.f32 %v3059, %v3886
      %v4261 = vsub.f32 %v3061, %v3890
      %v4262 = vsub.f32 %v3063, %v3890
      %v4263 = vsub.f32 %v3067, %v3894
      %v4264 = vsub.f32 %v3069, %v3894
      %v4265 = vsub.f32 %v3071, %v3898
      %v4266 = vsub.f32 %v3073, %v3898
      %v4267 = vsub.f32 %v3077, %v3902
      %v4268 = vsub.f32 %v3079, %v3902
      %v4269 = vsub.f32 %v3081, %v3906
      %v4270 = vsub.f32 %v3083, %v3906
      %v4271 = vsub.f32 %v3087, %v3910
      %v4272 = vsub.f32 %v3089, %v3910
      %v4273 = vsub.f32 %v3091, %v3914
      %v4274 = vsub.f32 %v3093, %v3914
      %v4275 = vsub.f32 %v3097, %v3918
      %v4276 = vsub.f32 %v3099, %v3918
      %v4277 = vsub.f32 %v3101, %v3922
      %v4278 = vsub.f32 %v3103, %v3922
      %v4279 = vsub.f32 %v3107, %v3926
      %v4280 = vsub.f32 %v3109, %v3926
      %v4281 = vsub.f32 %v3111, %v3930
      %v4282 = vsub.f32 %v3113, %v3930
      %v4283 = vsub.f32 %v3117, %v3934
      %v4284 = vsub.f32 %v3119, %v3934
      %v4285 = vsub.f32 %v3121, %v3938
      %v4286 = vsub.f32 %v3123, %v3938
      %v4287 = vsub.f32 %v3127, %v3942
      %v4288 = vsub.f32 %v3129, %v3942
      %v4289 = vsub.f32 %v3131, %v3946
      %v4290 = vsub.f32 %v3133, %v3946
      %v4291 = vsub.f32 %v3137, %v3950
      %v4292 = vsub.f32 %v3139, %v3950
      %v4293 = vsub.f32 %v3141, %v3954
      %v4294 = vsub.f32 %v3143, %v3954
      %v4295 = vsub.f32 %v3147, %v3958
      %v4296 = vsub.f32 %v3149, %v3958
      %v4297 = vsub.f32 %v3151, %v3962
      %v4298 = vsub.f32 %v3153, %v3962
      %v4299 = vsub.f32 %v3274, %v3966
      %v4300 = vsub.f32 %v3276, %v3966
      %v4301 = vsub.f32 %v3278, %v3970
      %v4302 = vsub.f32 %v3280, %v3970
      %v4303 = vsub.f32 %v3284, %v3974
      %v4304 = vsub.f32 %v3286, %v3974
      %v4305 = vsub.f32 %v3288, %v3978
      %v4306 = vsub.f32 %v3290, %v3978
      %v4307 = vsub.f32 %v3294, %v3982
      %v4308 = vsub.f32 %v3296, %v3982
      %v4309 = vsub.f32 %v3298, %v3986
      %v4310 = vsub.f32 %v3300, %v3986
      %v4311 = vsub.f32 %v3304, %v3990
      %v4312 = vsub.f32 %v3306, %v3990
      %v4313 = vsub.f32 %v3308, %v3994
      %v4314 = vsub.f32 %v3310, %v3994
      %v4315 = vsub.f32 %v3314, %v3998
      %v4316 = vsub.f32 %v3316, %v3998
      %v4317 = vsub.f32 %v3318, %v4002
      %v4318 = vsub.f32 %v3320, %v4002
      %v4319 = vsub.f32 %v3324, %v4006
      %v4320 = vsub.f32 %v3326, %v4006
      %v4321 = vsub.f32 %v3328, %v4010
      %v4322 = vsub.f32 %v3330, %v4010
      %v4323 = vsub.f32 %v3334, %v4014
      %v4324 = vsub.f32 %v3336, %v4014
      %v4325 = vsub.f32 %v3338, %v4018
      %v4326 = vsub.f32 %v3340, %v4018
      %v4327 = vsub.f32 %v3344, %v4022
      %v4328 = vsub.f32 %v3346, %v4022
      %v4329 = vsub.f32 %v3348, %v4026
      %v4330 = vsub.f32 %v3350, %v4026
      %v4331 = vsub.f32 %v3354, %v4030
      %v4332 = vsub.f32 %v3356, %v4030
      %v4333 = vsub.f32 %v3358, %v4034
      %v4334 = vsub.f32 %v3360, %v4034
      %v4335 = vsub.f32 %v3364, %v4038
      %v4336 = vsub.f32 %v3366, %v4038
      %v4337 = vsub.f32 %v3368, %v4042
      %v4338 = vsub.f32 %v3370, %v4042
      %v4339 = vsub.f32 %v3374, %v4046
      %v4340 = vsub.f32 %v3376, %v4046
      %v4341 = vsub.f32 %v3378, %v4050
      %v4342 = vsub.f32 %v3380, %v4050
      %v4343 = vsub.f32 %v3384, %v4054
      %v4344 = vsub.f32 %v3386, %v4054
      %v4345 = vsub.f32 %v3388, %v4058
      %v4346 = vsub.f32 %v3390, %v4058
      %v4347 = vsub.f32 %v3511, %v4062
      %v4348 = vsub.f32 %v3513, %v4062
      %v4349 = vsub.f32 %v3515, %v4066
      %v4350 = vsub.f32 %v3517, %v4066
      %v4351 = vsub.f32 %v3521, %v4070
      %v4352 = vsub.f32 %v3523, %v4070
      %v4353 = vsub.f32 %v3525, %v4074
      %v4354 = vsub.f32 %v3527, %v4074
      %v4355 = vsub.f32 %v3531, %v4078
      %v4356 = vsub.f32 %v3533, %v4078
      %v4357 = vsub.f32 %v3535, %v4082
      %v4358 = vsub.f32 %v3537, %v4082
      %v4359 = vsub.f32 %v3541, %v4086
      %v4360 = vsub.f32 %v3543, %v4086
      %v4361 = vsub.f32 %v3545, %v4090
      %v4362 = vsub.f32 %v3547, %v4090
      %v4363 = vsub.f32 %v3551, %v4094
      %v4364 = vsub.f32 %v3553, %v4094
      %v4365 = vsub.f32 %v3555, %v4098
      %v4366 = vsub.f32 %v3557, %v4098
      %v4367 = vsub.f32 %v3561, %v4102
      %v4368 = vsub.f32 %v3563, %v4102
      %v4369 = vsub.f32 %v3565, %v4106
      %v4370 = vsub.f32 %v3567, %v4106
      %v4371 = vsub.f32 %v3571, %v4110
      %v4372 = vsub.f32 %v3573, %v4110
      %v4373 = vsub.f32 %v3575, %v4114
      %v4374 = vsub.f32 %v3577, %v4114
      %v4375 = vsub.f32 %v3581, %v4118
      %v4376 = vsub.f32 %v3583, %v4118
      %v4377 = vsub.f32 %v3585, %v4122
      %v4378 = vsub.f32 %v3587, %v4122
      %v4379 = vsub.f32 %v3591, %v4126
      %v4380 = vsub.f32 %v3593, %v4126
      %v4381 = vsub.f32 %v3595, %v4130
      %v4382 = vsub.f32 %v3597, %v4130
      %v4383 = vsub.f32 %v3601, %v4134
      %v4384 = vsub.f32 %v3603, %v4134
      %v4385 = vsub.f32 %v3605, %v4138
      %v4386 = vsub.f32 %v3607, %v4138
      %v4387 = vsub.f32 %v3611, %v4142
      %v4388 = vsub.f32 %v3613, %v4142
      %v4389 = vsub.f32 %v3615, %v4146
      %v4390 = vsub.f32 %v3617, %v4146
      %v4391 = vsub.f32 %v3621, %v4150
      %v4392 = vsub.f32 %v3623, %v4150
      %v4393 = vsub.f32 %v3625, %v4154
      %v4394 = vsub.f32 %v3627, %v4154
      %v4395 = vsub.f32 %v3748, %v4158
      %v4396 = vsub.f32 %v3750, %v4158
      %v4397 = vsub.f32 %v3752, %v4162
      %v4398 = vsub.f32 %v3754, %v4162
      %v4399 = vsub.f32 %v3758, %v4166
      %v4400 = vsub.f32 %v3760, %v4166
      %v4401 = vsub.f32 %v3762, %v4170
      %v4402 = vsub.f32 %v3764, %v4170
      %v4403 = vsub.f32 %v3768, %v4174
      %v4404 = vsub.f32 %v3770, %v4174
      %v4405 = vsub.f32 %v3772, %v4178
      %v4406 = vsub.f32 %v3774, %v4178
      %v4407 = vsub.f32 %v3778, %v4182
      %v4408 = vsub.f32 %v3780, %v4182
      %v4409 = vsub.f32 %v3782, %v4186
      %v4410 = vsub.f32 %v3784, %v4186
      %v4411 = vsub.f32 %v3788, %v4190
      %v4412 = vsub.f32 %v3790, %v4190
      %v4413 = vsub.f32 %v3792, %v4194
      %v4414 = vsub.f32 %v3794, %v4194
      %v4415 = vsub.f32 %v3798, %v4198
      %v4416 = vsub.f32 %v3800, %v4198
      %v4417 = vsub.f32 %v3802, %v4202
      %v4418 = vsub.f32 %v3804, %v4202
      %v4419 = vsub.f32 %v3808, %v4206
      %v4420 = vsub.f32 %v3810, %v4206
      %v4421 = vsub.f32 %v3812, %v4210
      %v4422 = vsub.f32 %v3814, %v4210
      %v4423 = vsub.f32 %v3818, %v4214
      %v4424 = vsub.f32 %v3820, %v4214
      %v4425 = vsub.f32 %v3822, %v4218
      %v4426 = vsub.f32 %v3824, %v4218
      %v4427 = vsub.f32 %v3828, %v4222
      %v4428 = vsub.f32 %v3830, %v4222
      %v4429 = vsub.f32 %v3832, %v4226
      %v4430 = vsub.f32 %v3834, %v4226
      %v4431 = vsub.f32 %v3838, %v4230
      %v4432 = vsub.f32 %v3840, %v4230
      %v4433 = vsub.f32 %v3842, %v4234
      %v4434 = vsub.f32 %v3844, %v4234
      %v4435 = vsub.f32 %v3848, %v4238
      %v4436 = vsub.f32 %v3850, %v4238
      %v4437 = vsub.f32 %v3852, %v4242
      %v4438 = vsub.f32 %v3854, %v4242
      %v4439 = vsub.f32 %v3858, %v4246
      %v4440 = vsub.f32 %v3860, %v4246
      %v4441 = vsub.f32 %v3862, %v4250
      %v4442 = vsub.f32 %v3864, %v4250
      %v4443 = vmul.f32 %v4251, 1.442695
      %v4444 = vpow.pop %v4443
      %v4445 = vmul.f32 %v4252, 1.442695
      %v4446 = vpow.pop %v4445
      %v4447 = vmul.f32 %v4253, 1.442695
      %v4448 = vpow.pop %v4447
      %v4449 = vmul.f32 %v4254, 1.442695
      %v4450 = vpow.pop %v4449
      %v4451 = vmul.f32 %v4255, 1.442695
      %v4452 = vpow.pop %v4451
      %v4453 = vmul.f32 %v4256, 1.442695
      %v4454 = vpow.pop %v4453
      %v4455 = vmul.f32 %v4257, 1.442695
      %v4456 = vpow.pop %v4455
      %v4457 = vmul.f32 %v4258, 1.442695
      %v4458 = vpow.pop %v4457
      %v4459 = vmul.f32 %v4259, 1.442695
      %v4460 = vpow.pop %v4459
      %v4461 = vmul.f32 %v4260, 1.442695
      %v4462 = vpow.pop %v4461
      %v4463 = vmul.f32 %v4261, 1.442695
      %v4464 = vpow.pop %v4463
      %v4465 = vmul.f32 %v4262, 1.442695
      %v4466 = vpow.pop %v4465
      %v4467 = vmul.f32 %v4263, 1.442695
      %v4468 = vpow.pop %v4467
      %v4469 = vmul.f32 %v4264, 1.442695
      %v4470 = vpow.pop %v4469
      %v4471 = vmul.f32 %v4265, 1.442695
      %v4472 = vpow.pop %v4471
      %v4473 = vmul.f32 %v4266, 1.442695
      %v4474 = vpow.pop %v4473
      %v4475 = vmul.f32 %v4267, 1.442695
      %v4476 = vpow.pop %v4475
      %v4477 = vmul.f32 %v4268, 1.442695
      %v4478 = vpow.pop %v4477
      %v4479 = vmul.f32 %v4269, 1.442695
      %v4480 = vpow.pop %v4479
      %v4481 = vmul.f32 %v4270, 1.442695
      %v4482 = vpow.pop %v4481
      %v4483 = vmul.f32 %v4271, 1.442695
      %v4484 = vpow.pop %v4483
      %v4485 = vmul.f32 %v4272, 1.442695
      %v4486 = vpow.pop %v4485
      %v4487 = vmul.f32 %v4273, 1.442695
      %v4488 = vpow.pop %v4487
      %v4489 = vmul.f32 %v4274, 1.442695
      %v4490 = vpow.pop %v4489
      %v4491 = vmul.f32 %v4275, 1.442695
      %v4492 = vpow.pop %v4491
      %v4493 = vmul.f32 %v4276, 1.442695
      %v4494 = vpow.pop %v4493
      %v4495 = vmul.f32 %v4277, 1.442695
      %v4496 = vpow.pop %v4495
      %v4497 = vmul.f32 %v4278, 1.442695
      %v4498 = vpow.pop %v4497
      %v4499 = vmul.f32 %v4279, 1.442695
      %v4500 = vpow.pop %v4499
      %v4501 = vmul.f32 %v4280, 1.442695
      %v4502 = vpow.pop %v4501
      %v4503 = vmul.f32 %v4281, 1.442695
      %v4504 = vpow.pop %v4503
      %v4505 = vmul.f32 %v4282, 1.442695
      %v4506 = vpow.pop %v4505
      %v4507 = vmul.f32 %v4283, 1.442695
      %v4508 = vpow.pop %v4507
      %v4509 = vmul.f32 %v4284, 1.442695
      %v4510 = vpow.pop %v4509
      %v4511 = vmul.f32 %v4285, 1.442695
      %v4512 = vpow.pop %v4511
      %v4513 = vmul.f32 %v4286, 1.442695
      %v4514 = vpow.pop %v4513
      %v4515 = vmul.f32 %v4287, 1.442695
      %v4516 = vpow.pop %v4515
      %v4517 = vmul.f32 %v4288, 1.442695
      %v4518 = vpow.pop %v4517
      %v4519 = vmul.f32 %v4289, 1.442695
      %v4520 = vpow.pop %v4519
      %v4521 = vmul.f32 %v4290, 1.442695
      %v4522 = vpow.pop %v4521
      %v4523 = vmul.f32 %v4291, 1.442695
      %v4524 = vpow.pop %v4523
      %v4525 = vmul.f32 %v4292, 1.442695
      %v4526 = vpow.pop %v4525
      %v4527 = vmul.f32 %v4293, 1.442695
      %v4528 = vpow.pop %v4527
      %v4529 = vmul.f32 %v4294, 1.442695
      %v4530 = vpow.pop %v4529
      %v4531 = vmul.f32 %v4295, 1.442695
      %v4532 = vpow.pop %v4531
      %v4533 = vmul.f32 %v4296, 1.442695
      %v4534 = vpow.pop %v4533
      %v4535 = vmul.f32 %v4297, 1.442695
      %v4536 = vpow.pop %v4535
      %v4537 = vmul.f32 %v4298, 1.442695
      %v4538 = vpow.pop %v4537
      %v4539 = vmul.f32 %v4299, 1.442695
      %v4540 = vpow.pop %v4539
      %v4541 = vmul.f32 %v4300, 1.442695
      %v4542 = vpow.pop %v4541
      %v4543 = vmul.f32 %v4301, 1.442695
      %v4544 = vpow.pop %v4543
      %v4545 = vmul.f32 %v4302, 1.442695
      %v4546 = vpow.pop %v4545
      %v4547 = vmul.f32 %v4303, 1.442695
      %v4548 = vpow.pop %v4547
      %v4549 = vmul.f32 %v4304, 1.442695
      %v4550 = vpow.pop %v4549
      %v4551 = vmul.f32 %v4305, 1.442695
      %v4552 = vpow.pop %v4551
      %v4553 = vmul.f32 %v4306, 1.442695
      %v4554 = vpow.pop %v4553
      %v4555 = vmul.f32 %v4307, 1.442695
      %v4556 = vpow.pop %v4555
      %v4557 = vmul.f32 %v4308, 1.442695
      %v4558 = vpow.pop %v4557
      %v4559 = vmul.f32 %v4309, 1.442695
      %v4560 = vpow.pop %v4559
      %v4561 = vmul.f32 %v4310, 1.442695
      %v4562 = vpow.pop %v4561
      %v4563 = vmul.f32 %v4311, 1.442695
      %v4564 = vpow.pop %v4563
      %v4565 = vmul.f32 %v4312, 1.442695
      %v4566 = vpow.pop %v4565
      %v4567 = vmul.f32 %v4313, 1.442695
      %v4568 = vpow.pop %v4567
      %v4569 = vmul.f32 %v4314, 1.442695
      %v4570 = vpow.pop %v4569
      %v4571 = vmul.f32 %v4315, 1.442695
      %v4572 = vpow.pop %v4571
      %v4573 = vmul.f32 %v4316, 1.442695
      %v4574 = vpow.pop %v4573
      %v4575 = vmul.f32 %v4317, 1.442695
      %v4576 = vpow.pop %v4575
      %v4577 = vmul.f32 %v4318, 1.442695
      %v4578 = vpow.pop %v4577
      %v4579 = vmul.f32 %v4319, 1.442695
      %v4580 = vpow.pop %v4579
      %v4581 = vmul.f32 %v4320, 1.442695
      %v4582 = vpow.pop %v4581
      %v4583 = vmul.f32 %v4321, 1.442695
      %v4584 = vpow.pop %v4583
      %v4585 = vmul.f32 %v4322, 1.442695
      %v4586 = vpow.pop %v4585
      %v4587 = vmul.f32 %v4323, 1.442695
      %v4588 = vpow.pop %v4587
      %v4589 = vmul.f32 %v4324, 1.442695
      %v4590 = vpow.pop %v4589
      %v4591 = vmul.f32 %v4325, 1.442695
      %v4592 = vpow.pop %v4591
      %v4593 = vmul.f32 %v4326, 1.442695
      %v4594 = vpow.pop %v4593
      %v4595 = vmul.f32 %v4327, 1.442695
      %v4596 = vpow.pop %v4595
      %v4597 = vmul.f32 %v4328, 1.442695
      %v4598 = vpow.pop %v4597
      %v4599 = vmul.f32 %v4329, 1.442695
      %v4600 = vpow.pop %v4599
      %v4601 = vmul.f32 %v4330, 1.442695
      %v4602 = vpow.pop %v4601
      %v4603 = vmul.f32 %v4331, 1.442695
      %v4604 = vpow.pop %v4603
      %v4605 = vmul.f32 %v4332, 1.442695
      %v4606 = vpow.pop %v4605
      %v4607 = vmul.f32 %v4333, 1.442695
      %v4608 = vpow.pop %v4607
      %v4609 = vmul.f32 %v4334, 1.442695
      %v4610 = vpow.pop %v4609
      %v4611 = vmul.f32 %v4335, 1.442695
      %v4612 = vpow.pop %v4611
      %v4613 = vmul.f32 %v4336, 1.442695
      %v4614 = vpow.pop %v4613
      %v4615 = vmul.f32 %v4337, 1.442695
      %v4616 = vpow.pop %v4615
      %v4617 = vmul.f32 %v4338, 1.442695
      %v4618 = vpow.pop %v4617
      %v4619 = vmul.f32 %v4339, 1.442695
      %v4620 = vpow.pop %v4619
      %v4621 = vmul.f32 %v4340, 1.442695
      %v4622 = vpow.pop %v4621
      %v4623 = vmul.f32 %v4341, 1.442695
      %v4624 = vpow.pop %v4623
      %v4625 = vmul.f32 %v4342, 1.442695
      %v4626 = vpow.pop %v4625
      %v4627 = vmul.f32 %v4343, 1.442695
      %v4628 = vpow.pop %v4627
      %v4629 = vmul.f32 %v4344, 1.442695
      %v4630 = vpow.pop %v4629
      %v4631 = vmul.f32 %v4345, 1.442695
      %v4632 = vpow.pop %v4631
      %v4633 = vmul.f32 %v4346, 1.442695
      %v4634 = vpow.pop %v4633
      %v4635 = vmul.f32 %v4347, 1.442695
      %v4636 = vpow.pop %v4635
      %v4637 = vmul.f32 %v4348, 1.442695
      %v4638 = vpow.pop %v4637
      %v4639 = vmul.f32 %v4349, 1.442695
      %v4640 = vpow.pop %v4639
      %v4641 = vmul.f32 %v4350, 1.442695
      %v4642 = vpow.pop %v4641
      %v4643 = vmul.f32 %v4351, 1.442695
      %v4644 = vpow.pop %v4643
      %v4645 = vmul.f32 %v4352, 1.442695
      %v4646 = vpow.pop %v4645
      %v4647 = vmul.f32 %v4353, 1.442695
      %v4648 = vpow.pop %v4647
      %v4649 = vmul.f32 %v4354, 1.442695
      %v4650 = vpow.pop %v4649
      %v4651 = vmul.f32 %v4355, 1.442695
      %v4652 = vpow.pop %v4651
      %v4653 = vmul.f32 %v4356, 1.442695
      %v4654 = vpow.pop %v4653
      %v4655 = vmul.f32 %v4357, 1.442695
      %v4656 = vpow.pop %v4655
      %v4657 = vmul.f32 %v4358, 1.442695
      %v4658 = vpow.pop %v4657
      %v4659 = vmul.f32 %v4359, 1.442695
      %v4660 = vpow.pop %v4659
      %v4661 = vmul.f32 %v4360, 1.442695
      %v4662 = vpow.pop %v4661
      %v4663 = vmul.f32 %v4361, 1.442695
      %v4664 = vpow.pop %v4663
      %v4665 = vmul.f32 %v4362, 1.442695
      %v4666 = vpow.pop %v4665
      %v4667 = vmul.f32 %v4363, 1.442695
      %v4668 = vpow.pop %v4667
      %v4669 = vmul.f32 %v4364, 1.442695
      %v4670 = vpow.pop %v4669
      %v4671 = vmul.f32 %v4365, 1.442695
      %v4672 = vpow.pop %v4671
      %v4673 = vmul.f32 %v4366, 1.442695
      %v4674 = vpow.pop %v4673
      %v4675 = vmul.f32 %v4367, 1.442695
      %v4676 = vpow.pop %v4675
      %v4677 = vmul.f32 %v4368, 1.442695
      %v4678 = vpow.pop %v4677
      %v4679 = vmul.f32 %v4369, 1.442695
      %v4680 = vpow.pop %v4679
      %v4681 = vmul.f32 %v4370, 1.442695
      %v4682 = vpow.pop %v4681
      %v4683 = vmul.f32 %v4371, 1.442695
      %v4684 = vpow.pop %v4683
      %v4685 = vmul.f32 %v4372, 1.442695
      %v4686 = vpow.pop %v4685
      %v4687 = vmul.f32 %v4373, 1.442695
      %v4688 = vpow.pop %v4687
      %v4689 = vmul.f32 %v4374, 1.442695
      %v4690 = vpow.pop %v4689
      %v4691 = vmul.f32 %v4375, 1.442695
      %v4692 = vpow.pop %v4691
      %v4693 = vmul.f32 %v4376, 1.442695
      %v4694 = vpow.pop %v4693
      %v4695 = vmul.f32 %v4377, 1.442695
      %v4696 = vpow.pop %v4695
      %v4697 = vmul.f32 %v4378, 1.442695
      %v4698 = vpow.pop %v4697
      %v4699 = vmul.f32 %v4379, 1.442695
      %v4700 = vpow.pop %v4699
      %v4701 = vmul.f32 %v4380, 1.442695
      %v4702 = vpow.pop %v4701
      %v4703 = vmul.f32 %v4381, 1.442695
      %v4704 = vpow.pop %v4703
      %v4705 = vmul.f32 %v4382, 1.442695
      %v4706 = vpow.pop %v4705
      %v4707 = vmul.f32 %v4383, 1.442695
      %v4708 = vpow.pop %v4707
      %v4709 = vmul.f32 %v4384, 1.442695
      %v4710 = vpow.pop %v4709
      %v4711 = vmul.f32 %v4385, 1.442695
      %v4712 = vpow.pop %v4711
      %v4713 = vmul.f32 %v4386, 1.442695
      %v4714 = vpow.pop %v4713
      %v4715 = vmul.f32 %v4387, 1.442695
      %v4716 = vpow.pop %v4715
      %v4717 = vmul.f32 %v4388, 1.442695
      %v4718 = vpow.pop %v4717
      %v4719 = vmul.f32 %v4389, 1.442695
      %v4720 = vpow.pop %v4719
      %v4721 = vmul.f32 %v4390, 1.442695
      %v4722 = vpow.pop %v4721
      %v4723 = vmul.f32 %v4391, 1.442695
      %v4724 = vpow.pop %v4723
      %v4725 = vmul.f32 %v4392, 1.442695
      %v4726 = vpow.pop %v4725
      %v4727 = vmul.f32 %v4393, 1.442695
      %v4728 = vpow.pop %v4727
      %v4729 = vmul.f32 %v4394, 1.442695
      %v4730 = vpow.pop %v4729
      %v4731 = vmul.f32 %v4395, 1.442695
      %v4732 = vpow.pop %v4731
      %v4733 = vmul.f32 %v4396, 1.442695
      %v4734 = vpow.pop %v4733
      %v4735 = vmul.f32 %v4397, 1.442695
      %v4736 = vpow.pop %v4735
      %v4737 = vmul.f32 %v4398, 1.442695
      %v4738 = vpow.pop %v4737
      %v4739 = vmul.f32 %v4399, 1.442695
      %v4740 = vpow.pop %v4739
      %v4741 = vmul.f32 %v4400, 1.442695
      %v4742 = vpow.pop %v4741
      %v4743 = vmul.f32 %v4401, 1.442695
      %v4744 = vpow.pop %v4743
      %v4745 = vmul.f32 %v4402, 1.442695
      %v4746 = vpow.pop %v4745
      %v4747 = vmul.f32 %v4403, 1.442695
      %v4748 = vpow.pop %v4747
      %v4749 = vmul.f32 %v4404, 1.442695
      %v4750 = vpow.pop %v4749
      %v4751 = vmul.f32 %v4405, 1.442695
      %v4752 = vpow.pop %v4751
      %v4753 = vmul.f32 %v4406, 1.442695
      %v4754 = vpow.pop %v4753
      %v4755 = vmul.f32 %v4407, 1.442695
      %v4756 = vpow.pop %v4755
      %v4757 = vmul.f32 %v4408, 1.442695
      %v4758 = vpow.pop %v4757
      %v4759 = vmul.f32 %v4409, 1.442695
      %v4760 = vpow.pop %v4759
      %v4761 = vmul.f32 %v4410, 1.442695
      %v4762 = vpow.pop %v4761
      %v4763 = vmul.f32 %v4411, 1.442695
      %v4764 = vpow.pop %v4763
      %v4765 = vmul.f32 %v4412, 1.442695
      %v4766 = vpow.pop %v4765
      %v4767 = vmul.f32 %v4413, 1.442695
      %v4768 = vpow.pop %v4767
      %v4769 = vmul.f32 %v4414, 1.442695
      %v4770 = vpow.pop %v4769
      %v4771 = vmul.f32 %v4415, 1.442695
      %v4772 = vpow.pop %v4771
      %v4773 = vmul.f32 %v4416, 1.442695
      %v4774 = vpow.pop %v4773
      %v4775 = vmul.f32 %v4417, 1.442695
      %v4776 = vpow.pop %v4775
      %v4777 = vmul.f32 %v4418, 1.442695
      %v4778 = vpow.pop %v4777
      %v4779 = vmul.f32 %v4419, 1.442695
      %v4780 = vpow.pop %v4779
      %v4781 = vmul.f32 %v4420, 1.442695
      %v4782 = vpow.pop %v4781
      %v4783 = vmul.f32 %v4421, 1.442695
      %v4784 = vpow.pop %v4783
      %v4785 = vmul.f32 %v4422, 1.442695
      %v4786 = vpow.pop %v4785
      %v4787 = vmul.f32 %v4423, 1.442695
      %v4788 = vpow.pop %v4787
      %v4789 = vmul.f32 %v4424, 1.442695
      %v4790 = vpow.pop %v4789
      %v4791 = vmul.f32 %v4425, 1.442695
      %v4792 = vpow.pop %v4791
      %v4793 = vmul.f32 %v4426, 1.442695
      %v4794 = vpow.pop %v4793
      %v4795 = vmul.f32 %v4427, 1.442695
      %v4796 = vpow.pop %v4795
      %v4797 = vmul.f32 %v4428, 1.442695
      %v4798 = vpow.pop %v4797
      %v4799 = vmul.f32 %v4429, 1.442695
      %v4800 = vpow.pop %v4799
      %v4801 = vmul.f32 %v4430, 1.442695
      %v4802 = vpow.pop %v4801
      %v4803 = vmul.f32 %v4431, 1.442695
      %v4804 = vpow.pop %v4803
      %v4805 = vmul.f32 %v4432, 1.442695
      %v4806 = vpow.pop %v4805
      %v4807 = vmul.f32 %v4433, 1.442695
      %v4808 = vpow.pop %v4807
      %v4809 = vmul.f32 %v4434, 1.442695
      %v4810 = vpow.pop %v4809
      %v4811 = vmul.f32 %v4435, 1.442695
      %v4812 = vpow.pop %v4811
      %v4813 = vmul.f32 %v4436, 1.442695
      %v4814 = vpow.pop %v4813
      %v4815 = vmul.f32 %v4437, 1.442695
      %v4816 = vpow.pop %v4815
      %v4817 = vmul.f32 %v4438, 1.442695
      %v4818 = vpow.pop %v4817
      %v4819 = vmul.f32 %v4439, 1.442695
      %v4820 = vpow.pop %v4819
      %v4821 = vmul.f32 %v4440, 1.442695
      %v4822 = vpow.pop %v4821
      %v4823 = vmul.f32 %v4441, 1.442695
      %v4824 = vpow.pop %v4823
      %v4825 = vmul.f32 %v4442, 1.442695
      %v4826 = vpow.pop %v4825
      %v4827 = vsel %vm3866, %v4446, 0.0
      %v4828 = vadd.f32 %v4444, %v4827
      %4829 = vadd.xlane.f32.xlu0 %v4828
      %v4830 = vpop.xlane.xlu0 %4829
      %v4831 = vsel %vm3866, %v4450, 0.0
      %v4832 = vadd.f32 %v4448, %v4831
      %4833 = vadd.xlane.f32.xlu0 %v4832
      %v4834 = vpop.xlane.xlu0 %4833
      %v4835 = vsel %vm3866, %v4454, 0.0
      %v4836 = vadd.f32 %v4452, %v4835
      %4837 = vadd.xlane.f32.xlu0 %v4836
      %v4838 = vpop.xlane.xlu0 %4837
      %v4839 = vsel %vm3866, %v4458, 0.0
      %v4840 = vadd.f32 %v4456, %v4839
      %4841 = vadd.xlane.f32.xlu0 %v4840
      %v4842 = vpop.xlane.xlu0 %4841
      %v4843 = vsel %vm3866, %v4462, 0.0
      %v4844 = vadd.f32 %v4460, %v4843
      %4845 = vadd.xlane.f32.xlu0 %v4844
      %v4846 = vpop.xlane.xlu0 %4845
      %v4847 = vsel %vm3866, %v4466, 0.0
      %v4848 = vadd.f32 %v4464, %v4847
      %4849 = vadd.xlane.f32.xlu0 %v4848
      %v4850 = vpop.xlane.xlu0 %4849
      %v4851 = vsel %vm3866, %v4470, 0.0
      %v4852 = vadd.f32 %v4468, %v4851
      %4853 = vadd.xlane.f32.xlu0 %v4852
      %v4854 = vpop.xlane.xlu0 %4853
      %v4855 = vsel %vm3866, %v4474, 0.0
      %v4856 = vadd.f32 %v4472, %v4855
      %4857 = vadd.xlane.f32.xlu0 %v4856
      %v4858 = vpop.xlane.xlu0 %4857
      %v4859 = vsel %vm3866, %v4478, 0.0
      %v4860 = vadd.f32 %v4476, %v4859
      %4861 = vadd.xlane.f32.xlu0 %v4860
      %v4862 = vpop.xlane.xlu0 %4861
      %v4863 = vsel %vm3866, %v4482, 0.0
      %v4864 = vadd.f32 %v4480, %v4863
      %4865 = vadd.xlane.f32.xlu0 %v4864
      %v4866 = vpop.xlane.xlu0 %4865
      %v4867 = vsel %vm3866, %v4486, 0.0
      %v4868 = vadd.f32 %v4484, %v4867
      %4869 = vadd.xlane.f32.xlu0 %v4868
      %v4870 = vpop.xlane.xlu0 %4869
      %v4871 = vsel %vm3866, %v4490, 0.0
      %v4872 = vadd.f32 %v4488, %v4871
      %4873 = vadd.xlane.f32.xlu0 %v4872
      %v4874 = vpop.xlane.xlu0 %4873
      %v4875 = vsel %vm3866, %v4494, 0.0
      %v4876 = vadd.f32 %v4492, %v4875
      %4877 = vadd.xlane.f32.xlu0 %v4876
      %v4878 = vpop.xlane.xlu0 %4877
      %v4879 = vsel %vm3866, %v4498, 0.0
      %v4880 = vadd.f32 %v4496, %v4879
      %4881 = vadd.xlane.f32.xlu0 %v4880
      %v4882 = vpop.xlane.xlu0 %4881
      %v4883 = vsel %vm3866, %v4502, 0.0
      %v4884 = vadd.f32 %v4500, %v4883
      %4885 = vadd.xlane.f32.xlu0 %v4884
      %v4886 = vpop.xlane.xlu0 %4885
      %v4887 = vsel %vm3866, %v4506, 0.0
      %v4888 = vadd.f32 %v4504, %v4887
      %4889 = vadd.xlane.f32.xlu0 %v4888
      %v4890 = vpop.xlane.xlu0 %4889
      %v4891 = vsel %vm3866, %v4510, 0.0
      %v4892 = vadd.f32 %v4508, %v4891
      %4893 = vadd.xlane.f32.xlu0 %v4892
      %v4894 = vpop.xlane.xlu0 %4893
      %v4895 = vsel %vm3866, %v4514, 0.0
      %v4896 = vadd.f32 %v4512, %v4895
      %4897 = vadd.xlane.f32.xlu0 %v4896
      %v4898 = vpop.xlane.xlu0 %4897
      %v4899 = vsel %vm3866, %v4518, 0.0
      %v4900 = vadd.f32 %v4516, %v4899
      %4901 = vadd.xlane.f32.xlu0 %v4900
      %v4902 = vpop.xlane.xlu0 %4901
      %v4903 = vsel %vm3866, %v4522, 0.0
      %v4904 = vadd.f32 %v4520, %v4903
      %4905 = vadd.xlane.f32.xlu0 %v4904
      %v4906 = vpop.xlane.xlu0 %4905
      %v4907 = vsel %vm3866, %v4526, 0.0
      %v4908 = vadd.f32 %v4524, %v4907
      %4909 = vadd.xlane.f32.xlu0 %v4908
      %v4910 = vpop.xlane.xlu0 %4909
      %v4911 = vsel %vm3866, %v4530, 0.0
      %v4912 = vadd.f32 %v4528, %v4911
      %4913 = vadd.xlane.f32.xlu0 %v4912
      %v4914 = vpop.xlane.xlu0 %4913
      %v4915 = vsel %vm3866, %v4534, 0.0
      %v4916 = vadd.f32 %v4532, %v4915
      %4917 = vadd.xlane.f32.xlu0 %v4916
      %v4918 = vpop.xlane.xlu0 %4917
      %v4919 = vsel %vm3866, %v4538, 0.0
      %v4920 = vadd.f32 %v4536, %v4919
      %4921 = vadd.xlane.f32.xlu0 %v4920
      %v4922 = vpop.xlane.xlu0 %4921
      %v4923 = vsel %vm3866, %v4542, 0.0
      %v4924 = vadd.f32 %v4540, %v4923
      %4925 = vadd.xlane.f32.xlu0 %v4924
      %v4926 = vpop.xlane.xlu0 %4925
      %v4927 = vsel %vm3866, %v4546, 0.0
      %v4928 = vadd.f32 %v4544, %v4927
      %4929 = vadd.xlane.f32.xlu0 %v4928
      %v4930 = vpop.xlane.xlu0 %4929
      %v4931 = vsel %vm3866, %v4550, 0.0
      %v4932 = vadd.f32 %v4548, %v4931
      %4933 = vadd.xlane.f32.xlu0 %v4932
      %v4934 = vpop.xlane.xlu0 %4933
      %v4935 = vsel %vm3866, %v4554, 0.0
      %v4936 = vadd.f32 %v4552, %v4935
      %4937 = vadd.xlane.f32.xlu0 %v4936
      %v4938 = vpop.xlane.xlu0 %4937
      %v4939 = vsel %vm3866, %v4558, 0.0
      %v4940 = vadd.f32 %v4556, %v4939
      %4941 = vadd.xlane.f32.xlu0 %v4940
      %v4942 = vpop.xlane.xlu0 %4941
      %v4943 = vsel %vm3866, %v4562, 0.0
      %v4944 = vadd.f32 %v4560, %v4943
      %4945 = vadd.xlane.f32.xlu0 %v4944
      %v4946 = vpop.xlane.xlu0 %4945
      %v4947 = vsel %vm3866, %v4566, 0.0
      %v4948 = vadd.f32 %v4564, %v4947
      %4949 = vadd.xlane.f32.xlu0 %v4948
      %v4950 = vpop.xlane.xlu0 %4949
      %v4951 = vsel %vm3866, %v4570, 0.0
      %v4952 = vadd.f32 %v4568, %v4951
      %4953 = vadd.xlane.f32.xlu0 %v4952
      %v4954 = vpop.xlane.xlu0 %4953
      %v4955 = vsel %vm3866, %v4574, 0.0
      %v4956 = vadd.f32 %v4572, %v4955
      %4957 = vadd.xlane.f32.xlu0 %v4956
      %v4958 = vpop.xlane.xlu0 %4957
      %v4959 = vsel %vm3866, %v4578, 0.0
      %v4960 = vadd.f32 %v4576, %v4959
      %4961 = vadd.xlane.f32.xlu0 %v4960
      %v4962 = vpop.xlane.xlu0 %4961
      %v4963 = vsel %vm3866, %v4582, 0.0
      %v4964 = vadd.f32 %v4580, %v4963
      %4965 = vadd.xlane.f32.xlu0 %v4964
      %v4966 = vpop.xlane.xlu0 %4965
      %v4967 = vsel %vm3866, %v4586, 0.0
      %v4968 = vadd.f32 %v4584, %v4967
      %4969 = vadd.xlane.f32.xlu0 %v4968
      %v4970 = vpop.xlane.xlu0 %4969
      %v4971 = vsel %vm3866, %v4590, 0.0
      %v4972 = vadd.f32 %v4588, %v4971
      %4973 = vadd.xlane.f32.xlu0 %v4972
      %v4974 = vpop.xlane.xlu0 %4973
      %v4975 = vsel %vm3866, %v4594, 0.0
      %v4976 = vadd.f32 %v4592, %v4975
      %4977 = vadd.xlane.f32.xlu0 %v4976
      %v4978 = vpop.xlane.xlu0 %4977
      %v4979 = vsel %vm3866, %v4598, 0.0
      %v4980 = vadd.f32 %v4596, %v4979
      %4981 = vadd.xlane.f32.xlu0 %v4980
      %v4982 = vpop.xlane.xlu0 %4981
      %v4983 = vsel %vm3866, %v4602, 0.0
      %v4984 = vadd.f32 %v4600, %v4983
      %4985 = vadd.xlane.f32.xlu0 %v4984
      %v4986 = vpop.xlane.xlu0 %4985
      %v4987 = vsel %vm3866, %v4606, 0.0
      %v4988 = vadd.f32 %v4604, %v4987
      %4989 = vadd.xlane.f32.xlu0 %v4988
      %v4990 = vpop.xlane.xlu0 %4989
      %v4991 = vsel %vm3866, %v4610, 0.0
      %v4992 = vadd.f32 %v4608, %v4991
      %4993 = vadd.xlane.f32.xlu0 %v4992
      %v4994 = vpop.xlane.xlu0 %4993
      %v4995 = vsel %vm3866, %v4614, 0.0
      %v4996 = vadd.f32 %v4612, %v4995
      %4997 = vadd.xlane.f32.xlu0 %v4996
      %v4998 = vpop.xlane.xlu0 %4997
      %v4999 = vsel %vm3866, %v4618, 0.0
      %v5000 = vadd.f32 %v4616, %v4999
      %5001 = vadd.xlane.f32.xlu0 %v5000
      %v5002 = vpop.xlane.xlu0 %5001
      %v5003 = vsel %vm3866, %v4622, 0.0
      %v5004 = vadd.f32 %v4620, %v5003
      %5005 = vadd.xlane.f32.xlu0 %v5004
      %v5006 = vpop.xlane.xlu0 %5005
      %v5007 = vsel %vm3866, %v4626, 0.0
      %v5008 = vadd.f32 %v4624, %v5007
      %5009 = vadd.xlane.f32.xlu0 %v5008
      %v5010 = vpop.xlane.xlu0 %5009
      %v5011 = vsel %vm3866, %v4630, 0.0
      %v5012 = vadd.f32 %v4628, %v5011
      %5013 = vadd.xlane.f32.xlu0 %v5012
      %v5014 = vpop.xlane.xlu0 %5013
      %v5015 = vsel %vm3866, %v4634, 0.0
      %v5016 = vadd.f32 %v4632, %v5015
      %5017 = vadd.xlane.f32.xlu0 %v5016
      %v5018 = vpop.xlane.xlu0 %5017
      %v5019 = vsel %vm3866, %v4638, 0.0
      %v5020 = vadd.f32 %v4636, %v5019
      %5021 = vadd.xlane.f32.xlu0 %v5020
      %v5022 = vpop.xlane.xlu0 %5021
      %v5023 = vsel %vm3866, %v4642, 0.0
      %v5024 = vadd.f32 %v4640, %v5023
      %5025 = vadd.xlane.f32.xlu0 %v5024
      %v5026 = vpop.xlane.xlu0 %5025
      %v5027 = vsel %vm3866, %v4646, 0.0
      %v5028 = vadd.f32 %v4644, %v5027
      %5029 = vadd.xlane.f32.xlu0 %v5028
      %v5030 = vpop.xlane.xlu0 %5029
      %v5031 = vsel %vm3866, %v4650, 0.0
      %v5032 = vadd.f32 %v4648, %v5031
      %5033 = vadd.xlane.f32.xlu0 %v5032
      %v5034 = vpop.xlane.xlu0 %5033
      %v5035 = vsel %vm3866, %v4654, 0.0
      %v5036 = vadd.f32 %v4652, %v5035
      %5037 = vadd.xlane.f32.xlu0 %v5036
      %v5038 = vpop.xlane.xlu0 %5037
      %v5039 = vsel %vm3866, %v4658, 0.0
      %v5040 = vadd.f32 %v4656, %v5039
      %5041 = vadd.xlane.f32.xlu0 %v5040
      %v5042 = vpop.xlane.xlu0 %5041
      %v5043 = vsel %vm3866, %v4662, 0.0
      %v5044 = vadd.f32 %v4660, %v5043
      %5045 = vadd.xlane.f32.xlu0 %v5044
      %v5046 = vpop.xlane.xlu0 %5045
      %v5047 = vsel %vm3866, %v4666, 0.0
      %v5048 = vadd.f32 %v4664, %v5047
      %5049 = vadd.xlane.f32.xlu0 %v5048
      %v5050 = vpop.xlane.xlu0 %5049
      %v5051 = vsel %vm3866, %v4670, 0.0
      %v5052 = vadd.f32 %v4668, %v5051
      %5053 = vadd.xlane.f32.xlu0 %v5052
      %v5054 = vpop.xlane.xlu0 %5053
      %v5055 = vsel %vm3866, %v4674, 0.0
      %v5056 = vadd.f32 %v4672, %v5055
      %5057 = vadd.xlane.f32.xlu0 %v5056
      %v5058 = vpop.xlane.xlu0 %5057
      %v5059 = vsel %vm3866, %v4678, 0.0
      %v5060 = vadd.f32 %v4676, %v5059
      %5061 = vadd.xlane.f32.xlu0 %v5060
      %v5062 = vpop.xlane.xlu0 %5061
      %v5063 = vsel %vm3866, %v4682, 0.0
      %v5064 = vadd.f32 %v4680, %v5063
      %5065 = vadd.xlane.f32.xlu0 %v5064
      %v5066 = vpop.xlane.xlu0 %5065
      %v5067 = vsel %vm3866, %v4686, 0.0
      %v5068 = vadd.f32 %v4684, %v5067
      %5069 = vadd.xlane.f32.xlu0 %v5068
      %v5070 = vpop.xlane.xlu0 %5069
      %v5071 = vsel %vm3866, %v4690, 0.0
      %v5072 = vadd.f32 %v4688, %v5071
      %5073 = vadd.xlane.f32.xlu0 %v5072
      %v5074 = vpop.xlane.xlu0 %5073
      %v5075 = vsel %vm3866, %v4694, 0.0
      %v5076 = vadd.f32 %v4692, %v5075
      %5077 = vadd.xlane.f32.xlu0 %v5076
      %v5078 = vpop.xlane.xlu0 %5077
      %v5079 = vsel %vm3866, %v4698, 0.0
      %v5080 = vadd.f32 %v4696, %v5079
      %5081 = vadd.xlane.f32.xlu0 %v5080
      %v5082 = vpop.xlane.xlu0 %5081
      %v5083 = vsel %vm3866, %v4702, 0.0
      %v5084 = vadd.f32 %v4700, %v5083
      %5085 = vadd.xlane.f32.xlu0 %v5084
      %v5086 = vpop.xlane.xlu0 %5085
      %v5087 = vsel %vm3866, %v4706, 0.0
      %v5088 = vadd.f32 %v4704, %v5087
      %5089 = vadd.xlane.f32.xlu0 %v5088
      %v5090 = vpop.xlane.xlu0 %5089
      %v5091 = vsel %vm3866, %v4710, 0.0
      %v5092 = vadd.f32 %v4708, %v5091
      %5093 = vadd.xlane.f32.xlu0 %v5092
      %v5094 = vpop.xlane.xlu0 %5093
      %v5095 = vsel %vm3866, %v4714, 0.0
      %v5096 = vadd.f32 %v4712, %v5095
      %5097 = vadd.xlane.f32.xlu0 %v5096
      %v5098 = vpop.xlane.xlu0 %5097
      %v5099 = vsel %vm3866, %v4718, 0.0
      %v5100 = vadd.f32 %v4716, %v5099
      %5101 = vadd.xlane.f32.xlu0 %v5100
      %v5102 = vpop.xlane.xlu0 %5101
      %v5103 = vsel %vm3866, %v4722, 0.0
      %v5104 = vadd.f32 %v4720, %v5103
      %5105 = vadd.xlane.f32.xlu0 %v5104
      %v5106 = vpop.xlane.xlu0 %5105
      %v5107 = vsel %vm3866, %v4726, 0.0
      %v5108 = vadd.f32 %v4724, %v5107
      %5109 = vadd.xlane.f32.xlu0 %v5108
      %v5110 = vpop.xlane.xlu0 %5109
      %v5111 = vsel %vm3866, %v4730, 0.0
      %v5112 = vadd.f32 %v4728, %v5111
      %5113 = vadd.xlane.f32.xlu0 %v5112
      %v5114 = vpop.xlane.xlu0 %5113
      %v5115 = vsel %vm3866, %v4734, 0.0
      %v5116 = vadd.f32 %v4732, %v5115
      %5117 = vadd.xlane.f32.xlu0 %v5116
      %v5118 = vpop.xlane.xlu0 %5117
      %v5119 = vsel %vm3866, %v4738, 0.0
      %v5120 = vadd.f32 %v4736, %v5119
      %5121 = vadd.xlane.f32.xlu0 %v5120
      %v5122 = vpop.xlane.xlu0 %5121
      %v5123 = vsel %vm3866, %v4742, 0.0
      %v5124 = vadd.f32 %v4740, %v5123
      %5125 = vadd.xlane.f32.xlu0 %v5124
      %v5126 = vpop.xlane.xlu0 %5125
      %v5127 = vsel %vm3866, %v4746, 0.0
      %v5128 = vadd.f32 %v4744, %v5127
      %5129 = vadd.xlane.f32.xlu0 %v5128
      %v5130 = vpop.xlane.xlu0 %5129
      %v5131 = vsel %vm3866, %v4750, 0.0
      %v5132 = vadd.f32 %v4748, %v5131
      %5133 = vadd.xlane.f32.xlu0 %v5132
      %v5134 = vpop.xlane.xlu0 %5133
      %v5135 = vsel %vm3866, %v4754, 0.0
      %v5136 = vadd.f32 %v4752, %v5135
      %5137 = vadd.xlane.f32.xlu0 %v5136
      %v5138 = vpop.xlane.xlu0 %5137
      %v5139 = vsel %vm3866, %v4758, 0.0
      %v5140 = vadd.f32 %v4756, %v5139
      %5141 = vadd.xlane.f32.xlu0 %v5140
      %v5142 = vpop.xlane.xlu0 %5141
      %v5143 = vsel %vm3866, %v4762, 0.0
      %v5144 = vadd.f32 %v4760, %v5143
      %5145 = vadd.xlane.f32.xlu0 %v5144
      %v5146 = vpop.xlane.xlu0 %5145
      %v5147 = vsel %vm3866, %v4766, 0.0
      %v5148 = vadd.f32 %v4764, %v5147
      %5149 = vadd.xlane.f32.xlu0 %v5148
      %v5150 = vpop.xlane.xlu0 %5149
      %v5151 = vsel %vm3866, %v4770, 0.0
      %v5152 = vadd.f32 %v4768, %v5151
      %5153 = vadd.xlane.f32.xlu0 %v5152
      %v5154 = vpop.xlane.xlu0 %5153
      %v5155 = vsel %vm3866, %v4774, 0.0
      %v5156 = vadd.f32 %v4772, %v5155
      %5157 = vadd.xlane.f32.xlu0 %v5156
      %v5158 = vpop.xlane.xlu0 %5157
      %v5159 = vsel %vm3866, %v4778, 0.0
      %v5160 = vadd.f32 %v4776, %v5159
      %5161 = vadd.xlane.f32.xlu0 %v5160
      %v5162 = vpop.xlane.xlu0 %5161
      %v5163 = vsel %vm3866, %v4782, 0.0
      %v5164 = vadd.f32 %v4780, %v5163
      %5165 = vadd.xlane.f32.xlu0 %v5164
      %v5166 = vpop.xlane.xlu0 %5165
      %v5167 = vsel %vm3866, %v4786, 0.0
      %v5168 = vadd.f32 %v4784, %v5167
      %5169 = vadd.xlane.f32.xlu0 %v5168
      %v5170 = vpop.xlane.xlu0 %5169
      %v5171 = vsel %vm3866, %v4790, 0.0
      %v5172 = vadd.f32 %v4788, %v5171
      %5173 = vadd.xlane.f32.xlu0 %v5172
      %v5174 = vpop.xlane.xlu0 %5173
      %v5175 = vsel %vm3866, %v4794, 0.0
      %v5176 = vadd.f32 %v4792, %v5175
      %5177 = vadd.xlane.f32.xlu0 %v5176
      %v5178 = vpop.xlane.xlu0 %5177
      %v5179 = vsel %vm3866, %v4798, 0.0
      %v5180 = vadd.f32 %v4796, %v5179
      %5181 = vadd.xlane.f32.xlu0 %v5180
      %v5182 = vpop.xlane.xlu0 %5181
      %v5183 = vsel %vm3866, %v4802, 0.0
      %v5184 = vadd.f32 %v4800, %v5183
      %5185 = vadd.xlane.f32.xlu0 %v5184
      %v5186 = vpop.xlane.xlu0 %5185
      %v5187 = vsel %vm3866, %v4806, 0.0
      %v5188 = vadd.f32 %v4804, %v5187
      %5189 = vadd.xlane.f32.xlu0 %v5188
      %v5190 = vpop.xlane.xlu0 %5189
      %v5191 = vsel %vm3866, %v4810, 0.0
      %v5192 = vadd.f32 %v4808, %v5191
      %5193 = vadd.xlane.f32.xlu0 %v5192
      %v5194 = vpop.xlane.xlu0 %5193
      %v5195 = vsel %vm3866, %v4814, 0.0
      %v5196 = vadd.f32 %v4812, %v5195
      %5197 = vadd.xlane.f32.xlu0 %v5196
      %v5198 = vpop.xlane.xlu0 %5197
      %v5199 = vsel %vm3866, %v4818, 0.0
      %v5200 = vadd.f32 %v4816, %v5199
      %5201 = vadd.xlane.f32.xlu0 %v5200
      %v5202 = vpop.xlane.xlu0 %5201
      %v5203 = vsel %vm3866, %v4822, 0.0
      %v5204 = vadd.f32 %v4820, %v5203
      %5205 = vadd.xlane.f32.xlu0 %v5204
      %v5206 = vpop.xlane.xlu0 %5205
      %v5207 = vsel %vm3866, %v4826, 0.0
      %v5208 = vadd.f32 %v4824, %v5207
      %5209 = vadd.xlane.f32.xlu0 %v5208
      %v5210 = vpop.xlane.xlu0 %5209
      %v5211 = vrcp.pop %v4830
      %v5212 = vrcp.pop %v4834
      %v5213 = vrcp.pop %v4838
      %v5214 = vrcp.pop %v4842
      %v5215 = vrcp.pop %v4846
      %v5216 = vrcp.pop %v4850
      %v5217 = vrcp.pop %v4854
      %v5218 = vrcp.pop %v4858
      %v5219 = vrcp.pop %v4862
      %v5220 = vrcp.pop %v4866
      %v5221 = vrcp.pop %v4870
      %v5222 = vrcp.pop %v4874
      %v5223 = vrcp.pop %v4878
      %v5224 = vrcp.pop %v4882
      %v5225 = vrcp.pop %v4886
      %v5226 = vrcp.pop %v4890
      %v5227 = vrcp.pop %v4894
      %v5228 = vrcp.pop %v4898
      %v5229 = vrcp.pop %v4902
      %v5230 = vrcp.pop %v4906
      %v5231 = vrcp.pop %v4910
      %v5232 = vrcp.pop %v4914
      %v5233 = vrcp.pop %v4918
      %v5234 = vrcp.pop %v4922
      %v5235 = vrcp.pop %v4926
      %v5236 = vrcp.pop %v4930
      %v5237 = vrcp.pop %v4934
      %v5238 = vrcp.pop %v4938
      %v5239 = vrcp.pop %v4942
      %v5240 = vrcp.pop %v4946
      %v5241 = vrcp.pop %v4950
      %v5242 = vrcp.pop %v4954
      %v5243 = vrcp.pop %v4958
      %v5244 = vrcp.pop %v4962
      %v5245 = vrcp.pop %v4966
      %v5246 = vrcp.pop %v4970
      %v5247 = vrcp.pop %v4974
      %v5248 = vrcp.pop %v4978
      %v5249 = vrcp.pop %v4982
      %v5250 = vrcp.pop %v4986
      %v5251 = vrcp.pop %v4990
      %v5252 = vrcp.pop %v4994
      %v5253 = vrcp.pop %v4998
      %v5254 = vrcp.pop %v5002
      %v5255 = vrcp.pop %v5006
      %v5256 = vrcp.pop %v5010
      %v5257 = vrcp.pop %v5014
      %v5258 = vrcp.pop %v5018
      %v5259 = vrcp.pop %v5022
      %v5260 = vrcp.pop %v5026
      %v5261 = vrcp.pop %v5030
      %v5262 = vrcp.pop %v5034
      %v5263 = vrcp.pop %v5038
      %v5264 = vrcp.pop %v5042
      %v5265 = vrcp.pop %v5046
      %v5266 = vrcp.pop %v5050
      %v5267 = vrcp.pop %v5054
      %v5268 = vrcp.pop %v5058
      %v5269 = vrcp.pop %v5062
      %v5270 = vrcp.pop %v5066
      %v5271 = vrcp.pop %v5070
      %v5272 = vrcp.pop %v5074
      %v5273 = vrcp.pop %v5078
      %v5274 = vrcp.pop %v5082
      %v5275 = vrcp.pop %v5086
      %v5276 = vrcp.pop %v5090
      %v5277 = vrcp.pop %v5094
      %v5278 = vrcp.pop %v5098
      %v5279 = vrcp.pop %v5102
      %v5280 = vrcp.pop %v5106
      %v5281 = vrcp.pop %v5110
      %v5282 = vrcp.pop %v5114
      %v5283 = vrcp.pop %v5118
      %v5284 = vrcp.pop %v5122
      %v5285 = vrcp.pop %v5126
      %v5286 = vrcp.pop %v5130
      %v5287 = vrcp.pop %v5134
      %v5288 = vrcp.pop %v5138
      %v5289 = vrcp.pop %v5142
      %v5290 = vrcp.pop %v5146
      %v5291 = vrcp.pop %v5150
      %v5292 = vrcp.pop %v5154
      %v5293 = vrcp.pop %v5158
      %v5294 = vrcp.pop %v5162
      %v5295 = vrcp.pop %v5166
      %v5296 = vrcp.pop %v5170
      %v5297 = vrcp.pop %v5174
      %v5298 = vrcp.pop %v5178
      %v5299 = vrcp.pop %v5182
      %v5300 = vrcp.pop %v5186
      %v5301 = vrcp.pop %v5190
      %v5302 = vrcp.pop %v5194
      %v5303 = vrcp.pop %v5198
      %v5304 = vrcp.pop %v5202
      %v5305 = vrcp.pop %v5206
      %v5306 = vrcp.pop %v5210
      %v5307 = vmul.f32 %v4444, %v5211
      %v5308 = vmul.f32 %v4446, %v5211
      %v5309 = vmul.f32 %v4448, %v5212
      %v5310 = vmul.f32 %v4450, %v5212
      %v5311 = vmul.f32 %v4452, %v5213
      %v5312 = vmul.f32 %v4454, %v5213
      %v5313 = vmul.f32 %v4456, %v5214
      %v5314 = vmul.f32 %v4458, %v5214
      %v5315 = vmul.f32 %v4460, %v5215
      %v5316 = vmul.f32 %v4462, %v5215
      %v5317 = vmul.f32 %v4464, %v5216
      %v5318 = vmul.f32 %v4466, %v5216
      %v5319 = vmul.f32 %v4468, %v5217
      %v5320 = vmul.f32 %v4470, %v5217
      %v5321 = vmul.f32 %v4472, %v5218
      %v5322 = vmul.f32 %v4474, %v5218
      %v5323 = vmul.f32 %v4476, %v5219
      %v5324 = vmul.f32 %v4478, %v5219
      %v5325 = vmul.f32 %v4480, %v5220
      %v5326 = vmul.f32 %v4482, %v5220
      %v5327 = vmul.f32 %v4484, %v5221
      %v5328 = vmul.f32 %v4486, %v5221
      %v5329 = vmul.f32 %v4488, %v5222
      %v5330 = vmul.f32 %v4490, %v5222
      %v5331 = vmul.f32 %v4492, %v5223
      %v5332 = vmul.f32 %v4494, %v5223
      %v5333 = vmul.f32 %v4496, %v5224
      %v5334 = vmul.f32 %v4498, %v5224
      %v5335 = vmul.f32 %v4500, %v5225
      %v5336 = vmul.f32 %v4502, %v5225
      %v5337 = vmul.f32 %v4504, %v5226
      %v5338 = vmul.f32 %v4506, %v5226
      %v5339 = vmul.f32 %v4508, %v5227
      %v5340 = vmul.f32 %v4510, %v5227
      %v5341 = vmul.f32 %v4512, %v5228
      %v5342 = vmul.f32 %v4514, %v5228
      %v5343 = vmul.f32 %v4516, %v5229
      %v5344 = vmul.f32 %v4518, %v5229
      %v5345 = vmul.f32 %v4520, %v5230
      %v5346 = vmul.f32 %v4522, %v5230
      %v5347 = vmul.f32 %v4524, %v5231
      %v5348 = vmul.f32 %v4526, %v5231
      %v5349 = vmul.f32 %v4528, %v5232
      %v5350 = vmul.f32 %v4530, %v5232
      %v5351 = vmul.f32 %v4532, %v5233
      %v5352 = vmul.f32 %v4534, %v5233
      %v5353 = vmul.f32 %v4536, %v5234
      %v5354 = vmul.f32 %v4538, %v5234
      %v5355 = vmul.f32 %v4540, %v5235
      %v5356 = vmul.f32 %v4542, %v5235
      %v5357 = vmul.f32 %v4544, %v5236
      %v5358 = vmul.f32 %v4546, %v5236
      %v5359 = vmul.f32 %v4548, %v5237
      %v5360 = vmul.f32 %v4550, %v5237
      %v5361 = vmul.f32 %v4552, %v5238
      %v5362 = vmul.f32 %v4554, %v5238
      %v5363 = vmul.f32 %v4556, %v5239
      %v5364 = vmul.f32 %v4558, %v5239
      %v5365 = vmul.f32 %v4560, %v5240
      %v5366 = vmul.f32 %v4562, %v5240
      %v5367 = vmul.f32 %v4564, %v5241
      %v5368 = vmul.f32 %v4566, %v5241
      %v5369 = vmul.f32 %v4568, %v5242
      %v5370 = vmul.f32 %v4570, %v5242
      %v5371 = vmul.f32 %v4572, %v5243
      %v5372 = vmul.f32 %v4574, %v5243
      %v5373 = vmul.f32 %v4576, %v5244
      %v5374 = vmul.f32 %v4578, %v5244
      %v5375 = vmul.f32 %v4580, %v5245
      %v5376 = vmul.f32 %v4582, %v5245
      %v5377 = vmul.f32 %v4584, %v5246
      %v5378 = vmul.f32 %v4586, %v5246
      %v5379 = vmul.f32 %v4588, %v5247
      %v5380 = vmul.f32 %v4590, %v5247
      %v5381 = vmul.f32 %v4592, %v5248
      %v5382 = vmul.f32 %v4594, %v5248
      %v5383 = vmul.f32 %v4596, %v5249
      %v5384 = vmul.f32 %v4598, %v5249
      %v5385 = vmul.f32 %v4600, %v5250
      %v5386 = vmul.f32 %v4602, %v5250
      %v5387 = vmul.f32 %v4604, %v5251
      %v5388 = vmul.f32 %v4606, %v5251
      %v5389 = vmul.f32 %v4608, %v5252
      %v5390 = vmul.f32 %v4610, %v5252
      %v5391 = vmul.f32 %v4612, %v5253
      %v5392 = vmul.f32 %v4614, %v5253
      %v5393 = vmul.f32 %v4616, %v5254
      %v5394 = vmul.f32 %v4618, %v5254
      %v5395 = vmul.f32 %v4620, %v5255
      %v5396 = vmul.f32 %v4622, %v5255
      %v5397 = vmul.f32 %v4624, %v5256
      %v5398 = vmul.f32 %v4626, %v5256
      %v5399 = vmul.f32 %v4628, %v5257
      %v5400 = vmul.f32 %v4630, %v5257
      %v5401 = vmul.f32 %v4632, %v5258
      %v5402 = vmul.f32 %v4634, %v5258
      %v5403 = vmul.f32 %v4636, %v5259
      %v5404 = vmul.f32 %v4638, %v5259
      %v5405 = vmul.f32 %v4640, %v5260
      %v5406 = vmul.f32 %v4642, %v5260
      %v5407 = vmul.f32 %v4644, %v5261
      %v5408 = vmul.f32 %v4646, %v5261
      %v5409 = vmul.f32 %v4648, %v5262
      %v5410 = vmul.f32 %v4650, %v5262
      %v5411 = vmul.f32 %v4652, %v5263
      %v5412 = vmul.f32 %v4654, %v5263
      %v5413 = vmul.f32 %v4656, %v5264
      %v5414 = vmul.f32 %v4658, %v5264
      %v5415 = vmul.f32 %v4660, %v5265
      %v5416 = vmul.f32 %v4662, %v5265
      %v5417 = vmul.f32 %v4664, %v5266
      %v5418 = vmul.f32 %v4666, %v5266
      %v5419 = vmul.f32 %v4668, %v5267
      %v5420 = vmul.f32 %v4670, %v5267
      %v5421 = vmul.f32 %v4672, %v5268
      %v5422 = vmul.f32 %v4674, %v5268
      %v5423 = vmul.f32 %v4676, %v5269
      %v5424 = vmul.f32 %v4678, %v5269
      %v5425 = vmul.f32 %v4680, %v5270
      %v5426 = vmul.f32 %v4682, %v5270
      %v5427 = vmul.f32 %v4684, %v5271
      %v5428 = vmul.f32 %v4686, %v5271
      %v5429 = vmul.f32 %v4688, %v5272
      %v5430 = vmul.f32 %v4690, %v5272
      %v5431 = vmul.f32 %v4692, %v5273
      %v5432 = vmul.f32 %v4694, %v5273
      %v5433 = vmul.f32 %v4696, %v5274
      %v5434 = vmul.f32 %v4698, %v5274
      %v5435 = vmul.f32 %v4700, %v5275
      %v5436 = vmul.f32 %v4702, %v5275
      %v5437 = vmul.f32 %v4704, %v5276
      %v5438 = vmul.f32 %v4706, %v5276
      %v5439 = vmul.f32 %v4708, %v5277
      %v5440 = vmul.f32 %v4710, %v5277
      %v5441 = vmul.f32 %v4712, %v5278
      %v5442 = vmul.f32 %v4714, %v5278
      %v5443 = vmul.f32 %v4716, %v5279
      %v5444 = vmul.f32 %v4718, %v5279
      %v5445 = vmul.f32 %v4720, %v5280
      %v5446 = vmul.f32 %v4722, %v5280
      %v5447 = vmul.f32 %v4724, %v5281
      %v5448 = vmul.f32 %v4726, %v5281
      %v5449 = vmul.f32 %v4728, %v5282
      %v5450 = vmul.f32 %v4730, %v5282
      %v5451 = vmul.f32 %v4732, %v5283
      %v5452 = vmul.f32 %v4734, %v5283
      %v5453 = vmul.f32 %v4736, %v5284
      %v5454 = vmul.f32 %v4738, %v5284
      %v5455 = vmul.f32 %v4740, %v5285
      %v5456 = vmul.f32 %v4742, %v5285
      %v5457 = vmul.f32 %v4744, %v5286
      %v5458 = vmul.f32 %v4746, %v5286
      %v5459 = vmul.f32 %v4748, %v5287
      %v5460 = vmul.f32 %v4750, %v5287
      %v5461 = vmul.f32 %v4752, %v5288
      %v5462 = vmul.f32 %v4754, %v5288
      %v5463 = vmul.f32 %v4756, %v5289
      %v5464 = vmul.f32 %v4758, %v5289
      %v5465 = vmul.f32 %v4760, %v5290
      %v5466 = vmul.f32 %v4762, %v5290
      %v5467 = vmul.f32 %v4764, %v5291
      %v5468 = vmul.f32 %v4766, %v5291
      %v5469 = vmul.f32 %v4768, %v5292
      %v5470 = vmul.f32 %v4770, %v5292
      %v5471 = vmul.f32 %v4772, %v5293
      %v5472 = vmul.f32 %v4774, %v5293
      %v5473 = vmul.f32 %v4776, %v5294
      %v5474 = vmul.f32 %v4778, %v5294
      %v5475 = vmul.f32 %v4780, %v5295
      %v5476 = vmul.f32 %v4782, %v5295
      %v5477 = vmul.f32 %v4784, %v5296
      %v5478 = vmul.f32 %v4786, %v5296
      %v5479 = vmul.f32 %v4788, %v5297
      %v5480 = vmul.f32 %v4790, %v5297
      %v5481 = vmul.f32 %v4792, %v5298
      %v5482 = vmul.f32 %v4794, %v5298
      %v5483 = vmul.f32 %v4796, %v5299
      %v5484 = vmul.f32 %v4798, %v5299
      %v5485 = vmul.f32 %v4800, %v5300
      %v5486 = vmul.f32 %v4802, %v5300
      %v5487 = vmul.f32 %v4804, %v5301
      %v5488 = vmul.f32 %v4806, %v5301
      %v5489 = vmul.f32 %v4808, %v5302
      %v5490 = vmul.f32 %v4810, %v5302
      %v5491 = vmul.f32 %v4812, %v5303
      %v5492 = vmul.f32 %v4814, %v5303
      %v5493 = vmul.f32 %v4816, %v5304
      %v5494 = vmul.f32 %v4818, %v5304
      %v5495 = vmul.f32 %v4820, %v5305
      %v5496 = vmul.f32 %v4822, %v5305
      %v5497 = vmul.f32 %v4824, %v5306
      %v5498 = vmul.f32 %v4826, %v5306
      %v5499 = vpack.c.bf16 %v5309, %v5307
      %v5500 = vpack.c.bf16 %v5310, %v5308
      %v5501 = vpack.c.bf16 %v5313, %v5311
      %v5502 = vpack.c.bf16 %v5314, %v5312
      %v5503 = vpack.c.bf16 %v5317, %v5315
      %v5504 = vpack.c.bf16 %v5318, %v5316
      %v5505 = vpack.c.bf16 %v5321, %v5319
      %v5506 = vpack.c.bf16 %v5322, %v5320
      %v5507 = vpack.c.bf16 %v5325, %v5323
      %v5508 = vpack.c.bf16 %v5326, %v5324
      %v5509 = vpack.c.bf16 %v5329, %v5327
      %v5510 = vpack.c.bf16 %v5330, %v5328
      %v5511 = vpack.c.bf16 %v5333, %v5331
      %v5512 = vpack.c.bf16 %v5334, %v5332
      %v5513 = vpack.c.bf16 %v5337, %v5335
      %v5514 = vpack.c.bf16 %v5338, %v5336
      %v5515 = vpack.c.bf16 %v5341, %v5339
      %v5516 = vpack.c.bf16 %v5342, %v5340
      %v5517 = vpack.c.bf16 %v5345, %v5343
      %v5518 = vpack.c.bf16 %v5346, %v5344
      %v5519 = vpack.c.bf16 %v5349, %v5347
      %v5520 = vpack.c.bf16 %v5350, %v5348
      %v5521 = vpack.c.bf16 %v5353, %v5351
      %v5522 = vpack.c.bf16 %v5354, %v5352
      %v5523 = vpack.c.bf16 %v5357, %v5355
      %v5524 = vpack.c.bf16 %v5358, %v5356
      %v5525 = vpack.c.bf16 %v5361, %v5359
      %v5526 = vpack.c.bf16 %v5362, %v5360
      %v5527 = vpack.c.bf16 %v5365, %v5363
      %v5528 = vpack.c.bf16 %v5366, %v5364
      %v5529 = vpack.c.bf16 %v5369, %v5367
      %v5530 = vpack.c.bf16 %v5370, %v5368
      %v5531 = vpack.c.bf16 %v5373, %v5371
      %v5532 = vpack.c.bf16 %v5374, %v5372
      %v5533 = vpack.c.bf16 %v5377, %v5375
      %v5534 = vpack.c.bf16 %v5378, %v5376
      %v5535 = vpack.c.bf16 %v5381, %v5379
      %v5536 = vpack.c.bf16 %v5382, %v5380
      %v5537 = vpack.c.bf16 %v5385, %v5383
      %v5538 = vpack.c.bf16 %v5386, %v5384
      %v5539 = vpack.c.bf16 %v5389, %v5387
      %v5540 = vpack.c.bf16 %v5390, %v5388
      %v5541 = vpack.c.bf16 %v5393, %v5391
      %v5542 = vpack.c.bf16 %v5394, %v5392
      %v5543 = vpack.c.bf16 %v5397, %v5395
      %v5544 = vpack.c.bf16 %v5398, %v5396
      %v5545 = vpack.c.bf16 %v5401, %v5399
      %v5546 = vpack.c.bf16 %v5402, %v5400
      %v5547 = vpack.c.bf16 %v5405, %v5403
      %v5548 = vpack.c.bf16 %v5406, %v5404
      %v5549 = vpack.c.bf16 %v5409, %v5407
      %v5550 = vpack.c.bf16 %v5410, %v5408
      %v5551 = vpack.c.bf16 %v5413, %v5411
      %v5552 = vpack.c.bf16 %v5414, %v5412
      %v5553 = vpack.c.bf16 %v5417, %v5415
      %v5554 = vpack.c.bf16 %v5418, %v5416
      %v5555 = vpack.c.bf16 %v5421, %v5419
      %v5556 = vpack.c.bf16 %v5422, %v5420
      %v5557 = vpack.c.bf16 %v5425, %v5423
      %v5558 = vpack.c.bf16 %v5426, %v5424
      %v5559 = vpack.c.bf16 %v5429, %v5427
      %v5560 = vpack.c.bf16 %v5430, %v5428
      %v5561 = vpack.c.bf16 %v5433, %v5431
      %v5562 = vpack.c.bf16 %v5434, %v5432
      %v5563 = vpack.c.bf16 %v5437, %v5435
      %v5564 = vpack.c.bf16 %v5438, %v5436
      %v5565 = vpack.c.bf16 %v5441, %v5439
      %v5566 = vpack.c.bf16 %v5442, %v5440
      %v5567 = vpack.c.bf16 %v5445, %v5443
      %v5568 = vpack.c.bf16 %v5446, %v5444
      %v5569 = vpack.c.bf16 %v5449, %v5447
      %v5570 = vpack.c.bf16 %v5450, %v5448
      %v5571 = vpack.c.bf16 %v5453, %v5451
      %v5572 = vpack.c.bf16 %v5454, %v5452
      %v5573 = vpack.c.bf16 %v5457, %v5455
      %v5574 = vpack.c.bf16 %v5458, %v5456
      %v5575 = vpack.c.bf16 %v5461, %v5459
      %v5576 = vpack.c.bf16 %v5462, %v5460
      %v5577 = vpack.c.bf16 %v5465, %v5463
      %v5578 = vpack.c.bf16 %v5466, %v5464
      %v5579 = vpack.c.bf16 %v5469, %v5467
      %v5580 = vpack.c.bf16 %v5470, %v5468
      %v5581 = vpack.c.bf16 %v5473, %v5471
      %v5582 = vpack.c.bf16 %v5474, %v5472
      %v5583 = vpack.c.bf16 %v5477, %v5475
      %v5584 = vpack.c.bf16 %v5478, %v5476
      %v5585 = vpack.c.bf16 %v5481, %v5479
      %v5586 = vpack.c.bf16 %v5482, %v5480
      %v5587 = vpack.c.bf16 %v5485, %v5483
      %v5588 = vpack.c.bf16 %v5486, %v5484
      %v5589 = vpack.c.bf16 %v5489, %v5487
      %v5590 = vpack.c.bf16 %v5490, %v5488
      %v5591 = vpack.c.bf16 %v5493, %v5491
      %v5592 = vpack.c.bf16 %v5494, %v5492
      %v5593 = vpack.c.bf16 %v5497, %v5495
      %v5594 = vpack.c.bf16 %v5498, %v5496
      %5611 = vrot.lane.b32.xlu0 %v2806, 64
      %v5612 = vpop.permute.xlu0 %5611
      %5613 = vrot.lane.b32.xlu0 %v2807, 64
      %v5614 = vpop.permute.xlu0 %5613
      %5615 = vrot.lane.b32.xlu0 %v2808, 64
      %v5616 = vpop.permute.xlu0 %5615
      %5617 = vrot.lane.b32.xlu0 %v2809, 64
      %v5618 = vpop.permute.xlu0 %5617
      %5619 = vrot.lane.b32.xlu0 %v2810, 64
      %v5620 = vpop.permute.xlu0 %5619
      %5621 = vrot.lane.b32.xlu0 %v2811, 64
      %v5622 = vpop.permute.xlu0 %5621
      %5623 = vrot.lane.b32.xlu0 %v2812, 64
      %v5624 = vpop.permute.xlu0 %5623
      %5625 = vrot.lane.b32.xlu0 %v2813, 64
      %v5626 = vpop.permute.xlu0 %5625
      %5627 = vrot.lane.b32.xlu0 %v2814, 64
      %v5628 = vpop.permute.xlu0 %5627
      %5629 = vrot.lane.b32.xlu0 %v2815, 64
      %v5630 = vpop.permute.xlu0 %5629
      %5631 = vrot.lane.b32.xlu0 %v2816, 64
      %v5632 = vpop.permute.xlu0 %5631
      %5633 = vrot.lane.b32.xlu0 %v2817, 64
      %v5634 = vpop.permute.xlu0 %5633
      %5635 = vrot.lane.b32.xlu0 %v2818, 64
      %v5636 = vpop.permute.xlu0 %5635
      %5637 = vrot.lane.b32.xlu0 %v2819, 64
      %v5638 = vpop.permute.xlu0 %5637
      %5639 = vrot.lane.b32.xlu0 %v2820, 64
      %v5640 = vpop.permute.xlu0 %5639
      %5641 = vrot.lane.b32.xlu0 %v2821, 64
      %v5642 = vpop.permute.xlu0 %5641
      %v5659 = vsel %vm3866, %v5500, 0
      %v5662 = vsel %vm3866, %v5502, 0
      %v5665 = vsel %vm3866, %v5504, 0
      %v5668 = vsel %vm3866, %v5506, 0
      %v5671 = vsel %vm3866, %v5508, 0
      %v5674 = vsel %vm3866, %v5510, 0
      %v5677 = vsel %vm3866, %v5512, 0
      %v5680 = vsel %vm3866, %v5514, 0
      %v5683 = vsel %vm3866, %v5516, 0
      %v5686 = vsel %vm3866, %v5518, 0
      %v5689 = vsel %vm3866, %v5520, 0
      %v5692 = vsel %vm3866, %v5522, 0
      %vm5694 = vcmask 1044480
      %v5696 = vsel %vm5694, %v5642, 0
      %5698 = vmatprep.subr.bf16.mxu0 0
      %5699 = vmatpush1.bf16.msra.mxu0 %v5626
      %5700 = vmatprep.subr.bf16.mxu0 0
      %5701 = vmatpush1.bf16.msra.mxu0 %v5624
      %5702 = vmatprep.subr.bf16.mxu0 0
      %5703 = vmatpush1.bf16.msra.mxu0 %v5622
      %5704 = vmatprep.subr.bf16.mxu0 0
      %5705 = vmatpush1.bf16.msra.mxu0 %v5620
      %5706 = vmatprep.subr.bf16.mxu0 0
      %5707 = vmatpush1.bf16.msra.mxu0 %v5618
      %5708 = vmatprep.subr.bf16.mxu0 0
      %5709 = vmatpush1.bf16.msra.mxu0 %v5616
      %5710 = vmatprep.subr.bf16.mxu0 0
      %5711 = vmatpush1.bf16.msra.mxu0 %v5614
      %5712 = vmatprep.subr.bf16.mxu0 0
      %5713 = vmatpush1.bf16.msra.mxu0 %v5612
      %5714 = vmatprep.subr.bf16.mxu0 0
      %5715 = vmatpush2.bf16.msra.mxu0 %v5696
      %5716 = vmatprep.subr.bf16.mxu0 0
      %5717 = vmatpush2.bf16.msra.mxu0 %v5640
      %5718 = vmatprep.subr.bf16.mxu0 0
      %5719 = vmatpush2.bf16.msra.mxu0 %v5638
      %5720 = vmatprep.subr.bf16.mxu0 0
      %5721 = vmatpush2.bf16.msra.mxu0 %v5636
      %5722 = vmatprep.subr.bf16.mxu0 0
      %5723 = vmatpush2.bf16.msra.mxu0 %v5634
      %5724 = vmatprep.subr.bf16.mxu0 0
      %5725 = vmatpush2.bf16.msra.mxu0 %v5632
      %5726 = vmatprep.subr.bf16.mxu0 0
      %5727 = vmatpush2.bf16.msra.mxu0 %v5630
      %5728 = vmatprep.subr.bf16.mxu0 0
      %5729 = vmatpush2.bf16.msra.mxu0 %v5628
      %5730 = vmatprep.mubr.bf16.mxu0 %v5659
      %5731 = vmatmul.mubr.bf16.gmra.mxu0 %v5499
      %v5732 = vpop.f32.mrf.mxu0
      %v5733 = vadd.f32 0.0, %v5732
      %v5734 = vpop.f32.mrf.mxu0
      %v5735 = vpop.f32.mrf.mxu0
      %v5736 = vadd.f32 0.0, %v5735
      %v5737 = vpop.f32.mrf.mxu0
      %5738 = vmatprep.mubr.bf16.mxu0 %v5662
      %5739 = vmatmul.mubr.bf16.gmra.mxu0 %v5501
      %v5740 = vpop.f32.mrf.mxu0
      %v5741 = vadd.f32 0.0, %v5740
      %v5742 = vpop.f32.mrf.mxu0
      %v5743 = vpop.f32.mrf.mxu0
      %v5744 = vadd.f32 0.0, %v5743
      %v5745 = vpop.f32.mrf.mxu0
      %5746 = vmatprep.mubr.bf16.mxu0 %v5665
      %5747 = vmatmul.mubr.bf16.gmra.mxu0 %v5503
      %v5748 = vpop.f32.mrf.mxu0
      %v5749 = vadd.f32 0.0, %v5748
      %v5750 = vpop.f32.mrf.mxu0
      %v5751 = vpop.f32.mrf.mxu0
      %v5752 = vadd.f32 0.0, %v5751
      %v5753 = vpop.f32.mrf.mxu0
      %5754 = vmatprep.mubr.bf16.mxu0 %v5668
      %5755 = vmatmul.mubr.bf16.gmra.mxu0 %v5505
      %v5756 = vpop.f32.mrf.mxu0
      %v5757 = vadd.f32 0.0, %v5756
      %v5758 = vpop.f32.mrf.mxu0
      %v5759 = vpop.f32.mrf.mxu0
      %v5760 = vadd.f32 0.0, %v5759
      %v5761 = vpop.f32.mrf.mxu0
      %5762 = vmatprep.mubr.bf16.mxu0 %v5671
      %5763 = vmatmul.mubr.bf16.gmra.mxu0 %v5507
      %v5764 = vpop.f32.mrf.mxu0
      %v5765 = vadd.f32 0.0, %v5764
      %v5766 = vpop.f32.mrf.mxu0
      %v5767 = vpop.f32.mrf.mxu0
      %v5768 = vadd.f32 0.0, %v5767
      %v5769 = vpop.f32.mrf.mxu0
      %5770 = vmatprep.mubr.bf16.mxu0 %v5674
      %5771 = vmatmul.mubr.bf16.gmra.mxu0 %v5509
      %v5772 = vpop.f32.mrf.mxu0
      %v5773 = vadd.f32 0.0, %v5772
      %v5774 = vpop.f32.mrf.mxu0
      %v5775 = vpop.f32.mrf.mxu0
      %v5776 = vadd.f32 0.0, %v5775
      %v5777 = vpop.f32.mrf.mxu0
      %5778 = vmatprep.mubr.bf16.mxu0 %v5677
      %5779 = vmatmul.mubr.bf16.gmra.mxu0 %v5511
      %v5780 = vpop.f32.mrf.mxu0
      %v5781 = vadd.f32 0.0, %v5780
      %v5782 = vpop.f32.mrf.mxu0
      %v5783 = vpop.f32.mrf.mxu0
      %v5784 = vadd.f32 0.0, %v5783
      %v5785 = vpop.f32.mrf.mxu0
      %5786 = vmatprep.mubr.bf16.mxu0 %v5680
      %5787 = vmatmul.mubr.bf16.gmra.mxu0 %v5513
      %v5788 = vpop.f32.mrf.mxu0
      %v5789 = vadd.f32 0.0, %v5788
      %v5790 = vpop.f32.mrf.mxu0
      %v5791 = vpop.f32.mrf.mxu0
      %v5792 = vadd.f32 0.0, %v5791
      %v5793 = vpop.f32.mrf.mxu0
      %5794 = vmatprep.mubr.bf16.mxu0 %v5683
      %5795 = vmatmul.mubr.bf16.gmra.mxu0 %v5515
      %v5796 = vpop.f32.mrf.mxu0
      %v5797 = vadd.f32 0.0, %v5796
      %v5798 = vpop.f32.mrf.mxu0
      %v5799 = vpop.f32.mrf.mxu0
      %v5800 = vadd.f32 0.0, %v5799
      %v5801 = vpop.f32.mrf.mxu0
      %5802 = vmatprep.mubr.bf16.mxu0 %v5686
      %5803 = vmatmul.mubr.bf16.gmra.mxu0 %v5517
      %v5804 = vpop.f32.mrf.mxu0
      %v5805 = vadd.f32 0.0, %v5804
      %v5806 = vpop.f32.mrf.mxu0
      %v5807 = vpop.f32.mrf.mxu0
      %v5808 = vadd.f32 0.0, %v5807
      %v5809 = vpop.f32.mrf.mxu0
      %5810 = vmatprep.mubr.bf16.mxu0 %v5689
      %5811 = vmatmul.mubr.bf16.gmra.mxu0 %v5519
      %v5812 = vpop.f32.mrf.mxu0
      %v5813 = vadd.f32 0.0, %v5812
      %v5814 = vpop.f32.mrf.mxu0
      %v5815 = vpop.f32.mrf.mxu0
      %v5816 = vadd.f32 0.0, %v5815
      %v5817 = vpop.f32.mrf.mxu0
      %5818 = vmatprep.mubr.bf16.mxu0 %v5692
      %5819 = vmatmul.mubr.bf16.gmra.mxu0 %v5521
      %v5820 = vpop.f32.mrf.mxu0
      %v5821 = vadd.f32 0.0, %v5820
      %v5822 = vpop.f32.mrf.mxu0
      %v5823 = vpop.f32.mrf.mxu0
      %v5824 = vadd.f32 0.0, %v5823
      %v5825 = vpop.f32.mrf.mxu0
      %5826 = vdwg.mxu0
      %5843 = vrot.lane.b32.xlu0 %v2822, 64
      %v5844 = vpop.permute.xlu0 %5843
      %5845 = vrot.lane.b32.xlu0 %v2823, 64
      %v5846 = vpop.permute.xlu0 %5845
      %5847 = vrot.lane.b32.xlu0 %v2824, 64
      %v5848 = vpop.permute.xlu0 %5847
      %5849 = vrot.lane.b32.xlu0 %v2825, 64
      %v5850 = vpop.permute.xlu0 %5849
      %5851 = vrot.lane.b32.xlu0 %v2826, 64
      %v5852 = vpop.permute.xlu0 %5851
      %5853 = vrot.lane.b32.xlu0 %v2827, 64
      %v5854 = vpop.permute.xlu0 %5853
      %5855 = vrot.lane.b32.xlu0 %v2828, 64
      %v5856 = vpop.permute.xlu0 %5855
      %5857 = vrot.lane.b32.xlu0 %v2829, 64
      %v5858 = vpop.permute.xlu0 %5857
      %5859 = vrot.lane.b32.xlu0 %v2830, 64
      %v5860 = vpop.permute.xlu0 %5859
      %5861 = vrot.lane.b32.xlu0 %v2831, 64
      %v5862 = vpop.permute.xlu0 %5861
      %5863 = vrot.lane.b32.xlu0 %v2832, 64
      %v5864 = vpop.permute.xlu0 %5863
      %5865 = vrot.lane.b32.xlu0 %v2833, 64
      %v5866 = vpop.permute.xlu0 %5865
      %5867 = vrot.lane.b32.xlu0 %v2834, 64
      %v5868 = vpop.permute.xlu0 %5867
      %5869 = vrot.lane.b32.xlu0 %v2835, 64
      %v5870 = vpop.permute.xlu0 %5869
      %5871 = vrot.lane.b32.xlu0 %v2836, 64
      %v5872 = vpop.permute.xlu0 %5871
      %5873 = vrot.lane.b32.xlu0 %v2837, 64
      %v5874 = vpop.permute.xlu0 %5873
      %v5891 = vsel %vm3866, %v5524, 0
      %v5894 = vsel %vm3866, %v5526, 0
      %v5897 = vsel %vm3866, %v5528, 0
      %v5900 = vsel %vm3866, %v5530, 0
      %v5903 = vsel %vm3866, %v5532, 0
      %v5906 = vsel %vm3866, %v5534, 0
      %v5909 = vsel %vm3866, %v5536, 0
      %v5912 = vsel %vm3866, %v5538, 0
      %v5915 = vsel %vm3866, %v5540, 0
      %v5918 = vsel %vm3866, %v5542, 0
      %v5921 = vsel %vm3866, %v5544, 0
      %v5924 = vsel %vm3866, %v5546, 0
      %v5927 = vsel %vm5694, %v5874, 0
      %5929 = vmatprep.subr.bf16.mxu0 0
      %5930 = vmatpush1.bf16.msra.mxu0 %v5858
      %5931 = vmatprep.subr.bf16.mxu0 0
      %5932 = vmatpush1.bf16.msra.mxu0 %v5856
      %5933 = vmatprep.subr.bf16.mxu0 0
      %5934 = vmatpush1.bf16.msra.mxu0 %v5854
      %5935 = vmatprep.subr.bf16.mxu0 0
      %5936 = vmatpush1.bf16.msra.mxu0 %v5852
      %5937 = vmatprep.subr.bf16.mxu0 0
      %5938 = vmatpush1.bf16.msra.mxu0 %v5850
      %5939 = vmatprep.subr.bf16.mxu0 0
      %5940 = vmatpush1.bf16.msra.mxu0 %v5848
      %5941 = vmatprep.subr.bf16.mxu0 0
      %5942 = vmatpush1.bf16.msra.mxu0 %v5846
      %5943 = vmatprep.subr.bf16.mxu0 0
      %5944 = vmatpush1.bf16.msra.mxu0 %v5844
      %5945 = vmatprep.subr.bf16.mxu0 0
      %5946 = vmatpush2.bf16.msra.mxu0 %v5927
      %5947 = vmatprep.subr.bf16.mxu0 0
      %5948 = vmatpush2.bf16.msra.mxu0 %v5872
      %5949 = vmatprep.subr.bf16.mxu0 0
      %5950 = vmatpush2.bf16.msra.mxu0 %v5870
      %5951 = vmatprep.subr.bf16.mxu0 0
      %5952 = vmatpush2.bf16.msra.mxu0 %v5868
      %5953 = vmatprep.subr.bf16.mxu0 0
      %5954 = vmatpush2.bf16.msra.mxu0 %v5866
      %5955 = vmatprep.subr.bf16.mxu0 0
      %5956 = vmatpush2.bf16.msra.mxu0 %v5864
      %5957 = vmatprep.subr.bf16.mxu0 0
      %5958 = vmatpush2.bf16.msra.mxu0 %v5862
      %5959 = vmatprep.subr.bf16.mxu0 0
      %5960 = vmatpush2.bf16.msra.mxu0 %v5860
      %5961 = vmatprep.mubr.bf16.mxu0 %v5891
      %5962 = vmatmul.mubr.bf16.gmra.mxu0 %v5523
      %v5963 = vpop.f32.mrf.mxu0
      %v5964 = vadd.f32 0.0, %v5963
      %v5965 = vpop.f32.mrf.mxu0
      %v5966 = vpop.f32.mrf.mxu0
      %v5967 = vadd.f32 0.0, %v5966
      %v5968 = vpop.f32.mrf.mxu0
      %5969 = vmatprep.mubr.bf16.mxu0 %v5894
      %5970 = vmatmul.mubr.bf16.gmra.mxu0 %v5525
      %v5971 = vpop.f32.mrf.mxu0
      %v5972 = vadd.f32 0.0, %v5971
      %v5973 = vpop.f32.mrf.mxu0
      %v5974 = vpop.f32.mrf.mxu0
      %v5975 = vadd.f32 0.0, %v5974
      %v5976 = vpop.f32.mrf.mxu0
      %5977 = vmatprep.mubr.bf16.mxu0 %v5897
      %5978 = vmatmul.mubr.bf16.gmra.mxu0 %v5527
      %v5979 = vpop.f32.mrf.mxu0
      %v5980 = vadd.f32 0.0, %v5979
      %v5981 = vpop.f32.mrf.mxu0
      %v5982 = vpop.f32.mrf.mxu0
      %v5983 = vadd.f32 0.0, %v5982
      %v5984 = vpop.f32.mrf.mxu0
      %5985 = vmatprep.mubr.bf16.mxu0 %v5900
      %5986 = vmatmul.mubr.bf16.gmra.mxu0 %v5529
      %v5987 = vpop.f32.mrf.mxu0
      %v5988 = vadd.f32 0.0, %v5987
      %v5989 = vpop.f32.mrf.mxu0
      %v5990 = vpop.f32.mrf.mxu0
      %v5991 = vadd.f32 0.0, %v5990
      %v5992 = vpop.f32.mrf.mxu0
      %5993 = vmatprep.mubr.bf16.mxu0 %v5903
      %5994 = vmatmul.mubr.bf16.gmra.mxu0 %v5531
      %v5995 = vpop.f32.mrf.mxu0
      %v5996 = vadd.f32 0.0, %v5995
      %v5997 = vpop.f32.mrf.mxu0
      %v5998 = vpop.f32.mrf.mxu0
      %v5999 = vadd.f32 0.0, %v5998
      %v6000 = vpop.f32.mrf.mxu0
      %6001 = vmatprep.mubr.bf16.mxu0 %v5906
      %6002 = vmatmul.mubr.bf16.gmra.mxu0 %v5533
      %v6003 = vpop.f32.mrf.mxu0
      %v6004 = vadd.f32 0.0, %v6003
      %v6005 = vpop.f32.mrf.mxu0
      %v6006 = vpop.f32.mrf.mxu0
      %v6007 = vadd.f32 0.0, %v6006
      %v6008 = vpop.f32.mrf.mxu0
      %6009 = vmatprep.mubr.bf16.mxu0 %v5909
      %6010 = vmatmul.mubr.bf16.gmra.mxu0 %v5535
      %v6011 = vpop.f32.mrf.mxu0
      %v6012 = vadd.f32 0.0, %v6011
      %v6013 = vpop.f32.mrf.mxu0
      %v6014 = vpop.f32.mrf.mxu0
      %v6015 = vadd.f32 0.0, %v6014
      %v6016 = vpop.f32.mrf.mxu0
      %6017 = vmatprep.mubr.bf16.mxu0 %v5912
      %6018 = vmatmul.mubr.bf16.gmra.mxu0 %v5537
      %v6019 = vpop.f32.mrf.mxu0
      %v6020 = vadd.f32 0.0, %v6019
      %v6021 = vpop.f32.mrf.mxu0
      %v6022 = vpop.f32.mrf.mxu0
      %v6023 = vadd.f32 0.0, %v6022
      %v6024 = vpop.f32.mrf.mxu0
      %6025 = vmatprep.mubr.bf16.mxu0 %v5915
      %6026 = vmatmul.mubr.bf16.gmra.mxu0 %v5539
      %v6027 = vpop.f32.mrf.mxu0
      %v6028 = vadd.f32 0.0, %v6027
      %v6029 = vpop.f32.mrf.mxu0
      %v6030 = vpop.f32.mrf.mxu0
      %v6031 = vadd.f32 0.0, %v6030
      %v6032 = vpop.f32.mrf.mxu0
      %6033 = vmatprep.mubr.bf16.mxu0 %v5918
      %6034 = vmatmul.mubr.bf16.gmra.mxu0 %v5541
      %v6035 = vpop.f32.mrf.mxu0
      %v6036 = vadd.f32 0.0, %v6035
      %v6037 = vpop.f32.mrf.mxu0
      %v6038 = vpop.f32.mrf.mxu0
      %v6039 = vadd.f32 0.0, %v6038
      %v6040 = vpop.f32.mrf.mxu0
      %6041 = vmatprep.mubr.bf16.mxu0 %v5921
      %6042 = vmatmul.mubr.bf16.gmra.mxu0 %v5543
      %v6043 = vpop.f32.mrf.mxu0
      %v6044 = vadd.f32 0.0, %v6043
      %v6045 = vpop.f32.mrf.mxu0
      %v6046 = vpop.f32.mrf.mxu0
      %v6047 = vadd.f32 0.0, %v6046
      %v6048 = vpop.f32.mrf.mxu0
      %6049 = vmatprep.mubr.bf16.mxu0 %v5924
      %6050 = vmatmul.mubr.bf16.gmra.mxu0 %v5545
      %v6051 = vpop.f32.mrf.mxu0
      %v6052 = vadd.f32 0.0, %v6051
      %v6053 = vpop.f32.mrf.mxu0
      %v6054 = vpop.f32.mrf.mxu0
      %v6055 = vadd.f32 0.0, %v6054
      %v6056 = vpop.f32.mrf.mxu0
      %6057 = vdwg.mxu0
      %6074 = vrot.lane.b32.xlu0 %v2838, 64
      %v6075 = vpop.permute.xlu0 %6074
      %6076 = vrot.lane.b32.xlu0 %v2839, 64
      %v6077 = vpop.permute.xlu0 %6076
      %6078 = vrot.lane.b32.xlu0 %v2840, 64
      %v6079 = vpop.permute.xlu0 %6078
      %6080 = vrot.lane.b32.xlu0 %v2841, 64
      %v6081 = vpop.permute.xlu0 %6080
      %6082 = vrot.lane.b32.xlu0 %v2842, 64
      %v6083 = vpop.permute.xlu0 %6082
      %6084 = vrot.lane.b32.xlu0 %v2843, 64
      %v6085 = vpop.permute.xlu0 %6084
      %6086 = vrot.lane.b32.xlu0 %v2844, 64
      %v6087 = vpop.permute.xlu0 %6086
      %6088 = vrot.lane.b32.xlu0 %v2845, 64
      %v6089 = vpop.permute.xlu0 %6088
      %6090 = vrot.lane.b32.xlu0 %v2846, 64
      %v6091 = vpop.permute.xlu0 %6090
      %6092 = vrot.lane.b32.xlu0 %v2847, 64
      %v6093 = vpop.permute.xlu0 %6092
      %6094 = vrot.lane.b32.xlu0 %v2848, 64
      %v6095 = vpop.permute.xlu0 %6094
      %6096 = vrot.lane.b32.xlu0 %v2849, 64
      %v6097 = vpop.permute.xlu0 %6096
      %6098 = vrot.lane.b32.xlu0 %v2850, 64
      %v6099 = vpop.permute.xlu0 %6098
      %6100 = vrot.lane.b32.xlu0 %v2851, 64
      %v6101 = vpop.permute.xlu0 %6100
      %6102 = vrot.lane.b32.xlu0 %v2852, 64
      %v6103 = vpop.permute.xlu0 %6102
      %6104 = vrot.lane.b32.xlu0 %v2853, 64
      %v6105 = vpop.permute.xlu0 %6104
      %v6122 = vsel %vm3866, %v5548, 0
      %v6125 = vsel %vm3866, %v5550, 0
      %v6128 = vsel %vm3866, %v5552, 0
      %v6131 = vsel %vm3866, %v5554, 0
      %v6134 = vsel %vm3866, %v5556, 0
      %v6137 = vsel %vm3866, %v5558, 0
      %v6140 = vsel %vm3866, %v5560, 0
      %v6143 = vsel %vm3866, %v5562, 0
      %v6146 = vsel %vm3866, %v5564, 0
      %v6149 = vsel %vm3866, %v5566, 0
      %v6152 = vsel %vm3866, %v5568, 0
      %v6155 = vsel %vm3866, %v5570, 0
      %v6158 = vsel %vm5694, %v6105, 0
      %6160 = vmatprep.subr.bf16.mxu0 0
      %6161 = vmatpush1.bf16.msra.mxu0 %v6089
      %6162 = vmatprep.subr.bf16.mxu0 0
      %6163 = vmatpush1.bf16.msra.mxu0 %v6087
      %6164 = vmatprep.subr.bf16.mxu0 0
      %6165 = vmatpush1.bf16.msra.mxu0 %v6085
      %6166 = vmatprep.subr.bf16.mxu0 0
      %6167 = vmatpush1.bf16.msra.mxu0 %v6083
      %6168 = vmatprep.subr.bf16.mxu0 0
      %6169 = vmatpush1.bf16.msra.mxu0 %v6081
      %6170 = vmatprep.subr.bf16.mxu0 0
      %6171 = vmatpush1.bf16.msra.mxu0 %v6079
      %6172 = vmatprep.subr.bf16.mxu0 0
      %6173 = vmatpush1.bf16.msra.mxu0 %v6077
      %6174 = vmatprep.subr.bf16.mxu0 0
      %6175 = vmatpush1.bf16.msra.mxu0 %v6075
      %6176 = vmatprep.subr.bf16.mxu0 0
      %6177 = vmatpush2.bf16.msra.mxu0 %v6158
      %6178 = vmatprep.subr.bf16.mxu0 0
      %6179 = vmatpush2.bf16.msra.mxu0 %v6103
      %6180 = vmatprep.subr.bf16.mxu0 0
      %6181 = vmatpush2.bf16.msra.mxu0 %v6101
      %6182 = vmatprep.subr.bf16.mxu0 0
      %6183 = vmatpush2.bf16.msra.mxu0 %v6099
      %6184 = vmatprep.subr.bf16.mxu0 0
      %6185 = vmatpush2.bf16.msra.mxu0 %v6097
      %6186 = vmatprep.subr.bf16.mxu0 0
      %6187 = vmatpush2.bf16.msra.mxu0 %v6095
      %6188 = vmatprep.subr.bf16.mxu0 0
      %6189 = vmatpush2.bf16.msra.mxu0 %v6093
      %6190 = vmatprep.subr.bf16.mxu0 0
      %6191 = vmatpush2.bf16.msra.mxu0 %v6091
      %6192 = vmatprep.mubr.bf16.mxu0 %v6122
      %6193 = vmatmul.mubr.bf16.gmra.mxu0 %v5547
      %v6194 = vpop.f32.mrf.mxu0
      %v6195 = vadd.f32 0.0, %v6194
      %v6196 = vpop.f32.mrf.mxu0
      %v6197 = vpop.f32.mrf.mxu0
      %v6198 = vadd.f32 0.0, %v6197
      %v6199 = vpop.f32.mrf.mxu0
      %6200 = vmatprep.mubr.bf16.mxu0 %v6125
      %6201 = vmatmul.mubr.bf16.gmra.mxu0 %v5549
      %v6202 = vpop.f32.mrf.mxu0
      %v6203 = vadd.f32 0.0, %v6202
      %v6204 = vpop.f32.mrf.mxu0
      %v6205 = vpop.f32.mrf.mxu0
      %v6206 = vadd.f32 0.0, %v6205
      %v6207 = vpop.f32.mrf.mxu0
      %6208 = vmatprep.mubr.bf16.mxu0 %v6128
      %6209 = vmatmul.mubr.bf16.gmra.mxu0 %v5551
      %v6210 = vpop.f32.mrf.mxu0
      %v6211 = vadd.f32 0.0, %v6210
      %v6212 = vpop.f32.mrf.mxu0
      %v6213 = vpop.f32.mrf.mxu0
      %v6214 = vadd.f32 0.0, %v6213
      %v6215 = vpop.f32.mrf.mxu0
      %6216 = vmatprep.mubr.bf16.mxu0 %v6131
      %6217 = vmatmul.mubr.bf16.gmra.mxu0 %v5553
      %v6218 = vpop.f32.mrf.mxu0
      %v6219 = vadd.f32 0.0, %v6218
      %v6220 = vpop.f32.mrf.mxu0
      %v6221 = vpop.f32.mrf.mxu0
      %v6222 = vadd.f32 0.0, %v6221
      %v6223 = vpop.f32.mrf.mxu0
      %6224 = vmatprep.mubr.bf16.mxu0 %v6134
      %6225 = vmatmul.mubr.bf16.gmra.mxu0 %v5555
      %v6226 = vpop.f32.mrf.mxu0
      %v6227 = vadd.f32 0.0, %v6226
      %v6228 = vpop.f32.mrf.mxu0
      %v6229 = vpop.f32.mrf.mxu0
      %v6230 = vadd.f32 0.0, %v6229
      %v6231 = vpop.f32.mrf.mxu0
      %6232 = vmatprep.mubr.bf16.mxu0 %v6137
      %6233 = vmatmul.mubr.bf16.gmra.mxu0 %v5557
      %v6234 = vpop.f32.mrf.mxu0
      %v6235 = vadd.f32 0.0, %v6234
      %v6236 = vpop.f32.mrf.mxu0
      %v6237 = vpop.f32.mrf.mxu0
      %v6238 = vadd.f32 0.0, %v6237
      %v6239 = vpop.f32.mrf.mxu0
      %6240 = vmatprep.mubr.bf16.mxu0 %v6140
      %6241 = vmatmul.mubr.bf16.gmra.mxu0 %v5559
      %v6242 = vpop.f32.mrf.mxu0
      %v6243 = vadd.f32 0.0, %v6242
      %v6244 = vpop.f32.mrf.mxu0
      %v6245 = vpop.f32.mrf.mxu0
      %v6246 = vadd.f32 0.0, %v6245
      %v6247 = vpop.f32.mrf.mxu0
      %6248 = vmatprep.mubr.bf16.mxu0 %v6143
      %6249 = vmatmul.mubr.bf16.gmra.mxu0 %v5561
      %v6250 = vpop.f32.mrf.mxu0
      %v6251 = vadd.f32 0.0, %v6250
      %v6252 = vpop.f32.mrf.mxu0
      %v6253 = vpop.f32.mrf.mxu0
      %v6254 = vadd.f32 0.0, %v6253
      %v6255 = vpop.f32.mrf.mxu0
      %6256 = vmatprep.mubr.bf16.mxu0 %v6146
      %6257 = vmatmul.mubr.bf16.gmra.mxu0 %v5563
      %v6258 = vpop.f32.mrf.mxu0
      %v6259 = vadd.f32 0.0, %v6258
      %v6260 = vpop.f32.mrf.mxu0
      %v6261 = vpop.f32.mrf.mxu0
      %v6262 = vadd.f32 0.0, %v6261
      %v6263 = vpop.f32.mrf.mxu0
      %6264 = vmatprep.mubr.bf16.mxu0 %v6149
      %6265 = vmatmul.mubr.bf16.gmra.mxu0 %v5565
      %v6266 = vpop.f32.mrf.mxu0
      %v6267 = vadd.f32 0.0, %v6266
      %v6268 = vpop.f32.mrf.mxu0
      %v6269 = vpop.f32.mrf.mxu0
      %v6270 = vadd.f32 0.0, %v6269
      %v6271 = vpop.f32.mrf.mxu0
      %6272 = vmatprep.mubr.bf16.mxu0 %v6152
      %6273 = vmatmul.mubr.bf16.gmra.mxu0 %v5567
      %v6274 = vpop.f32.mrf.mxu0
      %v6275 = vadd.f32 0.0, %v6274
      %v6276 = vpop.f32.mrf.mxu0
      %v6277 = vpop.f32.mrf.mxu0
      %v6278 = vadd.f32 0.0, %v6277
      %v6279 = vpop.f32.mrf.mxu0
      %6280 = vmatprep.mubr.bf16.mxu0 %v6155
      %6281 = vmatmul.mubr.bf16.gmra.mxu0 %v5569
      %v6282 = vpop.f32.mrf.mxu0
      %v6283 = vadd.f32 0.0, %v6282
      %v6284 = vpop.f32.mrf.mxu0
      %v6285 = vpop.f32.mrf.mxu0
      %v6286 = vadd.f32 0.0, %v6285
      %v6287 = vpop.f32.mrf.mxu0
      %6288 = vdwg.mxu0
      %6305 = vrot.lane.b32.xlu0 %v2854, 64
      %v6306 = vpop.permute.xlu0 %6305
      %6307 = vrot.lane.b32.xlu0 %v2855, 64
      %v6308 = vpop.permute.xlu0 %6307
      %6309 = vrot.lane.b32.xlu0 %v2856, 64
      %v6310 = vpop.permute.xlu0 %6309
      %6311 = vrot.lane.b32.xlu0 %v2857, 64
      %v6312 = vpop.permute.xlu0 %6311
      %6313 = vrot.lane.b32.xlu0 %v2858, 64
      %v6314 = vpop.permute.xlu0 %6313
      %6315 = vrot.lane.b32.xlu0 %v2859, 64
      %v6316 = vpop.permute.xlu0 %6315
      %6317 = vrot.lane.b32.xlu0 %v2860, 64
      %v6318 = vpop.permute.xlu0 %6317
      %6319 = vrot.lane.b32.xlu0 %v2861, 64
      %v6320 = vpop.permute.xlu0 %6319
      %6321 = vrot.lane.b32.xlu0 %v2862, 64
      %v6322 = vpop.permute.xlu0 %6321
      %6323 = vrot.lane.b32.xlu0 %v2863, 64
      %v6324 = vpop.permute.xlu0 %6323
      %6325 = vrot.lane.b32.xlu0 %v2864, 64
      %v6326 = vpop.permute.xlu0 %6325
      %6327 = vrot.lane.b32.xlu0 %v2865, 64
      %v6328 = vpop.permute.xlu0 %6327
      %6329 = vrot.lane.b32.xlu0 %v2866, 64
      %v6330 = vpop.permute.xlu0 %6329
      %6331 = vrot.lane.b32.xlu0 %v2867, 64
      %v6332 = vpop.permute.xlu0 %6331
      %6333 = vrot.lane.b32.xlu0 %v2868, 64
      %v6334 = vpop.permute.xlu0 %6333
      %6335 = vrot.lane.b32.xlu0 %v2869, 64
      %v6336 = vpop.permute.xlu0 %6335
      %v6353 = vsel %vm3866, %v5572, 0
      %v6356 = vsel %vm3866, %v5574, 0
      %v6359 = vsel %vm3866, %v5576, 0
      %v6362 = vsel %vm3866, %v5578, 0
      %v6365 = vsel %vm3866, %v5580, 0
      %v6368 = vsel %vm3866, %v5582, 0
      %v6371 = vsel %vm3866, %v5584, 0
      %v6374 = vsel %vm3866, %v5586, 0
      %v6377 = vsel %vm3866, %v5588, 0
      %v6380 = vsel %vm3866, %v5590, 0
      %v6383 = vsel %vm3866, %v5592, 0
      %v6386 = vsel %vm3866, %v5594, 0
      %v6389 = vsel %vm5694, %v6336, 0
      %6391 = vmatprep.subr.bf16.mxu0 0
      %6392 = vmatpush1.bf16.msra.mxu0 %v6320
      %6393 = vmatprep.subr.bf16.mxu0 0
      %6394 = vmatpush1.bf16.msra.mxu0 %v6318
      %6395 = vmatprep.subr.bf16.mxu0 0
      %6396 = vmatpush1.bf16.msra.mxu0 %v6316
      %6397 = vmatprep.subr.bf16.mxu0 0
      %6398 = vmatpush1.bf16.msra.mxu0 %v6314
      %6399 = vmatprep.subr.bf16.mxu0 0
      %6400 = vmatpush1.bf16.msra.mxu0 %v6312
      %6401 = vmatprep.subr.bf16.mxu0 0
      %6402 = vmatpush1.bf16.msra.mxu0 %v6310
      %6403 = vmatprep.subr.bf16.mxu0 0
      %6404 = vmatpush1.bf16.msra.mxu0 %v6308
      %6405 = vmatprep.subr.bf16.mxu0 0
      %6406 = vmatpush1.bf16.msra.mxu0 %v6306
      %6407 = vmatprep.subr.bf16.mxu0 0
      %6408 = vmatpush2.bf16.msra.mxu0 %v6389
      %6409 = vmatprep.subr.bf16.mxu0 0
      %6410 = vmatpush2.bf16.msra.mxu0 %v6334
      %6411 = vmatprep.subr.bf16.mxu0 0
      %6412 = vmatpush2.bf16.msra.mxu0 %v6332
      %6413 = vmatprep.subr.bf16.mxu0 0
      %6414 = vmatpush2.bf16.msra.mxu0 %v6330
      %6415 = vmatprep.subr.bf16.mxu0 0
      %6416 = vmatpush2.bf16.msra.mxu0 %v6328
      %6417 = vmatprep.subr.bf16.mxu0 0
      %6418 = vmatpush2.bf16.msra.mxu0 %v6326
      %6419 = vmatprep.subr.bf16.mxu0 0
      %6420 = vmatpush2.bf16.msra.mxu0 %v6324
      %6421 = vmatprep.subr.bf16.mxu0 0
      %6422 = vmatpush2.bf16.msra.mxu0 %v6322
      %6423 = vmatprep.mubr.bf16.mxu0 %v6353
      %6424 = vmatmul.mubr.bf16.gmra.mxu0 %v5571
      %v6425 = vpop.f32.mrf.mxu0
      %v6426 = vadd.f32 0.0, %v6425
      %v6427 = vpop.f32.mrf.mxu0
      %v6428 = vpop.f32.mrf.mxu0
      %v6429 = vadd.f32 0.0, %v6428
      %v6430 = vpop.f32.mrf.mxu0
      %6431 = vmatprep.mubr.bf16.mxu0 %v6356
      %6432 = vmatmul.mubr.bf16.gmra.mxu0 %v5573
      %v6433 = vpop.f32.mrf.mxu0
      %v6434 = vadd.f32 0.0, %v6433
      %v6435 = vpop.f32.mrf.mxu0
      %v6436 = vpop.f32.mrf.mxu0
      %v6437 = vadd.f32 0.0, %v6436
      %v6438 = vpop.f32.mrf.mxu0
      %6439 = vmatprep.mubr.bf16.mxu0 %v6359
      %6440 = vmatmul.mubr.bf16.gmra.mxu0 %v5575
      %v6441 = vpop.f32.mrf.mxu0
      %v6442 = vadd.f32 0.0, %v6441
      %v6443 = vpop.f32.mrf.mxu0
      %v6444 = vpop.f32.mrf.mxu0
      %v6445 = vadd.f32 0.0, %v6444
      %v6446 = vpop.f32.mrf.mxu0
      %6447 = vmatprep.mubr.bf16.mxu0 %v6362
      %6448 = vmatmul.mubr.bf16.gmra.mxu0 %v5577
      %v6449 = vpop.f32.mrf.mxu0
      %v6450 = vadd.f32 0.0, %v6449
      %v6451 = vpop.f32.mrf.mxu0
      %v6452 = vpop.f32.mrf.mxu0
      %v6453 = vadd.f32 0.0, %v6452
      %v6454 = vpop.f32.mrf.mxu0
      %6455 = vmatprep.mubr.bf16.mxu0 %v6365
      %6456 = vmatmul.mubr.bf16.gmra.mxu0 %v5579
      %v6457 = vpop.f32.mrf.mxu0
      %v6458 = vadd.f32 0.0, %v6457
      %v6459 = vpop.f32.mrf.mxu0
      %v6460 = vpop.f32.mrf.mxu0
      %v6461 = vadd.f32 0.0, %v6460
      %v6462 = vpop.f32.mrf.mxu0
      %6463 = vmatprep.mubr.bf16.mxu0 %v6368
      %6464 = vmatmul.mubr.bf16.gmra.mxu0 %v5581
      %v6465 = vpop.f32.mrf.mxu0
      %v6466 = vadd.f32 0.0, %v6465
      %v6467 = vpop.f32.mrf.mxu0
      %v6468 = vpop.f32.mrf.mxu0
      %v6469 = vadd.f32 0.0, %v6468
      %v6470 = vpop.f32.mrf.mxu0
      %6471 = vmatprep.mubr.bf16.mxu0 %v6371
      %6472 = vmatmul.mubr.bf16.gmra.mxu0 %v5583
      %v6473 = vpop.f32.mrf.mxu0
      %v6474 = vadd.f32 0.0, %v6473
      %v6475 = vpop.f32.mrf.mxu0
      %v6476 = vpop.f32.mrf.mxu0
      %v6477 = vadd.f32 0.0, %v6476
      %v6478 = vpop.f32.mrf.mxu0
      %6479 = vmatprep.mubr.bf16.mxu0 %v6374
      %6480 = vmatmul.mubr.bf16.gmra.mxu0 %v5585
      %v6481 = vpop.f32.mrf.mxu0
      %v6482 = vadd.f32 0.0, %v6481
      %v6483 = vpop.f32.mrf.mxu0
      %v6484 = vpop.f32.mrf.mxu0
      %v6485 = vadd.f32 0.0, %v6484
      %v6486 = vpop.f32.mrf.mxu0
      %6487 = vmatprep.mubr.bf16.mxu0 %v6377
      %6488 = vmatmul.mubr.bf16.gmra.mxu0 %v5587
      %v6489 = vpop.f32.mrf.mxu0
      %v6490 = vadd.f32 0.0, %v6489
      %v6491 = vpop.f32.mrf.mxu0
      %v6492 = vpop.f32.mrf.mxu0
      %v6493 = vadd.f32 0.0, %v6492
      %v6494 = vpop.f32.mrf.mxu0
      %6495 = vmatprep.mubr.bf16.mxu0 %v6380
      %6496 = vmatmul.mubr.bf16.gmra.mxu0 %v5589
      %v6497 = vpop.f32.mrf.mxu0
      %v6498 = vadd.f32 0.0, %v6497
      %v6499 = vpop.f32.mrf.mxu0
      %v6500 = vpop.f32.mrf.mxu0
      %v6501 = vadd.f32 0.0, %v6500
      %v6502 = vpop.f32.mrf.mxu0
      %6503 = vmatprep.mubr.bf16.mxu0 %v6383
      %6504 = vmatmul.mubr.bf16.gmra.mxu0 %v5591
      %v6505 = vpop.f32.mrf.mxu0
      %v6506 = vadd.f32 0.0, %v6505
      %v6507 = vpop.f32.mrf.mxu0
      %v6508 = vpop.f32.mrf.mxu0
      %v6509 = vadd.f32 0.0, %v6508
      %v6510 = vpop.f32.mrf.mxu0
      %6511 = vmatprep.mubr.bf16.mxu0 %v6386
      %6512 = vmatmul.mubr.bf16.gmra.mxu0 %v5593
      %v6513 = vpop.f32.mrf.mxu0
      %v6514 = vadd.f32 0.0, %v6513
      %v6515 = vpop.f32.mrf.mxu0
      %v6516 = vpop.f32.mrf.mxu0
      %v6517 = vadd.f32 0.0, %v6516
      %v6518 = vpop.f32.mrf.mxu0
      %6519 = vdwg.mxu0
      %v6520 = vld [vmem:[%s8] sm:$0xff]
      %v6521 = vld [vmem:[%s8 + $0x8] sm:$0xff]
      %v6522 = vld [vmem:[%s8 + $0x10] sm:$0xff]
      %v6523 = vld [vmem:[%s8 + $0x18] sm:$0xff]
      %v6524 = vld [vmem:[%s8 + $0x20] sm:$0xff]
      %v6525 = vld [vmem:[%s8 + $0x28] sm:$0xff]
      %v6526 = vld [vmem:[%s8 + $0x30] sm:$0xff]
      %v6527 = vld [vmem:[%s8 + $0x38] sm:$0xff]
      %v6528 = vld [vmem:[%s8 + $0x40] sm:$0xff]
      %v6529 = vld [vmem:[%s8 + $0x48] sm:$0xff]
      %v6530 = vld [vmem:[%s8 + $0x50] sm:$0xff]
      %v6531 = vld [vmem:[%s8 + $0x58] sm:$0xff]
      %v6532 = vld [vmem:[%s8 + $0x60] sm:$0xff]
      %v6533 = vld [vmem:[%s8 + $0x68] sm:$0xff]
      %v6534 = vld [vmem:[%s8 + $0x70] sm:$0xff]
      %v6535 = vld [vmem:[%s8 + $0x78] sm:$0xff]
      %v6536 = vld [vmem:[%s8 + $0x80] sm:$0xff]
      %v6537 = vld [vmem:[%s8 + $0x88] sm:$0xff]
      %v6538 = vld [vmem:[%s8 + $0x90] sm:$0xff]
      %v6539 = vld [vmem:[%s8 + $0x98] sm:$0xff]
      %v6540 = vld [vmem:[%s8 + $0xa0] sm:$0xff]
      %v6541 = vld [vmem:[%s8 + $0xa8] sm:$0xff]
      %v6542 = vld [vmem:[%s8 + $0xb0] sm:$0xff]
      %v6543 = vld [vmem:[%s8 + $0xb8] sm:$0xff]
      %v6544 = vmul.f32 %v5733, %v6520
      %v6545 = vmul.f32 %v5736, %v6521
      %v6546 = vmul.f32 %v5741, %v6522
      %v6547 = vmul.f32 %v5744, %v6523
      %v6548 = vmul.f32 %v5749, %v6524
      %v6549 = vmul.f32 %v5752, %v6525
      %v6550 = vmul.f32 %v5757, %v6526
      %v6551 = vmul.f32 %v5760, %v6527
      %v6552 = vmul.f32 %v5765, %v6528
      %v6553 = vmul.f32 %v5768, %v6529
      %v6554 = vmul.f32 %v5773, %v6530
      %v6555 = vmul.f32 %v5776, %v6531
      %v6556 = vmul.f32 %v5781, %v6532
      %v6557 = vmul.f32 %v5784, %v6533
      %v6558 = vmul.f32 %v5789, %v6534
      %v6559 = vmul.f32 %v5792, %v6535
      %v6560 = vmul.f32 %v5797, %v6536
      %v6561 = vmul.f32 %v5800, %v6537
      %v6562 = vmul.f32 %v5805, %v6538
      %v6563 = vmul.f32 %v5808, %v6539
      %v6564 = vmul.f32 %v5813, %v6540
      %v6565 = vmul.f32 %v5816, %v6541
      %v6566 = vmul.f32 %v5821, %v6542
      %v6567 = vmul.f32 %v5824, %v6543
      %v6568 = vmul.f32 %v5964, %v6520
      %v6569 = vmul.f32 %v5967, %v6521
      %v6570 = vmul.f32 %v5972, %v6522
      %v6571 = vmul.f32 %v5975, %v6523
      %v6572 = vmul.f32 %v5980, %v6524
      %v6573 = vmul.f32 %v5983, %v6525
      %v6574 = vmul.f32 %v5988, %v6526
      %v6575 = vmul.f32 %v5991, %v6527
      %v6576 = vmul.f32 %v5996, %v6528
      %v6577 = vmul.f32 %v5999, %v6529
      %v6578 = vmul.f32 %v6004, %v6530
      %v6579 = vmul.f32 %v6007, %v6531
      %v6580 = vmul.f32 %v6012, %v6532
      %v6581 = vmul.f32 %v6015, %v6533
      %v6582 = vmul.f32 %v6020, %v6534
      %v6583 = vmul.f32 %v6023, %v6535
      %v6584 = vmul.f32 %v6028, %v6536
      %v6585 = vmul.f32 %v6031, %v6537
      %v6586 = vmul.f32 %v6036, %v6538
      %v6587 = vmul.f32 %v6039, %v6539
      %v6588 = vmul.f32 %v6044, %v6540
      %v6589 = vmul.f32 %v6047, %v6541
      %v6590 = vmul.f32 %v6052, %v6542
      %v6591 = vmul.f32 %v6055, %v6543
      %v6592 = vmul.f32 %v6195, %v6520
      %v6593 = vmul.f32 %v6198, %v6521
      %v6594 = vmul.f32 %v6203, %v6522
      %v6595 = vmul.f32 %v6206, %v6523
      %v6596 = vmul.f32 %v6211, %v6524
      %v6597 = vmul.f32 %v6214, %v6525
      %v6598 = vmul.f32 %v6219, %v6526
      %v6599 = vmul.f32 %v6222, %v6527
      %v6600 = vmul.f32 %v6227, %v6528
      %v6601 = vmul.f32 %v6230, %v6529
      %v6602 = vmul.f32 %v6235, %v6530
      %v6603 = vmul.f32 %v6238, %v6531
      %v6604 = vmul.f32 %v6243, %v6532
      %v6605 = vmul.f32 %v6246, %v6533
      %v6606 = vmul.f32 %v6251, %v6534
      %v6607 = vmul.f32 %v6254, %v6535
      %v6608 = vmul.f32 %v6259, %v6536
      %v6609 = vmul.f32 %v6262, %v6537
      %v6610 = vmul.f32 %v6267, %v6538
      %v6611 = vmul.f32 %v6270, %v6539
      %v6612 = vmul.f32 %v6275, %v6540
      %v6613 = vmul.f32 %v6278, %v6541
      %v6614 = vmul.f32 %v6283, %v6542
      %v6615 = vmul.f32 %v6286, %v6543
      %v6616 = vmul.f32 %v6426, %v6520
      %v6617 = vmul.f32 %v6429, %v6521
      %v6618 = vmul.f32 %v6434, %v6522
      %v6619 = vmul.f32 %v6437, %v6523
      %v6620 = vmul.f32 %v6442, %v6524
      %v6621 = vmul.f32 %v6445, %v6525
      %v6622 = vmul.f32 %v6450, %v6526
      %v6623 = vmul.f32 %v6453, %v6527
      %v6624 = vmul.f32 %v6458, %v6528
      %v6625 = vmul.f32 %v6461, %v6529
      %v6626 = vmul.f32 %v6466, %v6530
      %v6627 = vmul.f32 %v6469, %v6531
      %v6628 = vmul.f32 %v6474, %v6532
      %v6629 = vmul.f32 %v6477, %v6533
      %v6630 = vmul.f32 %v6482, %v6534
      %v6631 = vmul.f32 %v6485, %v6535
      %v6632 = vmul.f32 %v6490, %v6536
      %v6633 = vmul.f32 %v6493, %v6537
      %v6634 = vmul.f32 %v6498, %v6538
      %v6635 = vmul.f32 %v6501, %v6539
      %v6636 = vmul.f32 %v6506, %v6540
      %v6637 = vmul.f32 %v6509, %v6541
      %v6638 = vmul.f32 %v6514, %v6542
      %v6639 = vmul.f32 %v6517, %v6543
      %v6640 = vld [vmem:[%s9] sm:$0xff]
      %v6641 = vld [vmem:[%s9 + $0x8] sm:$0xff]
      %v6642 = vld [vmem:[%s9 + $0x10] sm:$0xff]
      %v6643 = vld [vmem:[%s9 + $0x18] sm:$0xff]
      %v6644 = vld [vmem:[%s9 + $0x20] sm:$0xff]
      %v6645 = vld [vmem:[%s9 + $0x28] sm:$0xff]
      %v6646 = vld [vmem:[%s9 + $0x30] sm:$0xff]
      %v6647 = vld [vmem:[%s9 + $0x38] sm:$0xff]
      %v6648 = vld [vmem:[%s9 + $0x40] sm:$0xff]
      %v6649 = vld [vmem:[%s9 + $0x48] sm:$0xff]
      %v6650 = vld [vmem:[%s9 + $0x50] sm:$0xff]
      %v6651 = vld [vmem:[%s9 + $0x58] sm:$0xff]
      %v6652 = vld [vmem:[%s9 + $0x60] sm:$0xff]
      %v6653 = vld [vmem:[%s9 + $0x68] sm:$0xff]
      %v6654 = vld [vmem:[%s9 + $0x70] sm:$0xff]
      %v6655 = vld [vmem:[%s9 + $0x78] sm:$0xff]
      %v6656 = vld [vmem:[%s9 + $0x80] sm:$0xff]
      %v6657 = vld [vmem:[%s9 + $0x88] sm:$0xff]
      %v6658 = vld [vmem:[%s9 + $0x90] sm:$0xff]
      %v6659 = vld [vmem:[%s9 + $0x98] sm:$0xff]
      %v6660 = vld [vmem:[%s9 + $0xa0] sm:$0xff]
      %v6661 = vld [vmem:[%s9 + $0xa8] sm:$0xff]
      %v6662 = vld [vmem:[%s9 + $0xb0] sm:$0xff]
      %v6663 = vld [vmem:[%s9 + $0xb8] sm:$0xff]
      %v6664 = vadd.f32 %v6544, %v6640
      %v6665 = vadd.f32 %v6545, %v6641
      %v6666 = vadd.f32 %v6546, %v6642
      %v6667 = vadd.f32 %v6547, %v6643
      %v6668 = vadd.f32 %v6548, %v6644
      %v6669 = vadd.f32 %v6549, %v6645
      %v6670 = vadd.f32 %v6550, %v6646
      %v6671 = vadd.f32 %v6551, %v6647
      %v6672 = vadd.f32 %v6552, %v6648
      %v6673 = vadd.f32 %v6553, %v6649
      %v6674 = vadd.f32 %v6554, %v6650
      %v6675 = vadd.f32 %v6555, %v6651
      %v6676 = vadd.f32 %v6556, %v6652
      %v6677 = vadd.f32 %v6557, %v6653
      %v6678 = vadd.f32 %v6558, %v6654
      %v6679 = vadd.f32 %v6559, %v6655
      %v6680 = vadd.f32 %v6560, %v6656
      %v6681 = vadd.f32 %v6561, %v6657
      %v6682 = vadd.f32 %v6562, %v6658
      %v6683 = vadd.f32 %v6563, %v6659
      %v6684 = vadd.f32 %v6564, %v6660
      %v6685 = vadd.f32 %v6565, %v6661
      %v6686 = vadd.f32 %v6566, %v6662
      %v6687 = vadd.f32 %v6567, %v6663
      %v6688 = vadd.f32 %v6568, %v6640
      %v6689 = vadd.f32 %v6569, %v6641
      %v6690 = vadd.f32 %v6570, %v6642
      %v6691 = vadd.f32 %v6571, %v6643
      %v6692 = vadd.f32 %v6572, %v6644
      %v6693 = vadd.f32 %v6573, %v6645
      %v6694 = vadd.f32 %v6574, %v6646
      %v6695 = vadd.f32 %v6575, %v6647
      %v6696 = vadd.f32 %v6576, %v6648
      %v6697 = vadd.f32 %v6577, %v6649
      %v6698 = vadd.f32 %v6578, %v6650
      %v6699 = vadd.f32 %v6579, %v6651
      %v6700 = vadd.f32 %v6580, %v6652
      %v6701 = vadd.f32 %v6581, %v6653
      %v6702 = vadd.f32 %v6582, %v6654
      %v6703 = vadd.f32 %v6583, %v6655
      %v6704 = vadd.f32 %v6584, %v6656
      %v6705 = vadd.f32 %v6585, %v6657
      %v6706 = vadd.f32 %v6586, %v6658
      %v6707 = vadd.f32 %v6587, %v6659
      %v6708 = vadd.f32 %v6588, %v6660
      %v6709 = vadd.f32 %v6589, %v6661
      %v6710 = vadd.f32 %v6590, %v6662
      %v6711 = vadd.f32 %v6591, %v6663
      %v6712 = vadd.f32 %v6592, %v6640
      %v6713 = vadd.f32 %v6593, %v6641
      %v6714 = vadd.f32 %v6594, %v6642
      %v6715 = vadd.f32 %v6595, %v6643
      %v6716 = vadd.f32 %v6596, %v6644
      %v6717 = vadd.f32 %v6597, %v6645
      %v6718 = vadd.f32 %v6598, %v6646
      %v6719 = vadd.f32 %v6599, %v6647
      %v6720 = vadd.f32 %v6600, %v6648
      %v6721 = vadd.f32 %v6601, %v6649
      %v6722 = vadd.f32 %v6602, %v6650
      %v6723 = vadd.f32 %v6603, %v6651
      %v6724 = vadd.f32 %v6604, %v6652
      %v6725 = vadd.f32 %v6605, %v6653
      %v6726 = vadd.f32 %v6606, %v6654
      %v6727 = vadd.f32 %v6607, %v6655
      %v6728 = vadd.f32 %v6608, %v6656
      %v6729 = vadd.f32 %v6609, %v6657
      %v6730 = vadd.f32 %v6610, %v6658
      %v6731 = vadd.f32 %v6611, %v6659
      %v6732 = vadd.f32 %v6612, %v6660
      %v6733 = vadd.f32 %v6613, %v6661
      %v6734 = vadd.f32 %v6614, %v6662
      %v6735 = vadd.f32 %v6615, %v6663
      %v6736 = vadd.f32 %v6616, %v6640
      %v6737 = vadd.f32 %v6617, %v6641
      %v6738 = vadd.f32 %v6618, %v6642
      %v6739 = vadd.f32 %v6619, %v6643
      %v6740 = vadd.f32 %v6620, %v6644
      %v6741 = vadd.f32 %v6621, %v6645
      %v6742 = vadd.f32 %v6622, %v6646
      %v6743 = vadd.f32 %v6623, %v6647
      %v6744 = vadd.f32 %v6624, %v6648
      %v6745 = vadd.f32 %v6625, %v6649
      %v6746 = vadd.f32 %v6626, %v6650
      %v6747 = vadd.f32 %v6627, %v6651
      %v6748 = vadd.f32 %v6628, %v6652
      %v6749 = vadd.f32 %v6629, %v6653
      %v6750 = vadd.f32 %v6630, %v6654
      %v6751 = vadd.f32 %v6631, %v6655
      %v6752 = vadd.f32 %v6632, %v6656
      %v6753 = vadd.f32 %v6633, %v6657
      %v6754 = vadd.f32 %v6634, %v6658
      %v6755 = vadd.f32 %v6635, %v6659
      %v6756 = vadd.f32 %v6636, %v6660
      %v6757 = vadd.f32 %v6637, %v6661
      %v6758 = vadd.f32 %v6638, %v6662
      %v6759 = vadd.f32 %v6639, %v6663
      %6760 = vst.msk [vmem:[%s429] sm:$0xff] %vm1288, %v6664
      %6761 = vst.msk [vmem:[%s429 + $0x8] sm:$0xff] %vm1288, %v6665
      %6762 = vst.msk [vmem:[%s429 + $0x10] sm:$0xff] %vm1288, %v6666
      %6763 = vst.msk [vmem:[%s429 + $0x18] sm:$0xff] %vm1288, %v6667
      %6764 = vst.msk [vmem:[%s429 + $0x20] sm:$0xff] %vm1288, %v6668
      %6765 = vst.msk [vmem:[%s429 + $0x28] sm:$0xff] %vm1288, %v6669
      %6766 = vst.msk [vmem:[%s429 + $0x30] sm:$0xff] %vm1288, %v6670
      %6767 = vst.msk [vmem:[%s429 + $0x38] sm:$0xff] %vm1288, %v6671
      %6768 = vst.msk [vmem:[%s429 + $0x40] sm:$0xff] %vm1288, %v6672
      %6769 = vst.msk [vmem:[%s429 + $0x48] sm:$0xff] %vm1288, %v6673
      %6770 = vst.msk [vmem:[%s429 + $0x50] sm:$0xff] %vm1288, %v6674
      %6771 = vst.msk [vmem:[%s429 + $0x58] sm:$0xff] %vm1288, %v6675
      %6772 = vst.msk [vmem:[%s429 + $0x60] sm:$0xff] %vm1288, %v6676
      %6773 = vst.msk [vmem:[%s429 + $0x68] sm:$0xff] %vm1288, %v6677
      %6774 = vst.msk [vmem:[%s429 + $0x70] sm:$0xff] %vm1288, %v6678
      %6775 = vst.msk [vmem:[%s429 + $0x78] sm:$0xff] %vm1288, %v6679
      %6776 = vst.msk [vmem:[%s429 + $0x80] sm:$0xff] %vm1288, %v6680
      %6777 = vst.msk [vmem:[%s429 + $0x88] sm:$0xff] %vm1288, %v6681
      %6778 = vst.msk [vmem:[%s429 + $0x90] sm:$0xff] %vm1288, %v6682
      %6779 = vst.msk [vmem:[%s429 + $0x98] sm:$0xff] %vm1288, %v6683
      %6780 = vst.msk [vmem:[%s429 + $0xa0] sm:$0xff] %vm1288, %v6684
      %6781 = vst.msk [vmem:[%s429 + $0xa8] sm:$0xff] %vm1288, %v6685
      %6782 = vst.msk [vmem:[%s429 + $0xb0] sm:$0xff] %vm1288, %v6686
      %6783 = vst.msk [vmem:[%s429 + $0xb8] sm:$0xff] %vm1288, %v6687
      %6784 = vst.msk [vmem:[%s429 + $0xc0] sm:$0xff] %vm1288, %v6688
      %6785 = vst.msk [vmem:[%s429 + $0xc8] sm:$0xff] %vm1288, %v6689
      %6786 = vst.msk [vmem:[%s429 + $0xd0] sm:$0xff] %vm1288, %v6690
      %6787 = vst.msk [vmem:[%s429 + $0xd8] sm:$0xff] %vm1288, %v6691
      %6788 = vst.msk [vmem:[%s429 + $0xe0] sm:$0xff] %vm1288, %v6692
      %6789 = vst.msk [vmem:[%s429 + $0xe8] sm:$0xff] %vm1288, %v6693
      %6790 = vst.msk [vmem:[%s429 + $0xf0] sm:$0xff] %vm1288, %v6694
      %6791 = vst.msk [vmem:[%s429 + $0xf8] sm:$0xff] %vm1288, %v6695
      %6792 = vst.msk [vmem:[%s429 + $0x100] sm:$0xff] %vm1288, %v6696
      %6793 = vst.msk [vmem:[%s429 + $0x108] sm:$0xff] %vm1288, %v6697
      %6794 = vst.msk [vmem:[%s429 + $0x110] sm:$0xff] %vm1288, %v6698
      %6795 = vst.msk [vmem:[%s429 + $0x118] sm:$0xff] %vm1288, %v6699
      %6796 = vst.msk [vmem:[%s429 + $0x120] sm:$0xff] %vm1288, %v6700
      %6797 = vst.msk [vmem:[%s429 + $0x128] sm:$0xff] %vm1288, %v6701
      %6798 = vst.msk [vmem:[%s429 + $0x130] sm:$0xff] %vm1288, %v6702
      %6799 = vst.msk [vmem:[%s429 + $0x138] sm:$0xff] %vm1288, %v6703
      %6800 = vst.msk [vmem:[%s429 + $0x140] sm:$0xff] %vm1288, %v6704
      %6801 = vst.msk [vmem:[%s429 + $0x148] sm:$0xff] %vm1288, %v6705
      %6802 = vst.msk [vmem:[%s429 + $0x150] sm:$0xff] %vm1288, %v6706
      %6803 = vst.msk [vmem:[%s429 + $0x158] sm:$0xff] %vm1288, %v6707
      %6804 = vst.msk [vmem:[%s429 + $0x160] sm:$0xff] %vm1288, %v6708
      %6805 = vst.msk [vmem:[%s429 + $0x168] sm:$0xff] %vm1288, %v6709
      %6806 = vst.msk [vmem:[%s429 + $0x170] sm:$0xff] %vm1288, %v6710
      %6807 = vst.msk [vmem:[%s429 + $0x178] sm:$0xff] %vm1288, %v6711
      %6808 = vst.msk [vmem:[%s429 + $0x180] sm:$0xff] %vm1288, %v6712
      %6809 = vst.msk [vmem:[%s429 + $0x188] sm:$0xff] %vm1288, %v6713
      %6810 = vst.msk [vmem:[%s429 + $0x190] sm:$0xff] %vm1288, %v6714
      %6811 = vst.msk [vmem:[%s429 + $0x198] sm:$0xff] %vm1288, %v6715
      %6812 = vst.msk [vmem:[%s429 + $0x1a0] sm:$0xff] %vm1288, %v6716
      %6813 = vst.msk [vmem:[%s429 + $0x1a8] sm:$0xff] %vm1288, %v6717
      %6814 = vst.msk [vmem:[%s429 + $0x1b0] sm:$0xff] %vm1288, %v6718
      %6815 = vst.msk [vmem:[%s429 + $0x1b8] sm:$0xff] %vm1288, %v6719
      %6816 = vst.msk [vmem:[%s429 + $0x1c0] sm:$0xff] %vm1288, %v6720
      %6817 = vst.msk [vmem:[%s429 + $0x1c8] sm:$0xff] %vm1288, %v6721
      %6818 = vst.msk [vmem:[%s429 + $0x1d0] sm:$0xff] %vm1288, %v6722
      %6819 = vst.msk [vmem:[%s429 + $0x1d8] sm:$0xff] %vm1288, %v6723
      %6820 = vst.msk [vmem:[%s429 + $0x1e0] sm:$0xff] %vm1288, %v6724
      %6821 = vst.msk [vmem:[%s429 + $0x1e8] sm:$0xff] %vm1288, %v6725
      %6822 = vst.msk [vmem:[%s429 + $0x1f0] sm:$0xff] %vm1288, %v6726
      %6823 = vst.msk [vmem:[%s429 + $0x1f8] sm:$0xff] %vm1288, %v6727
      %6824 = vst.msk [vmem:[%s429 + $0x200] sm:$0xff] %vm1288, %v6728
      %6825 = vst.msk [vmem:[%s429 + $0x208] sm:$0xff] %vm1288, %v6729
      %6826 = vst.msk [vmem:[%s429 + $0x210] sm:$0xff] %vm1288, %v6730
      %6827 = vst.msk [vmem:[%s429 + $0x218] sm:$0xff] %vm1288, %v6731
      %6828 = vst.msk [vmem:[%s429 + $0x220] sm:$0xff] %vm1288, %v6732
      %6829 = vst.msk [vmem:[%s429 + $0x228] sm:$0xff] %vm1288, %v6733
      %6830 = vst.msk [vmem:[%s429 + $0x230] sm:$0xff] %vm1288, %v6734
      %6831 = vst.msk [vmem:[%s429 + $0x238] sm:$0xff] %vm1288, %v6735
      %6832 = vst.msk [vmem:[%s429 + $0x240] sm:$0xff] %vm1288, %v6736
      %6833 = vst.msk [vmem:[%s429 + $0x248] sm:$0xff] %vm1288, %v6737
      %6834 = vst.msk [vmem:[%s429 + $0x250] sm:$0xff] %vm1288, %v6738
      %6835 = vst.msk [vmem:[%s429 + $0x258] sm:$0xff] %vm1288, %v6739
      %6836 = vst.msk [vmem:[%s429 + $0x260] sm:$0xff] %vm1288, %v6740
      %6837 = vst.msk [vmem:[%s429 + $0x268] sm:$0xff] %vm1288, %v6741
      %6838 = vst.msk [vmem:[%s429 + $0x270] sm:$0xff] %vm1288, %v6742
      %6839 = vst.msk [vmem:[%s429 + $0x278] sm:$0xff] %vm1288, %v6743
      %6840 = vst.msk [vmem:[%s429 + $0x280] sm:$0xff] %vm1288, %v6744
      %6841 = vst.msk [vmem:[%s429 + $0x288] sm:$0xff] %vm1288, %v6745
      %6842 = vst.msk [vmem:[%s429 + $0x290] sm:$0xff] %vm1288, %v6746
      %6843 = vst.msk [vmem:[%s429 + $0x298] sm:$0xff] %vm1288, %v6747
      %6844 = vst.msk [vmem:[%s429 + $0x2a0] sm:$0xff] %vm1288, %v6748
      %6845 = vst.msk [vmem:[%s429 + $0x2a8] sm:$0xff] %vm1288, %v6749
      %6846 = vst.msk [vmem:[%s429 + $0x2b0] sm:$0xff] %vm1288, %v6750
      %6847 = vst.msk [vmem:[%s429 + $0x2b8] sm:$0xff] %vm1288, %v6751
      %6848 = vst.msk [vmem:[%s429 + $0x2c0] sm:$0xff] %vm1288, %v6752
      %6849 = vst.msk [vmem:[%s429 + $0x2c8] sm:$0xff] %vm1288, %v6753
      %6850 = vst.msk [vmem:[%s429 + $0x2d0] sm:$0xff] %vm1288, %v6754
      %6851 = vst.msk [vmem:[%s429 + $0x2d8] sm:$0xff] %vm1288, %v6755
      %6852 = vst.msk [vmem:[%s429 + $0x2e0] sm:$0xff] %vm1288, %v6756
      %6853 = vst.msk [vmem:[%s429 + $0x2e8] sm:$0xff] %vm1288, %v6757
      %6854 = vst.msk [vmem:[%s429 + $0x2f0] sm:$0xff] %vm1288, %v6758
      %6855 = vst.msk [vmem:[%s429 + $0x2f8] sm:$0xff] %vm1288, %v6759
      %s6856 = smul.u32 4, %s21
      %p6857 = scmp.lt.s32.totalorder %s6856, 7
      %s6858 = scalar_select %p6857, %s6856, 7
      %s6859 = smul.addr %s6858, 24
      %s6860 = smul.addr %s6859, 8
      %s6861 = scalar_lea.vmem %s10, %s6860
      // Predicated region
      $region61: #{anchor_vec_fmap_attention.1} parent=59 // pred_check
        %p6862 = pneg %p269
      $region62: #{anchor_vec_fmap_attention.1} parent=59 // pred_check_branch
        %6864 = sbr.rel (%p6862) target = $region64
      $region63: #{anchor_vec_fmap_attention.1} parent=59 // pred_region
        %s6865 = smul.u32 4, %s21
      $region64: #{anchor_vec_fmap_attention.1} parent=59 // pred_fallthru
        _
    $region60: #{anchor_vec_fmap_attention.1} parent=5 // pred_fallthru
      _
    %p6866 = scmp.le.s32.totalorder 2, %s16
    // Predicated region
    $region65: #{anchor_vec_fmap_attention.1} parent=5 // pred_check
      %p6867 = pneg %p6866
    $region66: #{anchor_vec_fmap_attention.1} parent=5 // pred_check_branch
      %6869 = sbr.rel (%p6867) target = $region68
    $region67: #{anchor_vec_fmap_attention.1} parent=5 // pred_region
      %s6870 = ssub.s32 %s16, 2
      // Predicated region
      $region69: #{anchor_vec_fmap_attention.1} parent=67 // pred_check
        %p6871 = pneg %p275
      $region70: #{anchor_vec_fmap_attention.1} parent=67 // pred_check_branch
        %6873 = sbr.rel (%p6871) target = $region72
      $region71: #{anchor_vec_fmap_attention.1} parent=67 // pred_region
        %s6874 = smul.u32 4, %s22
        %p6875 = scmp.lt.s32.totalorder %s6874, 7
        %s6876 = scalar_select %p6875, %s6874, 7
        %s6877 = smul.addr %s6876, 24
        %s6878 = smul.addr %s6877, 8
        %s6879 = scalar_lea.vmem %s10, %s6878
      $region72: #{anchor_vec_fmap_attention.1} parent=67 // pred_fallthru
        _
    $region68: #{anchor_vec_fmap_attention.1} parent=5 // pred_fallthru
      _
  $region6: #{anchor_vec_fmap_attention.1} parent=0 // loop_footer
    %s20 = sadd.s32 1, %s16
  $region7: #{anchor_vec_fmap_attention.1} parent=0 // loop_footer_branch
    %15 = sbr.rel target = $region3
  $region8: #{anchor_vec_fmap_attention.1} parent=0 // loop_exit
    _

</llo_original>
